<compile_context>
chip_gen: v6e
topology: v6e:2x2x1
jax: 0.10.0
libtpu: 0.0.40
codegen_flags: <defaults>
</compile_context>

<pallas_src>
import jax
import jax.numpy as jnp
import numpy as np
from jax.experimental import pallas as pl
from jax.experimental.pallas import tpu as pltpu


# -----------------------------------------------------------------------------
# helpers mirroring the PyTorch module's size arithmetic
# -----------------------------------------------------------------------------
def get_conv_mp_out_size(in_size, last_layer, mps):
    size = in_size
    for mp in mps:
        size = round((size - mp["kernel_size"]) / mp["stride"] + 1)
    size = size + 1 if size % 2 != 0 else size
    return int(size * last_layer["out_channels"])


def _conv_len(L, K, P):
    return L + 2 * P - K + 1


def _mp_len(L, K, S):
    return (L - K) // S + 1


# -----------------------------------------------------------------------------
# wrapper-side constant builders (plain JAX, run once)
# -----------------------------------------------------------------------------
def _gather_matrix(l_in, l_out, stride, offset):
    """M[i, t] = 1 iff i == t*stride + offset (out-of-range taps -> all-zero column)."""
    i = jnp.arange(l_in)[:, None]
    t = jnp.arange(l_out)[None, :]
    return (i == t * stride + offset).astype(jnp.float32)


def _branch_block_diag(a, b):
    """[[a, 0], [0, b]]: fuses the Z / Y readout branches into one column slab."""
    ra, ca = a.shape
    rb, cb = b.shape
    top = jnp.concatenate([a, jnp.zeros((ra, cb), a.dtype)], axis=1)
    bot = jnp.concatenate([jnp.zeros((rb, ca), b.dtype), b], axis=1)
    return jnp.concatenate([top, bot], axis=0)


def _graph_block_diag(mat, g):
    """Tile an [a, b] matrix into a [g*a, g*b] block-diagonal (vectorized)."""
    a, b = mat.shape
    return jnp.einsum("ij,gh->gihj", mat, jnp.eye(g, dtype=mat.dtype)).reshape(g * a, g * b)


def build_kernel_params(cfg, raw):
    """Precompute kernel-ready constants (per graph-chunk of GB graphs)."""
    GB, N, EMB, C = cfg["GB"], cfg["N"], cfg["EMB"], cfg["C"]
    c1a, c2a = cfg["conv1d_1"], cfg["conv1d_2"]
    m1a, m2a = cfg["maxpool1d_1"], cfg["maxpool1d_2"]
    O1, K1, P1 = c1a["out_channels"], c1a["kernel_size"], c1a["padding"]
    O2, K2, P2 = c2a["out_channels"], c2a["kernel_size"], c2a["padding"]
    MK1, MS1 = m1a["kernel_size"], m1a["stride"]
    MK2, MS2 = m2a["kernel_size"], m2a["stride"]
    assert c1a["in_channels"] == N and c2a["in_channels"] == O1
    # conv1d_2 padding is folded into the maxpool1d_2 selectors (zero candidate column,
    # uniform bias added after the max) -- only valid because K2 == 1.
    assert K2 == 1
    assert C <= 128 and EMB <= 128

    bf16, f32 = jnp.bfloat16, jnp.float32
    LANE = 128

    # conv/pool length arithmetic for both branches (Z uses C+EMB, Y uses C)
    lz_in, ly_in = C + EMB, C
    lz_c1, ly_c1 = _conv_len(lz_in, K1, P1), _conv_len(ly_in, K1, P1)
    lz_m1, ly_m1 = _mp_len(lz_c1, MK1, MS1), _mp_len(ly_c1, MK1, MS1)
    lz = _mp_len(_conv_len(lz_m1, K2, P2), MK2, MS2)
    ly = _mp_len(_conv_len(ly_m1, K2, P2), MK2, MS2)

    # GRU gate weights fused into one matrix per direction; each gate (r | z | n)
    # padded to its own 128-lane block so in-kernel extraction is vreg-block aligned.
    wih, whh, bih, bhh = raw["wih"], raw["whh"], raw["bih"], raw["bhh"]
    wih_all = jnp.zeros((C, 3 * LANE), f32)
    whh_all = jnp.zeros((C, 3 * LANE), f32)
    for g in range(3):
        wih_all = wih_all.at[:, g * LANE:g * LANE + C].set(wih[g * C:(g + 1) * C].T)
        whh_all = whh_all.at[:, g * LANE:g * LANE + C].set(whh[g * C:(g + 1) * C].T)

    # fused [hidden | x | hidden] readout input slab via embedding matmuls (no lane concat)
    w_in = lz_in + ly_in
    eh = (jnp.eye(C, w_in, dtype=f32) + jnp.eye(C, w_in, k=lz_in, dtype=f32)).astype(bf16)
    ex = jnp.eye(EMB, w_in, k=C, dtype=f32).astype(bf16)

    # per-tap conv / pool / mp2 selectors with the two branches' columns side by side
    s_comb = jnp.stack([_branch_block_diag(_gather_matrix(lz_in, lz_c1, 1, k - P1),
                                           _gather_matrix(ly_in, ly_c1, 1, k - P1))
                        for k in range(K1)])
    p_comb = jnp.stack([_branch_block_diag(_gather_matrix(lz_c1, lz_m1, MS1, k),
                                           _gather_matrix(ly_c1, ly_m1, MS1, k))
                        for k in range(MK1)])
    r_comb = jnp.stack([_branch_block_diag(_gather_matrix(lz_m1, lz, MS2, k - P2),
                                           _gather_matrix(ly_m1, ly, MS2, k - P2))
                        for k in range(MK2)])

    # combined fc weights: wfc1 on the Z columns, wfc2 on the Y columns, tiled per graph
    wfc1c = jnp.concatenate([raw["wfc1"].reshape(O2, lz), jnp.zeros((O2, ly), f32)], axis=1)
    wfc2c = jnp.concatenate([jnp.zeros((O2, lz), f32), raw["wfc2"].reshape(O2, ly)], axis=1)

    kp = dict(
        wl=raw["w_ggc"].astype(bf16),
        wih_all=wih_all.astype(bf16), whh_all=whh_all.astype(bf16),
        b_r=(bih[0:C] + bhh[0:C]).reshape(1, C),
        b_z=(bih[C:2 * C] + bhh[C:2 * C]).reshape(1, C),
        b_in=bih[2 * C:3 * C].reshape(1, C),
        b_hn=bhh[2 * C:3 * C].reshape(1, C),
        eh=eh, ex=ex,
        bdw1=jnp.stack([_graph_block_diag(raw["w1"][:, :, k], GB)
                        for k in range(K1)]).astype(bf16),
        b1t=jnp.tile(raw["b1"].reshape(O1, 1), (GB, 1)),
        s=s_comb.astype(bf16), p=p_comb.astype(bf16), r=r_comb.astype(bf16),
        bdw2=_graph_block_diag(raw["w2"][:, :, 0], GB).astype(bf16),
        b2t=jnp.tile(raw["b2"].reshape(O2, 1), (GB, 1)),
        wfc1=jnp.tile(wfc1c, (GB, 1)),
        wfc2=jnp.tile(wfc2c, (GB, 1)),
        selg=jnp.repeat(jnp.eye(GB, dtype=f32), O2, axis=1).astype(bf16),
        bfc1=raw["bfc1"].reshape(1, 1),
        bfc2=raw["bfc2"].reshape(1, 1),
    )
    return kp


# -----------------------------------------------------------------------------
# The fused kernel: one graph chunk (GB graphs, GB*N rows) per grid step.
# -----------------------------------------------------------------------------
def net_kernel(h0_ref, x0_ref, adj_ref,
               wl_ref, wih_ref, whh_ref, br_ref, bz_ref, bin_ref, bhn_ref,
               eh_ref, ex_ref,
               bdw1_ref, b1t_ref, s_ref, p_ref,
               bdw2_ref, b2t_ref, r_ref,
               wfc1_ref, wfc2_ref, selg_ref, bfc1_ref, bfc2_ref,
               out_ref):
    f32, bf16 = jnp.float32, jnp.bfloat16
    C = h0_ref.shape[1]
    LANE = wih_ref.shape[1] // 3          # each GRU gate lives in its own 128-lane block

    def mm(a, b):                         # bf16 MXU operands, f32 accumulation
        return jnp.dot(a, b, preferred_element_type=f32)

    adj = adj_ref[...]                    # [R, R] bf16 (block-diag within the chunk)
    h = h0_ref[...]                       # [R, C] f32 (kept f32 for the GRU elementwise path)
    wih_all, whh_all = wih_ref[...], whh_ref[...]
    b_r, b_z, b_in, b_hn = br_ref[...], bz_ref[...], bin_ref[...], bhn_ref[...]

    # ---------------- GatedGraphConv (num_layers is small & static -> unrolled) ----------------
    # TODO(synk): switch to lax.fori_loop if num_layers grows well beyond 3 (vreg live ranges).
    for l in range(wl_ref.shape[0]):
        hb = h.astype(bf16)
        m = mm(hb, wl_ref[l])                              # h @ W_l
        agg = mm(adj, m.astype(bf16))                      # add-aggregation over edges
        gi = mm(agg.astype(bf16), wih_all)                 # [R, 3*LANE] fused gate matmul
        gh = mm(hb, whh_all)                               # [R, 3*LANE]
        r = jax.nn.sigmoid(gi[:, 0:C] + gh[:, 0:C] + b_r)
        z = jax.nn.sigmoid(gi[:, LANE:LANE + C] + gh[:, LANE:LANE + C] + b_z)
        n = jnp.tanh(gi[:, 2 * LANE:2 * LANE + C] + b_in
                     + r * (gh[:, 2 * LANE:2 * LANE + C] + b_hn))
        h = (1.0 - z) * n + z * h

    # ---------------- fused Z|Y readout head (all graphs of the chunk batched) ----------------
    hb = h.astype(bf16)
    # [hidden | x] (Z branch) and [hidden] (Y branch) as one lane slab via embedding matmuls
    xzy = (mm(hb, eh_ref[...]) + mm(x0_ref[...], ex_ref[...])).astype(bf16)

    # conv1d_1 (K taps, pad P1): block-diag weights x shift selectors, bias broadcast
    c1 = b1t_ref[...]                                      # [GB*O1, 1] f32
    for k in range(bdw1_ref.shape[0]):
        shifted = mm(xzy, s_ref[k]).astype(bf16)           # exact 0/1 column selection
        c1 = c1 + mm(bdw1_ref[k], shifted)
    r1 = jnp.maximum(c1, 0.0).astype(bf16)                 # ReLU

    # maxpool1d_1: column-selection matmuls + elementwise max (tiny vs. GRU aggregation)
    mp1 = mm(r1, p_ref[0])
    for k in range(1, p_ref.shape[0]):
        mp1 = jnp.maximum(mp1, mm(r1, p_ref[k]))

    # conv1d_2 (k=1) + maxpool1d_2 with the conv padding folded into the selectors;
    # bias added after the max (uniform across candidates, requires K2 == 1).
    c2 = mm(bdw2_ref[...], mp1.astype(bf16)).astype(bf16)
    mp2 = mm(c2, r_ref[0])
    for k in range(1, r_ref.shape[0]):
        mp2 = jnp.maximum(mp2, mm(c2, r_ref[k]))
    feat = mp2 + b2t_ref[...]                              # [GB*O2, Lz+Ly] f32

    # fc1(Z) * fc2(Y) -> sigmoid, one score per graph of the chunk
    s1 = jnp.sum(mm(selg_ref[...], (feat * wfc1_ref[...]).astype(bf16)),
                 axis=1, keepdims=True) + bfc1_ref[...]
    s2 = jnp.sum(mm(selg_ref[...], (feat * wfc2_ref[...]).astype(bf16)),
                 axis=1, keepdims=True) + bfc2_ref[...]
    # TODO(synk): nn.Dropout(p=0.2) modeled as identity (inference mode).
    out_ref[...] = jax.nn.sigmoid(s1 * s2)                 # [GB, 1]


def _resident_spec(a):
    """Full-array block with a constant index map -> stays VMEM-resident across steps."""
    n = a.ndim
    return pl.BlockSpec(a.shape, lambda i, n=n: (0,) * n)


# -----------------------------------------------------------------------------
# Wrapper: chunked, parallel grid over graphs.
# -----------------------------------------------------------------------------
def net_forward(x, adj, kp, gb):
    """x: [G, N, EMB] node features; adj: [G, N, N] dense A[dst, src]; gb = graphs/step."""
    G, N, EMB = x.shape
    C = kp["wl"].shape[-1]
    num_chunks = pl.cdiv(G, gb)
    g_pad = num_chunks * gb
    R = gb * N                                             # rows per grid step

    pad_g = g_pad - G
    x_p = jnp.concatenate([x, jnp.zeros((pad_g, N, EMB), x.dtype)], 0) if pad_g else x
    adj_p = jnp.concatenate([adj, jnp.zeros((pad_g, N, N), adj.dtype)], 0) if pad_g else adj

    x0f = x_p.reshape(num_chunks * R, EMB).astype(jnp.float32)
    # GatedGraphConv zero-pads input features up to out_channels.
    h0 = jnp.concatenate([x0f, jnp.zeros((num_chunks * R, C - EMB), jnp.float32)], axis=-1)
    x0 = x0f.astype(jnp.bfloat16)

    # Per-chunk block-diagonal adjacency (block-diag only *within* a chunk), built with a
    # single vectorized einsum; bf16 (0/1 edge counts are exact) halves the only O(R^2) buffer.
    adj_bd = jnp.einsum("cgij,gh->cgihj",
                        adj_p.reshape(num_chunks, gb, N, N).astype(jnp.float32),
                        jnp.eye(gb, dtype=jnp.float32))
    adj_bd = adj_bd.reshape(num_chunks * R, R).astype(jnp.bfloat16)

    weight_args = (kp["wl"], kp["wih_all"], kp["whh_all"],
                   kp["b_r"], kp["b_z"], kp["b_in"], kp["b_hn"],
                   kp["eh"], kp["ex"],
                   kp["bdw1"], kp["b1t"], kp["s"], kp["p"],
                   kp["bdw2"], kp["b2t"], kp["r"],
                   kp["wfc1"], kp["wfc2"], kp["selg"], kp["bfc1"], kp["bfc2"])
    args = (h0, x0, adj_bd) + weight_args

    in_specs = ([pl.BlockSpec((R, C), lambda i: (i, 0)),        # h0 chunk
                 pl.BlockSpec((R, EMB), lambda i: (i, 0)),      # x0 chunk
                 pl.BlockSpec((R, R), lambda i: (i, 0))]        # adjacency chunk
                + [_resident_spec(a) for a in weight_args])

    out = pl.pallas_call(
        net_kernel,
        out_shape=jax.ShapeDtypeStruct((num_chunks * gb, 1), jnp.float32),
        grid=(num_chunks,),
        in_specs=in_specs,
        out_specs=pl.BlockSpec((gb, 1), lambda i: (i, 0)),
        compiler_params=pltpu.CompilerParams(
            dimension_semantics=("parallel",),                  # chunks independent -> megacore
            vmem_limit_bytes=32 * 1024 * 1024),
    )(*args)
    return out.reshape(num_chunks * gb)[:G]


# -----------------------------------------------------------------------------
# Plain-JAX f32 reference of the PyTorch forward (inference mode), for validation.
# -----------------------------------------------------------------------------
def reference_forward(x, adj, raw):
    n_layers, C, _ = raw["w_ggc"].shape

    def conv1d(inp, w, b, pad):            # inp [Cin, L], w [O, Cin, K]
        _, _, K = w.shape
        lout = inp.shape[1] + 2 * pad - K + 1
        inp_p = jnp.pad(inp, ((0, 0), (pad, pad)))
        cols = [jnp.einsum("ock,ck->o", w, inp_p[:, t:t + K]) for t in range(lout)]
        return jnp.stack(cols, axis=1) + b[:, None]

    def maxpool1d(inp, K, S):
        lout = (inp.shape[1] - K) // S + 1
        return jnp.stack([jnp.max(inp[:, t * S:t * S + K], axis=1) for t in range(lout)],
                         axis=1)

    def single(xg, adjg):
        h = jnp.concatenate([xg, jnp.zeros((xg.shape[0], C - xg.shape[-1]), jnp.float32)], 1)
        for l in range(n_layers):
            m = h @ raw["w_ggc"][l]
            aggr = adjg @ m
            gi = aggr @ raw["wih"].T + raw["bih"]
            gh = h @ raw["whh"].T + raw["bhh"]
            r = jax.nn.sigmoid(gi[:, :C] + gh[:, :C])
            z = jax.nn.sigmoid(gi[:, C:2 * C] + gh[:, C:2 * C])
            n = jnp.tanh(gi[:, 2 * C:] + r * gh[:, 2 * C:])
            h = (1.0 - z) * n + z * h

        def branch(inp):
            t = maxpool1d(jnp.maximum(conv1d(inp, raw["w1"], raw["b1"], 1), 0.0), 3, 2)
            return maxpool1d(conv1d(t, raw["w2"], raw["b2"], 1), 2, 2)

        zb = branch(jnp.concatenate([h, xg], axis=1))
        yb = branch(h)
        s1 = jnp.sum(raw["wfc1"][0] * zb.reshape(-1)) + raw["bfc1"][0]
        s2 = jnp.sum(raw["wfc2"][0] * yb.reshape(-1)) + raw["bfc2"][0]
        return jax.nn.sigmoid(s1 * s2)

    return jax.jit(jax.vmap(single))(x, adj)


if __name__ == "__main__":
    # ----- config: small per-graph shapes, enough graphs to batch 256 rows per grid step -----
    G, N, EMB = 64, 8, 8         # graphs, nodes per graph (== conv1d_1.in_channels), emb_size
    C, NUM_LAYERS = 16, 3        # gated_graph_conv out_channels / num_layers
    GB = 32                      # graphs per grid step -> GB*N = 256 rows; bf16 adjacency
                                 # block = 128 KiB (double-buffered), fits every TPU gen's VMEM
    conv1d_1 = dict(in_channels=N, out_channels=6, kernel_size=3, padding=1)
    conv1d_2 = dict(in_channels=6, out_channels=4, kernel_size=1, padding=1)
    maxpool1d_1 = dict(kernel_size=3, stride=2)
    maxpool1d_2 = dict(kernel_size=2, stride=2)
    O1, K1, P1 = conv1d_1["out_channels"], conv1d_1["kernel_size"], conv1d_1["padding"]
    O2, K2, P2 = conv1d_2["out_channels"], conv1d_2["kernel_size"], conv1d_2["padding"]

    fc1_size = get_conv_mp_out_size(C + EMB, conv1d_2, [maxpool1d_1, maxpool1d_2])
    fc2_size = get_conv_mp_out_size(C, conv1d_2, [maxpool1d_1, maxpool1d_2])
    Lz = _mp_len(_conv_len(_mp_len(_conv_len(C + EMB, K1, P1), 3, 2), K2, P2), 2, 2)
    Ly = _mp_len(_conv_len(_mp_len(_conv_len(C, K1, P1), 3, 2), K2, P2), 2, 2)
    assert fc1_size == O2 * Lz and fc2_size == O2 * Ly

    # ----- deterministic inputs -----
    key = jax.random.PRNGKey(0)
    ks = jax.random.split(key, 14)
    x = jax.random.normal(ks[0], (G, N, EMB), jnp.float32)

    # ring edges plus 3 pseudo-random extra edges per graph, dense A[dst, src]
    ring_src = jnp.arange(N)
    ring_dst = (jnp.arange(N) + 1) % N
    adj = jnp.zeros((G, N, N), jnp.float32)
    adj = adj.at[:, ring_dst, ring_src].add(1.0)
    ex_src = jax.random.randint(ks[1], (G, 3), 0, N)
    ex_dst = jax.random.randint(ks[2], (G, 3), 0, N)
    gidx = jnp.arange(G)[:, None]
    adj = adj.at[gidx, ex_dst, ex_src].add(1.0)

    # ----- deterministic parameters (PyTorch layouts) -----
    s = 0.1
    raw = dict(
        w_ggc=s * jax.random.normal(ks[3], (NUM_LAYERS, C, C), jnp.float32),
        wih=s * jax.random.normal(ks[4], (3 * C, C), jnp.float32),   # GRUCell weight_ih
        whh=s * jax.random.normal(ks[5], (3 * C, C), jnp.float32),   # GRUCell weight_hh
        bih=s * jax.random.normal(ks[6], (3 * C,), jnp.float32),
        bhh=s * jax.random.normal(ks[7], (3 * C,), jnp.float32),
        w1=s * jax.random.normal(ks[8], (O1, N, K1), jnp.float32),   # conv1d_1.weight
        b1=s * jax.random.normal(ks[9], (O1,), jnp.float32),
        w2=s * jax.random.normal(ks[10], (O2, O1, K2), jnp.float32), # conv1d_2.weight
        b2=s * jax.random.normal(ks[11], (O2,), jnp.float32),
        wfc1=s * jax.random.normal(ks[12], (1, fc1_size), jnp.float32),
        bfc1=jnp.array([0.05], jnp.float32),
        wfc2=s * jax.random.normal(ks[13], (1, fc2_size), jnp.float32),
        bfc2=jnp.array([-0.05], jnp.float32),
    )
    cfg = dict(GB=GB, N=N, EMB=EMB, C=C, conv1d_1=conv1d_1, conv1d_2=conv1d_2,
               maxpool1d_1=maxpool1d_1, maxpool1d_2=maxpool1d_2)

    kp = build_kernel_params(cfg, raw)
    fwd = jax.jit(net_forward, static_argnames=("gb",))
    out = fwd(x, adj, kp, gb=GB)                   # shape [G], sigmoid outputs per graph
    jax.block_until_ready(out)
    assert out.shape == (G,)

    # validate against the plain-JAX f32 reference (looser tolerance: bf16 MXU operands)
    ref = reference_forward(x, adj, raw)
    np.testing.assert_allclose(np.asarray(out), np.asarray(ref), rtol=2e-2, atol=2e-2)

    print("KERNEL_OK")
</pallas_src>

<mosaic_0001>
module attributes {stable_mosaic.version = 11 : i64} {
  func.func @net_kernel(%arg0: i32, %arg1: memref<256x16xf32, #tpu.memory_space<vmem>>, %arg2: memref<256x8xbf16, #tpu.memory_space<vmem>>, %arg3: memref<256x256xbf16, #tpu.memory_space<vmem>>, %arg4: memref<3x16x16xbf16, #tpu.memory_space<vmem>>, %arg5: memref<16x384xbf16, #tpu.memory_space<vmem>>, %arg6: memref<16x384xbf16, #tpu.memory_space<vmem>>, %arg7: memref<1x16xf32, #tpu.memory_space<vmem>>, %arg8: memref<1x16xf32, #tpu.memory_space<vmem>>, %arg9: memref<1x16xf32, #tpu.memory_space<vmem>>, %arg10: memref<1x16xf32, #tpu.memory_space<vmem>>, %arg11: memref<16x40xbf16, #tpu.memory_space<vmem>>, %arg12: memref<8x40xbf16, #tpu.memory_space<vmem>>, %arg13: memref<3x192x256xbf16, #tpu.memory_space<vmem>>, %arg14: memref<192x1xf32, #tpu.memory_space<vmem>>, %arg15: memref<3x40x40xbf16, #tpu.memory_space<vmem>>, %arg16: memref<3x40x18xbf16, #tpu.memory_space<vmem>>, %arg17: memref<128x192xbf16, #tpu.memory_space<vmem>>, %arg18: memref<128x1xf32, #tpu.memory_space<vmem>>, %arg19: memref<2x18x10xbf16, #tpu.memory_space<vmem>>, %arg20: memref<128x10xf32, #tpu.memory_space<vmem>>, %arg21: memref<128x10xf32, #tpu.memory_space<vmem>>, %arg22: memref<32x128xbf16, #tpu.memory_space<vmem>>, %arg23: memref<1x1xf32, #tpu.memory_space<vmem>>, %arg24: memref<1x1xf32, #tpu.memory_space<vmem>>, %arg25: memref<32x1xf32, #tpu.memory_space<vmem>>) attributes {dimension_semantics = [#tpu.dimension_semantics<parallel>], iteration_bounds = array<i64: 2>, scalar_prefetch = 0 : i64, scratch_operands = 0 : i64, tpu.core_type = #tpu.core_type<tc>, window_params = [{transform_indices = @transform_0, window_bounds = array<i64: 256, 16>}, {transform_indices = @transform_1, window_bounds = array<i64: 256, 8>}, {transform_indices = @transform_2, window_bounds = array<i64: 256, 256>}, {pipeline_mode = #tpu.pipeline_mode<synchronous>, transform_indices = @transform_3, window_bounds = array<i64: 3, 16, 16>}, {pipeline_mode = #tpu.pipeline_mode<synchronous>, transform_indices = @transform_4, window_bounds = array<i64: 16, 384>}, {pipeline_mode = #tpu.pipeline_mode<synchronous>, transform_indices = @transform_5, window_bounds = array<i64: 16, 384>}, {pipeline_mode = #tpu.pipeline_mode<synchronous>, transform_indices = @transform_6, window_bounds = array<i64: 1, 16>}, {pipeline_mode = #tpu.pipeline_mode<synchronous>, transform_indices = @transform_7, window_bounds = array<i64: 1, 16>}, {pipeline_mode = #tpu.pipeline_mode<synchronous>, transform_indices = @transform_8, window_bounds = array<i64: 1, 16>}, {pipeline_mode = #tpu.pipeline_mode<synchronous>, transform_indices = @transform_9, window_bounds = array<i64: 1, 16>}, {pipeline_mode = #tpu.pipeline_mode<synchronous>, transform_indices = @transform_10, window_bounds = array<i64: 16, 40>}, {pipeline_mode = #tpu.pipeline_mode<synchronous>, transform_indices = @transform_11, window_bounds = array<i64: 8, 40>}, {pipeline_mode = #tpu.pipeline_mode<synchronous>, transform_indices = @transform_12, window_bounds = array<i64: 3, 192, 256>}, {pipeline_mode = #tpu.pipeline_mode<synchronous>, transform_indices = @transform_13, window_bounds = array<i64: 192, 1>}, {pipeline_mode = #tpu.pipeline_mode<synchronous>, transform_indices = @transform_14, window_bounds = array<i64: 3, 40, 40>}, {pipeline_mode = #tpu.pipeline_mode<synchronous>, transform_indices = @transform_15, window_bounds = array<i64: 3, 40, 18>}, {pipeline_mode = #tpu.pipeline_mode<synchronous>, transform_indices = @transform_16, window_bounds = array<i64: 128, 192>}, {pipeline_mode = #tpu.pipeline_mode<synchronous>, transform_indices = @transform_17, window_bounds = array<i64: 128, 1>}, {pipeline_mode = #tpu.pipeline_mode<synchronous>, transform_indices = @transform_18, window_bounds = array<i64: 2, 18, 10>}, {pipeline_mode = #tpu.pipeline_mode<synchronous>, transform_indices = @transform_19, window_bounds = array<i64: 128, 10>}, {pipeline_mode = #tpu.pipeline_mode<synchronous>, transform_indices = @transform_20, window_bounds = array<i64: 128, 10>}, {pipeline_mode = #tpu.pipeline_mode<synchronous>, transform_indices = @transform_21, window_bounds = array<i64: 32, 128>}, {pipeline_mode = #tpu.pipeline_mode<synchronous>, transform_indices = @transform_22, window_bounds = array<i64: 1, 1>}, {pipeline_mode = #tpu.pipeline_mode<synchronous>, transform_indices = @transform_23, window_bounds = array<i64: 1, 1>}, {transform_indices = @transform_24, window_bounds = array<i64: 32, 1>}]} {
    %c0 = arith.constant 0 : index
    %c0_0 = arith.constant 0 : index
    %0 = vector.load %arg3[%c0, %c0_0] : memref<256x256xbf16, #tpu.memory_space<vmem>>, vector<256x256xbf16>
    %c0_1 = arith.constant 0 : index
    %c0_2 = arith.constant 0 : index
    %1 = vector.load %arg1[%c0_1, %c0_2] : memref<256x16xf32, #tpu.memory_space<vmem>>, vector<256x16xf32>
    %c0_3 = arith.constant 0 : index
    %c0_4 = arith.constant 0 : index
    %2 = vector.load %arg5[%c0_3, %c0_4] : memref<16x384xbf16, #tpu.memory_space<vmem>>, vector<16x384xbf16>
    %c0_5 = arith.constant 0 : index
    %c0_6 = arith.constant 0 : index
    %3 = vector.load %arg6[%c0_5, %c0_6] : memref<16x384xbf16, #tpu.memory_space<vmem>>, vector<16x384xbf16>
    %c0_7 = arith.constant 0 : index
    %c0_8 = arith.constant 0 : index
    %4 = vector.load %arg7[%c0_7, %c0_8] : memref<1x16xf32, #tpu.memory_space<vmem>>, vector<1x16xf32>
    %c0_9 = arith.constant 0 : index
    %c0_10 = arith.constant 0 : index
    %5 = vector.load %arg8[%c0_9, %c0_10] : memref<1x16xf32, #tpu.memory_space<vmem>>, vector<1x16xf32>
    %c0_11 = arith.constant 0 : index
    %c0_12 = arith.constant 0 : index
    %6 = vector.load %arg9[%c0_11, %c0_12] : memref<1x16xf32, #tpu.memory_space<vmem>>, vector<1x16xf32>
    %c0_13 = arith.constant 0 : index
    %c0_14 = arith.constant 0 : index
    %7 = vector.load %arg10[%c0_13, %c0_14] : memref<1x16xf32, #tpu.memory_space<vmem>>, vector<1x16xf32>
    %8 = arith.truncf %1 : vector<256x16xf32> to vector<256x16xbf16>
    %c0_15 = arith.constant 0 : index
    %c0_16 = arith.constant 0 : index
    %c0_17 = arith.constant 0 : index
    %9 = vector.load %arg4[%c0_15, %c0_16, %c0_17] : memref<3x16x16xbf16, #tpu.memory_space<vmem>>, vector<1x16x16xbf16>
    %10 = vector.shape_cast %9 : vector<1x16x16xbf16> to vector<16x16xbf16>
    %cst = arith.constant dense<0.000000e+00> : vector<256x16xf32>
    %11 = tpu.matmul %8, %10, %cst {dimension_numbers = #tpu.dot_dimension_numbers<[1], [0], [0], [1], [0, 0, 1, 1], [], []>} : vector<256x16xbf16>, vector<16x16xbf16>, vector<256x16xf32> -> vector<256x16xf32>
    %12 = arith.truncf %11 : vector<256x16xf32> to vector<256x16xbf16>
    %cst_18 = arith.constant dense<0.000000e+00> : vector<256x16xf32>
    %13 = tpu.matmul %0, %12, %cst_18 {dimension_numbers = #tpu.dot_dimension_numbers<[1], [0], [0], [1], [0, 0, 1, 1], [], []>} : vector<256x256xbf16>, vector<256x16xbf16>, vector<256x16xf32> -> vector<256x16xf32>
    %14 = arith.truncf %13 : vector<256x16xf32> to vector<256x16xbf16>
    %cst_19 = arith.constant dense<0.000000e+00> : vector<256x384xf32>
    %15 = tpu.matmul %14, %2, %cst_19 {dimension_numbers = #tpu.dot_dimension_numbers<[1], [0], [0], [1], [0, 0, 1, 1], [], []>} : vector<256x16xbf16>, vector<16x384xbf16>, vector<256x384xf32> -> vector<256x384xf32>
    %cst_20 = arith.constant dense<0.000000e+00> : vector<256x384xf32>
    %16 = tpu.matmul %8, %3, %cst_20 {dimension_numbers = #tpu.dot_dimension_numbers<[1], [0], [0], [1], [0, 0, 1, 1], [], []>} : vector<256x16xbf16>, vector<16x384xbf16>, vector<256x384xf32> -> vector<256x384xf32>
    %17 = vector.extract_strided_slice %15 {offsets = [0, 0], sizes = [256, 16], strides = [1, 1]} : vector<256x384xf32> to vector<256x16xf32>
    %18 = vector.extract_strided_slice %16 {offsets = [0, 0], sizes = [256, 16], strides = [1, 1]} : vector<256x384xf32> to vector<256x16xf32>
    %19 = arith.addf %17, %18 : vector<256x16xf32>
    %20 = vector.broadcast %4 : vector<1x16xf32> to vector<256x16xf32>
    %21 = arith.addf %19, %20 : vector<256x16xf32>
    %22 = arith.negf %21 : vector<256x16xf32>
    %23 = math.exp %22 : vector<256x16xf32>
    %cst_21 = arith.constant 1.000000e+00 : f32
    %24 = vector.broadcast %cst_21 : f32 to vector<256x16xf32>
    %25 = arith.addf %24, %23 : vector<256x16xf32>
    %26 = arith.divf %24, %25 : vector<256x16xf32>
    %27 = vector.extract_strided_slice %15 {offsets = [0, 128], sizes = [256, 16], strides = [1, 1]} : vector<256x384xf32> to vector<256x16xf32>
    %28 = vector.extract_strided_slice %16 {offsets = [0, 128], sizes = [256, 16], strides = [1, 1]} : vector<256x384xf32> to vector<256x16xf32>
    %29 = arith.addf %27, %28 : vector<256x16xf32>
    %30 = vector.broadcast %5 : vector<1x16xf32> to vector<256x16xf32>
    %31 = arith.addf %29, %30 : vector<256x16xf32>
    %32 = arith.negf %31 : vector<256x16xf32>
    %33 = math.exp %32 : vector<256x16xf32>
    %cst_22 = arith.constant 1.000000e+00 : f32
    %34 = vector.broadcast %cst_22 : f32 to vector<256x16xf32>
    %35 = arith.addf %34, %33 : vector<256x16xf32>
    %36 = arith.divf %34, %35 : vector<256x16xf32>
    %37 = vector.extract_strided_slice %15 {offsets = [0, 256], sizes = [256, 16], strides = [1, 1]} : vector<256x384xf32> to vector<256x16xf32>
    %38 = vector.broadcast %6 : vector<1x16xf32> to vector<256x16xf32>
    %39 = arith.addf %37, %38 : vector<256x16xf32>
    %40 = vector.extract_strided_slice %16 {offsets = [0, 256], sizes = [256, 16], strides = [1, 1]} : vector<256x384xf32> to vector<256x16xf32>
    %41 = vector.broadcast %7 : vector<1x16xf32> to vector<256x16xf32>
    %42 = arith.addf %40, %41 : vector<256x16xf32>
    %43 = arith.mulf %26, %42 : vector<256x16xf32>
    %44 = arith.addf %39, %43 : vector<256x16xf32>
    %45 = math.tanh %44 : vector<256x16xf32>
    %cst_23 = arith.constant 1.000000e+00 : f32
    %46 = vector.broadcast %cst_23 : f32 to vector<256x16xf32>
    %47 = arith.subf %46, %36 : vector<256x16xf32>
    %48 = arith.mulf %47, %45 : vector<256x16xf32>
    %49 = arith.mulf %36, %1 : vector<256x16xf32>
    %50 = arith.addf %48, %49 : vector<256x16xf32>
    %51 = arith.truncf %50 : vector<256x16xf32> to vector<256x16xbf16>
    %c1 = arith.constant 1 : index
    %c0_24 = arith.constant 0 : index
    %c0_25 = arith.constant 0 : index
    %52 = vector.load %arg4[%c1, %c0_24, %c0_25] : memref<3x16x16xbf16, #tpu.memory_space<vmem>>, vector<1x16x16xbf16>
    %53 = vector.shape_cast %52 : vector<1x16x16xbf16> to vector<16x16xbf16>
    %cst_26 = arith.constant dense<0.000000e+00> : vector<256x16xf32>
    %54 = tpu.matmul %51, %53, %cst_26 {dimension_numbers = #tpu.dot_dimension_numbers<[1], [0], [0], [1], [0, 0, 1, 1], [], []>} : vector<256x16xbf16>, vector<16x16xbf16>, vector<256x16xf32> -> vector<256x16xf32>
    %55 = arith.truncf %54 : vector<256x16xf32> to vector<256x16xbf16>
    %cst_27 = arith.constant dense<0.000000e+00> : vector<256x16xf32>
    %56 = tpu.matmul %0, %55, %cst_27 {dimension_numbers = #tpu.dot_dimension_numbers<[1], [0], [0], [1], [0, 0, 1, 1], [], []>} : vector<256x256xbf16>, vector<256x16xbf16>, vector<256x16xf32> -> vector<256x16xf32>
    %57 = arith.truncf %56 : vector<256x16xf32> to vector<256x16xbf16>
    %cst_28 = arith.constant dense<0.000000e+00> : vector<256x384xf32>
    %58 = tpu.matmul %57, %2, %cst_28 {dimension_numbers = #tpu.dot_dimension_numbers<[1], [0], [0], [1], [0, 0, 1, 1], [], []>} : vector<256x16xbf16>, vector<16x384xbf16>, vector<256x384xf32> -> vector<256x384xf32>
    %cst_29 = arith.constant dense<0.000000e+00> : vector<256x384xf32>
    %59 = tpu.matmul %51, %3, %cst_29 {dimension_numbers = #tpu.dot_dimension_numbers<[1], [0], [0], [1], [0, 0, 1, 1], [], []>} : vector<256x16xbf16>, vector<16x384xbf16>, vector<256x384xf32> -> vector<256x384xf32>
    %60 = vector.extract_strided_slice %58 {offsets = [0, 0], sizes = [256, 16], strides = [1, 1]} : vector<256x384xf32> to vector<256x16xf32>
    %61 = vector.extract_strided_slice %59 {offsets = [0, 0], sizes = [256, 16], strides = [1, 1]} : vector<256x384xf32> to vector<256x16xf32>
    %62 = arith.addf %60, %61 : vector<256x16xf32>
    %63 = vector.broadcast %4 : vector<1x16xf32> to vector<256x16xf32>
    %64 = arith.addf %62, %63 : vector<256x16xf32>
    %65 = arith.negf %64 : vector<256x16xf32>
    %66 = math.exp %65 : vector<256x16xf32>
    %cst_30 = arith.constant 1.000000e+00 : f32
    %67 = vector.broadcast %cst_30 : f32 to vector<256x16xf32>
    %68 = arith.addf %67, %66 : vector<256x16xf32>
    %69 = arith.divf %67, %68 : vector<256x16xf32>
    %70 = vector.extract_strided_slice %58 {offsets = [0, 128], sizes = [256, 16], strides = [1, 1]} : vector<256x384xf32> to vector<256x16xf32>
    %71 = vector.extract_strided_slice %59 {offsets = [0, 128], sizes = [256, 16], strides = [1, 1]} : vector<256x384xf32> to vector<256x16xf32>
    %72 = arith.addf %70, %71 : vector<256x16xf32>
    %73 = vector.broadcast %5 : vector<1x16xf32> to vector<256x16xf32>
    %74 = arith.addf %72, %73 : vector<256x16xf32>
    %75 = arith.negf %74 : vector<256x16xf32>
    %76 = math.exp %75 : vector<256x16xf32>
    %cst_31 = arith.constant 1.000000e+00 : f32
    %77 = vector.broadcast %cst_31 : f32 to vector<256x16xf32>
    %78 = arith.addf %77, %76 : vector<256x16xf32>
    %79 = arith.divf %77, %78 : vector<256x16xf32>
    %80 = vector.extract_strided_slice %58 {offsets = [0, 256], sizes = [256, 16], strides = [1, 1]} : vector<256x384xf32> to vector<256x16xf32>
    %81 = vector.broadcast %6 : vector<1x16xf32> to vector<256x16xf32>
    %82 = arith.addf %80, %81 : vector<256x16xf32>
    %83 = vector.extract_strided_slice %59 {offsets = [0, 256], sizes = [256, 16], strides = [1, 1]} : vector<256x384xf32> to vector<256x16xf32>
    %84 = vector.broadcast %7 : vector<1x16xf32> to vector<256x16xf32>
    %85 = arith.addf %83, %84 : vector<256x16xf32>
    %86 = arith.mulf %69, %85 : vector<256x16xf32>
    %87 = arith.addf %82, %86 : vector<256x16xf32>
    %88 = math.tanh %87 : vector<256x16xf32>
    %cst_32 = arith.constant 1.000000e+00 : f32
    %89 = vector.broadcast %cst_32 : f32 to vector<256x16xf32>
    %90 = arith.subf %89, %79 : vector<256x16xf32>
    %91 = arith.mulf %90, %88 : vector<256x16xf32>
    %92 = arith.mulf %79, %50 : vector<256x16xf32>
    %93 = arith.addf %91, %92 : vector<256x16xf32>
    %94 = arith.truncf %93 : vector<256x16xf32> to vector<256x16xbf16>
    %c2 = arith.constant 2 : index
    %c0_33 = arith.constant 0 : index
    %c0_34 = arith.constant 0 : index
    %95 = vector.load %arg4[%c2, %c0_33, %c0_34] : memref<3x16x16xbf16, #tpu.memory_space<vmem>>, vector<1x16x16xbf16>
    %96 = vector.shape_cast %95 : vector<1x16x16xbf16> to vector<16x16xbf16>
    %cst_35 = arith.constant dense<0.000000e+00> : vector<256x16xf32>
    %97 = tpu.matmul %94, %96, %cst_35 {dimension_numbers = #tpu.dot_dimension_numbers<[1], [0], [0], [1], [0, 0, 1, 1], [], []>} : vector<256x16xbf16>, vector<16x16xbf16>, vector<256x16xf32> -> vector<256x16xf32>
    %98 = arith.truncf %97 : vector<256x16xf32> to vector<256x16xbf16>
    %cst_36 = arith.constant dense<0.000000e+00> : vector<256x16xf32>
    %99 = tpu.matmul %0, %98, %cst_36 {dimension_numbers = #tpu.dot_dimension_numbers<[1], [0], [0], [1], [0, 0, 1, 1], [], []>} : vector<256x256xbf16>, vector<256x16xbf16>, vector<256x16xf32> -> vector<256x16xf32>
    %100 = arith.truncf %99 : vector<256x16xf32> to vector<256x16xbf16>
    %cst_37 = arith.constant dense<0.000000e+00> : vector<256x384xf32>
    %101 = tpu.matmul %100, %2, %cst_37 {dimension_numbers = #tpu.dot_dimension_numbers<[1], [0], [0], [1], [0, 0, 1, 1], [], []>} : vector<256x16xbf16>, vector<16x384xbf16>, vector<256x384xf32> -> vector<256x384xf32>
    %cst_38 = arith.constant dense<0.000000e+00> : vector<256x384xf32>
    %102 = tpu.matmul %94, %3, %cst_38 {dimension_numbers = #tpu.dot_dimension_numbers<[1], [0], [0], [1], [0, 0, 1, 1], [], []>} : vector<256x16xbf16>, vector<16x384xbf16>, vector<256x384xf32> -> vector<256x384xf32>
    %103 = vector.extract_strided_slice %101 {offsets = [0, 0], sizes = [256, 16], strides = [1, 1]} : vector<256x384xf32> to vector<256x16xf32>
    %104 = vector.extract_strided_slice %102 {offsets = [0, 0], sizes = [256, 16], strides = [1, 1]} : vector<256x384xf32> to vector<256x16xf32>
    %105 = arith.addf %103, %104 : vector<256x16xf32>
    %106 = vector.broadcast %4 : vector<1x16xf32> to vector<256x16xf32>
    %107 = arith.addf %105, %106 : vector<256x16xf32>
    %108 = arith.negf %107 : vector<256x16xf32>
    %109 = math.exp %108 : vector<256x16xf32>
    %cst_39 = arith.constant 1.000000e+00 : f32
    %110 = vector.broadcast %cst_39 : f32 to vector<256x16xf32>
    %111 = arith.addf %110, %109 : vector<256x16xf32>
    %112 = arith.divf %110, %111 : vector<256x16xf32>
    %113 = vector.extract_strided_slice %101 {offsets = [0, 128], sizes = [256, 16], strides = [1, 1]} : vector<256x384xf32> to vector<256x16xf32>
    %114 = vector.extract_strided_slice %102 {offsets = [0, 128], sizes = [256, 16], strides = [1, 1]} : vector<256x384xf32> to vector<256x16xf32>
    %115 = arith.addf %113, %114 : vector<256x16xf32>
    %116 = vector.broadcast %5 : vector<1x16xf32> to vector<256x16xf32>
    %117 = arith.addf %115, %116 : vector<256x16xf32>
    %118 = arith.negf %117 : vector<256x16xf32>
    %119 = math.exp %118 : vector<256x16xf32>
    %cst_40 = arith.constant 1.000000e+00 : f32
    %120 = vector.broadcast %cst_40 : f32 to vector<256x16xf32>
    %121 = arith.addf %120, %119 : vector<256x16xf32>
    %122 = arith.divf %120, %121 : vector<256x16xf32>
    %123 = vector.extract_strided_slice %101 {offsets = [0, 256], sizes = [256, 16], strides = [1, 1]} : vector<256x384xf32> to vector<256x16xf32>
    %124 = vector.broadcast %6 : vector<1x16xf32> to vector<256x16xf32>
    %125 = arith.addf %123, %124 : vector<256x16xf32>
    %126 = vector.extract_strided_slice %102 {offsets = [0, 256], sizes = [256, 16], strides = [1, 1]} : vector<256x384xf32> to vector<256x16xf32>
    %127 = vector.broadcast %7 : vector<1x16xf32> to vector<256x16xf32>
    %128 = arith.addf %126, %127 : vector<256x16xf32>
    %129 = arith.mulf %112, %128 : vector<256x16xf32>
    %130 = arith.addf %125, %129 : vector<256x16xf32>
    %131 = math.tanh %130 : vector<256x16xf32>
    %cst_41 = arith.constant 1.000000e+00 : f32
    %132 = vector.broadcast %cst_41 : f32 to vector<256x16xf32>
    %133 = arith.subf %132, %122 : vector<256x16xf32>
    %134 = arith.mulf %133, %131 : vector<256x16xf32>
    %135 = arith.mulf %122, %93 : vector<256x16xf32>
    %136 = arith.addf %134, %135 : vector<256x16xf32>
    %137 = arith.truncf %136 : vector<256x16xf32> to vector<256x16xbf16>
    %c0_42 = arith.constant 0 : index
    %c0_43 = arith.constant 0 : index
    %138 = vector.load %arg11[%c0_42, %c0_43] : memref<16x40xbf16, #tpu.memory_space<vmem>>, vector<16x40xbf16>
    %cst_44 = arith.constant dense<0.000000e+00> : vector<256x40xf32>
    %139 = tpu.matmul %137, %138, %cst_44 {dimension_numbers = #tpu.dot_dimension_numbers<[1], [0], [0], [1], [0, 0, 1, 1], [], []>} : vector<256x16xbf16>, vector<16x40xbf16>, vector<256x40xf32> -> vector<256x40xf32>
    %c0_45 = arith.constant 0 : index
    %c0_46 = arith.constant 0 : index
    %140 = vector.load %arg2[%c0_45, %c0_46] : memref<256x8xbf16, #tpu.memory_space<vmem>>, vector<256x8xbf16>
    %c0_47 = arith.constant 0 : index
    %c0_48 = arith.constant 0 : index
    %141 = vector.load %arg12[%c0_47, %c0_48] : memref<8x40xbf16, #tpu.memory_space<vmem>>, vector<8x40xbf16>
    %cst_49 = arith.constant dense<0.000000e+00> : vector<256x40xf32>
    %142 = tpu.matmul %140, %141, %cst_49 {dimension_numbers = #tpu.dot_dimension_numbers<[1], [0], [0], [1], [0, 0, 1, 1], [], []>} : vector<256x8xbf16>, vector<8x40xbf16>, vector<256x40xf32> -> vector<256x40xf32>
    %143 = arith.addf %139, %142 : vector<256x40xf32>
    %144 = arith.truncf %143 : vector<256x40xf32> to vector<256x40xbf16>
    %c0_50 = arith.constant 0 : index
    %c0_51 = arith.constant 0 : index
    %145 = vector.load %arg14[%c0_50, %c0_51] : memref<192x1xf32, #tpu.memory_space<vmem>>, vector<192x1xf32>
    %c0_52 = arith.constant 0 : index
    %c0_53 = arith.constant 0 : index
    %c0_54 = arith.constant 0 : index
    %146 = vector.load %arg15[%c0_52, %c0_53, %c0_54] : memref<3x40x40xbf16, #tpu.memory_space<vmem>>, vector<1x40x40xbf16>
    %147 = vector.shape_cast %146 : vector<1x40x40xbf16> to vector<40x40xbf16>
    %cst_55 = arith.constant dense<0.000000e+00> : vector<256x40xf32>
    %148 = tpu.matmul %144, %147, %cst_55 {dimension_numbers = #tpu.dot_dimension_numbers<[1], [0], [0], [1], [0, 0, 1, 1], [], []>} : vector<256x40xbf16>, vector<40x40xbf16>, vector<256x40xf32> -> vector<256x40xf32>
    %149 = arith.truncf %148 : vector<256x40xf32> to vector<256x40xbf16>
    %c0_56 = arith.constant 0 : index
    %c0_57 = arith.constant 0 : index
    %c0_58 = arith.constant 0 : index
    %150 = vector.load %arg13[%c0_56, %c0_57, %c0_58] : memref<3x192x256xbf16, #tpu.memory_space<vmem>>, vector<1x192x256xbf16>
    %151 = vector.shape_cast %150 : vector<1x192x256xbf16> to vector<192x256xbf16>
    %cst_59 = arith.constant dense<0.000000e+00> : vector<192x40xf32>
    %152 = tpu.matmul %151, %149, %cst_59 {dimension_numbers = #tpu.dot_dimension_numbers<[1], [0], [0], [1], [0, 0, 1, 1], [], []>} : vector<192x256xbf16>, vector<256x40xbf16>, vector<192x40xf32> -> vector<192x40xf32>
    %153 = vector.broadcast %145 : vector<192x1xf32> to vector<192x40xf32>
    %154 = arith.addf %153, %152 : vector<192x40xf32>
    %c1_60 = arith.constant 1 : index
    %c0_61 = arith.constant 0 : index
    %c0_62 = arith.constant 0 : index
    %155 = vector.load %arg15[%c1_60, %c0_61, %c0_62] : memref<3x40x40xbf16, #tpu.memory_space<vmem>>, vector<1x40x40xbf16>
    %156 = vector.shape_cast %155 : vector<1x40x40xbf16> to vector<40x40xbf16>
    %cst_63 = arith.constant dense<0.000000e+00> : vector<256x40xf32>
    %157 = tpu.matmul %144, %156, %cst_63 {dimension_numbers = #tpu.dot_dimension_numbers<[1], [0], [0], [1], [0, 0, 1, 1], [], []>} : vector<256x40xbf16>, vector<40x40xbf16>, vector<256x40xf32> -> vector<256x40xf32>
    %158 = arith.truncf %157 : vector<256x40xf32> to vector<256x40xbf16>
    %c1_64 = arith.constant 1 : index
    %c0_65 = arith.constant 0 : index
    %c0_66 = arith.constant 0 : index
    %159 = vector.load %arg13[%c1_64, %c0_65, %c0_66] : memref<3x192x256xbf16, #tpu.memory_space<vmem>>, vector<1x192x256xbf16>
    %160 = vector.shape_cast %159 : vector<1x192x256xbf16> to vector<192x256xbf16>
    %cst_67 = arith.constant dense<0.000000e+00> : vector<192x40xf32>
    %161 = tpu.matmul %160, %158, %cst_67 {dimension_numbers = #tpu.dot_dimension_numbers<[1], [0], [0], [1], [0, 0, 1, 1], [], []>} : vector<192x256xbf16>, vector<256x40xbf16>, vector<192x40xf32> -> vector<192x40xf32>
    %162 = arith.addf %154, %161 : vector<192x40xf32>
    %c2_68 = arith.constant 2 : index
    %c0_69 = arith.constant 0 : index
    %c0_70 = arith.constant 0 : index
    %163 = vector.load %arg15[%c2_68, %c0_69, %c0_70] : memref<3x40x40xbf16, #tpu.memory_space<vmem>>, vector<1x40x40xbf16>
    %164 = vector.shape_cast %163 : vector<1x40x40xbf16> to vector<40x40xbf16>
    %cst_71 = arith.constant dense<0.000000e+00> : vector<256x40xf32>
    %165 = tpu.matmul %144, %164, %cst_71 {dimension_numbers = #tpu.dot_dimension_numbers<[1], [0], [0], [1], [0, 0, 1, 1], [], []>} : vector<256x40xbf16>, vector<40x40xbf16>, vector<256x40xf32> -> vector<256x40xf32>
    %166 = arith.truncf %165 : vector<256x40xf32> to vector<256x40xbf16>
    %c2_72 = arith.constant 2 : index
    %c0_73 = arith.constant 0 : index
    %c0_74 = arith.constant 0 : index
    %167 = vector.load %arg13[%c2_72, %c0_73, %c0_74] : memref<3x192x256xbf16, #tpu.memory_space<vmem>>, vector<1x192x256xbf16>
    %168 = vector.shape_cast %167 : vector<1x192x256xbf16> to vector<192x256xbf16>
    %cst_75 = arith.constant dense<0.000000e+00> : vector<192x40xf32>
    %169 = tpu.matmul %168, %166, %cst_75 {dimension_numbers = #tpu.dot_dimension_numbers<[1], [0], [0], [1], [0, 0, 1, 1], [], []>} : vector<192x256xbf16>, vector<256x40xbf16>, vector<192x40xf32> -> vector<192x40xf32>
    %170 = arith.addf %162, %169 : vector<192x40xf32>
    %cst_76 = arith.constant 0.000000e+00 : f32
    %171 = vector.broadcast %cst_76 : f32 to vector<192x40xf32>
    %172 = arith.maximumf %170, %171 : vector<192x40xf32>
    %173 = arith.truncf %172 : vector<192x40xf32> to vector<192x40xbf16>
    %c0_77 = arith.constant 0 : index
    %c0_78 = arith.constant 0 : index
    %c0_79 = arith.constant 0 : index
    %174 = vector.load %arg16[%c0_77, %c0_78, %c0_79] : memref<3x40x18xbf16, #tpu.memory_space<vmem>>, vector<1x40x18xbf16>
    %175 = vector.shape_cast %174 : vector<1x40x18xbf16> to vector<40x18xbf16>
    %cst_80 = arith.constant dense<0.000000e+00> : vector<192x18xf32>
    %176 = tpu.matmul %173, %175, %cst_80 {dimension_numbers = #tpu.dot_dimension_numbers<[1], [0], [0], [1], [0, 0, 1, 1], [], []>} : vector<192x40xbf16>, vector<40x18xbf16>, vector<192x18xf32> -> vector<192x18xf32>
    %c1_81 = arith.constant 1 : index
    %c0_82 = arith.constant 0 : index
    %c0_83 = arith.constant 0 : index
    %177 = vector.load %arg16[%c1_81, %c0_82, %c0_83] : memref<3x40x18xbf16, #tpu.memory_space<vmem>>, vector<1x40x18xbf16>
    %178 = vector.shape_cast %177 : vector<1x40x18xbf16> to vector<40x18xbf16>
    %cst_84 = arith.constant dense<0.000000e+00> : vector<192x18xf32>
    %179 = tpu.matmul %173, %178, %cst_84 {dimension_numbers = #tpu.dot_dimension_numbers<[1], [0], [0], [1], [0, 0, 1, 1], [], []>} : vector<192x40xbf16>, vector<40x18xbf16>, vector<192x18xf32> -> vector<192x18xf32>
    %180 = arith.maximumf %176, %179 : vector<192x18xf32>
    %c2_85 = arith.constant 2 : index
    %c0_86 = arith.constant 0 : index
    %c0_87 = arith.constant 0 : index
    %181 = vector.load %arg16[%c2_85, %c0_86, %c0_87] : memref<3x40x18xbf16, #tpu.memory_space<vmem>>, vector<1x40x18xbf16>
    %182 = vector.shape_cast %181 : vector<1x40x18xbf16> to vector<40x18xbf16>
    %cst_88 = arith.constant dense<0.000000e+00> : vector<192x18xf32>
    %183 = tpu.matmul %173, %182, %cst_88 {dimension_numbers = #tpu.dot_dimension_numbers<[1], [0], [0], [1], [0, 0, 1, 1], [], []>} : vector<192x40xbf16>, vector<40x18xbf16>, vector<192x18xf32> -> vector<192x18xf32>
    %184 = arith.maximumf %180, %183 : vector<192x18xf32>
    %c0_89 = arith.constant 0 : index
    %c0_90 = arith.constant 0 : index
    %185 = vector.load %arg17[%c0_89, %c0_90] : memref<128x192xbf16, #tpu.memory_space<vmem>>, vector<128x192xbf16>
    %186 = arith.truncf %184 : vector<192x18xf32> to vector<192x18xbf16>
    %cst_91 = arith.constant dense<0.000000e+00> : vector<128x18xf32>
    %187 = tpu.matmul %185, %186, %cst_91 {dimension_numbers = #tpu.dot_dimension_numbers<[1], [0], [0], [1], [0, 0, 1, 1], [], []>} : vector<128x192xbf16>, vector<192x18xbf16>, vector<128x18xf32> -> vector<128x18xf32>
    %188 = arith.truncf %187 : vector<128x18xf32> to vector<128x18xbf16>
    %c0_92 = arith.constant 0 : index
    %c0_93 = arith.constant 0 : index
    %c0_94 = arith.constant 0 : index
    %189 = vector.load %arg19[%c0_92, %c0_93, %c0_94] : memref<2x18x10xbf16, #tpu.memory_space<vmem>>, vector<1x18x10xbf16>
    %190 = vector.shape_cast %189 : vector<1x18x10xbf16> to vector<18x10xbf16>
    %cst_95 = arith.constant dense<0.000000e+00> : vector<128x10xf32>
    %191 = tpu.matmul %188, %190, %cst_95 {dimension_numbers = #tpu.dot_dimension_numbers<[1], [0], [0], [1], [0, 0, 1, 1], [], []>} : vector<128x18xbf16>, vector<18x10xbf16>, vector<128x10xf32> -> vector<128x10xf32>
    %c1_96 = arith.constant 1 : index
    %c0_97 = arith.constant 0 : index
    %c0_98 = arith.constant 0 : index
    %192 = vector.load %arg19[%c1_96, %c0_97, %c0_98] : memref<2x18x10xbf16, #tpu.memory_space<vmem>>, vector<1x18x10xbf16>
    %193 = vector.shape_cast %192 : vector<1x18x10xbf16> to vector<18x10xbf16>
    %cst_99 = arith.constant dense<0.000000e+00> : vector<128x10xf32>
    %194 = tpu.matmul %188, %193, %cst_99 {dimension_numbers = #tpu.dot_dimension_numbers<[1], [0], [0], [1], [0, 0, 1, 1], [], []>} : vector<128x18xbf16>, vector<18x10xbf16>, vector<128x10xf32> -> vector<128x10xf32>
    %195 = arith.maximumf %191, %194 : vector<128x10xf32>
    %c0_100 = arith.constant 0 : index
    %c0_101 = arith.constant 0 : index
    %196 = vector.load %arg18[%c0_100, %c0_101] : memref<128x1xf32, #tpu.memory_space<vmem>>, vector<128x1xf32>
    %197 = vector.broadcast %196 : vector<128x1xf32> to vector<128x10xf32>
    %198 = arith.addf %195, %197 : vector<128x10xf32>
    %c0_102 = arith.constant 0 : index
    %c0_103 = arith.constant 0 : index
    %199 = vector.load %arg22[%c0_102, %c0_103] : memref<32x128xbf16, #tpu.memory_space<vmem>>, vector<32x128xbf16>
    %c0_104 = arith.constant 0 : index
    %c0_105 = arith.constant 0 : index
    %200 = vector.load %arg20[%c0_104, %c0_105] : memref<128x10xf32, #tpu.memory_space<vmem>>, vector<128x10xf32>
    %201 = arith.mulf %198, %200 : vector<128x10xf32>
    %202 = arith.truncf %201 : vector<128x10xf32> to vector<128x10xbf16>
    %cst_106 = arith.constant dense<0.000000e+00> : vector<32x10xf32>
    %203 = tpu.matmul %199, %202, %cst_106 {dimension_numbers = #tpu.dot_dimension_numbers<[1], [0], [0], [1], [0, 0, 1, 1], [], []>} : vector<32x128xbf16>, vector<128x10xbf16>, vector<32x10xf32> -> vector<32x10xf32>
    %cst_107 = arith.constant dense<0.000000e+00> : vector<32xf32>
    %204 = vector.multi_reduction <add>, %203, %cst_107 [1] : vector<32x10xf32> to vector<32xf32>
    %205 = vector.shape_cast %204 : vector<32xf32> to vector<32x1xf32>
    %c0_108 = arith.constant 0 : index
    %c0_109 = arith.constant 0 : index
    %206 = vector.load %arg23[%c0_108, %c0_109] : memref<1x1xf32, #tpu.memory_space<vmem>>, vector<1x1xf32>
    %207 = vector.broadcast %206 : vector<1x1xf32> to vector<32x1xf32>
    %208 = arith.addf %205, %207 : vector<32x1xf32>
    %c0_110 = arith.constant 0 : index
    %c0_111 = arith.constant 0 : index
    %209 = vector.load %arg22[%c0_110, %c0_111] : memref<32x128xbf16, #tpu.memory_space<vmem>>, vector<32x128xbf16>
    %c0_112 = arith.constant 0 : index
    %c0_113 = arith.constant 0 : index
    %210 = vector.load %arg21[%c0_112, %c0_113] : memref<128x10xf32, #tpu.memory_space<vmem>>, vector<128x10xf32>
    %211 = arith.mulf %198, %210 : vector<128x10xf32>
    %212 = arith.truncf %211 : vector<128x10xf32> to vector<128x10xbf16>
    %cst_114 = arith.constant dense<0.000000e+00> : vector<32x10xf32>
    %213 = tpu.matmul %209, %212, %cst_114 {dimension_numbers = #tpu.dot_dimension_numbers<[1], [0], [0], [1], [0, 0, 1, 1], [], []>} : vector<32x128xbf16>, vector<128x10xbf16>, vector<32x10xf32> -> vector<32x10xf32>
    %cst_115 = arith.constant dense<0.000000e+00> : vector<32xf32>
    %214 = vector.multi_reduction <add>, %213, %cst_115 [1] : vector<32x10xf32> to vector<32xf32>
    %215 = vector.shape_cast %214 : vector<32xf32> to vector<32x1xf32>
    %c0_116 = arith.constant 0 : index
    %c0_117 = arith.constant 0 : index
    %216 = vector.load %arg24[%c0_116, %c0_117] : memref<1x1xf32, #tpu.memory_space<vmem>>, vector<1x1xf32>
    %217 = vector.broadcast %216 : vector<1x1xf32> to vector<32x1xf32>
    %218 = arith.addf %215, %217 : vector<32x1xf32>
    %219 = arith.mulf %208, %218 : vector<32x1xf32>
    %220 = arith.negf %219 : vector<32x1xf32>
    %221 = math.exp %220 : vector<32x1xf32>
    %cst_118 = arith.constant 1.000000e+00 : f32
    %222 = vector.broadcast %cst_118 : f32 to vector<32x1xf32>
    %223 = arith.addf %222, %221 : vector<32x1xf32>
    %224 = arith.divf %222, %223 : vector<32x1xf32>
    %c0_119 = arith.constant 0 : index
    %c0_120 = arith.constant 0 : index
    %225 = vector.load %arg25[%c0_119, %c0_120] : memref<32x1xf32, #tpu.memory_space<vmem>>, vector<32x1xf32>
    tpu.vector_store %arg25[%c0_119, %c0_120], %224 {strides = array<i32>} : memref<32x1xf32, #tpu.memory_space<vmem>>, vector<32x1xf32>,
    return
  }
  func.func @transform_0(%arg0: i32) -> (i32, i32) {
    %c0_i32 = arith.constant 0 : i32
    %c0_i32_0 = arith.constant 0 : i32
    return %arg0, %c0_i32 : i32, i32
  }
  func.func @transform_1(%arg0: i32) -> (i32, i32) {
    %c0_i32 = arith.constant 0 : i32
    %c0_i32_0 = arith.constant 0 : i32
    return %arg0, %c0_i32 : i32, i32
  }
  func.func @transform_2(%arg0: i32) -> (i32, i32) {
    %c0_i32 = arith.constant 0 : i32
    %c0_i32_0 = arith.constant 0 : i32
    return %arg0, %c0_i32 : i32, i32
  }
  func.func @transform_3(%arg0: i32) -> (i32, i32, i32) {
    %c0_i32 = arith.constant 0 : i32
    %c0_i32_0 = arith.constant 0 : i32
    %c0_i32_1 = arith.constant 0 : i32
    %c0_i32_2 = arith.constant 0 : i32
    return %c0_i32, %c0_i32_0, %c0_i32_1 : i32, i32, i32
  }
  func.func @transform_4(%arg0: i32) -> (i32, i32) {
    %c0_i32 = arith.constant 0 : i32
    %c0_i32_0 = arith.constant 0 : i32
    %c0_i32_1 = arith.constant 0 : i32
    return %c0_i32, %c0_i32_0 : i32, i32
  }
  func.func @transform_5(%arg0: i32) -> (i32, i32) {
    %c0_i32 = arith.constant 0 : i32
    %c0_i32_0 = arith.constant 0 : i32
    %c0_i32_1 = arith.constant 0 : i32
    return %c0_i32, %c0_i32_0 : i32, i32
  }
  func.func @transform_6(%arg0: i32) -> (i32, i32) {
    %c0_i32 = arith.constant 0 : i32
    %c0_i32_0 = arith.constant 0 : i32
    %c0_i32_1 = arith.constant 0 : i32
    return %c0_i32, %c0_i32_0 : i32, i32
  }
  func.func @transform_7(%arg0: i32) -> (i32, i32) {
    %c0_i32 = arith.constant 0 : i32
    %c0_i32_0 = arith.constant 0 : i32
    %c0_i32_1 = arith.constant 0 : i32
    return %c0_i32, %c0_i32_0 : i32, i32
  }
  func.func @transform_8(%arg0: i32) -> (i32, i32) {
    %c0_i32 = arith.constant 0 : i32
    %c0_i32_0 = arith.constant 0 : i32
    %c0_i32_1 = arith.constant 0 : i32
    return %c0_i32, %c0_i32_0 : i32, i32
  }
  func.func @transform_9(%arg0: i32) -> (i32, i32) {
    %c0_i32 = arith.constant 0 : i32
    %c0_i32_0 = arith.constant 0 : i32
    %c0_i32_1 = arith.constant 0 : i32
    return %c0_i32, %c0_i32_0 : i32, i32
  }
  func.func @transform_10(%arg0: i32) -> (i32, i32) {
    %c0_i32 = arith.constant 0 : i32
    %c0_i32_0 = arith.constant 0 : i32
    %c0_i32_1 = arith.constant 0 : i32
    return %c0_i32, %c0_i32_0 : i32, i32
  }
  func.func @transform_11(%arg0: i32) -> (i32, i32) {
    %c0_i32 = arith.constant 0 : i32
    %c0_i32_0 = arith.constant 0 : i32
    %c0_i32_1 = arith.constant 0 : i32
    return %c0_i32, %c0_i32_0 : i32, i32
  }
  func.func @transform_12(%arg0: i32) -> (i32, i32, i32) {
    %c0_i32 = arith.constant 0 : i32
    %c0_i32_0 = arith.constant 0 : i32
    %c0_i32_1 = arith.constant 0 : i32
    %c0_i32_2 = arith.constant 0 : i32
    return %c0_i32, %c0_i32_0, %c0_i32_1 : i32, i32, i32
  }
  func.func @transform_13(%arg0: i32) -> (i32, i32) {
    %c0_i32 = arith.constant 0 : i32
    %c0_i32_0 = arith.constant 0 : i32
    %c0_i32_1 = arith.constant 0 : i32
    return %c0_i32, %c0_i32_0 : i32, i32
  }
  func.func @transform_14(%arg0: i32) -> (i32, i32, i32) {
    %c0_i32 = arith.constant 0 : i32
    %c0_i32_0 = arith.constant 0 : i32
    %c0_i32_1 = arith.constant 0 : i32
    %c0_i32_2 = arith.constant 0 : i32
    return %c0_i32, %c0_i32_0, %c0_i32_1 : i32, i32, i32
  }
  func.func @transform_15(%arg0: i32) -> (i32, i32, i32) {
    %c0_i32 = arith.constant 0 : i32
    %c0_i32_0 = arith.constant 0 : i32
    %c0_i32_1 = arith.constant 0 : i32
    %c0_i32_2 = arith.constant 0 : i32
    return %c0_i32, %c0_i32_0, %c0_i32_1 : i32, i32, i32
  }
  func.func @transform_16(%arg0: i32) -> (i32, i32) {
    %c0_i32 = arith.constant 0 : i32
    %c0_i32_0 = arith.constant 0 : i32
    %c0_i32_1 = arith.constant 0 : i32
    return %c0_i32, %c0_i32_0 : i32, i32
  }
  func.func @transform_17(%arg0: i32) -> (i32, i32) {
    %c0_i32 = arith.constant 0 : i32
    %c0_i32_0 = arith.constant 0 : i32
    %c0_i32_1 = arith.constant 0 : i32
    return %c0_i32, %c0_i32_0 : i32, i32
  }
  func.func @transform_18(%arg0: i32) -> (i32, i32, i32) {
    %c0_i32 = arith.constant 0 : i32
    %c0_i32_0 = arith.constant 0 : i32
    %c0_i32_1 = arith.constant 0 : i32
    %c0_i32_2 = arith.constant 0 : i32
    return %c0_i32, %c0_i32_0, %c0_i32_1 : i32, i32, i32
  }
  func.func @transform_19(%arg0: i32) -> (i32, i32) {
    %c0_i32 = arith.constant 0 : i32
    %c0_i32_0 = arith.constant 0 : i32
    %c0_i32_1 = arith.constant 0 : i32
    return %c0_i32, %c0_i32_0 : i32, i32
  }
  func.func @transform_20(%arg0: i32) -> (i32, i32) {
    %c0_i32 = arith.constant 0 : i32
    %c0_i32_0 = arith.constant 0 : i32
    %c0_i32_1 = arith.constant 0 : i32
    return %c0_i32, %c0_i32_0 : i32, i32
  }
  func.func @transform_21(%arg0: i32) -> (i32, i32) {
    %c0_i32 = arith.constant 0 : i32
    %c0_i32_0 = arith.constant 0 : i32
    %c0_i32_1 = arith.constant 0 : i32
    return %c0_i32, %c0_i32_0 : i32, i32
  }
  func.func @transform_22(%arg0: i32) -> (i32, i32) {
    %c0_i32 = arith.constant 0 : i32
    %c0_i32_0 = arith.constant 0 : i32
    %c0_i32_1 = arith.constant 0 : i32
    return %c0_i32, %c0_i32_0 : i32, i32
  }
  func.func @transform_23(%arg0: i32) -> (i32, i32) {
    %c0_i32 = arith.constant 0 : i32
    %c0_i32_0 = arith.constant 0 : i32
    %c0_i32_1 = arith.constant 0 : i32
    return %c0_i32, %c0_i32_0 : i32, i32
  }
  func.func @transform_24(%arg0: i32) -> (i32, i32) {
    %c0_i32 = arith.constant 0 : i32
    %c0_i32_0 = arith.constant 0 : i32
    return %arg0, %c0_i32 : i32, i32
  }
}

</mosaic_0001>

<llo_original>
// kernel: net_forward.1
$region0: #{net_forward.1}
  #allocation0 [shape = 'u32[]', space=smem, size = 0x4, offset = 0x4, fixed_abs, tag = 'smem constant byte address 0x4 - core index']
  #allocation1 [shape = 'u32[144,128]{1,0:T(1,128)}', space=vmem, size = 0x12000, scoped, tag = 'internal scratch']
  #allocation2 [shape = 'f32[1,1]{1,0:T(1,128)S(1)}', space=vmem, size = 0x200, scoped, tag = 'scoped memory for net_forward.1']
  #allocation3 [shape = 'f32[1,1]{1,0:T(1,128)S(1)}', space=vmem, size = 0x200, scoped, tag = 'scoped memory for net_forward.1']
  %s0 = inlined_call_operand.vmem [shape: f32[512,16], index: 0, kind: input, shape index: {}]
  %s1 = inlined_call_operand.vmem [shape: bf16[512,8], index: 1, kind: input, shape index: {}]
  %s2 = inlined_call_operand.vmem [shape: bf16[512,256], index: 2, kind: input, shape index: {}]
  %s3 = inlined_call_operand.vmem [shape: bf16[3,16,16], index: 3, kind: input, shape index: {}]
  %s4 = inlined_call_operand.vmem [shape: bf16[16,384], index: 4, kind: input, shape index: {}]
  %s5 = inlined_call_operand.vmem [shape: bf16[16,384], index: 5, kind: input, shape index: {}]
  %s6 = inlined_call_operand.vmem [shape: f32[1,16], index: 6, kind: input, shape index: {}]
  %s7 = inlined_call_operand.vmem [shape: f32[1,16], index: 7, kind: input, shape index: {}]
  %s8 = inlined_call_operand.vmem [shape: f32[1,16], index: 8, kind: input, shape index: {}]
  %s9 = inlined_call_operand.vmem [shape: f32[1,16], index: 9, kind: input, shape index: {}]
  %s10 = inlined_call_operand.vmem [shape: bf16[16,40], index: 10, kind: input, shape index: {}]
  %s11 = inlined_call_operand.vmem [shape: bf16[8,40], index: 11, kind: input, shape index: {}]
  %s12 = inlined_call_operand.vmem [shape: bf16[3,192,256], index: 12, kind: input, shape index: {}]
  %s13 = inlined_call_operand.vmem [shape: f32[192,1], index: 13, kind: input, shape index: {}]
  %s14 = inlined_call_operand.vmem [shape: bf16[3,40,40], index: 14, kind: input, shape index: {}]
  %s15 = inlined_call_operand.vmem [shape: bf16[3,40,18], index: 15, kind: input, shape index: {}]
  %s16 = inlined_call_operand.vmem [shape: bf16[128,192], index: 16, kind: input, shape index: {}]
  %s17 = inlined_call_operand.vmem [shape: f32[128,1], index: 17, kind: input, shape index: {}]
  %s18 = inlined_call_operand.vmem [shape: bf16[2,18,10], index: 18, kind: input, shape index: {}]
  %s19 = inlined_call_operand.vmem [shape: f32[128,10], index: 19, kind: input, shape index: {}]
  %s20 = inlined_call_operand.vmem [shape: f32[128,10], index: 20, kind: input, shape index: {}]
  %s21 = inlined_call_operand.vmem [shape: bf16[32,128], index: 21, kind: input, shape index: {}]
  %s22 = inlined_call_operand.<no memory space> [shape: f32[1,1], index: 22, kind: input, shape index: {}]
  %s23 = inlined_call_operand.<no memory space> [shape: f32[1,1], index: 23, kind: input, shape index: {}]
  %s24 = inlined_call_operand.vmem [shape: f32[64,1], index: 24, kind: output, shape index: {}]
  %s25 = sld [smem:[#allocation0]]
  $region129: #{net_forward.1} parent=0
    _
  %s27 = ssub.s32 1, %s25
  %s28 = scalar_select 0, %s27, %s25
  %v29 = vstv %s22
  %30 = vst [vmem:[#allocation2] sm:$0x1] %v29
  %v31 = vstv %s23
  %32 = vst [vmem:[#allocation3] sm:$0x1] %v31
  loop: start=0, step=1, limit=4
  $region2: #{net_forward.1} parent=0 // loop_pre_header
    _
  $region3: #{net_forward.1} parent=0 // loop_header
    %s34 = sphi 0, %s38
    %p35 = scmp.ge.s32.totalorder %s34, 4
    %s44 = sphi 0, %s46
    %s47 = sphi 0, %s44
    %s48 = sphi 0, %s47
    %s64 = sphi 0, %s48
    %s70 = sphi 0, %s72
    %s73 = sphi 0, %s70
    %s74 = sphi 0, %s73
    %s90 = sphi 0, %s74
    %s96 = sphi 0, %s98
    %s99 = sphi 0, %s96
    %s100 = sphi 0, %s99
    %s116 = sphi 0, %s100
    %s120 = sphi 0, %s120
    %s122 = sphi 0, %s120
    %s123 = sphi 0, %s122
    %s137 = sphi 0, %s123
    %s141 = sphi 0, %s141
    %s143 = sphi 0, %s141
    %s144 = sphi 0, %s143
    %s158 = sphi 0, %s144
    %s162 = sphi 0, %s162
    %s164 = sphi 0, %s162
    %s165 = sphi 0, %s164
    %s179 = sphi 0, %s165
    %s183 = sphi 0, %s183
    %s185 = sphi 0, %s183
    %s186 = sphi 0, %s185
    %s200 = sphi 0, %s186
    %s204 = sphi 0, %s204
    %s206 = sphi 0, %s204
    %s207 = sphi 0, %s206
    %s221 = sphi 0, %s207
    %s225 = sphi 0, %s225
    %s227 = sphi 0, %s225
    %s228 = sphi 0, %s227
    %s242 = sphi 0, %s228
    %s246 = sphi 0, %s246
    %s248 = sphi 0, %s246
    %s249 = sphi 0, %s248
    %s263 = sphi 0, %s249
    %s267 = sphi 0, %s267
    %s269 = sphi 0, %s267
    %s270 = sphi 0, %s269
    %s284 = sphi 0, %s270
    %s288 = sphi 0, %s288
    %s290 = sphi 0, %s288
    %s291 = sphi 0, %s290
    %s305 = sphi 0, %s291
    %s309 = sphi 0, %s309
    %s311 = sphi 0, %s309
    %s312 = sphi 0, %s311
    %s326 = sphi 0, %s312
    %s330 = sphi 0, %s330
    %s332 = sphi 0, %s330
    %s333 = sphi 0, %s332
    %s347 = sphi 0, %s333
    %s351 = sphi 0, %s351
    %s353 = sphi 0, %s351
    %s354 = sphi 0, %s353
    %s368 = sphi 0, %s354
    %s372 = sphi 0, %s372
    %s374 = sphi 0, %s372
    %s375 = sphi 0, %s374
    %s389 = sphi 0, %s375
    %s393 = sphi 0, %s393
    %s395 = sphi 0, %s393
    %s396 = sphi 0, %s395
    %s410 = sphi 0, %s396
    %s414 = sphi 0, %s414
    %s416 = sphi 0, %s414
    %s417 = sphi 0, %s416
    %s431 = sphi 0, %s417
    %s435 = sphi 0, %s435
    %s437 = sphi 0, %s435
    %s438 = sphi 0, %s437
    %s452 = sphi 0, %s438
    %s456 = sphi 0, %s456
    %s458 = sphi 0, %s456
    %s459 = sphi 0, %s458
    %s473 = sphi 0, %s459
    %s477 = sphi 0, %s477
    %s479 = sphi 0, %s477
    %s480 = sphi 0, %s479
    %s494 = sphi 0, %s480
    %s498 = sphi 0, %s498
    %s500 = sphi 0, %s498
    %s501 = sphi 0, %s500
    %s515 = sphi 0, %s501
    %s519 = sphi 0, %s519
    %s521 = sphi 0, %s519
    %s522 = sphi 0, %s521
    %s536 = sphi 0, %s522
    %s540 = sphi 0, %s540
    %s542 = sphi 0, %s540
    %s543 = sphi 0, %s542
    %s557 = sphi 0, %s543
    %s563 = sphi 0, %s565
    %s566 = sphi 0, %s563
    %s567 = sphi 0, %s566
    %s583 = sphi 0, %s567
  $region4: #{net_forward.1} parent=0 // loop_header_branch
    %37 = sbr.rel (%p35) target = $region8
  $region5: #{net_forward.1} parent=0 // loop_body
    %s39 = ssub.s32 %s34, 1
    %s40 = ssub.s32 %s34, 2
    %s41 = sadd.s32 %s34, 1
    %s42 = ssub.s32 %s34, %s41
    %p43 = scmp.eq.s32.totalorder %s42, 0
    %s45 = sadd.s32 %s44, 1
    %s46 = scalar_select %p43, %s44, %s45
    %p49 = pneg %p43
    %p50 = scmp.eq.s32.totalorder %s34, 1
    %p51 = por %p49, %p50
    %p52 = scmp.ne.s32.totalorder %s44, %s47
    %p53 = scmp.eq.s32.totalorder %s34, 0
    %p54 = por %p52, %p53
    %p55 = scmp.ne.s32.totalorder %s44, %s47
    %p56 = scmp.eq.s32.totalorder %s39, 1
    %p57 = por %p55, %p56
    %p58 = scmp.ne.s32.totalorder %s47, %s48
    %p59 = scmp.eq.s32.totalorder %s39, 0
    %p60 = por %p58, %p59
    %p61 = scmp.ne.s32.totalorder %s47, %s48
    %p62 = scmp.eq.s32.totalorder %s40, 1
    %p63 = por %p61, %p62
    %p65 = scmp.ne.s32.totalorder %s48, %s64
    %p66 = scmp.eq.s32.totalorder %s40, 0
    %p67 = por %p65, %p66
    %s68 = ssub.s32 %s34, %s41
    %p69 = scmp.eq.s32.totalorder %s68, 0
    %s71 = sadd.s32 %s70, 1
    %s72 = scalar_select %p69, %s70, %s71
    %p75 = pneg %p69
    %p76 = scmp.eq.s32.totalorder %s34, 1
    %p77 = por %p75, %p76
    %p78 = scmp.ne.s32.totalorder %s70, %s73
    %p79 = scmp.eq.s32.totalorder %s34, 0
    %p80 = por %p78, %p79
    %p81 = scmp.ne.s32.totalorder %s70, %s73
    %p82 = scmp.eq.s32.totalorder %s39, 1
    %p83 = por %p81, %p82
    %p84 = scmp.ne.s32.totalorder %s73, %s74
    %p85 = scmp.eq.s32.totalorder %s39, 0
    %p86 = por %p84, %p85
    %p87 = scmp.ne.s32.totalorder %s73, %s74
    %p88 = scmp.eq.s32.totalorder %s40, 1
    %p89 = por %p87, %p88
    %p91 = scmp.ne.s32.totalorder %s74, %s90
    %p92 = scmp.eq.s32.totalorder %s40, 0
    %p93 = por %p91, %p92
    %s94 = ssub.s32 %s34, %s41
    %p95 = scmp.eq.s32.totalorder %s94, 0
    %s97 = sadd.s32 %s96, 1
    %s98 = scalar_select %p95, %s96, %s97
    %p101 = pneg %p95
    %p102 = scmp.eq.s32.totalorder %s34, 1
    %p103 = por %p101, %p102
    %p104 = scmp.ne.s32.totalorder %s96, %s99
    %p105 = scmp.eq.s32.totalorder %s34, 0
    %p106 = por %p104, %p105
    %p107 = scmp.ne.s32.totalorder %s96, %s99
    %p108 = scmp.eq.s32.totalorder %s39, 1
    %p109 = por %p107, %p108
    %p110 = scmp.ne.s32.totalorder %s99, %s100
    %p111 = scmp.eq.s32.totalorder %s39, 0
    %p112 = por %p110, %p111
    %p113 = scmp.ne.s32.totalorder %s99, %s100
    %p114 = scmp.eq.s32.totalorder %s40, 1
    %p115 = por %p113, %p114
    %p117 = scmp.ne.s32.totalorder %s100, %s116
    %p118 = scmp.eq.s32.totalorder %s40, 0
    %p119 = por %p117, %p118
    %s121 = sadd.s32 %s120, 1
    %p124 = scmp.eq.s32.totalorder %s34, 1
    %p125 = scmp.ne.s32.totalorder %s120, %s122
    %p126 = scmp.eq.s32.totalorder %s34, 0
    %p127 = por %p125, %p126
    %p128 = scmp.ne.s32.totalorder %s120, %s122
    %p129 = scmp.eq.s32.totalorder %s39, 1
    %p130 = por %p128, %p129
    %p131 = scmp.ne.s32.totalorder %s122, %s123
    %p132 = scmp.eq.s32.totalorder %s39, 0
    %p133 = por %p131, %p132
    %p134 = scmp.ne.s32.totalorder %s122, %s123
    %p135 = scmp.eq.s32.totalorder %s40, 1
    %p136 = por %p134, %p135
    %p138 = scmp.ne.s32.totalorder %s123, %s137
    %p139 = scmp.eq.s32.totalorder %s40, 0
    %p140 = por %p138, %p139
    %s142 = sadd.s32 %s141, 1
    %p145 = scmp.eq.s32.totalorder %s34, 1
    %p146 = scmp.ne.s32.totalorder %s141, %s143
    %p147 = scmp.eq.s32.totalorder %s34, 0
    %p148 = por %p146, %p147
    %p149 = scmp.ne.s32.totalorder %s141, %s143
    %p150 = scmp.eq.s32.totalorder %s39, 1
    %p151 = por %p149, %p150
    %p152 = scmp.ne.s32.totalorder %s143, %s144
    %p153 = scmp.eq.s32.totalorder %s39, 0
    %p154 = por %p152, %p153
    %p155 = scmp.ne.s32.totalorder %s143, %s144
    %p156 = scmp.eq.s32.totalorder %s40, 1
    %p157 = por %p155, %p156
    %p159 = scmp.ne.s32.totalorder %s144, %s158
    %p160 = scmp.eq.s32.totalorder %s40, 0
    %p161 = por %p159, %p160
    %s163 = sadd.s32 %s162, 1
    %p166 = scmp.eq.s32.totalorder %s34, 1
    %p167 = scmp.ne.s32.totalorder %s162, %s164
    %p168 = scmp.eq.s32.totalorder %s34, 0
    %p169 = por %p167, %p168
    %p170 = scmp.ne.s32.totalorder %s162, %s164
    %p171 = scmp.eq.s32.totalorder %s39, 1
    %p172 = por %p170, %p171
    %p173 = scmp.ne.s32.totalorder %s164, %s165
    %p174 = scmp.eq.s32.totalorder %s39, 0
    %p175 = por %p173, %p174
    %p176 = scmp.ne.s32.totalorder %s164, %s165
    %p177 = scmp.eq.s32.totalorder %s40, 1
    %p178 = por %p176, %p177
    %p180 = scmp.ne.s32.totalorder %s165, %s179
    %p181 = scmp.eq.s32.totalorder %s40, 0
    %p182 = por %p180, %p181
    %s184 = sadd.s32 %s183, 1
    %p187 = scmp.eq.s32.totalorder %s34, 1
    %p188 = scmp.ne.s32.totalorder %s183, %s185
    %p189 = scmp.eq.s32.totalorder %s34, 0
    %p190 = por %p188, %p189
    %p191 = scmp.ne.s32.totalorder %s183, %s185
    %p192 = scmp.eq.s32.totalorder %s39, 1
    %p193 = por %p191, %p192
    %p194 = scmp.ne.s32.totalorder %s185, %s186
    %p195 = scmp.eq.s32.totalorder %s39, 0
    %p196 = por %p194, %p195
    %p197 = scmp.ne.s32.totalorder %s185, %s186
    %p198 = scmp.eq.s32.totalorder %s40, 1
    %p199 = por %p197, %p198
    %p201 = scmp.ne.s32.totalorder %s186, %s200
    %p202 = scmp.eq.s32.totalorder %s40, 0
    %p203 = por %p201, %p202
    %s205 = sadd.s32 %s204, 1
    %p208 = scmp.eq.s32.totalorder %s34, 1
    %p209 = scmp.ne.s32.totalorder %s204, %s206
    %p210 = scmp.eq.s32.totalorder %s34, 0
    %p211 = por %p209, %p210
    %p212 = scmp.ne.s32.totalorder %s204, %s206
    %p213 = scmp.eq.s32.totalorder %s39, 1
    %p214 = por %p212, %p213
    %p215 = scmp.ne.s32.totalorder %s206, %s207
    %p216 = scmp.eq.s32.totalorder %s39, 0
    %p217 = por %p215, %p216
    %p218 = scmp.ne.s32.totalorder %s206, %s207
    %p219 = scmp.eq.s32.totalorder %s40, 1
    %p220 = por %p218, %p219
    %p222 = scmp.ne.s32.totalorder %s207, %s221
    %p223 = scmp.eq.s32.totalorder %s40, 0
    %p224 = por %p222, %p223
    %s226 = sadd.s32 %s225, 1
    %p229 = scmp.eq.s32.totalorder %s34, 1
    %p230 = scmp.ne.s32.totalorder %s225, %s227
    %p231 = scmp.eq.s32.totalorder %s34, 0
    %p232 = por %p230, %p231
    %p233 = scmp.ne.s32.totalorder %s225, %s227
    %p234 = scmp.eq.s32.totalorder %s39, 1
    %p235 = por %p233, %p234
    %p236 = scmp.ne.s32.totalorder %s227, %s228
    %p237 = scmp.eq.s32.totalorder %s39, 0
    %p238 = por %p236, %p237
    %p239 = scmp.ne.s32.totalorder %s227, %s228
    %p240 = scmp.eq.s32.totalorder %s40, 1
    %p241 = por %p239, %p240
    %p243 = scmp.ne.s32.totalorder %s228, %s242
    %p244 = scmp.eq.s32.totalorder %s40, 0
    %p245 = por %p243, %p244
    %s247 = sadd.s32 %s246, 1
    %p250 = scmp.eq.s32.totalorder %s34, 1
    %p251 = scmp.ne.s32.totalorder %s246, %s248
    %p252 = scmp.eq.s32.totalorder %s34, 0
    %p253 = por %p251, %p252
    %p254 = scmp.ne.s32.totalorder %s246, %s248
    %p255 = scmp.eq.s32.totalorder %s39, 1
    %p256 = por %p254, %p255
    %p257 = scmp.ne.s32.totalorder %s248, %s249
    %p258 = scmp.eq.s32.totalorder %s39, 0
    %p259 = por %p257, %p258
    %p260 = scmp.ne.s32.totalorder %s248, %s249
    %p261 = scmp.eq.s32.totalorder %s40, 1
    %p262 = por %p260, %p261
    %p264 = scmp.ne.s32.totalorder %s249, %s263
    %p265 = scmp.eq.s32.totalorder %s40, 0
    %p266 = por %p264, %p265
    %s268 = sadd.s32 %s267, 1
    %p271 = scmp.eq.s32.totalorder %s34, 1
    %p272 = scmp.ne.s32.totalorder %s267, %s269
    %p273 = scmp.eq.s32.totalorder %s34, 0
    %p274 = por %p272, %p273
    %p275 = scmp.ne.s32.totalorder %s267, %s269
    %p276 = scmp.eq.s32.totalorder %s39, 1
    %p277 = por %p275, %p276
    %p278 = scmp.ne.s32.totalorder %s269, %s270
    %p279 = scmp.eq.s32.totalorder %s39, 0
    %p280 = por %p278, %p279
    %p281 = scmp.ne.s32.totalorder %s269, %s270
    %p282 = scmp.eq.s32.totalorder %s40, 1
    %p283 = por %p281, %p282
    %p285 = scmp.ne.s32.totalorder %s270, %s284
    %p286 = scmp.eq.s32.totalorder %s40, 0
    %p287 = por %p285, %p286
    %s289 = sadd.s32 %s288, 1
    %p292 = scmp.eq.s32.totalorder %s34, 1
    %p293 = scmp.ne.s32.totalorder %s288, %s290
    %p294 = scmp.eq.s32.totalorder %s34, 0
    %p295 = por %p293, %p294
    %p296 = scmp.ne.s32.totalorder %s288, %s290
    %p297 = scmp.eq.s32.totalorder %s39, 1
    %p298 = por %p296, %p297
    %p299 = scmp.ne.s32.totalorder %s290, %s291
    %p300 = scmp.eq.s32.totalorder %s39, 0
    %p301 = por %p299, %p300
    %p302 = scmp.ne.s32.totalorder %s290, %s291
    %p303 = scmp.eq.s32.totalorder %s40, 1
    %p304 = por %p302, %p303
    %p306 = scmp.ne.s32.totalorder %s291, %s305
    %p307 = scmp.eq.s32.totalorder %s40, 0
    %p308 = por %p306, %p307
    %s310 = sadd.s32 %s309, 1
    %p313 = scmp.eq.s32.totalorder %s34, 1
    %p314 = scmp.ne.s32.totalorder %s309, %s311
    %p315 = scmp.eq.s32.totalorder %s34, 0
    %p316 = por %p314, %p315
    %p317 = scmp.ne.s32.totalorder %s309, %s311
    %p318 = scmp.eq.s32.totalorder %s39, 1
    %p319 = por %p317, %p318
    %p320 = scmp.ne.s32.totalorder %s311, %s312
    %p321 = scmp.eq.s32.totalorder %s39, 0
    %p322 = por %p320, %p321
    %p323 = scmp.ne.s32.totalorder %s311, %s312
    %p324 = scmp.eq.s32.totalorder %s40, 1
    %p325 = por %p323, %p324
    %p327 = scmp.ne.s32.totalorder %s312, %s326
    %p328 = scmp.eq.s32.totalorder %s40, 0
    %p329 = por %p327, %p328
    %s331 = sadd.s32 %s330, 1
    %p334 = scmp.eq.s32.totalorder %s34, 1
    %p335 = scmp.ne.s32.totalorder %s330, %s332
    %p336 = scmp.eq.s32.totalorder %s34, 0
    %p337 = por %p335, %p336
    %p338 = scmp.ne.s32.totalorder %s330, %s332
    %p339 = scmp.eq.s32.totalorder %s39, 1
    %p340 = por %p338, %p339
    %p341 = scmp.ne.s32.totalorder %s332, %s333
    %p342 = scmp.eq.s32.totalorder %s39, 0
    %p343 = por %p341, %p342
    %p344 = scmp.ne.s32.totalorder %s332, %s333
    %p345 = scmp.eq.s32.totalorder %s40, 1
    %p346 = por %p344, %p345
    %p348 = scmp.ne.s32.totalorder %s333, %s347
    %p349 = scmp.eq.s32.totalorder %s40, 0
    %p350 = por %p348, %p349
    %s352 = sadd.s32 %s351, 1
    %p355 = scmp.eq.s32.totalorder %s34, 1
    %p356 = scmp.ne.s32.totalorder %s351, %s353
    %p357 = scmp.eq.s32.totalorder %s34, 0
    %p358 = por %p356, %p357
    %p359 = scmp.ne.s32.totalorder %s351, %s353
    %p360 = scmp.eq.s32.totalorder %s39, 1
    %p361 = por %p359, %p360
    %p362 = scmp.ne.s32.totalorder %s353, %s354
    %p363 = scmp.eq.s32.totalorder %s39, 0
    %p364 = por %p362, %p363
    %p365 = scmp.ne.s32.totalorder %s353, %s354
    %p366 = scmp.eq.s32.totalorder %s40, 1
    %p367 = por %p365, %p366
    %p369 = scmp.ne.s32.totalorder %s354, %s368
    %p370 = scmp.eq.s32.totalorder %s40, 0
    %p371 = por %p369, %p370
    %s373 = sadd.s32 %s372, 1
    %p376 = scmp.eq.s32.totalorder %s34, 1
    %p377 = scmp.ne.s32.totalorder %s372, %s374
    %p378 = scmp.eq.s32.totalorder %s34, 0
    %p379 = por %p377, %p378
    %p380 = scmp.ne.s32.totalorder %s372, %s374
    %p381 = scmp.eq.s32.totalorder %s39, 1
    %p382 = por %p380, %p381
    %p383 = scmp.ne.s32.totalorder %s374, %s375
    %p384 = scmp.eq.s32.totalorder %s39, 0
    %p385 = por %p383, %p384
    %p386 = scmp.ne.s32.totalorder %s374, %s375
    %p387 = scmp.eq.s32.totalorder %s40, 1
    %p388 = por %p386, %p387
    %p390 = scmp.ne.s32.totalorder %s375, %s389
    %p391 = scmp.eq.s32.totalorder %s40, 0
    %p392 = por %p390, %p391
    %s394 = sadd.s32 %s393, 1
    %p397 = scmp.eq.s32.totalorder %s34, 1
    %p398 = scmp.ne.s32.totalorder %s393, %s395
    %p399 = scmp.eq.s32.totalorder %s34, 0
    %p400 = por %p398, %p399
    %p401 = scmp.ne.s32.totalorder %s393, %s395
    %p402 = scmp.eq.s32.totalorder %s39, 1
    %p403 = por %p401, %p402
    %p404 = scmp.ne.s32.totalorder %s395, %s396
    %p405 = scmp.eq.s32.totalorder %s39, 0
    %p406 = por %p404, %p405
    %p407 = scmp.ne.s32.totalorder %s395, %s396
    %p408 = scmp.eq.s32.totalorder %s40, 1
    %p409 = por %p407, %p408
    %p411 = scmp.ne.s32.totalorder %s396, %s410
    %p412 = scmp.eq.s32.totalorder %s40, 0
    %p413 = por %p411, %p412
    %s415 = sadd.s32 %s414, 1
    %p418 = scmp.eq.s32.totalorder %s34, 1
    %p419 = scmp.ne.s32.totalorder %s414, %s416
    %p420 = scmp.eq.s32.totalorder %s34, 0
    %p421 = por %p419, %p420
    %p422 = scmp.ne.s32.totalorder %s414, %s416
    %p423 = scmp.eq.s32.totalorder %s39, 1
    %p424 = por %p422, %p423
    %p425 = scmp.ne.s32.totalorder %s416, %s417
    %p426 = scmp.eq.s32.totalorder %s39, 0
    %p427 = por %p425, %p426
    %p428 = scmp.ne.s32.totalorder %s416, %s417
    %p429 = scmp.eq.s32.totalorder %s40, 1
    %p430 = por %p428, %p429
    %p432 = scmp.ne.s32.totalorder %s417, %s431
    %p433 = scmp.eq.s32.totalorder %s40, 0
    %p434 = por %p432, %p433
    %s436 = sadd.s32 %s435, 1
    %p439 = scmp.eq.s32.totalorder %s34, 1
    %p440 = scmp.ne.s32.totalorder %s435, %s437
    %p441 = scmp.eq.s32.totalorder %s34, 0
    %p442 = por %p440, %p441
    %p443 = scmp.ne.s32.totalorder %s435, %s437
    %p444 = scmp.eq.s32.totalorder %s39, 1
    %p445 = por %p443, %p444
    %p446 = scmp.ne.s32.totalorder %s437, %s438
    %p447 = scmp.eq.s32.totalorder %s39, 0
    %p448 = por %p446, %p447
    %p449 = scmp.ne.s32.totalorder %s437, %s438
    %p450 = scmp.eq.s32.totalorder %s40, 1
    %p451 = por %p449, %p450
    %p453 = scmp.ne.s32.totalorder %s438, %s452
    %p454 = scmp.eq.s32.totalorder %s40, 0
    %p455 = por %p453, %p454
    %s457 = sadd.s32 %s456, 1
    %p460 = scmp.eq.s32.totalorder %s34, 1
    %p461 = scmp.ne.s32.totalorder %s456, %s458
    %p462 = scmp.eq.s32.totalorder %s34, 0
    %p463 = por %p461, %p462
    %p464 = scmp.ne.s32.totalorder %s456, %s458
    %p465 = scmp.eq.s32.totalorder %s39, 1
    %p466 = por %p464, %p465
    %p467 = scmp.ne.s32.totalorder %s458, %s459
    %p468 = scmp.eq.s32.totalorder %s39, 0
    %p469 = por %p467, %p468
    %p470 = scmp.ne.s32.totalorder %s458, %s459
    %p471 = scmp.eq.s32.totalorder %s40, 1
    %p472 = por %p470, %p471
    %p474 = scmp.ne.s32.totalorder %s459, %s473
    %p475 = scmp.eq.s32.totalorder %s40, 0
    %p476 = por %p474, %p475
    %s478 = sadd.s32 %s477, 1
    %p481 = scmp.eq.s32.totalorder %s34, 1
    %p482 = scmp.ne.s32.totalorder %s477, %s479
    %p483 = scmp.eq.s32.totalorder %s34, 0
    %p484 = por %p482, %p483
    %p485 = scmp.ne.s32.totalorder %s477, %s479
    %p486 = scmp.eq.s32.totalorder %s39, 1
    %p487 = por %p485, %p486
    %p488 = scmp.ne.s32.totalorder %s479, %s480
    %p489 = scmp.eq.s32.totalorder %s39, 0
    %p490 = por %p488, %p489
    %p491 = scmp.ne.s32.totalorder %s479, %s480
    %p492 = scmp.eq.s32.totalorder %s40, 1
    %p493 = por %p491, %p492
    %p495 = scmp.ne.s32.totalorder %s480, %s494
    %p496 = scmp.eq.s32.totalorder %s40, 0
    %p497 = por %p495, %p496
    %s499 = sadd.s32 %s498, 1
    %p502 = scmp.eq.s32.totalorder %s34, 1
    %p503 = scmp.ne.s32.totalorder %s498, %s500
    %p504 = scmp.eq.s32.totalorder %s34, 0
    %p505 = por %p503, %p504
    %p506 = scmp.ne.s32.totalorder %s498, %s500
    %p507 = scmp.eq.s32.totalorder %s39, 1
    %p508 = por %p506, %p507
    %p509 = scmp.ne.s32.totalorder %s500, %s501
    %p510 = scmp.eq.s32.totalorder %s39, 0
    %p511 = por %p509, %p510
    %p512 = scmp.ne.s32.totalorder %s500, %s501
    %p513 = scmp.eq.s32.totalorder %s40, 1
    %p514 = por %p512, %p513
    %p516 = scmp.ne.s32.totalorder %s501, %s515
    %p517 = scmp.eq.s32.totalorder %s40, 0
    %p518 = por %p516, %p517
    %s520 = sadd.s32 %s519, 1
    %p523 = scmp.eq.s32.totalorder %s34, 1
    %p524 = scmp.ne.s32.totalorder %s519, %s521
    %p525 = scmp.eq.s32.totalorder %s34, 0
    %p526 = por %p524, %p525
    %p527 = scmp.ne.s32.totalorder %s519, %s521
    %p528 = scmp.eq.s32.totalorder %s39, 1
    %p529 = por %p527, %p528
    %p530 = scmp.ne.s32.totalorder %s521, %s522
    %p531 = scmp.eq.s32.totalorder %s39, 0
    %p532 = por %p530, %p531
    %p533 = scmp.ne.s32.totalorder %s521, %s522
    %p534 = scmp.eq.s32.totalorder %s40, 1
    %p535 = por %p533, %p534
    %p537 = scmp.ne.s32.totalorder %s522, %s536
    %p538 = scmp.eq.s32.totalorder %s40, 0
    %p539 = por %p537, %p538
    %s541 = sadd.s32 %s540, 1
    %p544 = scmp.eq.s32.totalorder %s34, 1
    %p545 = scmp.ne.s32.totalorder %s540, %s542
    %p546 = scmp.eq.s32.totalorder %s34, 0
    %p547 = por %p545, %p546
    %p548 = scmp.ne.s32.totalorder %s540, %s542
    %p549 = scmp.eq.s32.totalorder %s39, 1
    %p550 = por %p548, %p549
    %p551 = scmp.ne.s32.totalorder %s542, %s543
    %p552 = scmp.eq.s32.totalorder %s39, 0
    %p553 = por %p551, %p552
    %p554 = scmp.ne.s32.totalorder %s542, %s543
    %p555 = scmp.eq.s32.totalorder %s40, 1
    %p556 = por %p554, %p555
    %p558 = scmp.ne.s32.totalorder %s543, %s557
    %p559 = scmp.eq.s32.totalorder %s40, 0
    %p560 = por %p558, %p559
    %s561 = ssub.s32 %s34, %s41
    %p562 = scmp.eq.s32.totalorder %s561, 0
    %s564 = sadd.s32 %s563, 1
    %s565 = scalar_select %p562, %s563, %s564
    %p568 = pneg %p562
    %p569 = scmp.eq.s32.totalorder %s34, 1
    %p570 = por %p568, %p569
    %p571 = scmp.ne.s32.totalorder %s563, %s566
    %p572 = scmp.eq.s32.totalorder %s34, 0
    %p573 = por %p571, %p572
    %p574 = scmp.ne.s32.totalorder %s563, %s566
    %p575 = scmp.eq.s32.totalorder %s39, 1
    %p576 = por %p574, %p575
    %p577 = scmp.ne.s32.totalorder %s566, %s567
    %p578 = scmp.eq.s32.totalorder %s39, 0
    %p579 = por %p577, %p578
    %p580 = scmp.ne.s32.totalorder %s566, %s567
    %p581 = scmp.eq.s32.totalorder %s40, 1
    %p582 = por %p580, %p581
    %p584 = scmp.ne.s32.totalorder %s567, %s583
    %p585 = scmp.eq.s32.totalorder %s40, 0
    %p586 = por %p584, %p585
    %p587 = scmp.le.s32.totalorder 1, %s34
    %p588 = scmp.lt.s32.totalorder %s34, 3
    %p589 = pnand %p587, %p588
    %p590 = pneg %p589
    // Predicated region
    $region9: #{net_forward.1} parent=5 // pred_check
      _
    $region10: #{net_forward.1} parent=5 // pred_check_branch
      %592 = sbr.rel (%p589) target = $region12
    $region11: #{net_forward.1} parent=5 // pred_region
      %s593 = ssub.s32 %s34, 1
      // Predicated region
      $region13: #{net_forward.1} parent=11 // pred_check
        %p594 = pneg %p133
      $region14: #{net_forward.1} parent=11 // pred_check_branch
        %596 = sbr.rel (%p594) target = $region16
      $region15: #{net_forward.1} parent=11 // pred_region
        _
      $region16: #{net_forward.1} parent=11 // pred_fallthru
        _
      // Predicated region
      $region17: #{net_forward.1} parent=11 // pred_check
        %p597 = pneg %p154
      $region18: #{net_forward.1} parent=11 // pred_check_branch
        %599 = sbr.rel (%p597) target = $region20
      $region19: #{net_forward.1} parent=11 // pred_region
        _
      $region20: #{net_forward.1} parent=11 // pred_fallthru
        _
      // Predicated region
      $region21: #{net_forward.1} parent=11 // pred_check
        %p600 = pneg %p175
      $region22: #{net_forward.1} parent=11 // pred_check_branch
        %602 = sbr.rel (%p600) target = $region24
      $region23: #{net_forward.1} parent=11 // pred_region
        _
      $region24: #{net_forward.1} parent=11 // pred_fallthru
        _
      // Predicated region
      $region25: #{net_forward.1} parent=11 // pred_check
        %p603 = pneg %p196
      $region26: #{net_forward.1} parent=11 // pred_check_branch
        %605 = sbr.rel (%p603) target = $region28
      $region27: #{net_forward.1} parent=11 // pred_region
        _
      $region28: #{net_forward.1} parent=11 // pred_fallthru
        _
      // Predicated region
      $region29: #{net_forward.1} parent=11 // pred_check
        %p606 = pneg %p217
      $region30: #{net_forward.1} parent=11 // pred_check_branch
        %608 = sbr.rel (%p606) target = $region32
      $region31: #{net_forward.1} parent=11 // pred_region
        _
      $region32: #{net_forward.1} parent=11 // pred_fallthru
        _
      // Predicated region
      $region33: #{net_forward.1} parent=11 // pred_check
        %p609 = pneg %p238
      $region34: #{net_forward.1} parent=11 // pred_check_branch
        %611 = sbr.rel (%p609) target = $region36
      $region35: #{net_forward.1} parent=11 // pred_region
        _
      $region36: #{net_forward.1} parent=11 // pred_fallthru
        _
      // Predicated region
      $region37: #{net_forward.1} parent=11 // pred_check
        %p612 = pneg %p259
      $region38: #{net_forward.1} parent=11 // pred_check_branch
        %614 = sbr.rel (%p612) target = $region40
      $region39: #{net_forward.1} parent=11 // pred_region
        _
      $region40: #{net_forward.1} parent=11 // pred_fallthru
        _
      // Predicated region
      $region41: #{net_forward.1} parent=11 // pred_check
        %p615 = pneg %p280
      $region42: #{net_forward.1} parent=11 // pred_check_branch
        %617 = sbr.rel (%p615) target = $region44
      $region43: #{net_forward.1} parent=11 // pred_region
        _
      $region44: #{net_forward.1} parent=11 // pred_fallthru
        _
      // Predicated region
      $region45: #{net_forward.1} parent=11 // pred_check
        %p618 = pneg %p301
      $region46: #{net_forward.1} parent=11 // pred_check_branch
        %620 = sbr.rel (%p618) target = $region48
      $region47: #{net_forward.1} parent=11 // pred_region
        _
      $region48: #{net_forward.1} parent=11 // pred_fallthru
        _
      // Predicated region
      $region49: #{net_forward.1} parent=11 // pred_check
        %p621 = pneg %p322
      $region50: #{net_forward.1} parent=11 // pred_check_branch
        %623 = sbr.rel (%p621) target = $region52
      $region51: #{net_forward.1} parent=11 // pred_region
        _
      $region52: #{net_forward.1} parent=11 // pred_fallthru
        _
      // Predicated region
      $region53: #{net_forward.1} parent=11 // pred_check
        %p624 = pneg %p343
      $region54: #{net_forward.1} parent=11 // pred_check_branch
        %626 = sbr.rel (%p624) target = $region56
      $region55: #{net_forward.1} parent=11 // pred_region
        _
      $region56: #{net_forward.1} parent=11 // pred_fallthru
        _
      // Predicated region
      $region57: #{net_forward.1} parent=11 // pred_check
        %p627 = pneg %p364
      $region58: #{net_forward.1} parent=11 // pred_check_branch
        %629 = sbr.rel (%p627) target = $region60
      $region59: #{net_forward.1} parent=11 // pred_region
        _
      $region60: #{net_forward.1} parent=11 // pred_fallthru
        _
      // Predicated region
      $region61: #{net_forward.1} parent=11 // pred_check
        %p630 = pneg %p385
      $region62: #{net_forward.1} parent=11 // pred_check_branch
        %632 = sbr.rel (%p630) target = $region64
      $region63: #{net_forward.1} parent=11 // pred_region
        _
      $region64: #{net_forward.1} parent=11 // pred_fallthru
        _
      // Predicated region
      $region65: #{net_forward.1} parent=11 // pred_check
        %p633 = pneg %p406
      $region66: #{net_forward.1} parent=11 // pred_check_branch
        %635 = sbr.rel (%p633) target = $region68
      $region67: #{net_forward.1} parent=11 // pred_region
        _
      $region68: #{net_forward.1} parent=11 // pred_fallthru
        _
      // Predicated region
      $region69: #{net_forward.1} parent=11 // pred_check
        %p636 = pneg %p427
      $region70: #{net_forward.1} parent=11 // pred_check_branch
        %638 = sbr.rel (%p636) target = $region72
      $region71: #{net_forward.1} parent=11 // pred_region
        _
      $region72: #{net_forward.1} parent=11 // pred_fallthru
        _
      // Predicated region
      $region73: #{net_forward.1} parent=11 // pred_check
        %p639 = pneg %p448
      $region74: #{net_forward.1} parent=11 // pred_check_branch
        %641 = sbr.rel (%p639) target = $region76
      $region75: #{net_forward.1} parent=11 // pred_region
        _
      $region76: #{net_forward.1} parent=11 // pred_fallthru
        _
      // Predicated region
      $region77: #{net_forward.1} parent=11 // pred_check
        %p642 = pneg %p469
      $region78: #{net_forward.1} parent=11 // pred_check_branch
        %644 = sbr.rel (%p642) target = $region80
      $region79: #{net_forward.1} parent=11 // pred_region
        _
      $region80: #{net_forward.1} parent=11 // pred_fallthru
        _
      // Predicated region
      $region81: #{net_forward.1} parent=11 // pred_check
        %p645 = pneg %p490
      $region82: #{net_forward.1} parent=11 // pred_check_branch
        %647 = sbr.rel (%p645) target = $region84
      $region83: #{net_forward.1} parent=11 // pred_region
        _
      $region84: #{net_forward.1} parent=11 // pred_fallthru
        _
      // Predicated region
      $region85: #{net_forward.1} parent=11 // pred_check
        %p648 = pneg %p511
      $region86: #{net_forward.1} parent=11 // pred_check_branch
        %650 = sbr.rel (%p648) target = $region88
      $region87: #{net_forward.1} parent=11 // pred_region
        _
      $region88: #{net_forward.1} parent=11 // pred_fallthru
        _
      // Predicated region
      $region89: #{net_forward.1} parent=11 // pred_check
        %p651 = pneg %p532
      $region90: #{net_forward.1} parent=11 // pred_check_branch
        %653 = sbr.rel (%p651) target = $region92
      $region91: #{net_forward.1} parent=11 // pred_region
        _
      $region92: #{net_forward.1} parent=11 // pred_fallthru
        _
      // Predicated region
      $region93: #{net_forward.1} parent=11 // pred_check
        %p654 = pneg %p553
      $region94: #{net_forward.1} parent=11 // pred_check_branch
        %656 = sbr.rel (%p654) target = $region96
      $region95: #{net_forward.1} parent=11 // pred_region
        _
      $region96: #{net_forward.1} parent=11 // pred_fallthru
        _
    $region12: #{net_forward.1} parent=5 // pred_fallthru
      _
    %p657 = scmp.lt.s32.totalorder %s34, 2
    // Predicated region
    $region97: #{net_forward.1} parent=5 // pred_check
      %p658 = pneg %p657
    $region98: #{net_forward.1} parent=5 // pred_check_branch
      %660 = sbr.rel (%p658) target = $region100
    $region99: #{net_forward.1} parent=5 // pred_region
      // Predicated region
      $region101: #{net_forward.1} parent=99 // pred_check
        %p661 = pneg %p54
      $region102: #{net_forward.1} parent=99 // pred_check_branch
        %663 = sbr.rel (%p661) target = $region104
      $region103: #{net_forward.1} parent=99 // pred_region
        %s664 = smul.u32 32, %s34
        %p665 = scmp.lt.s32.totalorder %s664, 63
        %s666 = scalar_select %p665, %s664, 63
        %s667 = smul.addr %s666, 8
        %s668 = scalar_lea.vmem %s0, %s667
        %s669 = smul.u32 32, %s34
      $region104: #{net_forward.1} parent=99 // pred_fallthru
        _
      // Predicated region
      $region105: #{net_forward.1} parent=99 // pred_check
        %p670 = pneg %p80
      $region106: #{net_forward.1} parent=99 // pred_check_branch
        %672 = sbr.rel (%p670) target = $region108
      $region107: #{net_forward.1} parent=99 // pred_region
        %s673 = smul.u32 32, %s34
        %p674 = scmp.lt.s32.totalorder %s673, 63
        %s675 = scalar_select %p674, %s673, 63
        %s676 = smul.addr %s675, 4
        %s677 = scalar_lea.vmem %s1, %s676
        %s678 = smul.u32 32, %s34
      $region108: #{net_forward.1} parent=99 // pred_fallthru
        _
      // Predicated region
      $region109: #{net_forward.1} parent=99 // pred_check
        %p679 = pneg %p106
      $region110: #{net_forward.1} parent=99 // pred_check_branch
        %681 = sbr.rel (%p679) target = $region112
      $region111: #{net_forward.1} parent=99 // pred_region
        %s682 = smul.u32 32, %s34
        %p683 = scmp.lt.s32.totalorder %s682, 63
        %s684 = scalar_select %p683, %s682, 63
        %s685 = smul.addr %s684, 2
        %s686 = smul.addr %s685, 4
        %s687 = scalar_lea.vmem %s2, %s686
        %s688 = smul.u32 32, %s34
      $region112: #{net_forward.1} parent=99 // pred_fallthru
        _
    $region100: #{net_forward.1} parent=5 // pred_fallthru
      _
    %p689 = scmp.le.s32.totalorder 1, %s34
    %p690 = scmp.lt.s32.totalorder %s34, 3
    %p691 = pnand %p689, %p690
    %p692 = pneg %p691
    // Predicated region
    $region113: #{net_forward.1} parent=5 // pred_check
      _
    $region114: #{net_forward.1} parent=5 // pred_check_branch
      %694 = sbr.rel (%p691) target = $region116
    $region115: #{net_forward.1} parent=5 // pred_region
      %s695 = ssub.s32 %s34, 1
      %s696 = smul.u32 32, %s39
      %p697 = scmp.lt.s32.totalorder %s696, 63
      %s698 = scalar_select %p697, %s696, 63
      %s699 = smul.addr %s698, 8
      %s700 = scalar_lea.vmem %s0, %s699
      %p701 = pneg %p60
      %p702 = pneg %p57
      %s703 = smul.u32 32, %s39
      %p704 = scmp.lt.s32.totalorder %s703, 63
      %s705 = scalar_select %p704, %s703, 63
      %s706 = smul.addr %s705, 4
      %s707 = scalar_lea.vmem %s1, %s706
      %p708 = pneg %p86
      %p709 = pneg %p83
      %s710 = smul.u32 32, %s39
      %p711 = scmp.lt.s32.totalorder %s710, 63
      %s712 = scalar_select %p711, %s710, 63
      %s713 = smul.addr %s712, 2
      %s714 = smul.addr %s713, 4
      %s715 = scalar_lea.vmem %s2, %s714
      %p716 = pneg %p112
      %p717 = pneg %p109
      %p718 = pneg %p133
      %p719 = pneg %p130
      %p720 = pneg %p154
      %p721 = pneg %p151
      %p722 = pneg %p175
      %p723 = pneg %p172
      %p724 = pneg %p196
      %p725 = pneg %p193
      %p726 = pneg %p217
      %p727 = pneg %p214
      %p728 = pneg %p238
      %p729 = pneg %p235
      %p730 = pneg %p259
      %p731 = pneg %p256
      %p732 = pneg %p280
      %p733 = pneg %p277
      %p734 = pneg %p301
      %p735 = pneg %p298
      %p736 = pneg %p322
      %p737 = pneg %p319
      %p738 = pneg %p343
      %p739 = pneg %p340
      %p740 = pneg %p364
      %p741 = pneg %p361
      %p742 = pneg %p385
      %p743 = pneg %p382
      %p744 = pneg %p406
      %p745 = pneg %p403
      %p746 = pneg %p427
      %p747 = pneg %p424
      %p748 = pneg %p448
      %p749 = pneg %p445
      %p750 = pneg %p469
      %p751 = pneg %p466
      %p752 = pneg %p490
      %p753 = pneg %p487
      %p754 = pneg %p511
      %p755 = pneg %p508
      %p756 = pneg %p532
      %p757 = pneg %p529
      %p758 = pneg %p553
      %p759 = pneg %p550
      %p760 = pneg %p579
      %p761 = pneg %p576
      %s762 = smul.u32 4, %s39
      %p763 = scmp.lt.s32.totalorder %s762, 7
      %s764 = scalar_select %p763, %s762, 7
      %s765 = smul.addr %s764, 8
      %s766 = scalar_lea.vmem %s24, %s765
      %s767 = smul.u32 32, %s39
      %p768 = scmp.lt.s32.totalorder %s767, 63
      %s769 = scalar_select %p768, %s767, 63
      %s770 = smul.addr %s769, 8
      %s771 = scalar_lea.vmem %s0, %s770
      %s772 = smul.u32 32, %s39
      %s773 = smul.u32 32, %s39
      %p774 = scmp.lt.s32.totalorder %s773, 63
      %s775 = scalar_select %p774, %s773, 63
      %s776 = smul.addr %s775, 4
      %s777 = scalar_lea.vmem %s1, %s776
      %s778 = smul.u32 32, %s39
      %s779 = smul.u32 32, %s39
      %p780 = scmp.lt.s32.totalorder %s779, 63
      %s781 = scalar_select %p780, %s779, 63
      %s782 = smul.addr %s781, 2
      %s783 = smul.addr %s782, 4
      %s784 = scalar_lea.vmem %s2, %s783
      %s785 = smul.u32 32, %s39
      %s786 = smul.u32 4, %s39
      %p787 = scmp.lt.s32.totalorder %s786, 7
      %s788 = scalar_select %p787, %s786, 7
      %s789 = smul.addr %s788, 8
      %s790 = scalar_lea.vmem %s24, %s789
      %s791 = smul.u32 4, %s39
      %v793 = vld [vmem:[%s784] sm:$0xff]
      %v794 = vld [vmem:[%s784 + $0x8] sm:$0xff]
      %v795 = vld [vmem:[%s784 + $0x10] sm:$0xff]
      %v796 = vld [vmem:[%s784 + $0x18] sm:$0xff]
      %v797 = vld [vmem:[%s784 + $0x20] sm:$0xff]
      %v798 = vld [vmem:[%s784 + $0x28] sm:$0xff]
      %v799 = vld [vmem:[%s784 + $0x30] sm:$0xff]
      %v800 = vld [vmem:[%s784 + $0x38] sm:$0xff]
      %v801 = vld [vmem:[%s784 + $0x40] sm:$0xff]
      %v802 = vld [vmem:[%s784 + $0x48] sm:$0xff]
      %v803 = vld [vmem:[%s784 + $0x50] sm:$0xff]
      %v804 = vld [vmem:[%s784 + $0x58] sm:$0xff]
      %v805 = vld [vmem:[%s784 + $0x60] sm:$0xff]
      %v806 = vld [vmem:[%s784 + $0x68] sm:$0xff]
      %v807 = vld [vmem:[%s784 + $0x70] sm:$0xff]
      %v808 = vld [vmem:[%s784 + $0x78] sm:$0xff]
      %v809 = vld [vmem:[%s784 + $0x80] sm:$0xff]
      %v810 = vld [vmem:[%s784 + $0x88] sm:$0xff]
      %v811 = vld [vmem:[%s784 + $0x90] sm:$0xff]
      %v812 = vld [vmem:[%s784 + $0x98] sm:$0xff]
      %v813 = vld [vmem:[%s784 + $0xa0] sm:$0xff]
      %v814 = vld [vmem:[%s784 + $0xa8] sm:$0xff]
      %v815 = vld [vmem:[%s784 + $0xb0] sm:$0xff]
      %v816 = vld [vmem:[%s784 + $0xb8] sm:$0xff]
      %v817 = vld [vmem:[%s784 + $0xc0] sm:$0xff]
      %v818 = vld [vmem:[%s784 + $0xc8] sm:$0xff]
      %v819 = vld [vmem:[%s784 + $0xd0] sm:$0xff]
      %v820 = vld [vmem:[%s784 + $0xd8] sm:$0xff]
      %v821 = vld [vmem:[%s784 + $0xe0] sm:$0xff]
      %v822 = vld [vmem:[%s784 + $0xe8] sm:$0xff]
      %v823 = vld [vmem:[%s784 + $0xf0] sm:$0xff]
      %v824 = vld [vmem:[%s784 + $0xf8] sm:$0xff]
      %v825 = vld [vmem:[%s771] sm:$0xff]
      %v826 = vld [vmem:[%s771 + $0x8] sm:$0xff]
      %v827 = vld [vmem:[%s771 + $0x10] sm:$0xff]
      %v828 = vld [vmem:[%s771 + $0x18] sm:$0xff]
      %v829 = vld [vmem:[%s771 + $0x20] sm:$0xff]
      %v830 = vld [vmem:[%s771 + $0x28] sm:$0xff]
      %v831 = vld [vmem:[%s771 + $0x30] sm:$0xff]
      %v832 = vld [vmem:[%s771 + $0x38] sm:$0xff]
      %v833 = vld [vmem:[%s771 + $0x40] sm:$0xff]
      %v834 = vld [vmem:[%s771 + $0x48] sm:$0xff]
      %v835 = vld [vmem:[%s771 + $0x50] sm:$0xff]
      %v836 = vld [vmem:[%s771 + $0x58] sm:$0xff]
      %v837 = vld [vmem:[%s771 + $0x60] sm:$0xff]
      %v838 = vld [vmem:[%s771 + $0x68] sm:$0xff]
      %v839 = vld [vmem:[%s771 + $0x70] sm:$0xff]
      %v840 = vld [vmem:[%s771 + $0x78] sm:$0xff]
      %v841 = vld [vmem:[%s771 + $0x80] sm:$0xff]
      %v842 = vld [vmem:[%s771 + $0x88] sm:$0xff]
      %v843 = vld [vmem:[%s771 + $0x90] sm:$0xff]
      %v844 = vld [vmem:[%s771 + $0x98] sm:$0xff]
      %v845 = vld [vmem:[%s771 + $0xa0] sm:$0xff]
      %v846 = vld [vmem:[%s771 + $0xa8] sm:$0xff]
      %v847 = vld [vmem:[%s771 + $0xb0] sm:$0xff]
      %v848 = vld [vmem:[%s771 + $0xb8] sm:$0xff]
      %v849 = vld [vmem:[%s771 + $0xc0] sm:$0xff]
      %v850 = vld [vmem:[%s771 + $0xc8] sm:$0xff]
      %v851 = vld [vmem:[%s771 + $0xd0] sm:$0xff]
      %v852 = vld [vmem:[%s771 + $0xd8] sm:$0xff]
      %v853 = vld [vmem:[%s771 + $0xe0] sm:$0xff]
      %v854 = vld [vmem:[%s771 + $0xe8] sm:$0xff]
      %v855 = vld [vmem:[%s771 + $0xf0] sm:$0xff]
      %v856 = vld [vmem:[%s771 + $0xf8] sm:$0xff]
      %v857 = vld [vmem:[%s4] sm:$0xff]
      %v858 = vld [vmem:[%s4 + $0x8] sm:$0xf]
      %v859 = vld [vmem:[%s4 + $0xc] sm:$0xff]
      %v860 = vld [vmem:[%s4 + $0x14] sm:$0xf]
      %v861 = vld [vmem:[%s5] sm:$0xff]
      %v862 = vld [vmem:[%s5 + $0x8] sm:$0xf]
      %v863 = vld [vmem:[%s5 + $0xc] sm:$0xff]
      %v864 = vld [vmem:[%s5 + $0x14] sm:$0xf]
      %v865 = vld [vmem:[%s6] sm:$0x1]
      %v866 = vld [vmem:[%s7] sm:$0x1]
      %v867 = vld [vmem:[%s8] sm:$0x1]
      %v868 = vld [vmem:[%s9] sm:$0x1]
      %v869 = vpack.c.bf16 %v826, %v825
      %v870 = vpack.c.bf16 %v828, %v827
      %v871 = vpack.c.bf16 %v830, %v829
      %v872 = vpack.c.bf16 %v832, %v831
      %v873 = vpack.c.bf16 %v834, %v833
      %v874 = vpack.c.bf16 %v836, %v835
      %v875 = vpack.c.bf16 %v838, %v837
      %v876 = vpack.c.bf16 %v840, %v839
      %v877 = vpack.c.bf16 %v842, %v841
      %v878 = vpack.c.bf16 %v844, %v843
      %v879 = vpack.c.bf16 %v846, %v845
      %v880 = vpack.c.bf16 %v848, %v847
      %v881 = vpack.c.bf16 %v850, %v849
      %v882 = vpack.c.bf16 %v852, %v851
      %v883 = vpack.c.bf16 %v854, %v853
      %v884 = vpack.c.bf16 %v856, %v855
      %v885 = vld [vmem:[%s3] sm:$0xf]
      %v886 = vld [vmem:[%s3 + $0x4] sm:$0xf]
      %v889 = vunpack.c.l.b16 %v885
      %v890 = vunpack.c.l.b16 %v886
      %v891 = vpack.c.b16 %v890, %v889
      %vm893 = vcmask 130048
      %v895 = vsel %vm893, %v869, 0
      %v898 = vsel %vm893, %v870, 0
      %v901 = vsel %vm893, %v871, 0
      %v904 = vsel %vm893, %v872, 0
      %v907 = vsel %vm893, %v873, 0
      %v910 = vsel %vm893, %v874, 0
      %v913 = vsel %vm893, %v875, 0
      %v916 = vsel %vm893, %v876, 0
      %v919 = vsel %vm893, %v877, 0
      %v922 = vsel %vm893, %v878, 0
      %v925 = vsel %vm893, %v879, 0
      %v928 = vsel %vm893, %v880, 0
      %v931 = vsel %vm893, %v881, 0
      %v934 = vsel %vm893, %v882, 0
      %v937 = vsel %vm893, %v883, 0
      %v940 = vsel %vm893, %v884, 0
      %942 = vmatprep.subr.bf16.mxu0 0
      %943 = vmatpush1.bf16.msra.mxu0 0
      %944 = vmatprep.subr.bf16.mxu0 0
      %945 = vmatpush1.bf16.msra.mxu0 0
      %946 = vmatprep.subr.bf16.mxu0 0
      %947 = vmatpush1.bf16.msra.mxu0 0
      %948 = vmatprep.subr.bf16.mxu0 0
      %949 = vmatpush1.bf16.msra.mxu0 0
      %950 = vmatprep.subr.bf16.mxu0 0
      %951 = vmatpush1.bf16.msra.mxu0 0
      %952 = vmatprep.subr.bf16.mxu0 0
      %953 = vmatpush1.bf16.msra.mxu0 0
      %954 = vmatprep.subr.bf16.mxu0 0
      %955 = vmatpush1.bf16.msra.mxu0 0
      %956 = vmatprep.subr.bf16.mxu0 0
      %957 = vmatpush1.bf16.msra.mxu0 %v891
      %958 = vmatprep.subr.bf16.mxu0 0
      %959 = vmatpush2.bf16.msra.mxu0 0
      %960 = vmatprep.subr.bf16.mxu0 0
      %961 = vmatpush2.bf16.msra.mxu0 0
      %962 = vmatprep.subr.bf16.mxu0 0
      %963 = vmatpush2.bf16.msra.mxu0 0
      %964 = vmatprep.subr.bf16.mxu0 0
      %965 = vmatpush2.bf16.msra.mxu0 0
      %966 = vmatprep.subr.bf16.mxu0 0
      %967 = vmatpush2.bf16.msra.mxu0 0
      %968 = vmatprep.subr.bf16.mxu0 0
      %969 = vmatpush2.bf16.msra.mxu0 0
      %970 = vmatprep.subr.bf16.mxu0 0
      %971 = vmatpush2.bf16.msra.mxu0 0
      %972 = vmatprep.subr.bf16.mxu0 0
      %973 = vmatpush2.bf16.msra.mxu0 0
      %974 = vmatprep.mubr.bf16.mxu0 0
      %975 = vmatmul.mubr.bf16.gmra.mxu0 %v895
      %v976 = vpop.f32.mrf.mxu0
      %v977 = vadd.f32 0.0, %v976
      %v978 = vpop.f32.mrf.mxu0
      %v979 = vpop.f32.mrf.mxu0
      %v980 = vadd.f32 0.0, %v979
      %v981 = vpop.f32.mrf.mxu0
      %982 = vmatprep.mubr.bf16.mxu0 0
      %983 = vmatmul.mubr.bf16.gmra.mxu0 %v898
      %v984 = vpop.f32.mrf.mxu0
      %v985 = vadd.f32 0.0, %v984
      %v986 = vpop.f32.mrf.mxu0
      %v987 = vpop.f32.mrf.mxu0
      %v988 = vadd.f32 0.0, %v987
      %v989 = vpop.f32.mrf.mxu0
      %990 = vmatprep.mubr.bf16.mxu0 0
      %991 = vmatmul.mubr.bf16.gmra.mxu0 %v901
      %v992 = vpop.f32.mrf.mxu0
      %v993 = vadd.f32 0.0, %v992
      %v994 = vpop.f32.mrf.mxu0
      %v995 = vpop.f32.mrf.mxu0
      %v996 = vadd.f32 0.0, %v995
      %v997 = vpop.f32.mrf.mxu0
      %998 = vmatprep.mubr.bf16.mxu0 0
      %999 = vmatmul.mubr.bf16.gmra.mxu0 %v904
      %v1000 = vpop.f32.mrf.mxu0
      %v1001 = vadd.f32 0.0, %v1000
      %v1002 = vpop.f32.mrf.mxu0
      %v1003 = vpop.f32.mrf.mxu0
      %v1004 = vadd.f32 0.0, %v1003
      %v1005 = vpop.f32.mrf.mxu0
      %1006 = vmatprep.mubr.bf16.mxu0 0
      %1007 = vmatmul.mubr.bf16.gmra.mxu0 %v907
      %v1008 = vpop.f32.mrf.mxu0
      %v1009 = vadd.f32 0.0, %v1008
      %v1010 = vpop.f32.mrf.mxu0
      %v1011 = vpop.f32.mrf.mxu0
      %v1012 = vadd.f32 0.0, %v1011
      %v1013 = vpop.f32.mrf.mxu0
      %1014 = vmatprep.mubr.bf16.mxu0 0
      %1015 = vmatmul.mubr.bf16.gmra.mxu0 %v910
      %v1016 = vpop.f32.mrf.mxu0
      %v1017 = vadd.f32 0.0, %v1016
      %v1018 = vpop.f32.mrf.mxu0
      %v1019 = vpop.f32.mrf.mxu0
      %v1020 = vadd.f32 0.0, %v1019
      %v1021 = vpop.f32.mrf.mxu0
      %1022 = vmatprep.mubr.bf16.mxu0 0
      %1023 = vmatmul.mubr.bf16.gmra.mxu0 %v913
      %v1024 = vpop.f32.mrf.mxu0
      %v1025 = vadd.f32 0.0, %v1024
      %v1026 = vpop.f32.mrf.mxu0
      %v1027 = vpop.f32.mrf.mxu0
      %v1028 = vadd.f32 0.0, %v1027
      %v1029 = vpop.f32.mrf.mxu0
      %1030 = vmatprep.mubr.bf16.mxu0 0
      %1031 = vmatmul.mubr.bf16.gmra.mxu0 %v916
      %v1032 = vpop.f32.mrf.mxu0
      %v1033 = vadd.f32 0.0, %v1032
      %v1034 = vpop.f32.mrf.mxu0
      %v1035 = vpop.f32.mrf.mxu0
      %v1036 = vadd.f32 0.0, %v1035
      %v1037 = vpop.f32.mrf.mxu0
      %1038 = vmatprep.mubr.bf16.mxu0 0
      %1039 = vmatmul.mubr.bf16.gmra.mxu0 %v919
      %v1040 = vpop.f32.mrf.mxu0
      %v1041 = vadd.f32 0.0, %v1040
      %v1042 = vpop.f32.mrf.mxu0
      %v1043 = vpop.f32.mrf.mxu0
      %v1044 = vadd.f32 0.0, %v1043
      %v1045 = vpop.f32.mrf.mxu0
      %1046 = vmatprep.mubr.bf16.mxu0 0
      %1047 = vmatmul.mubr.bf16.gmra.mxu0 %v922
      %v1048 = vpop.f32.mrf.mxu0
      %v1049 = vadd.f32 0.0, %v1048
      %v1050 = vpop.f32.mrf.mxu0
      %v1051 = vpop.f32.mrf.mxu0
      %v1052 = vadd.f32 0.0, %v1051
      %v1053 = vpop.f32.mrf.mxu0
      %1054 = vmatprep.mubr.bf16.mxu0 0
      %1055 = vmatmul.mubr.bf16.gmra.mxu0 %v925
      %v1056 = vpop.f32.mrf.mxu0
      %v1057 = vadd.f32 0.0, %v1056
      %v1058 = vpop.f32.mrf.mxu0
      %v1059 = vpop.f32.mrf.mxu0
      %v1060 = vadd.f32 0.0, %v1059
      %v1061 = vpop.f32.mrf.mxu0
      %1062 = vmatprep.mubr.bf16.mxu0 0
      %1063 = vmatmul.mubr.bf16.gmra.mxu0 %v928
      %v1064 = vpop.f32.mrf.mxu0
      %v1065 = vadd.f32 0.0, %v1064
      %v1066 = vpop.f32.mrf.mxu0
      %v1067 = vpop.f32.mrf.mxu0
      %v1068 = vadd.f32 0.0, %v1067
      %v1069 = vpop.f32.mrf.mxu0
      %1070 = vmatprep.mubr.bf16.mxu0 0
      %1071 = vmatmul.mubr.bf16.gmra.mxu0 %v931
      %v1072 = vpop.f32.mrf.mxu0
      %v1073 = vadd.f32 0.0, %v1072
      %v1074 = vpop.f32.mrf.mxu0
      %v1075 = vpop.f32.mrf.mxu0
      %v1076 = vadd.f32 0.0, %v1075
      %v1077 = vpop.f32.mrf.mxu0
      %1078 = vmatprep.mubr.bf16.mxu0 0
      %1079 = vmatmul.mubr.bf16.gmra.mxu0 %v934
      %v1080 = vpop.f32.mrf.mxu0
      %v1081 = vadd.f32 0.0, %v1080
      %v1082 = vpop.f32.mrf.mxu0
      %v1083 = vpop.f32.mrf.mxu0
      %v1084 = vadd.f32 0.0, %v1083
      %v1085 = vpop.f32.mrf.mxu0
      %1086 = vmatprep.mubr.bf16.mxu0 0
      %1087 = vmatmul.mubr.bf16.gmra.mxu0 %v937
      %v1088 = vpop.f32.mrf.mxu0
      %v1089 = vadd.f32 0.0, %v1088
      %v1090 = vpop.f32.mrf.mxu0
      %v1091 = vpop.f32.mrf.mxu0
      %v1092 = vadd.f32 0.0, %v1091
      %v1093 = vpop.f32.mrf.mxu0
      %1094 = vmatprep.mubr.bf16.mxu0 0
      %1095 = vmatmul.mubr.bf16.gmra.mxu0 %v940
      %v1096 = vpop.f32.mrf.mxu0
      %v1097 = vadd.f32 0.0, %v1096
      %v1098 = vpop.f32.mrf.mxu0
      %v1099 = vpop.f32.mrf.mxu0
      %v1100 = vadd.f32 0.0, %v1099
      %v1101 = vpop.f32.mrf.mxu0
      %1102 = vdwg.mxu0
      %v1103 = vpack.c.bf16 %v980, %v977
      %v1104 = vpack.c.bf16 %v988, %v985
      %v1105 = vpack.c.bf16 %v996, %v993
      %v1106 = vpack.c.bf16 %v1004, %v1001
      %v1107 = vpack.c.bf16 %v1012, %v1009
      %v1108 = vpack.c.bf16 %v1020, %v1017
      %v1109 = vpack.c.bf16 %v1028, %v1025
      %v1110 = vpack.c.bf16 %v1036, %v1033
      %v1111 = vpack.c.bf16 %v1044, %v1041
      %v1112 = vpack.c.bf16 %v1052, %v1049
      %v1113 = vpack.c.bf16 %v1060, %v1057
      %v1114 = vpack.c.bf16 %v1068, %v1065
      %v1115 = vpack.c.bf16 %v1076, %v1073
      %v1116 = vpack.c.bf16 %v1084, %v1081
      %v1117 = vpack.c.bf16 %v1092, %v1089
      %v1118 = vpack.c.bf16 %v1100, %v1097
      %v1151 = vunpack.c.l.b16 %v793
      %v1152 = vunpack.c.h.b16 %v793
      %v1153 = vunpack.c.l.b16 %v794
      %v1154 = vunpack.c.h.b16 %v794
      %v1155 = vunpack.c.l.b16 %v795
      %v1156 = vunpack.c.h.b16 %v795
      %v1157 = vunpack.c.l.b16 %v796
      %v1158 = vunpack.c.h.b16 %v796
      %v1159 = vunpack.c.l.b16 %v797
      %v1160 = vunpack.c.h.b16 %v797
      %v1161 = vunpack.c.l.b16 %v798
      %v1162 = vunpack.c.h.b16 %v798
      %v1163 = vunpack.c.l.b16 %v799
      %v1164 = vunpack.c.h.b16 %v799
      %v1165 = vunpack.c.l.b16 %v800
      %v1166 = vunpack.c.h.b16 %v800
      %v1167 = vunpack.c.l.b16 %v801
      %v1168 = vunpack.c.h.b16 %v801
      %v1169 = vunpack.c.l.b16 %v802
      %v1170 = vunpack.c.h.b16 %v802
      %v1171 = vunpack.c.l.b16 %v803
      %v1172 = vunpack.c.h.b16 %v803
      %v1173 = vunpack.c.l.b16 %v804
      %v1174 = vunpack.c.h.b16 %v804
      %v1175 = vunpack.c.l.b16 %v805
      %v1176 = vunpack.c.h.b16 %v805
      %v1177 = vunpack.c.l.b16 %v806
      %v1178 = vunpack.c.h.b16 %v806
      %v1179 = vunpack.c.l.b16 %v807
      %v1180 = vunpack.c.h.b16 %v807
      %v1181 = vunpack.c.l.b16 %v808
      %v1182 = vunpack.c.h.b16 %v808
      %v1183 = vunpack.c.l.b16 %v809
      %v1184 = vunpack.c.h.b16 %v809
      %v1185 = vunpack.c.l.b16 %v810
      %v1186 = vunpack.c.h.b16 %v810
      %v1187 = vunpack.c.l.b16 %v811
      %v1188 = vunpack.c.h.b16 %v811
      %v1189 = vunpack.c.l.b16 %v812
      %v1190 = vunpack.c.h.b16 %v812
      %v1191 = vunpack.c.l.b16 %v813
      %v1192 = vunpack.c.h.b16 %v813
      %v1193 = vunpack.c.l.b16 %v814
      %v1194 = vunpack.c.h.b16 %v814
      %v1195 = vunpack.c.l.b16 %v815
      %v1196 = vunpack.c.h.b16 %v815
      %v1197 = vunpack.c.l.b16 %v816
      %v1198 = vunpack.c.h.b16 %v816
      %v1199 = vunpack.c.l.b16 %v817
      %v1200 = vunpack.c.h.b16 %v817
      %v1201 = vunpack.c.l.b16 %v818
      %v1202 = vunpack.c.h.b16 %v818
      %v1203 = vunpack.c.l.b16 %v819
      %v1204 = vunpack.c.h.b16 %v819
      %v1205 = vunpack.c.l.b16 %v820
      %v1206 = vunpack.c.h.b16 %v820
      %v1207 = vunpack.c.l.b16 %v821
      %v1208 = vunpack.c.h.b16 %v821
      %v1209 = vunpack.c.l.b16 %v822
      %v1210 = vunpack.c.h.b16 %v822
      %v1211 = vunpack.c.l.b16 %v823
      %v1212 = vunpack.c.h.b16 %v823
      %v1213 = vunpack.c.l.b16 %v824
      %v1214 = vunpack.c.h.b16 %v824
      %v1215 = vpack.c.b16 %v1153, %v1151
      %v1216 = vpack.c.b16 %v1154, %v1152
      %v1217 = vpack.c.b16 %v1157, %v1155
      %v1218 = vpack.c.b16 %v1158, %v1156
      %v1219 = vpack.c.b16 %v1161, %v1159
      %v1220 = vpack.c.b16 %v1162, %v1160
      %v1221 = vpack.c.b16 %v1165, %v1163
      %v1222 = vpack.c.b16 %v1166, %v1164
      %v1223 = vpack.c.b16 %v1169, %v1167
      %v1224 = vpack.c.b16 %v1170, %v1168
      %v1225 = vpack.c.b16 %v1173, %v1171
      %v1226 = vpack.c.b16 %v1174, %v1172
      %v1227 = vpack.c.b16 %v1177, %v1175
      %v1228 = vpack.c.b16 %v1178, %v1176
      %v1229 = vpack.c.b16 %v1181, %v1179
      %v1230 = vpack.c.b16 %v1182, %v1180
      %v1231 = vpack.c.b16 %v1185, %v1183
      %v1232 = vpack.c.b16 %v1186, %v1184
      %v1233 = vpack.c.b16 %v1189, %v1187
      %v1234 = vpack.c.b16 %v1190, %v1188
      %v1235 = vpack.c.b16 %v1193, %v1191
      %v1236 = vpack.c.b16 %v1194, %v1192
      %v1237 = vpack.c.b16 %v1197, %v1195
      %v1238 = vpack.c.b16 %v1198, %v1196
      %v1239 = vpack.c.b16 %v1201, %v1199
      %v1240 = vpack.c.b16 %v1202, %v1200
      %v1241 = vpack.c.b16 %v1205, %v1203
      %v1242 = vpack.c.b16 %v1206, %v1204
      %v1243 = vpack.c.b16 %v1209, %v1207
      %v1244 = vpack.c.b16 %v1210, %v1208
      %v1245 = vpack.c.b16 %v1213, %v1211
      %v1246 = vpack.c.b16 %v1214, %v1212
      %1279 = vmatprep.subr.bf16.mxu0 0
      %1280 = vmatpush1.bf16.msra.mxu0 %v1110
      %1281 = vmatprep.subr.bf16.mxu0 0
      %1282 = vmatpush1.bf16.msra.mxu0 %v1109
      %1283 = vmatprep.subr.bf16.mxu0 0
      %1284 = vmatpush1.bf16.msra.mxu0 %v1108
      %1285 = vmatprep.subr.bf16.mxu0 0
      %1286 = vmatpush1.bf16.msra.mxu0 %v1107
      %1287 = vmatprep.subr.bf16.mxu0 0
      %1288 = vmatpush1.bf16.msra.mxu0 %v1106
      %1289 = vmatprep.subr.bf16.mxu0 0
      %1290 = vmatpush1.bf16.msra.mxu0 %v1105
      %1291 = vmatprep.subr.bf16.mxu0 0
      %1292 = vmatpush1.bf16.msra.mxu0 %v1104
      %1293 = vmatprep.subr.bf16.mxu0 0
      %1294 = vmatpush1.bf16.msra.mxu0 %v1103
      %1295 = vmatprep.subr.bf16.mxu0 0
      %1296 = vmatpush2.bf16.msra.mxu0 %v1118
      %1297 = vmatprep.subr.bf16.mxu0 0
      %1298 = vmatpush2.bf16.msra.mxu0 %v1117
      %1299 = vmatprep.subr.bf16.mxu0 0
      %1300 = vmatpush2.bf16.msra.mxu0 %v1116
      %1301 = vmatprep.subr.bf16.mxu0 0
      %1302 = vmatpush2.bf16.msra.mxu0 %v1115
      %1303 = vmatprep.subr.bf16.mxu0 0
      %1304 = vmatpush2.bf16.msra.mxu0 %v1114
      %1305 = vmatprep.subr.bf16.mxu0 0
      %1306 = vmatpush2.bf16.msra.mxu0 %v1113
      %1307 = vmatprep.subr.bf16.mxu0 0
      %1308 = vmatpush2.bf16.msra.mxu0 %v1112
      %1309 = vmatprep.subr.bf16.mxu0 0
      %1310 = vmatpush2.bf16.msra.mxu0 %v1111
      %1311 = vmatprep.mubr.bf16.mxu0 %v1216
      %1312 = vmatmul.mubr.bf16.gmra.mxu0 %v1215
      %v1313 = vpop.f32.mrf.mxu0
      %v1314 = vadd.f32 0.0, %v1313
      %v1315 = vpop.f32.mrf.mxu0
      %v1316 = vpop.f32.mrf.mxu0
      %v1317 = vadd.f32 0.0, %v1316
      %v1318 = vpop.f32.mrf.mxu0
      %1319 = vmatprep.mubr.bf16.mxu0 %v1218
      %1320 = vmatmul.mubr.bf16.gmra.mxu0 %v1217
      %v1321 = vpop.f32.mrf.mxu0
      %v1322 = vadd.f32 0.0, %v1321
      %v1323 = vpop.f32.mrf.mxu0
      %v1324 = vpop.f32.mrf.mxu0
      %v1325 = vadd.f32 0.0, %v1324
      %v1326 = vpop.f32.mrf.mxu0
      %1327 = vmatprep.mubr.bf16.mxu0 %v1220
      %1328 = vmatmul.mubr.bf16.gmra.mxu0 %v1219
      %v1329 = vpop.f32.mrf.mxu0
      %v1330 = vadd.f32 0.0, %v1329
      %v1331 = vpop.f32.mrf.mxu0
      %v1332 = vpop.f32.mrf.mxu0
      %v1333 = vadd.f32 0.0, %v1332
      %v1334 = vpop.f32.mrf.mxu0
      %1335 = vmatprep.mubr.bf16.mxu0 %v1222
      %1336 = vmatmul.mubr.bf16.gmra.mxu0 %v1221
      %v1337 = vpop.f32.mrf.mxu0
      %v1338 = vadd.f32 0.0, %v1337
      %v1339 = vpop.f32.mrf.mxu0
      %v1340 = vpop.f32.mrf.mxu0
      %v1341 = vadd.f32 0.0, %v1340
      %v1342 = vpop.f32.mrf.mxu0
      %1343 = vmatprep.mubr.bf16.mxu0 %v1224
      %1344 = vmatmul.mubr.bf16.gmra.mxu0 %v1223
      %v1345 = vpop.f32.mrf.mxu0
      %v1346 = vadd.f32 0.0, %v1345
      %v1347 = vpop.f32.mrf.mxu0
      %v1348 = vpop.f32.mrf.mxu0
      %v1349 = vadd.f32 0.0, %v1348
      %v1350 = vpop.f32.mrf.mxu0
      %1351 = vmatprep.mubr.bf16.mxu0 %v1226
      %1352 = vmatmul.mubr.bf16.gmra.mxu0 %v1225
      %v1353 = vpop.f32.mrf.mxu0
      %v1354 = vadd.f32 0.0, %v1353
      %v1355 = vpop.f32.mrf.mxu0
      %v1356 = vpop.f32.mrf.mxu0
      %v1357 = vadd.f32 0.0, %v1356
      %v1358 = vpop.f32.mrf.mxu0
      %1359 = vmatprep.mubr.bf16.mxu0 %v1228
      %1360 = vmatmul.mubr.bf16.gmra.mxu0 %v1227
      %v1361 = vpop.f32.mrf.mxu0
      %v1362 = vadd.f32 0.0, %v1361
      %v1363 = vpop.f32.mrf.mxu0
      %v1364 = vpop.f32.mrf.mxu0
      %v1365 = vadd.f32 0.0, %v1364
      %v1366 = vpop.f32.mrf.mxu0
      %1367 = vmatprep.mubr.bf16.mxu0 %v1230
      %1368 = vmatmul.mubr.bf16.gmra.mxu0 %v1229
      %v1369 = vpop.f32.mrf.mxu0
      %v1370 = vadd.f32 0.0, %v1369
      %v1371 = vpop.f32.mrf.mxu0
      %v1372 = vpop.f32.mrf.mxu0
      %v1373 = vadd.f32 0.0, %v1372
      %v1374 = vpop.f32.mrf.mxu0
      %1375 = vmatprep.mubr.bf16.mxu0 %v1232
      %1376 = vmatmul.mubr.bf16.gmra.mxu0 %v1231
      %v1377 = vpop.f32.mrf.mxu0
      %v1378 = vadd.f32 0.0, %v1377
      %v1379 = vpop.f32.mrf.mxu0
      %v1380 = vpop.f32.mrf.mxu0
      %v1381 = vadd.f32 0.0, %v1380
      %v1382 = vpop.f32.mrf.mxu0
      %1383 = vmatprep.mubr.bf16.mxu0 %v1234
      %1384 = vmatmul.mubr.bf16.gmra.mxu0 %v1233
      %v1385 = vpop.f32.mrf.mxu0
      %v1386 = vadd.f32 0.0, %v1385
      %v1387 = vpop.f32.mrf.mxu0
      %v1388 = vpop.f32.mrf.mxu0
      %v1389 = vadd.f32 0.0, %v1388
      %v1390 = vpop.f32.mrf.mxu0
      %1391 = vmatprep.mubr.bf16.mxu0 %v1236
      %1392 = vmatmul.mubr.bf16.gmra.mxu0 %v1235
      %v1393 = vpop.f32.mrf.mxu0
      %v1394 = vadd.f32 0.0, %v1393
      %v1395 = vpop.f32.mrf.mxu0
      %v1396 = vpop.f32.mrf.mxu0
      %v1397 = vadd.f32 0.0, %v1396
      %v1398 = vpop.f32.mrf.mxu0
      %1399 = vmatprep.mubr.bf16.mxu0 %v1238
      %1400 = vmatmul.mubr.bf16.gmra.mxu0 %v1237
      %v1401 = vpop.f32.mrf.mxu0
      %v1402 = vadd.f32 0.0, %v1401
      %v1403 = vpop.f32.mrf.mxu0
      %v1404 = vpop.f32.mrf.mxu0
      %v1405 = vadd.f32 0.0, %v1404
      %v1406 = vpop.f32.mrf.mxu0
      %1407 = vmatprep.mubr.bf16.mxu0 %v1240
      %1408 = vmatmul.mubr.bf16.gmra.mxu0 %v1239
      %v1409 = vpop.f32.mrf.mxu0
      %v1410 = vadd.f32 0.0, %v1409
      %v1411 = vpop.f32.mrf.mxu0
      %v1412 = vpop.f32.mrf.mxu0
      %v1413 = vadd.f32 0.0, %v1412
      %v1414 = vpop.f32.mrf.mxu0
      %1415 = vmatprep.mubr.bf16.mxu0 %v1242
      %1416 = vmatmul.mubr.bf16.gmra.mxu0 %v1241
      %v1417 = vpop.f32.mrf.mxu0
      %v1418 = vadd.f32 0.0, %v1417
      %v1419 = vpop.f32.mrf.mxu0
      %v1420 = vpop.f32.mrf.mxu0
      %v1421 = vadd.f32 0.0, %v1420
      %v1422 = vpop.f32.mrf.mxu0
      %1423 = vmatprep.mubr.bf16.mxu0 %v1244
      %1424 = vmatmul.mubr.bf16.gmra.mxu0 %v1243
      %v1425 = vpop.f32.mrf.mxu0
      %v1426 = vadd.f32 0.0, %v1425
      %v1427 = vpop.f32.mrf.mxu0
      %v1428 = vpop.f32.mrf.mxu0
      %v1429 = vadd.f32 0.0, %v1428
      %v1430 = vpop.f32.mrf.mxu0
      %1431 = vmatprep.mubr.bf16.mxu0 %v1246
      %1432 = vmatmul.mubr.bf16.gmra.mxu0 %v1245
      %v1433 = vpop.f32.mrf.mxu0
      %v1434 = vadd.f32 0.0, %v1433
      %v1435 = vpop.f32.mrf.mxu0
      %v1436 = vpop.f32.mrf.mxu0
      %v1437 = vadd.f32 0.0, %v1436
      %v1438 = vpop.f32.mrf.mxu0
      %1439 = vdwg.mxu0
      %v1440 = vpack.c.bf16 %v1317, %v1314
      %v1441 = vpack.c.bf16 %v1325, %v1322
      %v1442 = vpack.c.bf16 %v1333, %v1330
      %v1443 = vpack.c.bf16 %v1341, %v1338
      %v1444 = vpack.c.bf16 %v1349, %v1346
      %v1445 = vpack.c.bf16 %v1357, %v1354
      %v1446 = vpack.c.bf16 %v1365, %v1362
      %v1447 = vpack.c.bf16 %v1373, %v1370
      %v1448 = vpack.c.bf16 %v1381, %v1378
      %v1449 = vpack.c.bf16 %v1389, %v1386
      %v1450 = vpack.c.bf16 %v1397, %v1394
      %v1451 = vpack.c.bf16 %v1405, %v1402
      %v1452 = vpack.c.bf16 %v1413, %v1410
      %v1453 = vpack.c.bf16 %v1421, %v1418
      %v1454 = vpack.c.bf16 %v1429, %v1426
      %v1455 = vpack.c.bf16 %v1437, %v1434
      %v1460 = vunpack.c.l.b16 %v857
      %v1461 = vunpack.c.h.b16 %v857
      %v1462 = vunpack.c.l.b16 %v858
      %v1463 = vunpack.c.l.b16 %v859
      %v1464 = vunpack.c.h.b16 %v859
      %v1465 = vunpack.c.l.b16 %v860
      %v1466 = vpack.c.b16 %v1463, %v1460
      %v1467 = vpack.c.b16 %v1464, %v1461
      %v1468 = vpack.c.b16 %v1465, %v1462
      %v1473 = vsel %vm893, %v1440, 0
      %v1476 = vsel %vm893, %v1441, 0
      %v1479 = vsel %vm893, %v1442, 0
      %v1482 = vsel %vm893, %v1443, 0
      %v1485 = vsel %vm893, %v1444, 0
      %v1488 = vsel %vm893, %v1445, 0
      %v1491 = vsel %vm893, %v1446, 0
      %v1494 = vsel %vm893, %v1447, 0
      %v1497 = vsel %vm893, %v1448, 0
      %v1500 = vsel %vm893, %v1449, 0
      %v1503 = vsel %vm893, %v1450, 0
      %v1506 = vsel %vm893, %v1451, 0
      %v1509 = vsel %vm893, %v1452, 0
      %v1512 = vsel %vm893, %v1453, 0
      %v1515 = vsel %vm893, %v1454, 0
      %v1518 = vsel %vm893, %v1455, 0
      %1520 = vmatprep.subr.bf16.mxu0 0
      %1521 = vmatpush1.bf16.msra.mxu0 0
      %1522 = vmatprep.subr.bf16.mxu0 0
      %1523 = vmatpush1.bf16.msra.mxu0 0
      %1524 = vmatprep.subr.bf16.mxu0 0
      %1525 = vmatpush1.bf16.msra.mxu0 0
      %1526 = vmatprep.subr.bf16.mxu0 0
      %1527 = vmatpush1.bf16.msra.mxu0 0
      %1528 = vmatprep.subr.bf16.mxu0 0
      %1529 = vmatpush1.bf16.msra.mxu0 0
      %1530 = vmatprep.subr.bf16.mxu0 0
      %1531 = vmatpush1.bf16.msra.mxu0 0
      %1532 = vmatprep.subr.bf16.mxu0 0
      %1533 = vmatpush1.bf16.msra.mxu0 0
      %1534 = vmatprep.subr.bf16.mxu0 %v1467
      %1535 = vmatpush1.bf16.msra.mxu0 %v1466
      %1536 = vmatprep.subr.bf16.mxu0 0
      %1537 = vmatpush2.bf16.msra.mxu0 0
      %1538 = vmatprep.subr.bf16.mxu0 0
      %1539 = vmatpush2.bf16.msra.mxu0 0
      %1540 = vmatprep.subr.bf16.mxu0 0
      %1541 = vmatpush2.bf16.msra.mxu0 0
      %1542 = vmatprep.subr.bf16.mxu0 0
      %1543 = vmatpush2.bf16.msra.mxu0 0
      %1544 = vmatprep.subr.bf16.mxu0 0
      %1545 = vmatpush2.bf16.msra.mxu0 0
      %1546 = vmatprep.subr.bf16.mxu0 0
      %1547 = vmatpush2.bf16.msra.mxu0 0
      %1548 = vmatprep.subr.bf16.mxu0 0
      %1549 = vmatpush2.bf16.msra.mxu0 0
      %1550 = vmatprep.subr.bf16.mxu0 0
      %1551 = vmatpush2.bf16.msra.mxu0 0
      %1552 = vmatprep.mubr.bf16.mxu0 0
      %1553 = vmatmul.mubr.bf16.gmra.mxu0 %v1473
      %v1554 = vpop.f32.mrf.mxu0
      %v1555 = vadd.f32 0.0, %v1554
      %v1556 = vpop.f32.mrf.mxu0
      %v1557 = vadd.f32 0.0, %v1556
      %v1558 = vpop.f32.mrf.mxu0
      %v1559 = vadd.f32 0.0, %v1558
      %v1560 = vpop.f32.mrf.mxu0
      %v1561 = vadd.f32 0.0, %v1560
      %1562 = vmatprep.mubr.bf16.mxu0 0
      %1563 = vmatmul.mubr.bf16.gmra.mxu0 %v1476
      %v1564 = vpop.f32.mrf.mxu0
      %v1565 = vadd.f32 0.0, %v1564
      %v1566 = vpop.f32.mrf.mxu0
      %v1567 = vadd.f32 0.0, %v1566
      %v1568 = vpop.f32.mrf.mxu0
      %v1569 = vadd.f32 0.0, %v1568
      %v1570 = vpop.f32.mrf.mxu0
      %v1571 = vadd.f32 0.0, %v1570
      %1572 = vmatprep.mubr.bf16.mxu0 0
      %1573 = vmatmul.mubr.bf16.gmra.mxu0 %v1479
      %v1574 = vpop.f32.mrf.mxu0
      %v1575 = vadd.f32 0.0, %v1574
      %v1576 = vpop.f32.mrf.mxu0
      %v1577 = vadd.f32 0.0, %v1576
      %v1578 = vpop.f32.mrf.mxu0
      %v1579 = vadd.f32 0.0, %v1578
      %v1580 = vpop.f32.mrf.mxu0
      %v1581 = vadd.f32 0.0, %v1580
      %1582 = vmatprep.mubr.bf16.mxu0 0
      %1583 = vmatmul.mubr.bf16.gmra.mxu0 %v1482
      %v1584 = vpop.f32.mrf.mxu0
      %v1585 = vadd.f32 0.0, %v1584
      %v1586 = vpop.f32.mrf.mxu0
      %v1587 = vadd.f32 0.0, %v1586
      %v1588 = vpop.f32.mrf.mxu0
      %v1589 = vadd.f32 0.0, %v1588
      %v1590 = vpop.f32.mrf.mxu0
      %v1591 = vadd.f32 0.0, %v1590
      %1592 = vmatprep.mubr.bf16.mxu0 0
      %1593 = vmatmul.mubr.bf16.gmra.mxu0 %v1485
      %v1594 = vpop.f32.mrf.mxu0
      %v1595 = vadd.f32 0.0, %v1594
      %v1596 = vpop.f32.mrf.mxu0
      %v1597 = vadd.f32 0.0, %v1596
      %v1598 = vpop.f32.mrf.mxu0
      %v1599 = vadd.f32 0.0, %v1598
      %v1600 = vpop.f32.mrf.mxu0
      %v1601 = vadd.f32 0.0, %v1600
      %1602 = vmatprep.mubr.bf16.mxu0 0
      %1603 = vmatmul.mubr.bf16.gmra.mxu0 %v1488
      %v1604 = vpop.f32.mrf.mxu0
      %v1605 = vadd.f32 0.0, %v1604
      %v1606 = vpop.f32.mrf.mxu0
      %v1607 = vadd.f32 0.0, %v1606
      %v1608 = vpop.f32.mrf.mxu0
      %v1609 = vadd.f32 0.0, %v1608
      %v1610 = vpop.f32.mrf.mxu0
      %v1611 = vadd.f32 0.0, %v1610
      %1612 = vmatprep.mubr.bf16.mxu0 0
      %1613 = vmatmul.mubr.bf16.gmra.mxu0 %v1491
      %v1614 = vpop.f32.mrf.mxu0
      %v1615 = vadd.f32 0.0, %v1614
      %v1616 = vpop.f32.mrf.mxu0
      %v1617 = vadd.f32 0.0, %v1616
      %v1618 = vpop.f32.mrf.mxu0
      %v1619 = vadd.f32 0.0, %v1618
      %v1620 = vpop.f32.mrf.mxu0
      %v1621 = vadd.f32 0.0, %v1620
      %1622 = vmatprep.mubr.bf16.mxu0 0
      %1623 = vmatmul.mubr.bf16.gmra.mxu0 %v1494
      %v1624 = vpop.f32.mrf.mxu0
      %v1625 = vadd.f32 0.0, %v1624
      %v1626 = vpop.f32.mrf.mxu0
      %v1627 = vadd.f32 0.0, %v1626
      %v1628 = vpop.f32.mrf.mxu0
      %v1629 = vadd.f32 0.0, %v1628
      %v1630 = vpop.f32.mrf.mxu0
      %v1631 = vadd.f32 0.0, %v1630
      %1632 = vmatprep.mubr.bf16.mxu0 0
      %1633 = vmatmul.mubr.bf16.gmra.mxu0 %v1497
      %v1634 = vpop.f32.mrf.mxu0
      %v1635 = vadd.f32 0.0, %v1634
      %v1636 = vpop.f32.mrf.mxu0
      %v1637 = vadd.f32 0.0, %v1636
      %v1638 = vpop.f32.mrf.mxu0
      %v1639 = vadd.f32 0.0, %v1638
      %v1640 = vpop.f32.mrf.mxu0
      %v1641 = vadd.f32 0.0, %v1640
      %1642 = vmatprep.mubr.bf16.mxu0 0
      %1643 = vmatmul.mubr.bf16.gmra.mxu0 %v1500
      %v1644 = vpop.f32.mrf.mxu0
      %v1645 = vadd.f32 0.0, %v1644
      %v1646 = vpop.f32.mrf.mxu0
      %v1647 = vadd.f32 0.0, %v1646
      %v1648 = vpop.f32.mrf.mxu0
      %v1649 = vadd.f32 0.0, %v1648
      %v1650 = vpop.f32.mrf.mxu0
      %v1651 = vadd.f32 0.0, %v1650
      %1652 = vmatprep.mubr.bf16.mxu0 0
      %1653 = vmatmul.mubr.bf16.gmra.mxu0 %v1503
      %v1654 = vpop.f32.mrf.mxu0
      %v1655 = vadd.f32 0.0, %v1654
      %v1656 = vpop.f32.mrf.mxu0
      %v1657 = vadd.f32 0.0, %v1656
      %v1658 = vpop.f32.mrf.mxu0
      %v1659 = vadd.f32 0.0, %v1658
      %v1660 = vpop.f32.mrf.mxu0
      %v1661 = vadd.f32 0.0, %v1660
      %1662 = vmatprep.mubr.bf16.mxu0 0
      %1663 = vmatmul.mubr.bf16.gmra.mxu0 %v1506
      %v1664 = vpop.f32.mrf.mxu0
      %v1665 = vadd.f32 0.0, %v1664
      %v1666 = vpop.f32.mrf.mxu0
      %v1667 = vadd.f32 0.0, %v1666
      %v1668 = vpop.f32.mrf.mxu0
      %v1669 = vadd.f32 0.0, %v1668
      %v1670 = vpop.f32.mrf.mxu0
      %v1671 = vadd.f32 0.0, %v1670
      %1672 = vmatprep.mubr.bf16.mxu0 0
      %1673 = vmatmul.mubr.bf16.gmra.mxu0 %v1509
      %v1674 = vpop.f32.mrf.mxu0
      %v1675 = vadd.f32 0.0, %v1674
      %v1676 = vpop.f32.mrf.mxu0
      %v1677 = vadd.f32 0.0, %v1676
      %v1678 = vpop.f32.mrf.mxu0
      %v1679 = vadd.f32 0.0, %v1678
      %v1680 = vpop.f32.mrf.mxu0
      %v1681 = vadd.f32 0.0, %v1680
      %1682 = vmatprep.mubr.bf16.mxu0 0
      %1683 = vmatmul.mubr.bf16.gmra.mxu0 %v1512
      %v1684 = vpop.f32.mrf.mxu0
      %v1685 = vadd.f32 0.0, %v1684
      %v1686 = vpop.f32.mrf.mxu0
      %v1687 = vadd.f32 0.0, %v1686
      %v1688 = vpop.f32.mrf.mxu0
      %v1689 = vadd.f32 0.0, %v1688
      %v1690 = vpop.f32.mrf.mxu0
      %v1691 = vadd.f32 0.0, %v1690
      %1692 = vmatprep.mubr.bf16.mxu0 0
      %1693 = vmatmul.mubr.bf16.gmra.mxu0 %v1515
      %v1694 = vpop.f32.mrf.mxu0
      %v1695 = vadd.f32 0.0, %v1694
      %v1696 = vpop.f32.mrf.mxu0
      %v1697 = vadd.f32 0.0, %v1696
      %v1698 = vpop.f32.mrf.mxu0
      %v1699 = vadd.f32 0.0, %v1698
      %v1700 = vpop.f32.mrf.mxu0
      %v1701 = vadd.f32 0.0, %v1700
      %1702 = vmatprep.mubr.bf16.mxu0 0
      %1703 = vmatmul.mubr.bf16.gmra.mxu0 %v1518
      %v1704 = vpop.f32.mrf.mxu0
      %v1705 = vadd.f32 0.0, %v1704
      %v1706 = vpop.f32.mrf.mxu0
      %v1707 = vadd.f32 0.0, %v1706
      %v1708 = vpop.f32.mrf.mxu0
      %v1709 = vadd.f32 0.0, %v1708
      %v1710 = vpop.f32.mrf.mxu0
      %v1711 = vadd.f32 0.0, %v1710
      %1712 = vdwg.mxu0
      %1713 = vmatprep.subr.bf16.mxu0 0
      %1714 = vmatpush1.bf16.msra.mxu0 0
      %1715 = vmatprep.subr.bf16.mxu0 0
      %1716 = vmatpush1.bf16.msra.mxu0 0
      %1717 = vmatprep.subr.bf16.mxu0 0
      %1718 = vmatpush1.bf16.msra.mxu0 0
      %1719 = vmatprep.subr.bf16.mxu0 0
      %1720 = vmatpush1.bf16.msra.mxu0 0
      %1721 = vmatprep.subr.bf16.mxu0 0
      %1722 = vmatpush1.bf16.msra.mxu0 0
      %1723 = vmatprep.subr.bf16.mxu0 0
      %1724 = vmatpush1.bf16.msra.mxu0 0
      %1725 = vmatprep.subr.bf16.mxu0 0
      %1726 = vmatpush1.bf16.msra.mxu0 0
      %1727 = vmatprep.subr.bf16.mxu0 0
      %1728 = vmatpush1.bf16.msra.mxu0 %v1468
      %1729 = vmatprep.subr.bf16.mxu0 0
      %1730 = vmatpush2.bf16.msra.mxu0 0
      %1731 = vmatprep.subr.bf16.mxu0 0
      %1732 = vmatpush2.bf16.msra.mxu0 0
      %1733 = vmatprep.subr.bf16.mxu0 0
      %1734 = vmatpush2.bf16.msra.mxu0 0
      %1735 = vmatprep.subr.bf16.mxu0 0
      %1736 = vmatpush2.bf16.msra.mxu0 0
      %1737 = vmatprep.subr.bf16.mxu0 0
      %1738 = vmatpush2.bf16.msra.mxu0 0
      %1739 = vmatprep.subr.bf16.mxu0 0
      %1740 = vmatpush2.bf16.msra.mxu0 0
      %1741 = vmatprep.subr.bf16.mxu0 0
      %1742 = vmatpush2.bf16.msra.mxu0 0
      %1743 = vmatprep.subr.bf16.mxu0 0
      %1744 = vmatpush2.bf16.msra.mxu0 0
      %1745 = vmatprep.mubr.bf16.mxu0 0
      %1746 = vmatmul.mubr.bf16.gmra.mxu0 %v1473
      %v1747 = vpop.f32.mrf.mxu0
      %v1748 = vadd.f32 0.0, %v1747
      %v1749 = vpop.f32.mrf.mxu0
      %v1750 = vpop.f32.mrf.mxu0
      %v1751 = vadd.f32 0.0, %v1750
      %v1752 = vpop.f32.mrf.mxu0
      %1753 = vmatprep.mubr.bf16.mxu0 0
      %1754 = vmatmul.mubr.bf16.gmra.mxu0 %v1476
      %v1755 = vpop.f32.mrf.mxu0
      %v1756 = vadd.f32 0.0, %v1755
      %v1757 = vpop.f32.mrf.mxu0
      %v1758 = vpop.f32.mrf.mxu0
      %v1759 = vadd.f32 0.0, %v1758
      %v1760 = vpop.f32.mrf.mxu0
      %1761 = vmatprep.mubr.bf16.mxu0 0
      %1762 = vmatmul.mubr.bf16.gmra.mxu0 %v1479
      %v1763 = vpop.f32.mrf.mxu0
      %v1764 = vadd.f32 0.0, %v1763
      %v1765 = vpop.f32.mrf.mxu0
      %v1766 = vpop.f32.mrf.mxu0
      %v1767 = vadd.f32 0.0, %v1766
      %v1768 = vpop.f32.mrf.mxu0
      %1769 = vmatprep.mubr.bf16.mxu0 0
      %1770 = vmatmul.mubr.bf16.gmra.mxu0 %v1482
      %v1771 = vpop.f32.mrf.mxu0
      %v1772 = vadd.f32 0.0, %v1771
      %v1773 = vpop.f32.mrf.mxu0
      %v1774 = vpop.f32.mrf.mxu0
      %v1775 = vadd.f32 0.0, %v1774
      %v1776 = vpop.f32.mrf.mxu0
      %1777 = vmatprep.mubr.bf16.mxu0 0
      %1778 = vmatmul.mubr.bf16.gmra.mxu0 %v1485
      %v1779 = vpop.f32.mrf.mxu0
      %v1780 = vadd.f32 0.0, %v1779
      %v1781 = vpop.f32.mrf.mxu0
      %v1782 = vpop.f32.mrf.mxu0
      %v1783 = vadd.f32 0.0, %v1782
      %v1784 = vpop.f32.mrf.mxu0
      %1785 = vmatprep.mubr.bf16.mxu0 0
      %1786 = vmatmul.mubr.bf16.gmra.mxu0 %v1488
      %v1787 = vpop.f32.mrf.mxu0
      %v1788 = vadd.f32 0.0, %v1787
      %v1789 = vpop.f32.mrf.mxu0
      %v1790 = vpop.f32.mrf.mxu0
      %v1791 = vadd.f32 0.0, %v1790
      %v1792 = vpop.f32.mrf.mxu0
      %1793 = vmatprep.mubr.bf16.mxu0 0
      %1794 = vmatmul.mubr.bf16.gmra.mxu0 %v1491
      %v1795 = vpop.f32.mrf.mxu0
      %v1796 = vadd.f32 0.0, %v1795
      %v1797 = vpop.f32.mrf.mxu0
      %v1798 = vpop.f32.mrf.mxu0
      %v1799 = vadd.f32 0.0, %v1798
      %v1800 = vpop.f32.mrf.mxu0
      %1801 = vmatprep.mubr.bf16.mxu0 0
      %1802 = vmatmul.mubr.bf16.gmra.mxu0 %v1494
      %v1803 = vpop.f32.mrf.mxu0
      %v1804 = vadd.f32 0.0, %v1803
      %v1805 = vpop.f32.mrf.mxu0
      %v1806 = vpop.f32.mrf.mxu0
      %v1807 = vadd.f32 0.0, %v1806
      %v1808 = vpop.f32.mrf.mxu0
      %1809 = vmatprep.mubr.bf16.mxu0 0
      %1810 = vmatmul.mubr.bf16.gmra.mxu0 %v1497
      %v1811 = vpop.f32.mrf.mxu0
      %v1812 = vadd.f32 0.0, %v1811
      %v1813 = vpop.f32.mrf.mxu0
      %v1814 = vpop.f32.mrf.mxu0
      %v1815 = vadd.f32 0.0, %v1814
      %v1816 = vpop.f32.mrf.mxu0
      %1817 = vmatprep.mubr.bf16.mxu0 0
      %1818 = vmatmul.mubr.bf16.gmra.mxu0 %v1500
      %v1819 = vpop.f32.mrf.mxu0
      %v1820 = vadd.f32 0.0, %v1819
      %v1821 = vpop.f32.mrf.mxu0
      %v1822 = vpop.f32.mrf.mxu0
      %v1823 = vadd.f32 0.0, %v1822
      %v1824 = vpop.f32.mrf.mxu0
      %1825 = vmatprep.mubr.bf16.mxu0 0
      %1826 = vmatmul.mubr.bf16.gmra.mxu0 %v1503
      %v1827 = vpop.f32.mrf.mxu0
      %v1828 = vadd.f32 0.0, %v1827
      %v1829 = vpop.f32.mrf.mxu0
      %v1830 = vpop.f32.mrf.mxu0
      %v1831 = vadd.f32 0.0, %v1830
      %v1832 = vpop.f32.mrf.mxu0
      %1833 = vmatprep.mubr.bf16.mxu0 0
      %1834 = vmatmul.mubr.bf16.gmra.mxu0 %v1506
      %v1835 = vpop.f32.mrf.mxu0
      %v1836 = vadd.f32 0.0, %v1835
      %v1837 = vpop.f32.mrf.mxu0
      %v1838 = vpop.f32.mrf.mxu0
      %v1839 = vadd.f32 0.0, %v1838
      %v1840 = vpop.f32.mrf.mxu0
      %1841 = vmatprep.mubr.bf16.mxu0 0
      %1842 = vmatmul.mubr.bf16.gmra.mxu0 %v1509
      %v1843 = vpop.f32.mrf.mxu0
      %v1844 = vadd.f32 0.0, %v1843
      %v1845 = vpop.f32.mrf.mxu0
      %v1846 = vpop.f32.mrf.mxu0
      %v1847 = vadd.f32 0.0, %v1846
      %v1848 = vpop.f32.mrf.mxu0
      %1849 = vmatprep.mubr.bf16.mxu0 0
      %1850 = vmatmul.mubr.bf16.gmra.mxu0 %v1512
      %v1851 = vpop.f32.mrf.mxu0
      %v1852 = vadd.f32 0.0, %v1851
      %v1853 = vpop.f32.mrf.mxu0
      %v1854 = vpop.f32.mrf.mxu0
      %v1855 = vadd.f32 0.0, %v1854
      %v1856 = vpop.f32.mrf.mxu0
      %1857 = vmatprep.mubr.bf16.mxu0 0
      %1858 = vmatmul.mubr.bf16.gmra.mxu0 %v1515
      %v1859 = vpop.f32.mrf.mxu0
      %v1860 = vadd.f32 0.0, %v1859
      %v1861 = vpop.f32.mrf.mxu0
      %v1862 = vpop.f32.mrf.mxu0
      %v1863 = vadd.f32 0.0, %v1862
      %v1864 = vpop.f32.mrf.mxu0
      %1865 = vmatprep.mubr.bf16.mxu0 0
      %1866 = vmatmul.mubr.bf16.gmra.mxu0 %v1518
      %v1867 = vpop.f32.mrf.mxu0
      %v1868 = vadd.f32 0.0, %v1867
      %v1869 = vpop.f32.mrf.mxu0
      %v1870 = vpop.f32.mrf.mxu0
      %v1871 = vadd.f32 0.0, %v1870
      %v1872 = vpop.f32.mrf.mxu0
      %1873 = vdwg.mxu0
      %v1878 = vunpack.c.l.b16 %v861
      %v1879 = vunpack.c.h.b16 %v861
      %v1880 = vunpack.c.l.b16 %v862
      %v1881 = vunpack.c.l.b16 %v863
      %v1882 = vunpack.c.h.b16 %v863
      %v1883 = vunpack.c.l.b16 %v864
      %v1884 = vpack.c.b16 %v1881, %v1878
      %v1885 = vpack.c.b16 %v1882, %v1879
      %v1886 = vpack.c.b16 %v1883, %v1880
      %1890 = vmatprep.subr.bf16.mxu0 0
      %1891 = vmatpush1.bf16.msra.mxu0 0
      %1892 = vmatprep.subr.bf16.mxu0 0
      %1893 = vmatpush1.bf16.msra.mxu0 0
      %1894 = vmatprep.subr.bf16.mxu0 0
      %1895 = vmatpush1.bf16.msra.mxu0 0
      %1896 = vmatprep.subr.bf16.mxu0 0
      %1897 = vmatpush1.bf16.msra.mxu0 0
      %1898 = vmatprep.subr.bf16.mxu0 0
      %1899 = vmatpush1.bf16.msra.mxu0 0
      %1900 = vmatprep.subr.bf16.mxu0 0
      %1901 = vmatpush1.bf16.msra.mxu0 0
      %1902 = vmatprep.subr.bf16.mxu0 0
      %1903 = vmatpush1.bf16.msra.mxu0 0
      %1904 = vmatprep.subr.bf16.mxu0 %v1885
      %1905 = vmatpush1.bf16.msra.mxu0 %v1884
      %1906 = vmatprep.subr.bf16.mxu0 0
      %1907 = vmatpush2.bf16.msra.mxu0 0
      %1908 = vmatprep.subr.bf16.mxu0 0
      %1909 = vmatpush2.bf16.msra.mxu0 0
      %1910 = vmatprep.subr.bf16.mxu0 0
      %1911 = vmatpush2.bf16.msra.mxu0 0
      %1912 = vmatprep.subr.bf16.mxu0 0
      %1913 = vmatpush2.bf16.msra.mxu0 0
      %1914 = vmatprep.subr.bf16.mxu0 0
      %1915 = vmatpush2.bf16.msra.mxu0 0
      %1916 = vmatprep.subr.bf16.mxu0 0
      %1917 = vmatpush2.bf16.msra.mxu0 0
      %1918 = vmatprep.subr.bf16.mxu0 0
      %1919 = vmatpush2.bf16.msra.mxu0 0
      %1920 = vmatprep.subr.bf16.mxu0 0
      %1921 = vmatpush2.bf16.msra.mxu0 0
      %1922 = vmatprep.mubr.bf16.mxu0 0
      %1923 = vmatmul.mubr.bf16.gmra.mxu0 %v895
      %v1924 = vpop.f32.mrf.mxu0
      %v1925 = vadd.f32 0.0, %v1924
      %v1926 = vpop.f32.mrf.mxu0
      %v1927 = vadd.f32 0.0, %v1926
      %v1928 = vpop.f32.mrf.mxu0
      %v1929 = vadd.f32 0.0, %v1928
      %v1930 = vpop.f32.mrf.mxu0
      %v1931 = vadd.f32 0.0, %v1930
      %1932 = vmatprep.mubr.bf16.mxu0 0
      %1933 = vmatmul.mubr.bf16.gmra.mxu0 %v898
      %v1934 = vpop.f32.mrf.mxu0
      %v1935 = vadd.f32 0.0, %v1934
      %v1936 = vpop.f32.mrf.mxu0
      %v1937 = vadd.f32 0.0, %v1936
      %v1938 = vpop.f32.mrf.mxu0
      %v1939 = vadd.f32 0.0, %v1938
      %v1940 = vpop.f32.mrf.mxu0
      %v1941 = vadd.f32 0.0, %v1940
      %1942 = vmatprep.mubr.bf16.mxu0 0
      %1943 = vmatmul.mubr.bf16.gmra.mxu0 %v901
      %v1944 = vpop.f32.mrf.mxu0
      %v1945 = vadd.f32 0.0, %v1944
      %v1946 = vpop.f32.mrf.mxu0
      %v1947 = vadd.f32 0.0, %v1946
      %v1948 = vpop.f32.mrf.mxu0
      %v1949 = vadd.f32 0.0, %v1948
      %v1950 = vpop.f32.mrf.mxu0
      %v1951 = vadd.f32 0.0, %v1950
      %1952 = vmatprep.mubr.bf16.mxu0 0
      %1953 = vmatmul.mubr.bf16.gmra.mxu0 %v904
      %v1954 = vpop.f32.mrf.mxu0
      %v1955 = vadd.f32 0.0, %v1954
      %v1956 = vpop.f32.mrf.mxu0
      %v1957 = vadd.f32 0.0, %v1956
      %v1958 = vpop.f32.mrf.mxu0
      %v1959 = vadd.f32 0.0, %v1958
      %v1960 = vpop.f32.mrf.mxu0
      %v1961 = vadd.f32 0.0, %v1960
      %1962 = vmatprep.mubr.bf16.mxu0 0
      %1963 = vmatmul.mubr.bf16.gmra.mxu0 %v907
      %v1964 = vpop.f32.mrf.mxu0
      %v1965 = vadd.f32 0.0, %v1964
      %v1966 = vpop.f32.mrf.mxu0
      %v1967 = vadd.f32 0.0, %v1966
      %v1968 = vpop.f32.mrf.mxu0
      %v1969 = vadd.f32 0.0, %v1968
      %v1970 = vpop.f32.mrf.mxu0
      %v1971 = vadd.f32 0.0, %v1970
      %1972 = vmatprep.mubr.bf16.mxu0 0
      %1973 = vmatmul.mubr.bf16.gmra.mxu0 %v910
      %v1974 = vpop.f32.mrf.mxu0
      %v1975 = vadd.f32 0.0, %v1974
      %v1976 = vpop.f32.mrf.mxu0
      %v1977 = vadd.f32 0.0, %v1976
      %v1978 = vpop.f32.mrf.mxu0
      %v1979 = vadd.f32 0.0, %v1978
      %v1980 = vpop.f32.mrf.mxu0
      %v1981 = vadd.f32 0.0, %v1980
      %1982 = vmatprep.mubr.bf16.mxu0 0
      %1983 = vmatmul.mubr.bf16.gmra.mxu0 %v913
      %v1984 = vpop.f32.mrf.mxu0
      %v1985 = vadd.f32 0.0, %v1984
      %v1986 = vpop.f32.mrf.mxu0
      %v1987 = vadd.f32 0.0, %v1986
      %v1988 = vpop.f32.mrf.mxu0
      %v1989 = vadd.f32 0.0, %v1988
      %v1990 = vpop.f32.mrf.mxu0
      %v1991 = vadd.f32 0.0, %v1990
      %1992 = vmatprep.mubr.bf16.mxu0 0
      %1993 = vmatmul.mubr.bf16.gmra.mxu0 %v916
      %v1994 = vpop.f32.mrf.mxu0
      %v1995 = vadd.f32 0.0, %v1994
      %v1996 = vpop.f32.mrf.mxu0
      %v1997 = vadd.f32 0.0, %v1996
      %v1998 = vpop.f32.mrf.mxu0
      %v1999 = vadd.f32 0.0, %v1998
      %v2000 = vpop.f32.mrf.mxu0
      %v2001 = vadd.f32 0.0, %v2000
      %2002 = vmatprep.mubr.bf16.mxu0 0
      %2003 = vmatmul.mubr.bf16.gmra.mxu0 %v919
      %v2004 = vpop.f32.mrf.mxu0
      %v2005 = vadd.f32 0.0, %v2004
      %v2006 = vpop.f32.mrf.mxu0
      %v2007 = vadd.f32 0.0, %v2006
      %v2008 = vpop.f32.mrf.mxu0
      %v2009 = vadd.f32 0.0, %v2008
      %v2010 = vpop.f32.mrf.mxu0
      %v2011 = vadd.f32 0.0, %v2010
      %2012 = vmatprep.mubr.bf16.mxu0 0
      %2013 = vmatmul.mubr.bf16.gmra.mxu0 %v922
      %v2014 = vpop.f32.mrf.mxu0
      %v2015 = vadd.f32 0.0, %v2014
      %v2016 = vpop.f32.mrf.mxu0
      %v2017 = vadd.f32 0.0, %v2016
      %v2018 = vpop.f32.mrf.mxu0
      %v2019 = vadd.f32 0.0, %v2018
      %v2020 = vpop.f32.mrf.mxu0
      %v2021 = vadd.f32 0.0, %v2020
      %2022 = vmatprep.mubr.bf16.mxu0 0
      %2023 = vmatmul.mubr.bf16.gmra.mxu0 %v925
      %v2024 = vpop.f32.mrf.mxu0
      %v2025 = vadd.f32 0.0, %v2024
      %v2026 = vpop.f32.mrf.mxu0
      %v2027 = vadd.f32 0.0, %v2026
      %v2028 = vpop.f32.mrf.mxu0
      %v2029 = vadd.f32 0.0, %v2028
      %v2030 = vpop.f32.mrf.mxu0
      %v2031 = vadd.f32 0.0, %v2030
      %2032 = vmatprep.mubr.bf16.mxu0 0
      %2033 = vmatmul.mubr.bf16.gmra.mxu0 %v928
      %v2034 = vpop.f32.mrf.mxu0
      %v2035 = vadd.f32 0.0, %v2034
      %v2036 = vpop.f32.mrf.mxu0
      %v2037 = vadd.f32 0.0, %v2036
      %v2038 = vpop.f32.mrf.mxu0
      %v2039 = vadd.f32 0.0, %v2038
      %v2040 = vpop.f32.mrf.mxu0
      %v2041 = vadd.f32 0.0, %v2040
      %2042 = vmatprep.mubr.bf16.mxu0 0
      %2043 = vmatmul.mubr.bf16.gmra.mxu0 %v931
      %v2044 = vpop.f32.mrf.mxu0
      %v2045 = vadd.f32 0.0, %v2044
      %v2046 = vpop.f32.mrf.mxu0
      %v2047 = vadd.f32 0.0, %v2046
      %v2048 = vpop.f32.mrf.mxu0
      %v2049 = vadd.f32 0.0, %v2048
      %v2050 = vpop.f32.mrf.mxu0
      %v2051 = vadd.f32 0.0, %v2050
      %2052 = vmatprep.mubr.bf16.mxu0 0
      %2053 = vmatmul.mubr.bf16.gmra.mxu0 %v934
      %v2054 = vpop.f32.mrf.mxu0
      %v2055 = vadd.f32 0.0, %v2054
      %v2056 = vpop.f32.mrf.mxu0
      %v2057 = vadd.f32 0.0, %v2056
      %v2058 = vpop.f32.mrf.mxu0
      %v2059 = vadd.f32 0.0, %v2058
      %v2060 = vpop.f32.mrf.mxu0
      %v2061 = vadd.f32 0.0, %v2060
      %2062 = vmatprep.mubr.bf16.mxu0 0
      %2063 = vmatmul.mubr.bf16.gmra.mxu0 %v937
      %v2064 = vpop.f32.mrf.mxu0
      %v2065 = vadd.f32 0.0, %v2064
      %v2066 = vpop.f32.mrf.mxu0
      %v2067 = vadd.f32 0.0, %v2066
      %v2068 = vpop.f32.mrf.mxu0
      %v2069 = vadd.f32 0.0, %v2068
      %v2070 = vpop.f32.mrf.mxu0
      %v2071 = vadd.f32 0.0, %v2070
      %2072 = vmatprep.mubr.bf16.mxu0 0
      %2073 = vmatmul.mubr.bf16.gmra.mxu0 %v940
      %v2074 = vpop.f32.mrf.mxu0
      %v2075 = vadd.f32 0.0, %v2074
      %v2076 = vpop.f32.mrf.mxu0
      %v2077 = vadd.f32 0.0, %v2076
      %v2078 = vpop.f32.mrf.mxu0
      %v2079 = vadd.f32 0.0, %v2078
      %v2080 = vpop.f32.mrf.mxu0
      %v2081 = vadd.f32 0.0, %v2080
      %2082 = vdwg.mxu0
      %2083 = vmatprep.subr.bf16.mxu0 0
      %2084 = vmatpush1.bf16.msra.mxu0 0
      %2085 = vmatprep.subr.bf16.mxu0 0
      %2086 = vmatpush1.bf16.msra.mxu0 0
      %2087 = vmatprep.subr.bf16.mxu0 0
      %2088 = vmatpush1.bf16.msra.mxu0 0
      %2089 = vmatprep.subr.bf16.mxu0 0
      %2090 = vmatpush1.bf16.msra.mxu0 0
      %2091 = vmatprep.subr.bf16.mxu0 0
      %2092 = vmatpush1.bf16.msra.mxu0 0
      %2093 = vmatprep.subr.bf16.mxu0 0
      %2094 = vmatpush1.bf16.msra.mxu0 0
      %2095 = vmatprep.subr.bf16.mxu0 0
      %2096 = vmatpush1.bf16.msra.mxu0 0
      %2097 = vmatprep.subr.bf16.mxu0 0
      %2098 = vmatpush1.bf16.msra.mxu0 %v1886
      %2099 = vmatprep.subr.bf16.mxu0 0
      %2100 = vmatpush2.bf16.msra.mxu0 0
      %2101 = vmatprep.subr.bf16.mxu0 0
      %2102 = vmatpush2.bf16.msra.mxu0 0
      %2103 = vmatprep.subr.bf16.mxu0 0
      %2104 = vmatpush2.bf16.msra.mxu0 0
      %2105 = vmatprep.subr.bf16.mxu0 0
      %2106 = vmatpush2.bf16.msra.mxu0 0
      %2107 = vmatprep.subr.bf16.mxu0 0
      %2108 = vmatpush2.bf16.msra.mxu0 0
      %2109 = vmatprep.subr.bf16.mxu0 0
      %2110 = vmatpush2.bf16.msra.mxu0 0
      %2111 = vmatprep.subr.bf16.mxu0 0
      %2112 = vmatpush2.bf16.msra.mxu0 0
      %2113 = vmatprep.subr.bf16.mxu0 0
      %2114 = vmatpush2.bf16.msra.mxu0 0
      %2115 = vmatprep.mubr.bf16.mxu0 0
      %2116 = vmatmul.mubr.bf16.gmra.mxu0 %v895
      %v2117 = vpop.f32.mrf.mxu0
      %v2118 = vadd.f32 0.0, %v2117
      %v2119 = vpop.f32.mrf.mxu0
      %v2120 = vpop.f32.mrf.mxu0
      %v2121 = vadd.f32 0.0, %v2120
      %v2122 = vpop.f32.mrf.mxu0
      %2123 = vmatprep.mubr.bf16.mxu0 0
      %2124 = vmatmul.mubr.bf16.gmra.mxu0 %v898
      %v2125 = vpop.f32.mrf.mxu0
      %v2126 = vadd.f32 0.0, %v2125
      %v2127 = vpop.f32.mrf.mxu0
      %v2128 = vpop.f32.mrf.mxu0
      %v2129 = vadd.f32 0.0, %v2128
      %v2130 = vpop.f32.mrf.mxu0
      %2131 = vmatprep.mubr.bf16.mxu0 0
      %2132 = vmatmul.mubr.bf16.gmra.mxu0 %v901
      %v2133 = vpop.f32.mrf.mxu0
      %v2134 = vadd.f32 0.0, %v2133
      %v2135 = vpop.f32.mrf.mxu0
      %v2136 = vpop.f32.mrf.mxu0
      %v2137 = vadd.f32 0.0, %v2136
      %v2138 = vpop.f32.mrf.mxu0
      %2139 = vmatprep.mubr.bf16.mxu0 0
      %2140 = vmatmul.mubr.bf16.gmra.mxu0 %v904
      %v2141 = vpop.f32.mrf.mxu0
      %v2142 = vadd.f32 0.0, %v2141
      %v2143 = vpop.f32.mrf.mxu0
      %v2144 = vpop.f32.mrf.mxu0
      %v2145 = vadd.f32 0.0, %v2144
      %v2146 = vpop.f32.mrf.mxu0
      %2147 = vmatprep.mubr.bf16.mxu0 0
      %2148 = vmatmul.mubr.bf16.gmra.mxu0 %v907
      %v2149 = vpop.f32.mrf.mxu0
      %v2150 = vadd.f32 0.0, %v2149
      %v2151 = vpop.f32.mrf.mxu0
      %v2152 = vpop.f32.mrf.mxu0
      %v2153 = vadd.f32 0.0, %v2152
      %v2154 = vpop.f32.mrf.mxu0
      %2155 = vmatprep.mubr.bf16.mxu0 0
      %2156 = vmatmul.mubr.bf16.gmra.mxu0 %v910
      %v2157 = vpop.f32.mrf.mxu0
      %v2158 = vadd.f32 0.0, %v2157
      %v2159 = vpop.f32.mrf.mxu0
      %v2160 = vpop.f32.mrf.mxu0
      %v2161 = vadd.f32 0.0, %v2160
      %v2162 = vpop.f32.mrf.mxu0
      %2163 = vmatprep.mubr.bf16.mxu0 0
      %2164 = vmatmul.mubr.bf16.gmra.mxu0 %v913
      %v2165 = vpop.f32.mrf.mxu0
      %v2166 = vadd.f32 0.0, %v2165
      %v2167 = vpop.f32.mrf.mxu0
      %v2168 = vpop.f32.mrf.mxu0
      %v2169 = vadd.f32 0.0, %v2168
      %v2170 = vpop.f32.mrf.mxu0
      %2171 = vmatprep.mubr.bf16.mxu0 0
      %2172 = vmatmul.mubr.bf16.gmra.mxu0 %v916
      %v2173 = vpop.f32.mrf.mxu0
      %v2174 = vadd.f32 0.0, %v2173
      %v2175 = vpop.f32.mrf.mxu0
      %v2176 = vpop.f32.mrf.mxu0
      %v2177 = vadd.f32 0.0, %v2176
      %v2178 = vpop.f32.mrf.mxu0
      %2179 = vmatprep.mubr.bf16.mxu0 0
      %2180 = vmatmul.mubr.bf16.gmra.mxu0 %v919
      %v2181 = vpop.f32.mrf.mxu0
      %v2182 = vadd.f32 0.0, %v2181
      %v2183 = vpop.f32.mrf.mxu0
      %v2184 = vpop.f32.mrf.mxu0
      %v2185 = vadd.f32 0.0, %v2184
      %v2186 = vpop.f32.mrf.mxu0
      %2187 = vmatprep.mubr.bf16.mxu0 0
      %2188 = vmatmul.mubr.bf16.gmra.mxu0 %v922
      %v2189 = vpop.f32.mrf.mxu0
      %v2190 = vadd.f32 0.0, %v2189
      %v2191 = vpop.f32.mrf.mxu0
      %v2192 = vpop.f32.mrf.mxu0
      %v2193 = vadd.f32 0.0, %v2192
      %v2194 = vpop.f32.mrf.mxu0
      %2195 = vmatprep.mubr.bf16.mxu0 0
      %2196 = vmatmul.mubr.bf16.gmra.mxu0 %v925
      %v2197 = vpop.f32.mrf.mxu0
      %v2198 = vadd.f32 0.0, %v2197
      %v2199 = vpop.f32.mrf.mxu0
      %v2200 = vpop.f32.mrf.mxu0
      %v2201 = vadd.f32 0.0, %v2200
      %v2202 = vpop.f32.mrf.mxu0
      %2203 = vmatprep.mubr.bf16.mxu0 0
      %2204 = vmatmul.mubr.bf16.gmra.mxu0 %v928
      %v2205 = vpop.f32.mrf.mxu0
      %v2206 = vadd.f32 0.0, %v2205
      %v2207 = vpop.f32.mrf.mxu0
      %v2208 = vpop.f32.mrf.mxu0
      %v2209 = vadd.f32 0.0, %v2208
      %v2210 = vpop.f32.mrf.mxu0
      %2211 = vmatprep.mubr.bf16.mxu0 0
      %2212 = vmatmul.mubr.bf16.gmra.mxu0 %v931
      %v2213 = vpop.f32.mrf.mxu0
      %v2214 = vadd.f32 0.0, %v2213
      %v2215 = vpop.f32.mrf.mxu0
      %v2216 = vpop.f32.mrf.mxu0
      %v2217 = vadd.f32 0.0, %v2216
      %v2218 = vpop.f32.mrf.mxu0
      %2219 = vmatprep.mubr.bf16.mxu0 0
      %2220 = vmatmul.mubr.bf16.gmra.mxu0 %v934
      %v2221 = vpop.f32.mrf.mxu0
      %v2222 = vadd.f32 0.0, %v2221
      %v2223 = vpop.f32.mrf.mxu0
      %v2224 = vpop.f32.mrf.mxu0
      %v2225 = vadd.f32 0.0, %v2224
      %v2226 = vpop.f32.mrf.mxu0
      %2227 = vmatprep.mubr.bf16.mxu0 0
      %2228 = vmatmul.mubr.bf16.gmra.mxu0 %v937
      %v2229 = vpop.f32.mrf.mxu0
      %v2230 = vadd.f32 0.0, %v2229
      %v2231 = vpop.f32.mrf.mxu0
      %v2232 = vpop.f32.mrf.mxu0
      %v2233 = vadd.f32 0.0, %v2232
      %v2234 = vpop.f32.mrf.mxu0
      %2235 = vmatprep.mubr.bf16.mxu0 0
      %2236 = vmatmul.mubr.bf16.gmra.mxu0 %v940
      %v2237 = vpop.f32.mrf.mxu0
      %v2238 = vadd.f32 0.0, %v2237
      %v2239 = vpop.f32.mrf.mxu0
      %v2240 = vpop.f32.mrf.mxu0
      %v2241 = vadd.f32 0.0, %v2240
      %v2242 = vpop.f32.mrf.mxu0
      %2243 = vdwg.mxu0
      %v2244 = vadd.f32 %v1555, %v1925
      %v2245 = vadd.f32 %v1559, %v1929
      %v2246 = vadd.f32 %v1565, %v1935
      %v2247 = vadd.f32 %v1569, %v1939
      %v2248 = vadd.f32 %v1575, %v1945
      %v2249 = vadd.f32 %v1579, %v1949
      %v2250 = vadd.f32 %v1585, %v1955
      %v2251 = vadd.f32 %v1589, %v1959
      %v2252 = vadd.f32 %v1595, %v1965
      %v2253 = vadd.f32 %v1599, %v1969
      %v2254 = vadd.f32 %v1605, %v1975
      %v2255 = vadd.f32 %v1609, %v1979
      %v2256 = vadd.f32 %v1615, %v1985
      %v2257 = vadd.f32 %v1619, %v1989
      %v2258 = vadd.f32 %v1625, %v1995
      %v2259 = vadd.f32 %v1629, %v1999
      %v2260 = vadd.f32 %v1635, %v2005
      %v2261 = vadd.f32 %v1639, %v2009
      %v2262 = vadd.f32 %v1645, %v2015
      %v2263 = vadd.f32 %v1649, %v2019
      %v2264 = vadd.f32 %v1655, %v2025
      %v2265 = vadd.f32 %v1659, %v2029
      %v2266 = vadd.f32 %v1665, %v2035
      %v2267 = vadd.f32 %v1669, %v2039
      %v2268 = vadd.f32 %v1675, %v2045
      %v2269 = vadd.f32 %v1679, %v2049
      %v2270 = vadd.f32 %v1685, %v2055
      %v2271 = vadd.f32 %v1689, %v2059
      %v2272 = vadd.f32 %v1695, %v2065
      %v2273 = vadd.f32 %v1699, %v2069
      %v2274 = vadd.f32 %v1705, %v2075
      %v2275 = vadd.f32 %v1709, %v2079
      %v2277 = vlaneseq
      %v2278 = vshrl.u32 %v2277, 7
      %v2279 = vsub.s32 0, %v2278
      %v2280 = vrot.slane %v865, %v2279
      %v2282 = vadd.f32 %v2244, %v2280
      %v2283 = vadd.f32 %v2245, %v2280
      %v2284 = vadd.f32 %v2246, %v2280
      %v2285 = vadd.f32 %v2247, %v2280
      %v2286 = vadd.f32 %v2248, %v2280
      %v2287 = vadd.f32 %v2249, %v2280
      %v2288 = vadd.f32 %v2250, %v2280
      %v2289 = vadd.f32 %v2251, %v2280
      %v2290 = vadd.f32 %v2252, %v2280
      %v2291 = vadd.f32 %v2253, %v2280
      %v2292 = vadd.f32 %v2254, %v2280
      %v2293 = vadd.f32 %v2255, %v2280
      %v2294 = vadd.f32 %v2256, %v2280
      %v2295 = vadd.f32 %v2257, %v2280
      %v2296 = vadd.f32 %v2258, %v2280
      %v2297 = vadd.f32 %v2259, %v2280
      %v2298 = vadd.f32 %v2260, %v2280
      %v2299 = vadd.f32 %v2261, %v2280
      %v2300 = vadd.f32 %v2262, %v2280
      %v2301 = vadd.f32 %v2263, %v2280
      %v2302 = vadd.f32 %v2264, %v2280
      %v2303 = vadd.f32 %v2265, %v2280
      %v2304 = vadd.f32 %v2266, %v2280
      %v2305 = vadd.f32 %v2267, %v2280
      %v2306 = vadd.f32 %v2268, %v2280
      %v2307 = vadd.f32 %v2269, %v2280
      %v2308 = vadd.f32 %v2270, %v2280
      %v2309 = vadd.f32 %v2271, %v2280
      %v2310 = vadd.f32 %v2272, %v2280
      %v2311 = vadd.f32 %v2273, %v2280
      %v2312 = vadd.f32 %v2274, %v2280
      %v2313 = vadd.f32 %v2275, %v2280
      %v2314 = vxor.u32 %v2282, 2147483648
      %v2315 = vxor.u32 %v2283, 2147483648
      %v2316 = vxor.u32 %v2284, 2147483648
      %v2317 = vxor.u32 %v2285, 2147483648
      %v2318 = vxor.u32 %v2286, 2147483648
      %v2319 = vxor.u32 %v2287, 2147483648
      %v2320 = vxor.u32 %v2288, 2147483648
      %v2321 = vxor.u32 %v2289, 2147483648
      %v2322 = vxor.u32 %v2290, 2147483648
      %v2323 = vxor.u32 %v2291, 2147483648
      %v2324 = vxor.u32 %v2292, 2147483648
      %v2325 = vxor.u32 %v2293, 2147483648
      %v2326 = vxor.u32 %v2294, 2147483648
      %v2327 = vxor.u32 %v2295, 2147483648
      %v2328 = vxor.u32 %v2296, 2147483648
      %v2329 = vxor.u32 %v2297, 2147483648
      %v2330 = vxor.u32 %v2298, 2147483648
      %v2331 = vxor.u32 %v2299, 2147483648
      %v2332 = vxor.u32 %v2300, 2147483648
      %v2333 = vxor.u32 %v2301, 2147483648
      %v2334 = vxor.u32 %v2302, 2147483648
      %v2335 = vxor.u32 %v2303, 2147483648
      %v2336 = vxor.u32 %v2304, 2147483648
      %v2337 = vxor.u32 %v2305, 2147483648
      %v2338 = vxor.u32 %v2306, 2147483648
      %v2339 = vxor.u32 %v2307, 2147483648
      %v2340 = vxor.u32 %v2308, 2147483648
      %v2341 = vxor.u32 %v2309, 2147483648
      %v2342 = vxor.u32 %v2310, 2147483648
      %v2343 = vxor.u32 %v2311, 2147483648
      %v2344 = vxor.u32 %v2312, 2147483648
      %v2345 = vxor.u32 %v2313, 2147483648
      %v2346 = vmul.f32 %v2314, 1.442695
      %v2347 = vpow.pop %v2346
      %v2348 = vmul.f32 %v2315, 1.442695
      %v2349 = vpow.pop %v2348
      %v2350 = vmul.f32 %v2316, 1.442695
      %v2351 = vpow.pop %v2350
      %v2352 = vmul.f32 %v2317, 1.442695
      %v2353 = vpow.pop %v2352
      %v2354 = vmul.f32 %v2318, 1.442695
      %v2355 = vpow.pop %v2354
      %v2356 = vmul.f32 %v2319, 1.442695
      %v2357 = vpow.pop %v2356
      %v2358 = vmul.f32 %v2320, 1.442695
      %v2359 = vpow.pop %v2358
      %v2360 = vmul.f32 %v2321, 1.442695
      %v2361 = vpow.pop %v2360
      %v2362 = vmul.f32 %v2322, 1.442695
      %v2363 = vpow.pop %v2362
      %v2364 = vmul.f32 %v2323, 1.442695
      %v2365 = vpow.pop %v2364
      %v2366 = vmul.f32 %v2324, 1.442695
      %v2367 = vpow.pop %v2366
      %v2368 = vmul.f32 %v2325, 1.442695
      %v2369 = vpow.pop %v2368
      %v2370 = vmul.f32 %v2326, 1.442695
      %v2371 = vpow.pop %v2370
      %v2372 = vmul.f32 %v2327, 1.442695
      %v2373 = vpow.pop %v2372
      %v2374 = vmul.f32 %v2328, 1.442695
      %v2375 = vpow.pop %v2374
      %v2376 = vmul.f32 %v2329, 1.442695
      %v2377 = vpow.pop %v2376
      %v2378 = vmul.f32 %v2330, 1.442695
      %v2379 = vpow.pop %v2378
      %v2380 = vmul.f32 %v2331, 1.442695
      %v2381 = vpow.pop %v2380
      %v2382 = vmul.f32 %v2332, 1.442695
      %v2383 = vpow.pop %v2382
      %v2384 = vmul.f32 %v2333, 1.442695
      %v2385 = vpow.pop %v2384
      %v2386 = vmul.f32 %v2334, 1.442695
      %v2387 = vpow.pop %v2386
      %v2388 = vmul.f32 %v2335, 1.442695
      %v2389 = vpow.pop %v2388
      %v2390 = vmul.f32 %v2336, 1.442695
      %v2391 = vpow.pop %v2390
      %v2392 = vmul.f32 %v2337, 1.442695
      %v2393 = vpow.pop %v2392
      %v2394 = vmul.f32 %v2338, 1.442695
      %v2395 = vpow.pop %v2394
      %v2396 = vmul.f32 %v2339, 1.442695
      %v2397 = vpow.pop %v2396
      %v2398 = vmul.f32 %v2340, 1.442695
      %v2399 = vpow.pop %v2398
      %v2400 = vmul.f32 %v2341, 1.442695
      %v2401 = vpow.pop %v2400
      %v2402 = vmul.f32 %v2342, 1.442695
      %v2403 = vpow.pop %v2402
      %v2404 = vmul.f32 %v2343, 1.442695
      %v2405 = vpow.pop %v2404
      %v2406 = vmul.f32 %v2344, 1.442695
      %v2407 = vpow.pop %v2406
      %v2408 = vmul.f32 %v2345, 1.442695
      %v2409 = vpow.pop %v2408
      %v2410 = vadd.f32 %v2347, 1.0
      %v2411 = vadd.f32 %v2349, 1.0
      %v2412 = vadd.f32 %v2351, 1.0
      %v2413 = vadd.f32 %v2353, 1.0
      %v2414 = vadd.f32 %v2355, 1.0
      %v2415 = vadd.f32 %v2357, 1.0
      %v2416 = vadd.f32 %v2359, 1.0
      %v2417 = vadd.f32 %v2361, 1.0
      %v2418 = vadd.f32 %v2363, 1.0
      %v2419 = vadd.f32 %v2365, 1.0
      %v2420 = vadd.f32 %v2367, 1.0
      %v2421 = vadd.f32 %v2369, 1.0
      %v2422 = vadd.f32 %v2371, 1.0
      %v2423 = vadd.f32 %v2373, 1.0
      %v2424 = vadd.f32 %v2375, 1.0
      %v2425 = vadd.f32 %v2377, 1.0
      %v2426 = vadd.f32 %v2379, 1.0
      %v2427 = vadd.f32 %v2381, 1.0
      %v2428 = vadd.f32 %v2383, 1.0
      %v2429 = vadd.f32 %v2385, 1.0
      %v2430 = vadd.f32 %v2387, 1.0
      %v2431 = vadd.f32 %v2389, 1.0
      %v2432 = vadd.f32 %v2391, 1.0
      %v2433 = vadd.f32 %v2393, 1.0
      %v2434 = vadd.f32 %v2395, 1.0
      %v2435 = vadd.f32 %v2397, 1.0
      %v2436 = vadd.f32 %v2399, 1.0
      %v2437 = vadd.f32 %v2401, 1.0
      %v2438 = vadd.f32 %v2403, 1.0
      %v2439 = vadd.f32 %v2405, 1.0
      %v2440 = vadd.f32 %v2407, 1.0
      %v2441 = vadd.f32 %v2409, 1.0
      %v2442 = vrcp.pop %v2410
      %v2443 = vmul.f32 1.0, %v2442
      %v2444 = vrcp.pop %v2411
      %v2445 = vmul.f32 1.0, %v2444
      %v2446 = vrcp.pop %v2412
      %v2447 = vmul.f32 1.0, %v2446
      %v2448 = vrcp.pop %v2413
      %v2449 = vmul.f32 1.0, %v2448
      %v2450 = vrcp.pop %v2414
      %v2451 = vmul.f32 1.0, %v2450
      %v2452 = vrcp.pop %v2415
      %v2453 = vmul.f32 1.0, %v2452
      %v2454 = vrcp.pop %v2416
      %v2455 = vmul.f32 1.0, %v2454
      %v2456 = vrcp.pop %v2417
      %v2457 = vmul.f32 1.0, %v2456
      %v2458 = vrcp.pop %v2418
      %v2459 = vmul.f32 1.0, %v2458
      %v2460 = vrcp.pop %v2419
      %v2461 = vmul.f32 1.0, %v2460
      %v2462 = vrcp.pop %v2420
      %v2463 = vmul.f32 1.0, %v2462
      %v2464 = vrcp.pop %v2421
      %v2465 = vmul.f32 1.0, %v2464
      %v2466 = vrcp.pop %v2422
      %v2467 = vmul.f32 1.0, %v2466
      %v2468 = vrcp.pop %v2423
      %v2469 = vmul.f32 1.0, %v2468
      %v2470 = vrcp.pop %v2424
      %v2471 = vmul.f32 1.0, %v2470
      %v2472 = vrcp.pop %v2425
      %v2473 = vmul.f32 1.0, %v2472
      %v2474 = vrcp.pop %v2426
      %v2475 = vmul.f32 1.0, %v2474
      %v2476 = vrcp.pop %v2427
      %v2477 = vmul.f32 1.0, %v2476
      %v2478 = vrcp.pop %v2428
      %v2479 = vmul.f32 1.0, %v2478
      %v2480 = vrcp.pop %v2429
      %v2481 = vmul.f32 1.0, %v2480
      %v2482 = vrcp.pop %v2430
      %v2483 = vmul.f32 1.0, %v2482
      %v2484 = vrcp.pop %v2431
      %v2485 = vmul.f32 1.0, %v2484
      %v2486 = vrcp.pop %v2432
      %v2487 = vmul.f32 1.0, %v2486
      %v2488 = vrcp.pop %v2433
      %v2489 = vmul.f32 1.0, %v2488
      %v2490 = vrcp.pop %v2434
      %v2491 = vmul.f32 1.0, %v2490
      %v2492 = vrcp.pop %v2435
      %v2493 = vmul.f32 1.0, %v2492
      %v2494 = vrcp.pop %v2436
      %v2495 = vmul.f32 1.0, %v2494
      %v2496 = vrcp.pop %v2437
      %v2497 = vmul.f32 1.0, %v2496
      %v2498 = vrcp.pop %v2438
      %v2499 = vmul.f32 1.0, %v2498
      %v2500 = vrcp.pop %v2439
      %v2501 = vmul.f32 1.0, %v2500
      %v2502 = vrcp.pop %v2440
      %v2503 = vmul.f32 1.0, %v2502
      %v2504 = vrcp.pop %v2441
      %v2505 = vmul.f32 1.0, %v2504
      %v2506 = vadd.f32 %v1557, %v1927
      %v2507 = vadd.f32 %v1561, %v1931
      %v2508 = vadd.f32 %v1567, %v1937
      %v2509 = vadd.f32 %v1571, %v1941
      %v2510 = vadd.f32 %v1577, %v1947
      %v2511 = vadd.f32 %v1581, %v1951
      %v2512 = vadd.f32 %v1587, %v1957
      %v2513 = vadd.f32 %v1591, %v1961
      %v2514 = vadd.f32 %v1597, %v1967
      %v2515 = vadd.f32 %v1601, %v1971
      %v2516 = vadd.f32 %v1607, %v1977
      %v2517 = vadd.f32 %v1611, %v1981
      %v2518 = vadd.f32 %v1617, %v1987
      %v2519 = vadd.f32 %v1621, %v1991
      %v2520 = vadd.f32 %v1627, %v1997
      %v2521 = vadd.f32 %v1631, %v2001
      %v2522 = vadd.f32 %v1637, %v2007
      %v2523 = vadd.f32 %v1641, %v2011
      %v2524 = vadd.f32 %v1647, %v2017
      %v2525 = vadd.f32 %v1651, %v2021
      %v2526 = vadd.f32 %v1657, %v2027
      %v2527 = vadd.f32 %v1661, %v2031
      %v2528 = vadd.f32 %v1667, %v2037
      %v2529 = vadd.f32 %v1671, %v2041
      %v2530 = vadd.f32 %v1677, %v2047
      %v2531 = vadd.f32 %v1681, %v2051
      %v2532 = vadd.f32 %v1687, %v2057
      %v2533 = vadd.f32 %v1691, %v2061
      %v2534 = vadd.f32 %v1697, %v2067
      %v2535 = vadd.f32 %v1701, %v2071
      %v2536 = vadd.f32 %v1707, %v2077
      %v2537 = vadd.f32 %v1711, %v2081
      %v2539 = vlaneseq
      %v2540 = vshrl.u32 %v2539, 7
      %v2541 = vsub.s32 0, %v2540
      %v2542 = vrot.slane %v866, %v2541
      %v2544 = vadd.f32 %v2506, %v2542
      %v2545 = vadd.f32 %v2507, %v2542
      %v2546 = vadd.f32 %v2508, %v2542
      %v2547 = vadd.f32 %v2509, %v2542
      %v2548 = vadd.f32 %v2510, %v2542
      %v2549 = vadd.f32 %v2511, %v2542
      %v2550 = vadd.f32 %v2512, %v2542
      %v2551 = vadd.f32 %v2513, %v2542
      %v2552 = vadd.f32 %v2514, %v2542
      %v2553 = vadd.f32 %v2515, %v2542
      %v2554 = vadd.f32 %v2516, %v2542
      %v2555 = vadd.f32 %v2517, %v2542
      %v2556 = vadd.f32 %v2518, %v2542
      %v2557 = vadd.f32 %v2519, %v2542
      %v2558 = vadd.f32 %v2520, %v2542
      %v2559 = vadd.f32 %v2521, %v2542
      %v2560 = vadd.f32 %v2522, %v2542
      %v2561 = vadd.f32 %v2523, %v2542
      %v2562 = vadd.f32 %v2524, %v2542
      %v2563 = vadd.f32 %v2525, %v2542
      %v2564 = vadd.f32 %v2526, %v2542
      %v2565 = vadd.f32 %v2527, %v2542
      %v2566 = vadd.f32 %v2528, %v2542
      %v2567 = vadd.f32 %v2529, %v2542
      %v2568 = vadd.f32 %v2530, %v2542
      %v2569 = vadd.f32 %v2531, %v2542
      %v2570 = vadd.f32 %v2532, %v2542
      %v2571 = vadd.f32 %v2533, %v2542
      %v2572 = vadd.f32 %v2534, %v2542
      %v2573 = vadd.f32 %v2535, %v2542
      %v2574 = vadd.f32 %v2536, %v2542
      %v2575 = vadd.f32 %v2537, %v2542
      %v2576 = vxor.u32 %v2544, 2147483648
      %v2577 = vxor.u32 %v2545, 2147483648
      %v2578 = vxor.u32 %v2546, 2147483648
      %v2579 = vxor.u32 %v2547, 2147483648
      %v2580 = vxor.u32 %v2548, 2147483648
      %v2581 = vxor.u32 %v2549, 2147483648
      %v2582 = vxor.u32 %v2550, 2147483648
      %v2583 = vxor.u32 %v2551, 2147483648
      %v2584 = vxor.u32 %v2552, 2147483648
      %v2585 = vxor.u32 %v2553, 2147483648
      %v2586 = vxor.u32 %v2554, 2147483648
      %v2587 = vxor.u32 %v2555, 2147483648
      %v2588 = vxor.u32 %v2556, 2147483648
      %v2589 = vxor.u32 %v2557, 2147483648
      %v2590 = vxor.u32 %v2558, 2147483648
      %v2591 = vxor.u32 %v2559, 2147483648
      %v2592 = vxor.u32 %v2560, 2147483648
      %v2593 = vxor.u32 %v2561, 2147483648
      %v2594 = vxor.u32 %v2562, 2147483648
      %v2595 = vxor.u32 %v2563, 2147483648
      %v2596 = vxor.u32 %v2564, 2147483648
      %v2597 = vxor.u32 %v2565, 2147483648
      %v2598 = vxor.u32 %v2566, 2147483648
      %v2599 = vxor.u32 %v2567, 2147483648
      %v2600 = vxor.u32 %v2568, 2147483648
      %v2601 = vxor.u32 %v2569, 2147483648
      %v2602 = vxor.u32 %v2570, 2147483648
      %v2603 = vxor.u32 %v2571, 2147483648
      %v2604 = vxor.u32 %v2572, 2147483648
      %v2605 = vxor.u32 %v2573, 2147483648
      %v2606 = vxor.u32 %v2574, 2147483648
      %v2607 = vxor.u32 %v2575, 2147483648
      %v2608 = vmul.f32 %v2576, 1.442695
      %v2609 = vpow.pop %v2608
      %v2610 = vmul.f32 %v2577, 1.442695
      %v2611 = vpow.pop %v2610
      %v2612 = vmul.f32 %v2578, 1.442695
      %v2613 = vpow.pop %v2612
      %v2614 = vmul.f32 %v2579, 1.442695
      %v2615 = vpow.pop %v2614
      %v2616 = vmul.f32 %v2580, 1.442695
      %v2617 = vpow.pop %v2616
      %v2618 = vmul.f32 %v2581, 1.442695
      %v2619 = vpow.pop %v2618
      %v2620 = vmul.f32 %v2582, 1.442695
      %v2621 = vpow.pop %v2620
      %v2622 = vmul.f32 %v2583, 1.442695
      %v2623 = vpow.pop %v2622
      %v2624 = vmul.f32 %v2584, 1.442695
      %v2625 = vpow.pop %v2624
      %v2626 = vmul.f32 %v2585, 1.442695
      %v2627 = vpow.pop %v2626
      %v2628 = vmul.f32 %v2586, 1.442695
      %v2629 = vpow.pop %v2628
      %v2630 = vmul.f32 %v2587, 1.442695
      %v2631 = vpow.pop %v2630
      %v2632 = vmul.f32 %v2588, 1.442695
      %v2633 = vpow.pop %v2632
      %v2634 = vmul.f32 %v2589, 1.442695
      %v2635 = vpow.pop %v2634
      %v2636 = vmul.f32 %v2590, 1.442695
      %v2637 = vpow.pop %v2636
      %v2638 = vmul.f32 %v2591, 1.442695
      %v2639 = vpow.pop %v2638
      %v2640 = vmul.f32 %v2592, 1.442695
      %v2641 = vpow.pop %v2640
      %v2642 = vmul.f32 %v2593, 1.442695
      %v2643 = vpow.pop %v2642
      %v2644 = vmul.f32 %v2594, 1.442695
      %v2645 = vpow.pop %v2644
      %v2646 = vmul.f32 %v2595, 1.442695
      %v2647 = vpow.pop %v2646
      %v2648 = vmul.f32 %v2596, 1.442695
      %v2649 = vpow.pop %v2648
      %v2650 = vmul.f32 %v2597, 1.442695
      %v2651 = vpow.pop %v2650
      %v2652 = vmul.f32 %v2598, 1.442695
      %v2653 = vpow.pop %v2652
      %v2654 = vmul.f32 %v2599, 1.442695
      %v2655 = vpow.pop %v2654
      %v2656 = vmul.f32 %v2600, 1.442695
      %v2657 = vpow.pop %v2656
      %v2658 = vmul.f32 %v2601, 1.442695
      %v2659 = vpow.pop %v2658
      %v2660 = vmul.f32 %v2602, 1.442695
      %v2661 = vpow.pop %v2660
      %v2662 = vmul.f32 %v2603, 1.442695
      %v2663 = vpow.pop %v2662
      %v2664 = vmul.f32 %v2604, 1.442695
      %v2665 = vpow.pop %v2664
      %v2666 = vmul.f32 %v2605, 1.442695
      %v2667 = vpow.pop %v2666
      %v2668 = vmul.f32 %v2606, 1.442695
      %v2669 = vpow.pop %v2668
      %v2670 = vmul.f32 %v2607, 1.442695
      %v2671 = vpow.pop %v2670
      %v2672 = vadd.f32 %v2609, 1.0
      %v2673 = vadd.f32 %v2611, 1.0
      %v2674 = vadd.f32 %v2613, 1.0
      %v2675 = vadd.f32 %v2615, 1.0
      %v2676 = vadd.f32 %v2617, 1.0
      %v2677 = vadd.f32 %v2619, 1.0
      %v2678 = vadd.f32 %v2621, 1.0
      %v2679 = vadd.f32 %v2623, 1.0
      %v2680 = vadd.f32 %v2625, 1.0
      %v2681 = vadd.f32 %v2627, 1.0
      %v2682 = vadd.f32 %v2629, 1.0
      %v2683 = vadd.f32 %v2631, 1.0
      %v2684 = vadd.f32 %v2633, 1.0
      %v2685 = vadd.f32 %v2635, 1.0
      %v2686 = vadd.f32 %v2637, 1.0
      %v2687 = vadd.f32 %v2639, 1.0
      %v2688 = vadd.f32 %v2641, 1.0
      %v2689 = vadd.f32 %v2643, 1.0
      %v2690 = vadd.f32 %v2645, 1.0
      %v2691 = vadd.f32 %v2647, 1.0
      %v2692 = vadd.f32 %v2649, 1.0
      %v2693 = vadd.f32 %v2651, 1.0
      %v2694 = vadd.f32 %v2653, 1.0
      %v2695 = vadd.f32 %v2655, 1.0
      %v2696 = vadd.f32 %v2657, 1.0
      %v2697 = vadd.f32 %v2659, 1.0
      %v2698 = vadd.f32 %v2661, 1.0
      %v2699 = vadd.f32 %v2663, 1.0
      %v2700 = vadd.f32 %v2665, 1.0
      %v2701 = vadd.f32 %v2667, 1.0
      %v2702 = vadd.f32 %v2669, 1.0
      %v2703 = vadd.f32 %v2671, 1.0
      %v2704 = vrcp.pop %v2672
      %v2705 = vmul.f32 1.0, %v2704
      %v2706 = vrcp.pop %v2673
      %v2707 = vmul.f32 1.0, %v2706
      %v2708 = vrcp.pop %v2674
      %v2709 = vmul.f32 1.0, %v2708
      %v2710 = vrcp.pop %v2675
      %v2711 = vmul.f32 1.0, %v2710
      %v2712 = vrcp.pop %v2676
      %v2713 = vmul.f32 1.0, %v2712
      %v2714 = vrcp.pop %v2677
      %v2715 = vmul.f32 1.0, %v2714
      %v2716 = vrcp.pop %v2678
      %v2717 = vmul.f32 1.0, %v2716
      %v2718 = vrcp.pop %v2679
      %v2719 = vmul.f32 1.0, %v2718
      %v2720 = vrcp.pop %v2680
      %v2721 = vmul.f32 1.0, %v2720
      %v2722 = vrcp.pop %v2681
      %v2723 = vmul.f32 1.0, %v2722
      %v2724 = vrcp.pop %v2682
      %v2725 = vmul.f32 1.0, %v2724
      %v2726 = vrcp.pop %v2683
      %v2727 = vmul.f32 1.0, %v2726
      %v2728 = vrcp.pop %v2684
      %v2729 = vmul.f32 1.0, %v2728
      %v2730 = vrcp.pop %v2685
      %v2731 = vmul.f32 1.0, %v2730
      %v2732 = vrcp.pop %v2686
      %v2733 = vmul.f32 1.0, %v2732
      %v2734 = vrcp.pop %v2687
      %v2735 = vmul.f32 1.0, %v2734
      %v2736 = vrcp.pop %v2688
      %v2737 = vmul.f32 1.0, %v2736
      %v2738 = vrcp.pop %v2689
      %v2739 = vmul.f32 1.0, %v2738
      %v2740 = vrcp.pop %v2690
      %v2741 = vmul.f32 1.0, %v2740
      %v2742 = vrcp.pop %v2691
      %v2743 = vmul.f32 1.0, %v2742
      %v2744 = vrcp.pop %v2692
      %v2745 = vmul.f32 1.0, %v2744
      %v2746 = vrcp.pop %v2693
      %v2747 = vmul.f32 1.0, %v2746
      %v2748 = vrcp.pop %v2694
      %v2749 = vmul.f32 1.0, %v2748
      %v2750 = vrcp.pop %v2695
      %v2751 = vmul.f32 1.0, %v2750
      %v2752 = vrcp.pop %v2696
      %v2753 = vmul.f32 1.0, %v2752
      %v2754 = vrcp.pop %v2697
      %v2755 = vmul.f32 1.0, %v2754
      %v2756 = vrcp.pop %v2698
      %v2757 = vmul.f32 1.0, %v2756
      %v2758 = vrcp.pop %v2699
      %v2759 = vmul.f32 1.0, %v2758
      %v2760 = vrcp.pop %v2700
      %v2761 = vmul.f32 1.0, %v2760
      %v2762 = vrcp.pop %v2701
      %v2763 = vmul.f32 1.0, %v2762
      %v2764 = vrcp.pop %v2702
      %v2765 = vmul.f32 1.0, %v2764
      %v2766 = vrcp.pop %v2703
      %v2767 = vmul.f32 1.0, %v2766
      %v2769 = vlaneseq
      %v2770 = vshrl.u32 %v2769, 7
      %v2771 = vsub.s32 0, %v2770
      %v2772 = vrot.slane %v867, %v2771
      %v2774 = vadd.f32 %v1748, %v2772
      %v2775 = vadd.f32 %v1751, %v2772
      %v2776 = vadd.f32 %v1756, %v2772
      %v2777 = vadd.f32 %v1759, %v2772
      %v2778 = vadd.f32 %v1764, %v2772
      %v2779 = vadd.f32 %v1767, %v2772
      %v2780 = vadd.f32 %v1772, %v2772
      %v2781 = vadd.f32 %v1775, %v2772
      %v2782 = vadd.f32 %v1780, %v2772
      %v2783 = vadd.f32 %v1783, %v2772
      %v2784 = vadd.f32 %v1788, %v2772
      %v2785 = vadd.f32 %v1791, %v2772
      %v2786 = vadd.f32 %v1796, %v2772
      %v2787 = vadd.f32 %v1799, %v2772
      %v2788 = vadd.f32 %v1804, %v2772
      %v2789 = vadd.f32 %v1807, %v2772
      %v2790 = vadd.f32 %v1812, %v2772
      %v2791 = vadd.f32 %v1815, %v2772
      %v2792 = vadd.f32 %v1820, %v2772
      %v2793 = vadd.f32 %v1823, %v2772
      %v2794 = vadd.f32 %v1828, %v2772
      %v2795 = vadd.f32 %v1831, %v2772
      %v2796 = vadd.f32 %v1836, %v2772
      %v2797 = vadd.f32 %v1839, %v2772
      %v2798 = vadd.f32 %v1844, %v2772
      %v2799 = vadd.f32 %v1847, %v2772
      %v2800 = vadd.f32 %v1852, %v2772
      %v2801 = vadd.f32 %v1855, %v2772
      %v2802 = vadd.f32 %v1860, %v2772
      %v2803 = vadd.f32 %v1863, %v2772
      %v2804 = vadd.f32 %v1868, %v2772
      %v2805 = vadd.f32 %v1871, %v2772
      %v2807 = vlaneseq
      %v2808 = vshrl.u32 %v2807, 7
      %v2809 = vsub.s32 0, %v2808
      %v2810 = vrot.slane %v868, %v2809
      %v2812 = vadd.f32 %v2118, %v2810
      %v2813 = vadd.f32 %v2121, %v2810
      %v2814 = vadd.f32 %v2126, %v2810
      %v2815 = vadd.f32 %v2129, %v2810
      %v2816 = vadd.f32 %v2134, %v2810
      %v2817 = vadd.f32 %v2137, %v2810
      %v2818 = vadd.f32 %v2142, %v2810
      %v2819 = vadd.f32 %v2145, %v2810
      %v2820 = vadd.f32 %v2150, %v2810
      %v2821 = vadd.f32 %v2153, %v2810
      %v2822 = vadd.f32 %v2158, %v2810
      %v2823 = vadd.f32 %v2161, %v2810
      %v2824 = vadd.f32 %v2166, %v2810
      %v2825 = vadd.f32 %v2169, %v2810
      %v2826 = vadd.f32 %v2174, %v2810
      %v2827 = vadd.f32 %v2177, %v2810
      %v2828 = vadd.f32 %v2182, %v2810
      %v2829 = vadd.f32 %v2185, %v2810
      %v2830 = vadd.f32 %v2190, %v2810
      %v2831 = vadd.f32 %v2193, %v2810
      %v2832 = vadd.f32 %v2198, %v2810
      %v2833 = vadd.f32 %v2201, %v2810
      %v2834 = vadd.f32 %v2206, %v2810
      %v2835 = vadd.f32 %v2209, %v2810
      %v2836 = vadd.f32 %v2214, %v2810
      %v2837 = vadd.f32 %v2217, %v2810
      %v2838 = vadd.f32 %v2222, %v2810
      %v2839 = vadd.f32 %v2225, %v2810
      %v2840 = vadd.f32 %v2230, %v2810
      %v2841 = vadd.f32 %v2233, %v2810
      %v2842 = vadd.f32 %v2238, %v2810
      %v2843 = vadd.f32 %v2241, %v2810
      %v2844 = vmul.f32 %v2443, %v2812
      %v2845 = vmul.f32 %v2445, %v2813
      %v2846 = vmul.f32 %v2447, %v2814
      %v2847 = vmul.f32 %v2449, %v2815
      %v2848 = vmul.f32 %v2451, %v2816
      %v2849 = vmul.f32 %v2453, %v2817
      %v2850 = vmul.f32 %v2455, %v2818
      %v2851 = vmul.f32 %v2457, %v2819
      %v2852 = vmul.f32 %v2459, %v2820
      %v2853 = vmul.f32 %v2461, %v2821
      %v2854 = vmul.f32 %v2463, %v2822
      %v2855 = vmul.f32 %v2465, %v2823
      %v2856 = vmul.f32 %v2467, %v2824
      %v2857 = vmul.f32 %v2469, %v2825
      %v2858 = vmul.f32 %v2471, %v2826
      %v2859 = vmul.f32 %v2473, %v2827
      %v2860 = vmul.f32 %v2475, %v2828
      %v2861 = vmul.f32 %v2477, %v2829
      %v2862 = vmul.f32 %v2479, %v2830
      %v2863 = vmul.f32 %v2481, %v2831
      %v2864 = vmul.f32 %v2483, %v2832
      %v2865 = vmul.f32 %v2485, %v2833
      %v2866 = vmul.f32 %v2487, %v2834
      %v2867 = vmul.f32 %v2489, %v2835
      %v2868 = vmul.f32 %v2491, %v2836
      %v2869 = vmul.f32 %v2493, %v2837
      %v2870 = vmul.f32 %v2495, %v2838
      %v2871 = vmul.f32 %v2497, %v2839
      %v2872 = vmul.f32 %v2499, %v2840
      %v2873 = vmul.f32 %v2501, %v2841
      %v2874 = vmul.f32 %v2503, %v2842
      %v2875 = vmul.f32 %v2505, %v2843
      %v2876 = vadd.f32 %v2774, %v2844
      %v2877 = vadd.f32 %v2775, %v2845
      %v2878 = vadd.f32 %v2776, %v2846
      %v2879 = vadd.f32 %v2777, %v2847
      %v2880 = vadd.f32 %v2778, %v2848
      %v2881 = vadd.f32 %v2779, %v2849
      %v2882 = vadd.f32 %v2780, %v2850
      %v2883 = vadd.f32 %v2781, %v2851
      %v2884 = vadd.f32 %v2782, %v2852
      %v2885 = vadd.f32 %v2783, %v2853
      %v2886 = vadd.f32 %v2784, %v2854
      %v2887 = vadd.f32 %v2785, %v2855
      %v2888 = vadd.f32 %v2786, %v2856
      %v2889 = vadd.f32 %v2787, %v2857
      %v2890 = vadd.f32 %v2788, %v2858
      %v2891 = vadd.f32 %v2789, %v2859
      %v2892 = vadd.f32 %v2790, %v2860
      %v2893 = vadd.f32 %v2791, %v2861
      %v2894 = vadd.f32 %v2792, %v2862
      %v2895 = vadd.f32 %v2793, %v2863
      %v2896 = vadd.f32 %v2794, %v2864
      %v2897 = vadd.f32 %v2795, %v2865
      %v2898 = vadd.f32 %v2796, %v2866
      %v2899 = vadd.f32 %v2797, %v2867
      %v2900 = vadd.f32 %v2798, %v2868
      %v2901 = vadd.f32 %v2799, %v2869
      %v2902 = vadd.f32 %v2800, %v2870
      %v2903 = vadd.f32 %v2801, %v2871
      %v2904 = vadd.f32 %v2802, %v2872
      %v2905 = vadd.f32 %v2803, %v2873
      %v2906 = vadd.f32 %v2804, %v2874
      %v2907 = vadd.f32 %v2805, %v2875
      %v2908 = vtanh.pop %v2876
      %v2909 = vtanh.pop %v2877
      %v2910 = vtanh.pop %v2878
      %v2911 = vtanh.pop %v2879
      %v2912 = vtanh.pop %v2880
      %v2913 = vtanh.pop %v2881
      %v2914 = vtanh.pop %v2882
      %v2915 = vtanh.pop %v2883
      %v2916 = vtanh.pop %v2884
      %v2917 = vtanh.pop %v2885
      %v2918 = vtanh.pop %v2886
      %v2919 = vtanh.pop %v2887
      %v2920 = vtanh.pop %v2888
      %v2921 = vtanh.pop %v2889
      %v2922 = vtanh.pop %v2890
      %v2923 = vtanh.pop %v2891
      %v2924 = vtanh.pop %v2892
      %v2925 = vtanh.pop %v2893
      %v2926 = vtanh.pop %v2894
      %v2927 = vtanh.pop %v2895
      %v2928 = vtanh.pop %v2896
      %v2929 = vtanh.pop %v2897
      %v2930 = vtanh.pop %v2898
      %v2931 = vtanh.pop %v2899
      %v2932 = vtanh.pop %v2900
      %v2933 = vtanh.pop %v2901
      %v2934 = vtanh.pop %v2902
      %v2935 = vtanh.pop %v2903
      %v2936 = vtanh.pop %v2904
      %v2937 = vtanh.pop %v2905
      %v2938 = vtanh.pop %v2906
      %v2939 = vtanh.pop %v2907
      %v2940 = vsub.f32 1.0, %v2705
      %v2941 = vsub.f32 1.0, %v2707
      %v2942 = vsub.f32 1.0, %v2709
      %v2943 = vsub.f32 1.0, %v2711
      %v2944 = vsub.f32 1.0, %v2713
      %v2945 = vsub.f32 1.0, %v2715
      %v2946 = vsub.f32 1.0, %v2717
      %v2947 = vsub.f32 1.0, %v2719
      %v2948 = vsub.f32 1.0, %v2721
      %v2949 = vsub.f32 1.0, %v2723
      %v2950 = vsub.f32 1.0, %v2725
      %v2951 = vsub.f32 1.0, %v2727
      %v2952 = vsub.f32 1.0, %v2729
      %v2953 = vsub.f32 1.0, %v2731
      %v2954 = vsub.f32 1.0, %v2733
      %v2955 = vsub.f32 1.0, %v2735
      %v2956 = vsub.f32 1.0, %v2737
      %v2957 = vsub.f32 1.0, %v2739
      %v2958 = vsub.f32 1.0, %v2741
      %v2959 = vsub.f32 1.0, %v2743
      %v2960 = vsub.f32 1.0, %v2745
      %v2961 = vsub.f32 1.0, %v2747
      %v2962 = vsub.f32 1.0, %v2749
      %v2963 = vsub.f32 1.0, %v2751
      %v2964 = vsub.f32 1.0, %v2753
      %v2965 = vsub.f32 1.0, %v2755
      %v2966 = vsub.f32 1.0, %v2757
      %v2967 = vsub.f32 1.0, %v2759
      %v2968 = vsub.f32 1.0, %v2761
      %v2969 = vsub.f32 1.0, %v2763
      %v2970 = vsub.f32 1.0, %v2765
      %v2971 = vsub.f32 1.0, %v2767
      %v2972 = vmul.f32 %v2940, %v2908
      %v2973 = vmul.f32 %v2941, %v2909
      %v2974 = vmul.f32 %v2942, %v2910
      %v2975 = vmul.f32 %v2943, %v2911
      %v2976 = vmul.f32 %v2944, %v2912
      %v2977 = vmul.f32 %v2945, %v2913
      %v2978 = vmul.f32 %v2946, %v2914
      %v2979 = vmul.f32 %v2947, %v2915
      %v2980 = vmul.f32 %v2948, %v2916
      %v2981 = vmul.f32 %v2949, %v2917
      %v2982 = vmul.f32 %v2950, %v2918
      %v2983 = vmul.f32 %v2951, %v2919
      %v2984 = vmul.f32 %v2952, %v2920
      %v2985 = vmul.f32 %v2953, %v2921
      %v2986 = vmul.f32 %v2954, %v2922
      %v2987 = vmul.f32 %v2955, %v2923
      %v2988 = vmul.f32 %v2956, %v2924
      %v2989 = vmul.f32 %v2957, %v2925
      %v2990 = vmul.f32 %v2958, %v2926
      %v2991 = vmul.f32 %v2959, %v2927
      %v2992 = vmul.f32 %v2960, %v2928
      %v2993 = vmul.f32 %v2961, %v2929
      %v2994 = vmul.f32 %v2962, %v2930
      %v2995 = vmul.f32 %v2963, %v2931
      %v2996 = vmul.f32 %v2964, %v2932
      %v2997 = vmul.f32 %v2965, %v2933
      %v2998 = vmul.f32 %v2966, %v2934
      %v2999 = vmul.f32 %v2967, %v2935
      %v3000 = vmul.f32 %v2968, %v2936
      %v3001 = vmul.f32 %v2969, %v2937
      %v3002 = vmul.f32 %v2970, %v2938
      %v3003 = vmul.f32 %v2971, %v2939
      %v3004 = vmul.f32 %v2705, %v825
      %v3005 = vmul.f32 %v2707, %v826
      %v3006 = vmul.f32 %v2709, %v827
      %v3007 = vmul.f32 %v2711, %v828
      %v3008 = vmul.f32 %v2713, %v829
      %v3009 = vmul.f32 %v2715, %v830
      %v3010 = vmul.f32 %v2717, %v831
      %v3011 = vmul.f32 %v2719, %v832
      %v3012 = vmul.f32 %v2721, %v833
      %v3013 = vmul.f32 %v2723, %v834
      %v3014 = vmul.f32 %v2725, %v835
      %v3015 = vmul.f32 %v2727, %v836
      %v3016 = vmul.f32 %v2729, %v837
      %v3017 = vmul.f32 %v2731, %v838
      %v3018 = vmul.f32 %v2733, %v839
      %v3019 = vmul.f32 %v2735, %v840
      %v3020 = vmul.f32 %v2737, %v841
      %v3021 = vmul.f32 %v2739, %v842
      %v3022 = vmul.f32 %v2741, %v843
      %v3023 = vmul.f32 %v2743, %v844
      %v3024 = vmul.f32 %v2745, %v845
      %v3025 = vmul.f32 %v2747, %v846
      %v3026 = vmul.f32 %v2749, %v847
      %v3027 = vmul.f32 %v2751, %v848
      %v3028 = vmul.f32 %v2753, %v849
      %v3029 = vmul.f32 %v2755, %v850
      %v3030 = vmul.f32 %v2757, %v851
      %v3031 = vmul.f32 %v2759, %v852
      %v3032 = vmul.f32 %v2761, %v853
      %v3033 = vmul.f32 %v2763, %v854
      %v3034 = vmul.f32 %v2765, %v855
      %v3035 = vmul.f32 %v2767, %v856
      %v3036 = vadd.f32 %v2972, %v3004
      %v3037 = vadd.f32 %v2973, %v3005
      %v3038 = vadd.f32 %v2974, %v3006
      %v3039 = vadd.f32 %v2975, %v3007
      %v3040 = vadd.f32 %v2976, %v3008
      %v3041 = vadd.f32 %v2977, %v3009
      %v3042 = vadd.f32 %v2978, %v3010
      %v3043 = vadd.f32 %v2979, %v3011
      %v3044 = vadd.f32 %v2980, %v3012
      %v3045 = vadd.f32 %v2981, %v3013
      %v3046 = vadd.f32 %v2982, %v3014
      %v3047 = vadd.f32 %v2983, %v3015
      %v3048 = vadd.f32 %v2984, %v3016
      %v3049 = vadd.f32 %v2985, %v3017
      %v3050 = vadd.f32 %v2986, %v3018
      %v3051 = vadd.f32 %v2987, %v3019
      %v3052 = vadd.f32 %v2988, %v3020
      %v3053 = vadd.f32 %v2989, %v3021
      %v3054 = vadd.f32 %v2990, %v3022
      %v3055 = vadd.f32 %v2991, %v3023
      %v3056 = vadd.f32 %v2992, %v3024
      %v3057 = vadd.f32 %v2993, %v3025
      %v3058 = vadd.f32 %v2994, %v3026
      %v3059 = vadd.f32 %v2995, %v3027
      %v3060 = vadd.f32 %v2996, %v3028
      %v3061 = vadd.f32 %v2997, %v3029
      %v3062 = vadd.f32 %v2998, %v3030
      %v3063 = vadd.f32 %v2999, %v3031
      %v3064 = vadd.f32 %v3000, %v3032
      %v3065 = vadd.f32 %v3001, %v3033
      %v3066 = vadd.f32 %v3002, %v3034
      %v3067 = vadd.f32 %v3003, %v3035
      %v3068 = vpack.c.bf16 %v3037, %v3036
      %v3069 = vpack.c.bf16 %v3039, %v3038
      %v3070 = vpack.c.bf16 %v3041, %v3040
      %v3071 = vpack.c.bf16 %v3043, %v3042
      %v3072 = vpack.c.bf16 %v3045, %v3044
      %v3073 = vpack.c.bf16 %v3047, %v3046
      %v3074 = vpack.c.bf16 %v3049, %v3048
      %v3075 = vpack.c.bf16 %v3051, %v3050
      %v3076 = vpack.c.bf16 %v3053, %v3052
      %v3077 = vpack.c.bf16 %v3055, %v3054
      %v3078 = vpack.c.bf16 %v3057, %v3056
      %v3079 = vpack.c.bf16 %v3059, %v3058
      %v3080 = vpack.c.bf16 %v3061, %v3060
      %v3081 = vpack.c.bf16 %v3063, %v3062
      %v3082 = vpack.c.bf16 %v3065, %v3064
      %v3083 = vpack.c.bf16 %v3067, %v3066
      %s3084 = scalar_lea.vmem %s3, 8
      %v3085 = vld [vmem:[%s3084] sm:$0xf]
      %v3086 = vld [vmem:[%s3084 + $0x4] sm:$0xf]
      %v3089 = vunpack.c.l.b16 %v3085
      %v3090 = vunpack.c.l.b16 %v3086
      %v3091 = vpack.c.b16 %v3090, %v3089
      %v3094 = vsel %vm893, %v3068, 0
      %v3097 = vsel %vm893, %v3069, 0
      %v3100 = vsel %vm893, %v3070, 0
      %v3103 = vsel %vm893, %v3071, 0
      %v3106 = vsel %vm893, %v3072, 0
      %v3109 = vsel %vm893, %v3073, 0
      %v3112 = vsel %vm893, %v3074, 0
      %v3115 = vsel %vm893, %v3075, 0
      %v3118 = vsel %vm893, %v3076, 0
      %v3121 = vsel %vm893, %v3077, 0
      %v3124 = vsel %vm893, %v3078, 0
      %v3127 = vsel %vm893, %v3079, 0
      %v3130 = vsel %vm893, %v3080, 0
      %v3133 = vsel %vm893, %v3081, 0
      %v3136 = vsel %vm893, %v3082, 0
      %v3139 = vsel %vm893, %v3083, 0
      %3141 = vmatprep.subr.bf16.mxu0 0
      %3142 = vmatpush1.bf16.msra.mxu0 0
      %3143 = vmatprep.subr.bf16.mxu0 0
      %3144 = vmatpush1.bf16.msra.mxu0 0
      %3145 = vmatprep.subr.bf16.mxu0 0
      %3146 = vmatpush1.bf16.msra.mxu0 0
      %3147 = vmatprep.subr.bf16.mxu0 0
      %3148 = vmatpush1.bf16.msra.mxu0 0
      %3149 = vmatprep.subr.bf16.mxu0 0
      %3150 = vmatpush1.bf16.msra.mxu0 0
      %3151 = vmatprep.subr.bf16.mxu0 0
      %3152 = vmatpush1.bf16.msra.mxu0 0
      %3153 = vmatprep.subr.bf16.mxu0 0
      %3154 = vmatpush1.bf16.msra.mxu0 0
      %3155 = vmatprep.subr.bf16.mxu0 0
      %3156 = vmatpush1.bf16.msra.mxu0 %v3091
      %3157 = vmatprep.subr.bf16.mxu0 0
      %3158 = vmatpush2.bf16.msra.mxu0 0
      %3159 = vmatprep.subr.bf16.mxu0 0
      %3160 = vmatpush2.bf16.msra.mxu0 0
      %3161 = vmatprep.subr.bf16.mxu0 0
      %3162 = vmatpush2.bf16.msra.mxu0 0
      %3163 = vmatprep.subr.bf16.mxu0 0
      %3164 = vmatpush2.bf16.msra.mxu0 0
      %3165 = vmatprep.subr.bf16.mxu0 0
      %3166 = vmatpush2.bf16.msra.mxu0 0
      %3167 = vmatprep.subr.bf16.mxu0 0
      %3168 = vmatpush2.bf16.msra.mxu0 0
      %3169 = vmatprep.subr.bf16.mxu0 0
      %3170 = vmatpush2.bf16.msra.mxu0 0
      %3171 = vmatprep.subr.bf16.mxu0 0
      %3172 = vmatpush2.bf16.msra.mxu0 0
      %3173 = vmatprep.mubr.bf16.mxu0 0
      %3174 = vmatmul.mubr.bf16.gmra.mxu0 %v3094
      %v3175 = vpop.f32.mrf.mxu0
      %v3176 = vadd.f32 0.0, %v3175
      %v3177 = vpop.f32.mrf.mxu0
      %v3178 = vpop.f32.mrf.mxu0
      %v3179 = vadd.f32 0.0, %v3178
      %v3180 = vpop.f32.mrf.mxu0
      %3181 = vmatprep.mubr.bf16.mxu0 0
      %3182 = vmatmul.mubr.bf16.gmra.mxu0 %v3097
      %v3183 = vpop.f32.mrf.mxu0
      %v3184 = vadd.f32 0.0, %v3183
      %v3185 = vpop.f32.mrf.mxu0
      %v3186 = vpop.f32.mrf.mxu0
      %v3187 = vadd.f32 0.0, %v3186
      %v3188 = vpop.f32.mrf.mxu0
      %3189 = vmatprep.mubr.bf16.mxu0 0
      %3190 = vmatmul.mubr.bf16.gmra.mxu0 %v3100
      %v3191 = vpop.f32.mrf.mxu0
      %v3192 = vadd.f32 0.0, %v3191
      %v3193 = vpop.f32.mrf.mxu0
      %v3194 = vpop.f32.mrf.mxu0
      %v3195 = vadd.f32 0.0, %v3194
      %v3196 = vpop.f32.mrf.mxu0
      %3197 = vmatprep.mubr.bf16.mxu0 0
      %3198 = vmatmul.mubr.bf16.gmra.mxu0 %v3103
      %v3199 = vpop.f32.mrf.mxu0
      %v3200 = vadd.f32 0.0, %v3199
      %v3201 = vpop.f32.mrf.mxu0
      %v3202 = vpop.f32.mrf.mxu0
      %v3203 = vadd.f32 0.0, %v3202
      %v3204 = vpop.f32.mrf.mxu0
      %3205 = vmatprep.mubr.bf16.mxu0 0
      %3206 = vmatmul.mubr.bf16.gmra.mxu0 %v3106
      %v3207 = vpop.f32.mrf.mxu0
      %v3208 = vadd.f32 0.0, %v3207
      %v3209 = vpop.f32.mrf.mxu0
      %v3210 = vpop.f32.mrf.mxu0
      %v3211 = vadd.f32 0.0, %v3210
      %v3212 = vpop.f32.mrf.mxu0
      %3213 = vmatprep.mubr.bf16.mxu0 0
      %3214 = vmatmul.mubr.bf16.gmra.mxu0 %v3109
      %v3215 = vpop.f32.mrf.mxu0
      %v3216 = vadd.f32 0.0, %v3215
      %v3217 = vpop.f32.mrf.mxu0
      %v3218 = vpop.f32.mrf.mxu0
      %v3219 = vadd.f32 0.0, %v3218
      %v3220 = vpop.f32.mrf.mxu0
      %3221 = vmatprep.mubr.bf16.mxu0 0
      %3222 = vmatmul.mubr.bf16.gmra.mxu0 %v3112
      %v3223 = vpop.f32.mrf.mxu0
      %v3224 = vadd.f32 0.0, %v3223
      %v3225 = vpop.f32.mrf.mxu0
      %v3226 = vpop.f32.mrf.mxu0
      %v3227 = vadd.f32 0.0, %v3226
      %v3228 = vpop.f32.mrf.mxu0
      %3229 = vmatprep.mubr.bf16.mxu0 0
      %3230 = vmatmul.mubr.bf16.gmra.mxu0 %v3115
      %v3231 = vpop.f32.mrf.mxu0
      %v3232 = vadd.f32 0.0, %v3231
      %v3233 = vpop.f32.mrf.mxu0
      %v3234 = vpop.f32.mrf.mxu0
      %v3235 = vadd.f32 0.0, %v3234
      %v3236 = vpop.f32.mrf.mxu0
      %3237 = vmatprep.mubr.bf16.mxu0 0
      %3238 = vmatmul.mubr.bf16.gmra.mxu0 %v3118
      %v3239 = vpop.f32.mrf.mxu0
      %v3240 = vadd.f32 0.0, %v3239
      %v3241 = vpop.f32.mrf.mxu0
      %v3242 = vpop.f32.mrf.mxu0
      %v3243 = vadd.f32 0.0, %v3242
      %v3244 = vpop.f32.mrf.mxu0
      %3245 = vmatprep.mubr.bf16.mxu0 0
      %3246 = vmatmul.mubr.bf16.gmra.mxu0 %v3121
      %v3247 = vpop.f32.mrf.mxu0
      %v3248 = vadd.f32 0.0, %v3247
      %v3249 = vpop.f32.mrf.mxu0
      %v3250 = vpop.f32.mrf.mxu0
      %v3251 = vadd.f32 0.0, %v3250
      %v3252 = vpop.f32.mrf.mxu0
      %3253 = vmatprep.mubr.bf16.mxu0 0
      %3254 = vmatmul.mubr.bf16.gmra.mxu0 %v3124
      %v3255 = vpop.f32.mrf.mxu0
      %v3256 = vadd.f32 0.0, %v3255
      %v3257 = vpop.f32.mrf.mxu0
      %v3258 = vpop.f32.mrf.mxu0
      %v3259 = vadd.f32 0.0, %v3258
      %v3260 = vpop.f32.mrf.mxu0
      %3261 = vmatprep.mubr.bf16.mxu0 0
      %3262 = vmatmul.mubr.bf16.gmra.mxu0 %v3127
      %v3263 = vpop.f32.mrf.mxu0
      %v3264 = vadd.f32 0.0, %v3263
      %v3265 = vpop.f32.mrf.mxu0
      %v3266 = vpop.f32.mrf.mxu0
      %v3267 = vadd.f32 0.0, %v3266
      %v3268 = vpop.f32.mrf.mxu0
      %3269 = vmatprep.mubr.bf16.mxu0 0
      %3270 = vmatmul.mubr.bf16.gmra.mxu0 %v3130
      %v3271 = vpop.f32.mrf.mxu0
      %v3272 = vadd.f32 0.0, %v3271
      %v3273 = vpop.f32.mrf.mxu0
      %v3274 = vpop.f32.mrf.mxu0
      %v3275 = vadd.f32 0.0, %v3274
      %v3276 = vpop.f32.mrf.mxu0
      %3277 = vmatprep.mubr.bf16.mxu0 0
      %3278 = vmatmul.mubr.bf16.gmra.mxu0 %v3133
      %v3279 = vpop.f32.mrf.mxu0
      %v3280 = vadd.f32 0.0, %v3279
      %v3281 = vpop.f32.mrf.mxu0
      %v3282 = vpop.f32.mrf.mxu0
      %v3283 = vadd.f32 0.0, %v3282
      %v3284 = vpop.f32.mrf.mxu0
      %3285 = vmatprep.mubr.bf16.mxu0 0
      %3286 = vmatmul.mubr.bf16.gmra.mxu0 %v3136
      %v3287 = vpop.f32.mrf.mxu0
      %v3288 = vadd.f32 0.0, %v3287
      %v3289 = vpop.f32.mrf.mxu0
      %v3290 = vpop.f32.mrf.mxu0
      %v3291 = vadd.f32 0.0, %v3290
      %v3292 = vpop.f32.mrf.mxu0
      %3293 = vmatprep.mubr.bf16.mxu0 0
      %3294 = vmatmul.mubr.bf16.gmra.mxu0 %v3139
      %v3295 = vpop.f32.mrf.mxu0
      %v3296 = vadd.f32 0.0, %v3295
      %v3297 = vpop.f32.mrf.mxu0
      %v3298 = vpop.f32.mrf.mxu0
      %v3299 = vadd.f32 0.0, %v3298
      %v3300 = vpop.f32.mrf.mxu0
      %3301 = vdwg.mxu0
      %v3302 = vpack.c.bf16 %v3179, %v3176
      %v3303 = vpack.c.bf16 %v3187, %v3184
      %v3304 = vpack.c.bf16 %v3195, %v3192
      %v3305 = vpack.c.bf16 %v3203, %v3200
      %v3306 = vpack.c.bf16 %v3211, %v3208
      %v3307 = vpack.c.bf16 %v3219, %v3216
      %v3308 = vpack.c.bf16 %v3227, %v3224
      %v3309 = vpack.c.bf16 %v3235, %v3232
      %v3310 = vpack.c.bf16 %v3243, %v3240
      %v3311 = vpack.c.bf16 %v3251, %v3248
      %v3312 = vpack.c.bf16 %v3259, %v3256
      %v3313 = vpack.c.bf16 %v3267, %v3264
      %v3314 = vpack.c.bf16 %v3275, %v3272
      %v3315 = vpack.c.bf16 %v3283, %v3280
      %v3316 = vpack.c.bf16 %v3291, %v3288
      %v3317 = vpack.c.bf16 %v3299, %v3296
      %3318 = vmatprep.subr.bf16.mxu0 0
      %3319 = vmatpush1.bf16.msra.mxu0 %v3309
      %3320 = vmatprep.subr.bf16.mxu0 0
      %3321 = vmatpush1.bf16.msra.mxu0 %v3308
      %3322 = vmatprep.subr.bf16.mxu0 0
      %3323 = vmatpush1.bf16.msra.mxu0 %v3307
      %3324 = vmatprep.subr.bf16.mxu0 0
      %3325 = vmatpush1.bf16.msra.mxu0 %v3306
      %3326 = vmatprep.subr.bf16.mxu0 0
      %3327 = vmatpush1.bf16.msra.mxu0 %v3305
      %3328 = vmatprep.subr.bf16.mxu0 0
      %3329 = vmatpush1.bf16.msra.mxu0 %v3304
      %3330 = vmatprep.subr.bf16.mxu0 0
      %3331 = vmatpush1.bf16.msra.mxu0 %v3303
      %3332 = vmatprep.subr.bf16.mxu0 0
      %3333 = vmatpush1.bf16.msra.mxu0 %v3302
      %3334 = vmatprep.subr.bf16.mxu0 0
      %3335 = vmatpush2.bf16.msra.mxu0 %v3317
      %3336 = vmatprep.subr.bf16.mxu0 0
      %3337 = vmatpush2.bf16.msra.mxu0 %v3316
      %3338 = vmatprep.subr.bf16.mxu0 0
      %3339 = vmatpush2.bf16.msra.mxu0 %v3315
      %3340 = vmatprep.subr.bf16.mxu0 0
      %3341 = vmatpush2.bf16.msra.mxu0 %v3314
      %3342 = vmatprep.subr.bf16.mxu0 0
      %3343 = vmatpush2.bf16.msra.mxu0 %v3313
      %3344 = vmatprep.subr.bf16.mxu0 0
      %3345 = vmatpush2.bf16.msra.mxu0 %v3312
      %3346 = vmatprep.subr.bf16.mxu0 0
      %3347 = vmatpush2.bf16.msra.mxu0 %v3311
      %3348 = vmatprep.subr.bf16.mxu0 0
      %3349 = vmatpush2.bf16.msra.mxu0 %v3310
      %3350 = vmatprep.mubr.bf16.mxu0 %v1216
      %3351 = vmatmul.mubr.bf16.gmra.mxu0 %v1215
      %v3352 = vpop.f32.mrf.mxu0
      %v3353 = vadd.f32 0.0, %v3352
      %v3354 = vpop.f32.mrf.mxu0
      %v3355 = vpop.f32.mrf.mxu0
      %v3356 = vadd.f32 0.0, %v3355
      %v3357 = vpop.f32.mrf.mxu0
      %3358 = vmatprep.mubr.bf16.mxu0 %v1218
      %3359 = vmatmul.mubr.bf16.gmra.mxu0 %v1217
      %v3360 = vpop.f32.mrf.mxu0
      %v3361 = vadd.f32 0.0, %v3360
      %v3362 = vpop.f32.mrf.mxu0
      %v3363 = vpop.f32.mrf.mxu0
      %v3364 = vadd.f32 0.0, %v3363
      %v3365 = vpop.f32.mrf.mxu0
      %3366 = vmatprep.mubr.bf16.mxu0 %v1220
      %3367 = vmatmul.mubr.bf16.gmra.mxu0 %v1219
      %v3368 = vpop.f32.mrf.mxu0
      %v3369 = vadd.f32 0.0, %v3368
      %v3370 = vpop.f32.mrf.mxu0
      %v3371 = vpop.f32.mrf.mxu0
      %v3372 = vadd.f32 0.0, %v3371
      %v3373 = vpop.f32.mrf.mxu0
      %3374 = vmatprep.mubr.bf16.mxu0 %v1222
      %3375 = vmatmul.mubr.bf16.gmra.mxu0 %v1221
      %v3376 = vpop.f32.mrf.mxu0
      %v3377 = vadd.f32 0.0, %v3376
      %v3378 = vpop.f32.mrf.mxu0
      %v3379 = vpop.f32.mrf.mxu0
      %v3380 = vadd.f32 0.0, %v3379
      %v3381 = vpop.f32.mrf.mxu0
      %3382 = vmatprep.mubr.bf16.mxu0 %v1224
      %3383 = vmatmul.mubr.bf16.gmra.mxu0 %v1223
      %v3384 = vpop.f32.mrf.mxu0
      %v3385 = vadd.f32 0.0, %v3384
      %v3386 = vpop.f32.mrf.mxu0
      %v3387 = vpop.f32.mrf.mxu0
      %v3388 = vadd.f32 0.0, %v3387
      %v3389 = vpop.f32.mrf.mxu0
      %3390 = vmatprep.mubr.bf16.mxu0 %v1226
      %3391 = vmatmul.mubr.bf16.gmra.mxu0 %v1225
      %v3392 = vpop.f32.mrf.mxu0
      %v3393 = vadd.f32 0.0, %v3392
      %v3394 = vpop.f32.mrf.mxu0
      %v3395 = vpop.f32.mrf.mxu0
      %v3396 = vadd.f32 0.0, %v3395
      %v3397 = vpop.f32.mrf.mxu0
      %3398 = vmatprep.mubr.bf16.mxu0 %v1228
      %3399 = vmatmul.mubr.bf16.gmra.mxu0 %v1227
      %v3400 = vpop.f32.mrf.mxu0
      %v3401 = vadd.f32 0.0, %v3400
      %v3402 = vpop.f32.mrf.mxu0
      %v3403 = vpop.f32.mrf.mxu0
      %v3404 = vadd.f32 0.0, %v3403
      %v3405 = vpop.f32.mrf.mxu0
      %3406 = vmatprep.mubr.bf16.mxu0 %v1230
      %3407 = vmatmul.mubr.bf16.gmra.mxu0 %v1229
      %v3408 = vpop.f32.mrf.mxu0
      %v3409 = vadd.f32 0.0, %v3408
      %v3410 = vpop.f32.mrf.mxu0
      %v3411 = vpop.f32.mrf.mxu0
      %v3412 = vadd.f32 0.0, %v3411
      %v3413 = vpop.f32.mrf.mxu0
      %3414 = vmatprep.mubr.bf16.mxu0 %v1232
      %3415 = vmatmul.mubr.bf16.gmra.mxu0 %v1231
      %v3416 = vpop.f32.mrf.mxu0
      %v3417 = vadd.f32 0.0, %v3416
      %v3418 = vpop.f32.mrf.mxu0
      %v3419 = vpop.f32.mrf.mxu0
      %v3420 = vadd.f32 0.0, %v3419
      %v3421 = vpop.f32.mrf.mxu0
      %3422 = vmatprep.mubr.bf16.mxu0 %v1234
      %3423 = vmatmul.mubr.bf16.gmra.mxu0 %v1233
      %v3424 = vpop.f32.mrf.mxu0
      %v3425 = vadd.f32 0.0, %v3424
      %v3426 = vpop.f32.mrf.mxu0
      %v3427 = vpop.f32.mrf.mxu0
      %v3428 = vadd.f32 0.0, %v3427
      %v3429 = vpop.f32.mrf.mxu0
      %3430 = vmatprep.mubr.bf16.mxu0 %v1236
      %3431 = vmatmul.mubr.bf16.gmra.mxu0 %v1235
      %v3432 = vpop.f32.mrf.mxu0
      %v3433 = vadd.f32 0.0, %v3432
      %v3434 = vpop.f32.mrf.mxu0
      %v3435 = vpop.f32.mrf.mxu0
      %v3436 = vadd.f32 0.0, %v3435
      %v3437 = vpop.f32.mrf.mxu0
      %3438 = vmatprep.mubr.bf16.mxu0 %v1238
      %3439 = vmatmul.mubr.bf16.gmra.mxu0 %v1237
      %v3440 = vpop.f32.mrf.mxu0
      %v3441 = vadd.f32 0.0, %v3440
      %v3442 = vpop.f32.mrf.mxu0
      %v3443 = vpop.f32.mrf.mxu0
      %v3444 = vadd.f32 0.0, %v3443
      %v3445 = vpop.f32.mrf.mxu0
      %3446 = vmatprep.mubr.bf16.mxu0 %v1240
      %3447 = vmatmul.mubr.bf16.gmra.mxu0 %v1239
      %v3448 = vpop.f32.mrf.mxu0
      %v3449 = vadd.f32 0.0, %v3448
      %v3450 = vpop.f32.mrf.mxu0
      %v3451 = vpop.f32.mrf.mxu0
      %v3452 = vadd.f32 0.0, %v3451
      %v3453 = vpop.f32.mrf.mxu0
      %3454 = vmatprep.mubr.bf16.mxu0 %v1242
      %3455 = vmatmul.mubr.bf16.gmra.mxu0 %v1241
      %v3456 = vpop.f32.mrf.mxu0
      %v3457 = vadd.f32 0.0, %v3456
      %v3458 = vpop.f32.mrf.mxu0
      %v3459 = vpop.f32.mrf.mxu0
      %v3460 = vadd.f32 0.0, %v3459
      %v3461 = vpop.f32.mrf.mxu0
      %3462 = vmatprep.mubr.bf16.mxu0 %v1244
      %3463 = vmatmul.mubr.bf16.gmra.mxu0 %v1243
      %v3464 = vpop.f32.mrf.mxu0
      %v3465 = vadd.f32 0.0, %v3464
      %v3466 = vpop.f32.mrf.mxu0
      %v3467 = vpop.f32.mrf.mxu0
      %v3468 = vadd.f32 0.0, %v3467
      %v3469 = vpop.f32.mrf.mxu0
      %3470 = vmatprep.mubr.bf16.mxu0 %v1246
      %3471 = vmatmul.mubr.bf16.gmra.mxu0 %v1245
      %v3472 = vpop.f32.mrf.mxu0
      %v3473 = vadd.f32 0.0, %v3472
      %v3474 = vpop.f32.mrf.mxu0
      %v3475 = vpop.f32.mrf.mxu0
      %v3476 = vadd.f32 0.0, %v3475
      %v3477 = vpop.f32.mrf.mxu0
      %3478 = vdwg.mxu0
      %v3479 = vpack.c.bf16 %v3356, %v3353
      %v3480 = vpack.c.bf16 %v3364, %v3361
      %v3481 = vpack.c.bf16 %v3372, %v3369
      %v3482 = vpack.c.bf16 %v3380, %v3377
      %v3483 = vpack.c.bf16 %v3388, %v3385
      %v3484 = vpack.c.bf16 %v3396, %v3393
      %v3485 = vpack.c.bf16 %v3404, %v3401
      %v3486 = vpack.c.bf16 %v3412, %v3409
      %v3487 = vpack.c.bf16 %v3420, %v3417
      %v3488 = vpack.c.bf16 %v3428, %v3425
      %v3489 = vpack.c.bf16 %v3436, %v3433
      %v3490 = vpack.c.bf16 %v3444, %v3441
      %v3491 = vpack.c.bf16 %v3452, %v3449
      %v3492 = vpack.c.bf16 %v3460, %v3457
      %v3493 = vpack.c.bf16 %v3468, %v3465
      %v3494 = vpack.c.bf16 %v3476, %v3473
      %v3496 = vsel %vm893, %v3479, 0
      %v3499 = vsel %vm893, %v3480, 0
      %v3502 = vsel %vm893, %v3481, 0
      %v3505 = vsel %vm893, %v3482, 0
      %v3508 = vsel %vm893, %v3483, 0
      %v3511 = vsel %vm893, %v3484, 0
      %v3514 = vsel %vm893, %v3485, 0
      %v3517 = vsel %vm893, %v3486, 0
      %v3520 = vsel %vm893, %v3487, 0
      %v3523 = vsel %vm893, %v3488, 0
      %v3526 = vsel %vm893, %v3489, 0
      %v3529 = vsel %vm893, %v3490, 0
      %v3532 = vsel %vm893, %v3491, 0
      %v3535 = vsel %vm893, %v3492, 0
      %v3538 = vsel %vm893, %v3493, 0
      %v3541 = vsel %vm893, %v3494, 0
      %3543 = vmatprep.subr.bf16.mxu0 0
      %3544 = vmatpush1.bf16.msra.mxu0 0
      %3545 = vmatprep.subr.bf16.mxu0 0
      %3546 = vmatpush1.bf16.msra.mxu0 0
      %3547 = vmatprep.subr.bf16.mxu0 0
      %3548 = vmatpush1.bf16.msra.mxu0 0
      %3549 = vmatprep.subr.bf16.mxu0 0
      %3550 = vmatpush1.bf16.msra.mxu0 0
      %3551 = vmatprep.subr.bf16.mxu0 0
      %3552 = vmatpush1.bf16.msra.mxu0 0
      %3553 = vmatprep.subr.bf16.mxu0 0
      %3554 = vmatpush1.bf16.msra.mxu0 0
      %3555 = vmatprep.subr.bf16.mxu0 0
      %3556 = vmatpush1.bf16.msra.mxu0 0
      %3557 = vmatprep.subr.bf16.mxu0 %v1467
      %3558 = vmatpush1.bf16.msra.mxu0 %v1466
      %3559 = vmatprep.subr.bf16.mxu0 0
      %3560 = vmatpush2.bf16.msra.mxu0 0
      %3561 = vmatprep.subr.bf16.mxu0 0
      %3562 = vmatpush2.bf16.msra.mxu0 0
      %3563 = vmatprep.subr.bf16.mxu0 0
      %3564 = vmatpush2.bf16.msra.mxu0 0
      %3565 = vmatprep.subr.bf16.mxu0 0
      %3566 = vmatpush2.bf16.msra.mxu0 0
      %3567 = vmatprep.subr.bf16.mxu0 0
      %3568 = vmatpush2.bf16.msra.mxu0 0
      %3569 = vmatprep.subr.bf16.mxu0 0
      %3570 = vmatpush2.bf16.msra.mxu0 0
      %3571 = vmatprep.subr.bf16.mxu0 0
      %3572 = vmatpush2.bf16.msra.mxu0 0
      %3573 = vmatprep.subr.bf16.mxu0 0
      %3574 = vmatpush2.bf16.msra.mxu0 0
      %3575 = vmatprep.mubr.bf16.mxu0 0
      %3576 = vmatmul.mubr.bf16.gmra.mxu0 %v3496
      %v3577 = vpop.f32.mrf.mxu0
      %v3578 = vadd.f32 0.0, %v3577
      %v3579 = vpop.f32.mrf.mxu0
      %v3580 = vadd.f32 0.0, %v3579
      %v3581 = vpop.f32.mrf.mxu0
      %v3582 = vadd.f32 0.0, %v3581
      %v3583 = vpop.f32.mrf.mxu0
      %v3584 = vadd.f32 0.0, %v3583
      %3585 = vmatprep.mubr.bf16.mxu0 0
      %3586 = vmatmul.mubr.bf16.gmra.mxu0 %v3499
      %v3587 = vpop.f32.mrf.mxu0
      %v3588 = vadd.f32 0.0, %v3587
      %v3589 = vpop.f32.mrf.mxu0
      %v3590 = vadd.f32 0.0, %v3589
      %v3591 = vpop.f32.mrf.mxu0
      %v3592 = vadd.f32 0.0, %v3591
      %v3593 = vpop.f32.mrf.mxu0
      %v3594 = vadd.f32 0.0, %v3593
      %3595 = vmatprep.mubr.bf16.mxu0 0
      %3596 = vmatmul.mubr.bf16.gmra.mxu0 %v3502
      %v3597 = vpop.f32.mrf.mxu0
      %v3598 = vadd.f32 0.0, %v3597
      %v3599 = vpop.f32.mrf.mxu0
      %v3600 = vadd.f32 0.0, %v3599
      %v3601 = vpop.f32.mrf.mxu0
      %v3602 = vadd.f32 0.0, %v3601
      %v3603 = vpop.f32.mrf.mxu0
      %v3604 = vadd.f32 0.0, %v3603
      %3605 = vmatprep.mubr.bf16.mxu0 0
      %3606 = vmatmul.mubr.bf16.gmra.mxu0 %v3505
      %v3607 = vpop.f32.mrf.mxu0
      %v3608 = vadd.f32 0.0, %v3607
      %v3609 = vpop.f32.mrf.mxu0
      %v3610 = vadd.f32 0.0, %v3609
      %v3611 = vpop.f32.mrf.mxu0
      %v3612 = vadd.f32 0.0, %v3611
      %v3613 = vpop.f32.mrf.mxu0
      %v3614 = vadd.f32 0.0, %v3613
      %3615 = vmatprep.mubr.bf16.mxu0 0
      %3616 = vmatmul.mubr.bf16.gmra.mxu0 %v3508
      %v3617 = vpop.f32.mrf.mxu0
      %v3618 = vadd.f32 0.0, %v3617
      %v3619 = vpop.f32.mrf.mxu0
      %v3620 = vadd.f32 0.0, %v3619
      %v3621 = vpop.f32.mrf.mxu0
      %v3622 = vadd.f32 0.0, %v3621
      %v3623 = vpop.f32.mrf.mxu0
      %v3624 = vadd.f32 0.0, %v3623
      %3625 = vmatprep.mubr.bf16.mxu0 0
      %3626 = vmatmul.mubr.bf16.gmra.mxu0 %v3511
      %v3627 = vpop.f32.mrf.mxu0
      %v3628 = vadd.f32 0.0, %v3627
      %v3629 = vpop.f32.mrf.mxu0
      %v3630 = vadd.f32 0.0, %v3629
      %v3631 = vpop.f32.mrf.mxu0
      %v3632 = vadd.f32 0.0, %v3631
      %v3633 = vpop.f32.mrf.mxu0
      %v3634 = vadd.f32 0.0, %v3633
      %3635 = vmatprep.mubr.bf16.mxu0 0
      %3636 = vmatmul.mubr.bf16.gmra.mxu0 %v3514
      %v3637 = vpop.f32.mrf.mxu0
      %v3638 = vadd.f32 0.0, %v3637
      %v3639 = vpop.f32.mrf.mxu0
      %v3640 = vadd.f32 0.0, %v3639
      %v3641 = vpop.f32.mrf.mxu0
      %v3642 = vadd.f32 0.0, %v3641
      %v3643 = vpop.f32.mrf.mxu0
      %v3644 = vadd.f32 0.0, %v3643
      %3645 = vmatprep.mubr.bf16.mxu0 0
      %3646 = vmatmul.mubr.bf16.gmra.mxu0 %v3517
      %v3647 = vpop.f32.mrf.mxu0
      %v3648 = vadd.f32 0.0, %v3647
      %v3649 = vpop.f32.mrf.mxu0
      %v3650 = vadd.f32 0.0, %v3649
      %v3651 = vpop.f32.mrf.mxu0
      %v3652 = vadd.f32 0.0, %v3651
      %v3653 = vpop.f32.mrf.mxu0
      %v3654 = vadd.f32 0.0, %v3653
      %3655 = vmatprep.mubr.bf16.mxu0 0
      %3656 = vmatmul.mubr.bf16.gmra.mxu0 %v3520
      %v3657 = vpop.f32.mrf.mxu0
      %v3658 = vadd.f32 0.0, %v3657
      %v3659 = vpop.f32.mrf.mxu0
      %v3660 = vadd.f32 0.0, %v3659
      %v3661 = vpop.f32.mrf.mxu0
      %v3662 = vadd.f32 0.0, %v3661
      %v3663 = vpop.f32.mrf.mxu0
      %v3664 = vadd.f32 0.0, %v3663
      %3665 = vmatprep.mubr.bf16.mxu0 0
      %3666 = vmatmul.mubr.bf16.gmra.mxu0 %v3523
      %v3667 = vpop.f32.mrf.mxu0
      %v3668 = vadd.f32 0.0, %v3667
      %v3669 = vpop.f32.mrf.mxu0
      %v3670 = vadd.f32 0.0, %v3669
      %v3671 = vpop.f32.mrf.mxu0
      %v3672 = vadd.f32 0.0, %v3671
      %v3673 = vpop.f32.mrf.mxu0
      %v3674 = vadd.f32 0.0, %v3673
      %3675 = vmatprep.mubr.bf16.mxu0 0
      %3676 = vmatmul.mubr.bf16.gmra.mxu0 %v3526
      %v3677 = vpop.f32.mrf.mxu0
      %v3678 = vadd.f32 0.0, %v3677
      %v3679 = vpop.f32.mrf.mxu0
      %v3680 = vadd.f32 0.0, %v3679
      %v3681 = vpop.f32.mrf.mxu0
      %v3682 = vadd.f32 0.0, %v3681
      %v3683 = vpop.f32.mrf.mxu0
      %v3684 = vadd.f32 0.0, %v3683
      %3685 = vmatprep.mubr.bf16.mxu0 0
      %3686 = vmatmul.mubr.bf16.gmra.mxu0 %v3529
      %v3687 = vpop.f32.mrf.mxu0
      %v3688 = vadd.f32 0.0, %v3687
      %v3689 = vpop.f32.mrf.mxu0
      %v3690 = vadd.f32 0.0, %v3689
      %v3691 = vpop.f32.mrf.mxu0
      %v3692 = vadd.f32 0.0, %v3691
      %v3693 = vpop.f32.mrf.mxu0
      %v3694 = vadd.f32 0.0, %v3693
      %3695 = vmatprep.mubr.bf16.mxu0 0
      %3696 = vmatmul.mubr.bf16.gmra.mxu0 %v3532
      %v3697 = vpop.f32.mrf.mxu0
      %v3698 = vadd.f32 0.0, %v3697
      %v3699 = vpop.f32.mrf.mxu0
      %v3700 = vadd.f32 0.0, %v3699
      %v3701 = vpop.f32.mrf.mxu0
      %v3702 = vadd.f32 0.0, %v3701
      %v3703 = vpop.f32.mrf.mxu0
      %v3704 = vadd.f32 0.0, %v3703
      %3705 = vmatprep.mubr.bf16.mxu0 0
      %3706 = vmatmul.mubr.bf16.gmra.mxu0 %v3535
      %v3707 = vpop.f32.mrf.mxu0
      %v3708 = vadd.f32 0.0, %v3707
      %v3709 = vpop.f32.mrf.mxu0
      %v3710 = vadd.f32 0.0, %v3709
      %v3711 = vpop.f32.mrf.mxu0
      %v3712 = vadd.f32 0.0, %v3711
      %v3713 = vpop.f32.mrf.mxu0
      %v3714 = vadd.f32 0.0, %v3713
      %3715 = vmatprep.mubr.bf16.mxu0 0
      %3716 = vmatmul.mubr.bf16.gmra.mxu0 %v3538
      %v3717 = vpop.f32.mrf.mxu0
      %v3718 = vadd.f32 0.0, %v3717
      %v3719 = vpop.f32.mrf.mxu0
      %v3720 = vadd.f32 0.0, %v3719
      %v3721 = vpop.f32.mrf.mxu0
      %v3722 = vadd.f32 0.0, %v3721
      %v3723 = vpop.f32.mrf.mxu0
      %v3724 = vadd.f32 0.0, %v3723
      %3725 = vmatprep.mubr.bf16.mxu0 0
      %3726 = vmatmul.mubr.bf16.gmra.mxu0 %v3541
      %v3727 = vpop.f32.mrf.mxu0
      %v3728 = vadd.f32 0.0, %v3727
      %v3729 = vpop.f32.mrf.mxu0
      %v3730 = vadd.f32 0.0, %v3729
      %v3731 = vpop.f32.mrf.mxu0
      %v3732 = vadd.f32 0.0, %v3731
      %v3733 = vpop.f32.mrf.mxu0
      %v3734 = vadd.f32 0.0, %v3733
      %3735 = vdwg.mxu0
      %3736 = vmatprep.subr.bf16.mxu0 0
      %3737 = vmatpush1.bf16.msra.mxu0 0
      %3738 = vmatprep.subr.bf16.mxu0 0
      %3739 = vmatpush1.bf16.msra.mxu0 0
      %3740 = vmatprep.subr.bf16.mxu0 0
      %3741 = vmatpush1.bf16.msra.mxu0 0
      %3742 = vmatprep.subr.bf16.mxu0 0
      %3743 = vmatpush1.bf16.msra.mxu0 0
      %3744 = vmatprep.subr.bf16.mxu0 0
      %3745 = vmatpush1.bf16.msra.mxu0 0
      %3746 = vmatprep.subr.bf16.mxu0 0
      %3747 = vmatpush1.bf16.msra.mxu0 0
      %3748 = vmatprep.subr.bf16.mxu0 0
      %3749 = vmatpush1.bf16.msra.mxu0 0
      %3750 = vmatprep.subr.bf16.mxu0 0
      %3751 = vmatpush1.bf16.msra.mxu0 %v1468
      %3752 = vmatprep.subr.bf16.mxu0 0
      %3753 = vmatpush2.bf16.msra.mxu0 0
      %3754 = vmatprep.subr.bf16.mxu0 0
      %3755 = vmatpush2.bf16.msra.mxu0 0
      %3756 = vmatprep.subr.bf16.mxu0 0
      %3757 = vmatpush2.bf16.msra.mxu0 0
      %3758 = vmatprep.subr.bf16.mxu0 0
      %3759 = vmatpush2.bf16.msra.mxu0 0
      %3760 = vmatprep.subr.bf16.mxu0 0
      %3761 = vmatpush2.bf16.msra.mxu0 0
      %3762 = vmatprep.subr.bf16.mxu0 0
      %3763 = vmatpush2.bf16.msra.mxu0 0
      %3764 = vmatprep.subr.bf16.mxu0 0
      %3765 = vmatpush2.bf16.msra.mxu0 0
      %3766 = vmatprep.subr.bf16.mxu0 0
      %3767 = vmatpush2.bf16.msra.mxu0 0
      %3768 = vmatprep.mubr.bf16.mxu0 0
      %3769 = vmatmul.mubr.bf16.gmra.mxu0 %v3496
      %v3770 = vpop.f32.mrf.mxu0
      %v3771 = vadd.f32 0.0, %v3770
      %v3772 = vpop.f32.mrf.mxu0
      %v3773 = vpop.f32.mrf.mxu0
      %v3774 = vadd.f32 0.0, %v3773
      %v3775 = vpop.f32.mrf.mxu0
      %3776 = vmatprep.mubr.bf16.mxu0 0
      %3777 = vmatmul.mubr.bf16.gmra.mxu0 %v3499
      %v3778 = vpop.f32.mrf.mxu0
      %v3779 = vadd.f32 0.0, %v3778
      %v3780 = vpop.f32.mrf.mxu0
      %v3781 = vpop.f32.mrf.mxu0
      %v3782 = vadd.f32 0.0, %v3781
      %v3783 = vpop.f32.mrf.mxu0
      %3784 = vmatprep.mubr.bf16.mxu0 0
      %3785 = vmatmul.mubr.bf16.gmra.mxu0 %v3502
      %v3786 = vpop.f32.mrf.mxu0
      %v3787 = vadd.f32 0.0, %v3786
      %v3788 = vpop.f32.mrf.mxu0
      %v3789 = vpop.f32.mrf.mxu0
      %v3790 = vadd.f32 0.0, %v3789
      %v3791 = vpop.f32.mrf.mxu0
      %3792 = vmatprep.mubr.bf16.mxu0 0
      %3793 = vmatmul.mubr.bf16.gmra.mxu0 %v3505
      %v3794 = vpop.f32.mrf.mxu0
      %v3795 = vadd.f32 0.0, %v3794
      %v3796 = vpop.f32.mrf.mxu0
      %v3797 = vpop.f32.mrf.mxu0
      %v3798 = vadd.f32 0.0, %v3797
      %v3799 = vpop.f32.mrf.mxu0
      %3800 = vmatprep.mubr.bf16.mxu0 0
      %3801 = vmatmul.mubr.bf16.gmra.mxu0 %v3508
      %v3802 = vpop.f32.mrf.mxu0
      %v3803 = vadd.f32 0.0, %v3802
      %v3804 = vpop.f32.mrf.mxu0
      %v3805 = vpop.f32.mrf.mxu0
      %v3806 = vadd.f32 0.0, %v3805
      %v3807 = vpop.f32.mrf.mxu0
      %3808 = vmatprep.mubr.bf16.mxu0 0
      %3809 = vmatmul.mubr.bf16.gmra.mxu0 %v3511
      %v3810 = vpop.f32.mrf.mxu0
      %v3811 = vadd.f32 0.0, %v3810
      %v3812 = vpop.f32.mrf.mxu0
      %v3813 = vpop.f32.mrf.mxu0
      %v3814 = vadd.f32 0.0, %v3813
      %v3815 = vpop.f32.mrf.mxu0
      %3816 = vmatprep.mubr.bf16.mxu0 0
      %3817 = vmatmul.mubr.bf16.gmra.mxu0 %v3514
      %v3818 = vpop.f32.mrf.mxu0
      %v3819 = vadd.f32 0.0, %v3818
      %v3820 = vpop.f32.mrf.mxu0
      %v3821 = vpop.f32.mrf.mxu0
      %v3822 = vadd.f32 0.0, %v3821
      %v3823 = vpop.f32.mrf.mxu0
      %3824 = vmatprep.mubr.bf16.mxu0 0
      %3825 = vmatmul.mubr.bf16.gmra.mxu0 %v3517
      %v3826 = vpop.f32.mrf.mxu0
      %v3827 = vadd.f32 0.0, %v3826
      %v3828 = vpop.f32.mrf.mxu0
      %v3829 = vpop.f32.mrf.mxu0
      %v3830 = vadd.f32 0.0, %v3829
      %v3831 = vpop.f32.mrf.mxu0
      %3832 = vmatprep.mubr.bf16.mxu0 0
      %3833 = vmatmul.mubr.bf16.gmra.mxu0 %v3520
      %v3834 = vpop.f32.mrf.mxu0
      %v3835 = vadd.f32 0.0, %v3834
      %v3836 = vpop.f32.mrf.mxu0
      %v3837 = vpop.f32.mrf.mxu0
      %v3838 = vadd.f32 0.0, %v3837
      %v3839 = vpop.f32.mrf.mxu0
      %3840 = vmatprep.mubr.bf16.mxu0 0
      %3841 = vmatmul.mubr.bf16.gmra.mxu0 %v3523
      %v3842 = vpop.f32.mrf.mxu0
      %v3843 = vadd.f32 0.0, %v3842
      %v3844 = vpop.f32.mrf.mxu0
      %v3845 = vpop.f32.mrf.mxu0
      %v3846 = vadd.f32 0.0, %v3845
      %v3847 = vpop.f32.mrf.mxu0
      %3848 = vmatprep.mubr.bf16.mxu0 0
      %3849 = vmatmul.mubr.bf16.gmra.mxu0 %v3526
      %v3850 = vpop.f32.mrf.mxu0
      %v3851 = vadd.f32 0.0, %v3850
      %v3852 = vpop.f32.mrf.mxu0
      %v3853 = vpop.f32.mrf.mxu0
      %v3854 = vadd.f32 0.0, %v3853
      %v3855 = vpop.f32.mrf.mxu0
      %3856 = vmatprep.mubr.bf16.mxu0 0
      %3857 = vmatmul.mubr.bf16.gmra.mxu0 %v3529
      %v3858 = vpop.f32.mrf.mxu0
      %v3859 = vadd.f32 0.0, %v3858
      %v3860 = vpop.f32.mrf.mxu0
      %v3861 = vpop.f32.mrf.mxu0
      %v3862 = vadd.f32 0.0, %v3861
      %v3863 = vpop.f32.mrf.mxu0
      %3864 = vmatprep.mubr.bf16.mxu0 0
      %3865 = vmatmul.mubr.bf16.gmra.mxu0 %v3532
      %v3866 = vpop.f32.mrf.mxu0
      %v3867 = vadd.f32 0.0, %v3866
      %v3868 = vpop.f32.mrf.mxu0
      %v3869 = vpop.f32.mrf.mxu0
      %v3870 = vadd.f32 0.0, %v3869
      %v3871 = vpop.f32.mrf.mxu0
      %3872 = vmatprep.mubr.bf16.mxu0 0
      %3873 = vmatmul.mubr.bf16.gmra.mxu0 %v3535
      %v3874 = vpop.f32.mrf.mxu0
      %v3875 = vadd.f32 0.0, %v3874
      %v3876 = vpop.f32.mrf.mxu0
      %v3877 = vpop.f32.mrf.mxu0
      %v3878 = vadd.f32 0.0, %v3877
      %v3879 = vpop.f32.mrf.mxu0
      %3880 = vmatprep.mubr.bf16.mxu0 0
      %3881 = vmatmul.mubr.bf16.gmra.mxu0 %v3538
      %v3882 = vpop.f32.mrf.mxu0
      %v3883 = vadd.f32 0.0, %v3882
      %v3884 = vpop.f32.mrf.mxu0
      %v3885 = vpop.f32.mrf.mxu0
      %v3886 = vadd.f32 0.0, %v3885
      %v3887 = vpop.f32.mrf.mxu0
      %3888 = vmatprep.mubr.bf16.mxu0 0
      %3889 = vmatmul.mubr.bf16.gmra.mxu0 %v3541
      %v3890 = vpop.f32.mrf.mxu0
      %v3891 = vadd.f32 0.0, %v3890
      %v3892 = vpop.f32.mrf.mxu0
      %v3893 = vpop.f32.mrf.mxu0
      %v3894 = vadd.f32 0.0, %v3893
      %v3895 = vpop.f32.mrf.mxu0
      %3896 = vdwg.mxu0
      %3897 = vmatprep.subr.bf16.mxu0 0
      %3898 = vmatpush1.bf16.msra.mxu0 0
      %3899 = vmatprep.subr.bf16.mxu0 0
      %3900 = vmatpush1.bf16.msra.mxu0 0
      %3901 = vmatprep.subr.bf16.mxu0 0
      %3902 = vmatpush1.bf16.msra.mxu0 0
      %3903 = vmatprep.subr.bf16.mxu0 0
      %3904 = vmatpush1.bf16.msra.mxu0 0
      %3905 = vmatprep.subr.bf16.mxu0 0
      %3906 = vmatpush1.bf16.msra.mxu0 0
      %3907 = vmatprep.subr.bf16.mxu0 0
      %3908 = vmatpush1.bf16.msra.mxu0 0
      %3909 = vmatprep.subr.bf16.mxu0 0
      %3910 = vmatpush1.bf16.msra.mxu0 0
      %3911 = vmatprep.subr.bf16.mxu0 %v1885
      %3912 = vmatpush1.bf16.msra.mxu0 %v1884
      %3913 = vmatprep.subr.bf16.mxu0 0
      %3914 = vmatpush2.bf16.msra.mxu0 0
      %3915 = vmatprep.subr.bf16.mxu0 0
      %3916 = vmatpush2.bf16.msra.mxu0 0
      %3917 = vmatprep.subr.bf16.mxu0 0
      %3918 = vmatpush2.bf16.msra.mxu0 0
      %3919 = vmatprep.subr.bf16.mxu0 0
      %3920 = vmatpush2.bf16.msra.mxu0 0
      %3921 = vmatprep.subr.bf16.mxu0 0
      %3922 = vmatpush2.bf16.msra.mxu0 0
      %3923 = vmatprep.subr.bf16.mxu0 0
      %3924 = vmatpush2.bf16.msra.mxu0 0
      %3925 = vmatprep.subr.bf16.mxu0 0
      %3926 = vmatpush2.bf16.msra.mxu0 0
      %3927 = vmatprep.subr.bf16.mxu0 0
      %3928 = vmatpush2.bf16.msra.mxu0 0
      %3929 = vmatprep.mubr.bf16.mxu0 0
      %3930 = vmatmul.mubr.bf16.gmra.mxu0 %v3094
      %v3931 = vpop.f32.mrf.mxu0
      %v3932 = vadd.f32 0.0, %v3931
      %v3933 = vpop.f32.mrf.mxu0
      %v3934 = vadd.f32 0.0, %v3933
      %v3935 = vpop.f32.mrf.mxu0
      %v3936 = vadd.f32 0.0, %v3935
      %v3937 = vpop.f32.mrf.mxu0
      %v3938 = vadd.f32 0.0, %v3937
      %3939 = vmatprep.mubr.bf16.mxu0 0
      %3940 = vmatmul.mubr.bf16.gmra.mxu0 %v3097
      %v3941 = vpop.f32.mrf.mxu0
      %v3942 = vadd.f32 0.0, %v3941
      %v3943 = vpop.f32.mrf.mxu0
      %v3944 = vadd.f32 0.0, %v3943
      %v3945 = vpop.f32.mrf.mxu0
      %v3946 = vadd.f32 0.0, %v3945
      %v3947 = vpop.f32.mrf.mxu0
      %v3948 = vadd.f32 0.0, %v3947
      %3949 = vmatprep.mubr.bf16.mxu0 0
      %3950 = vmatmul.mubr.bf16.gmra.mxu0 %v3100
      %v3951 = vpop.f32.mrf.mxu0
      %v3952 = vadd.f32 0.0, %v3951
      %v3953 = vpop.f32.mrf.mxu0
      %v3954 = vadd.f32 0.0, %v3953
      %v3955 = vpop.f32.mrf.mxu0
      %v3956 = vadd.f32 0.0, %v3955
      %v3957 = vpop.f32.mrf.mxu0
      %v3958 = vadd.f32 0.0, %v3957
      %3959 = vmatprep.mubr.bf16.mxu0 0
      %3960 = vmatmul.mubr.bf16.gmra.mxu0 %v3103
      %v3961 = vpop.f32.mrf.mxu0
      %v3962 = vadd.f32 0.0, %v3961
      %v3963 = vpop.f32.mrf.mxu0
      %v3964 = vadd.f32 0.0, %v3963
      %v3965 = vpop.f32.mrf.mxu0
      %v3966 = vadd.f32 0.0, %v3965
      %v3967 = vpop.f32.mrf.mxu0
      %v3968 = vadd.f32 0.0, %v3967
      %3969 = vmatprep.mubr.bf16.mxu0 0
      %3970 = vmatmul.mubr.bf16.gmra.mxu0 %v3106
      %v3971 = vpop.f32.mrf.mxu0
      %v3972 = vadd.f32 0.0, %v3971
      %v3973 = vpop.f32.mrf.mxu0
      %v3974 = vadd.f32 0.0, %v3973
      %v3975 = vpop.f32.mrf.mxu0
      %v3976 = vadd.f32 0.0, %v3975
      %v3977 = vpop.f32.mrf.mxu0
      %v3978 = vadd.f32 0.0, %v3977
      %3979 = vmatprep.mubr.bf16.mxu0 0
      %3980 = vmatmul.mubr.bf16.gmra.mxu0 %v3109
      %v3981 = vpop.f32.mrf.mxu0
      %v3982 = vadd.f32 0.0, %v3981
      %v3983 = vpop.f32.mrf.mxu0
      %v3984 = vadd.f32 0.0, %v3983
      %v3985 = vpop.f32.mrf.mxu0
      %v3986 = vadd.f32 0.0, %v3985
      %v3987 = vpop.f32.mrf.mxu0
      %v3988 = vadd.f32 0.0, %v3987
      %3989 = vmatprep.mubr.bf16.mxu0 0
      %3990 = vmatmul.mubr.bf16.gmra.mxu0 %v3112
      %v3991 = vpop.f32.mrf.mxu0
      %v3992 = vadd.f32 0.0, %v3991
      %v3993 = vpop.f32.mrf.mxu0
      %v3994 = vadd.f32 0.0, %v3993
      %v3995 = vpop.f32.mrf.mxu0
      %v3996 = vadd.f32 0.0, %v3995
      %v3997 = vpop.f32.mrf.mxu0
      %v3998 = vadd.f32 0.0, %v3997
      %3999 = vmatprep.mubr.bf16.mxu0 0
      %4000 = vmatmul.mubr.bf16.gmra.mxu0 %v3115
      %v4001 = vpop.f32.mrf.mxu0
      %v4002 = vadd.f32 0.0, %v4001
      %v4003 = vpop.f32.mrf.mxu0
      %v4004 = vadd.f32 0.0, %v4003
      %v4005 = vpop.f32.mrf.mxu0
      %v4006 = vadd.f32 0.0, %v4005
      %v4007 = vpop.f32.mrf.mxu0
      %v4008 = vadd.f32 0.0, %v4007
      %4009 = vmatprep.mubr.bf16.mxu0 0
      %4010 = vmatmul.mubr.bf16.gmra.mxu0 %v3118
      %v4011 = vpop.f32.mrf.mxu0
      %v4012 = vadd.f32 0.0, %v4011
      %v4013 = vpop.f32.mrf.mxu0
      %v4014 = vadd.f32 0.0, %v4013
      %v4015 = vpop.f32.mrf.mxu0
      %v4016 = vadd.f32 0.0, %v4015
      %v4017 = vpop.f32.mrf.mxu0
      %v4018 = vadd.f32 0.0, %v4017
      %4019 = vmatprep.mubr.bf16.mxu0 0
      %4020 = vmatmul.mubr.bf16.gmra.mxu0 %v3121
      %v4021 = vpop.f32.mrf.mxu0
      %v4022 = vadd.f32 0.0, %v4021
      %v4023 = vpop.f32.mrf.mxu0
      %v4024 = vadd.f32 0.0, %v4023
      %v4025 = vpop.f32.mrf.mxu0
      %v4026 = vadd.f32 0.0, %v4025
      %v4027 = vpop.f32.mrf.mxu0
      %v4028 = vadd.f32 0.0, %v4027
      %4029 = vmatprep.mubr.bf16.mxu0 0
      %4030 = vmatmul.mubr.bf16.gmra.mxu0 %v3124
      %v4031 = vpop.f32.mrf.mxu0
      %v4032 = vadd.f32 0.0, %v4031
      %v4033 = vpop.f32.mrf.mxu0
      %v4034 = vadd.f32 0.0, %v4033
      %v4035 = vpop.f32.mrf.mxu0
      %v4036 = vadd.f32 0.0, %v4035
      %v4037 = vpop.f32.mrf.mxu0
      %v4038 = vadd.f32 0.0, %v4037
      %4039 = vmatprep.mubr.bf16.mxu0 0
      %4040 = vmatmul.mubr.bf16.gmra.mxu0 %v3127
      %v4041 = vpop.f32.mrf.mxu0
      %v4042 = vadd.f32 0.0, %v4041
      %v4043 = vpop.f32.mrf.mxu0
      %v4044 = vadd.f32 0.0, %v4043
      %v4045 = vpop.f32.mrf.mxu0
      %v4046 = vadd.f32 0.0, %v4045
      %v4047 = vpop.f32.mrf.mxu0
      %v4048 = vadd.f32 0.0, %v4047
      %4049 = vmatprep.mubr.bf16.mxu0 0
      %4050 = vmatmul.mubr.bf16.gmra.mxu0 %v3130
      %v4051 = vpop.f32.mrf.mxu0
      %v4052 = vadd.f32 0.0, %v4051
      %v4053 = vpop.f32.mrf.mxu0
      %v4054 = vadd.f32 0.0, %v4053
      %v4055 = vpop.f32.mrf.mxu0
      %v4056 = vadd.f32 0.0, %v4055
      %v4057 = vpop.f32.mrf.mxu0
      %v4058 = vadd.f32 0.0, %v4057
      %4059 = vmatprep.mubr.bf16.mxu0 0
      %4060 = vmatmul.mubr.bf16.gmra.mxu0 %v3133
      %v4061 = vpop.f32.mrf.mxu0
      %v4062 = vadd.f32 0.0, %v4061
      %v4063 = vpop.f32.mrf.mxu0
      %v4064 = vadd.f32 0.0, %v4063
      %v4065 = vpop.f32.mrf.mxu0
      %v4066 = vadd.f32 0.0, %v4065
      %v4067 = vpop.f32.mrf.mxu0
      %v4068 = vadd.f32 0.0, %v4067
      %4069 = vmatprep.mubr.bf16.mxu0 0
      %4070 = vmatmul.mubr.bf16.gmra.mxu0 %v3136
      %v4071 = vpop.f32.mrf.mxu0
      %v4072 = vadd.f32 0.0, %v4071
      %v4073 = vpop.f32.mrf.mxu0
      %v4074 = vadd.f32 0.0, %v4073
      %v4075 = vpop.f32.mrf.mxu0
      %v4076 = vadd.f32 0.0, %v4075
      %v4077 = vpop.f32.mrf.mxu0
      %v4078 = vadd.f32 0.0, %v4077
      %4079 = vmatprep.mubr.bf16.mxu0 0
      %4080 = vmatmul.mubr.bf16.gmra.mxu0 %v3139
      %v4081 = vpop.f32.mrf.mxu0
      %v4082 = vadd.f32 0.0, %v4081
      %v4083 = vpop.f32.mrf.mxu0
      %v4084 = vadd.f32 0.0, %v4083
      %v4085 = vpop.f32.mrf.mxu0
      %v4086 = vadd.f32 0.0, %v4085
      %v4087 = vpop.f32.mrf.mxu0
      %v4088 = vadd.f32 0.0, %v4087
      %4089 = vdwg.mxu0
      %4090 = vmatprep.subr.bf16.mxu0 0
      %4091 = vmatpush1.bf16.msra.mxu0 0
      %4092 = vmatprep.subr.bf16.mxu0 0
      %4093 = vmatpush1.bf16.msra.mxu0 0
      %4094 = vmatprep.subr.bf16.mxu0 0
      %4095 = vmatpush1.bf16.msra.mxu0 0
      %4096 = vmatprep.subr.bf16.mxu0 0
      %4097 = vmatpush1.bf16.msra.mxu0 0
      %4098 = vmatprep.subr.bf16.mxu0 0
      %4099 = vmatpush1.bf16.msra.mxu0 0
      %4100 = vmatprep.subr.bf16.mxu0 0
      %4101 = vmatpush1.bf16.msra.mxu0 0
      %4102 = vmatprep.subr.bf16.mxu0 0
      %4103 = vmatpush1.bf16.msra.mxu0 0
      %4104 = vmatprep.subr.bf16.mxu0 0
      %4105 = vmatpush1.bf16.msra.mxu0 %v1886
      %4106 = vmatprep.subr.bf16.mxu0 0
      %4107 = vmatpush2.bf16.msra.mxu0 0
      %4108 = vmatprep.subr.bf16.mxu0 0
      %4109 = vmatpush2.bf16.msra.mxu0 0
      %4110 = vmatprep.subr.bf16.mxu0 0
      %4111 = vmatpush2.bf16.msra.mxu0 0
      %4112 = vmatprep.subr.bf16.mxu0 0
      %4113 = vmatpush2.bf16.msra.mxu0 0
      %4114 = vmatprep.subr.bf16.mxu0 0
      %4115 = vmatpush2.bf16.msra.mxu0 0
      %4116 = vmatprep.subr.bf16.mxu0 0
      %4117 = vmatpush2.bf16.msra.mxu0 0
      %4118 = vmatprep.subr.bf16.mxu0 0
      %4119 = vmatpush2.bf16.msra.mxu0 0
      %4120 = vmatprep.subr.bf16.mxu0 0
      %4121 = vmatpush2.bf16.msra.mxu0 0
      %4122 = vmatprep.mubr.bf16.mxu0 0
      %4123 = vmatmul.mubr.bf16.gmra.mxu0 %v3094
      %v4124 = vpop.f32.mrf.mxu0
      %v4125 = vadd.f32 0.0, %v4124
      %v4126 = vpop.f32.mrf.mxu0
      %v4127 = vpop.f32.mrf.mxu0
      %v4128 = vadd.f32 0.0, %v4127
      %v4129 = vpop.f32.mrf.mxu0
      %4130 = vmatprep.mubr.bf16.mxu0 0
      %4131 = vmatmul.mubr.bf16.gmra.mxu0 %v3097
      %v4132 = vpop.f32.mrf.mxu0
      %v4133 = vadd.f32 0.0, %v4132
      %v4134 = vpop.f32.mrf.mxu0
      %v4135 = vpop.f32.mrf.mxu0
      %v4136 = vadd.f32 0.0, %v4135
      %v4137 = vpop.f32.mrf.mxu0
      %4138 = vmatprep.mubr.bf16.mxu0 0
      %4139 = vmatmul.mubr.bf16.gmra.mxu0 %v3100
      %v4140 = vpop.f32.mrf.mxu0
      %v4141 = vadd.f32 0.0, %v4140
      %v4142 = vpop.f32.mrf.mxu0
      %v4143 = vpop.f32.mrf.mxu0
      %v4144 = vadd.f32 0.0, %v4143
      %v4145 = vpop.f32.mrf.mxu0
      %4146 = vmatprep.mubr.bf16.mxu0 0
      %4147 = vmatmul.mubr.bf16.gmra.mxu0 %v3103
      %v4148 = vpop.f32.mrf.mxu0
      %v4149 = vadd.f32 0.0, %v4148
      %v4150 = vpop.f32.mrf.mxu0
      %v4151 = vpop.f32.mrf.mxu0
      %v4152 = vadd.f32 0.0, %v4151
      %v4153 = vpop.f32.mrf.mxu0
      %4154 = vmatprep.mubr.bf16.mxu0 0
      %4155 = vmatmul.mubr.bf16.gmra.mxu0 %v3106
      %v4156 = vpop.f32.mrf.mxu0
      %v4157 = vadd.f32 0.0, %v4156
      %v4158 = vpop.f32.mrf.mxu0
      %v4159 = vpop.f32.mrf.mxu0
      %v4160 = vadd.f32 0.0, %v4159
      %v4161 = vpop.f32.mrf.mxu0
      %4162 = vmatprep.mubr.bf16.mxu0 0
      %4163 = vmatmul.mubr.bf16.gmra.mxu0 %v3109
      %v4164 = vpop.f32.mrf.mxu0
      %v4165 = vadd.f32 0.0, %v4164
      %v4166 = vpop.f32.mrf.mxu0
      %v4167 = vpop.f32.mrf.mxu0
      %v4168 = vadd.f32 0.0, %v4167
      %v4169 = vpop.f32.mrf.mxu0
      %4170 = vmatprep.mubr.bf16.mxu0 0
      %4171 = vmatmul.mubr.bf16.gmra.mxu0 %v3112
      %v4172 = vpop.f32.mrf.mxu0
      %v4173 = vadd.f32 0.0, %v4172
      %v4174 = vpop.f32.mrf.mxu0
      %v4175 = vpop.f32.mrf.mxu0
      %v4176 = vadd.f32 0.0, %v4175
      %v4177 = vpop.f32.mrf.mxu0
      %4178 = vmatprep.mubr.bf16.mxu0 0
      %4179 = vmatmul.mubr.bf16.gmra.mxu0 %v3115
      %v4180 = vpop.f32.mrf.mxu0
      %v4181 = vadd.f32 0.0, %v4180
      %v4182 = vpop.f32.mrf.mxu0
      %v4183 = vpop.f32.mrf.mxu0
      %v4184 = vadd.f32 0.0, %v4183
      %v4185 = vpop.f32.mrf.mxu0
      %4186 = vmatprep.mubr.bf16.mxu0 0
      %4187 = vmatmul.mubr.bf16.gmra.mxu0 %v3118
      %v4188 = vpop.f32.mrf.mxu0
      %v4189 = vadd.f32 0.0, %v4188
      %v4190 = vpop.f32.mrf.mxu0
      %v4191 = vpop.f32.mrf.mxu0
      %v4192 = vadd.f32 0.0, %v4191
      %v4193 = vpop.f32.mrf.mxu0
      %4194 = vmatprep.mubr.bf16.mxu0 0
      %4195 = vmatmul.mubr.bf16.gmra.mxu0 %v3121
      %v4196 = vpop.f32.mrf.mxu0
      %v4197 = vadd.f32 0.0, %v4196
      %v4198 = vpop.f32.mrf.mxu0
      %v4199 = vpop.f32.mrf.mxu0
      %v4200 = vadd.f32 0.0, %v4199
      %v4201 = vpop.f32.mrf.mxu0
      %4202 = vmatprep.mubr.bf16.mxu0 0
      %4203 = vmatmul.mubr.bf16.gmra.mxu0 %v3124
      %v4204 = vpop.f32.mrf.mxu0
      %v4205 = vadd.f32 0.0, %v4204
      %v4206 = vpop.f32.mrf.mxu0
      %v4207 = vpop.f32.mrf.mxu0
      %v4208 = vadd.f32 0.0, %v4207
      %v4209 = vpop.f32.mrf.mxu0
      %4210 = vmatprep.mubr.bf16.mxu0 0
      %4211 = vmatmul.mubr.bf16.gmra.mxu0 %v3127
      %v4212 = vpop.f32.mrf.mxu0
      %v4213 = vadd.f32 0.0, %v4212
      %v4214 = vpop.f32.mrf.mxu0
      %v4215 = vpop.f32.mrf.mxu0
      %v4216 = vadd.f32 0.0, %v4215
      %v4217 = vpop.f32.mrf.mxu0
      %4218 = vmatprep.mubr.bf16.mxu0 0
      %4219 = vmatmul.mubr.bf16.gmra.mxu0 %v3130
      %v4220 = vpop.f32.mrf.mxu0
      %v4221 = vadd.f32 0.0, %v4220
      %v4222 = vpop.f32.mrf.mxu0
      %v4223 = vpop.f32.mrf.mxu0
      %v4224 = vadd.f32 0.0, %v4223
      %v4225 = vpop.f32.mrf.mxu0
      %4226 = vmatprep.mubr.bf16.mxu0 0
      %4227 = vmatmul.mubr.bf16.gmra.mxu0 %v3133
      %v4228 = vpop.f32.mrf.mxu0
      %v4229 = vadd.f32 0.0, %v4228
      %v4230 = vpop.f32.mrf.mxu0
      %v4231 = vpop.f32.mrf.mxu0
      %v4232 = vadd.f32 0.0, %v4231
      %v4233 = vpop.f32.mrf.mxu0
      %4234 = vmatprep.mubr.bf16.mxu0 0
      %4235 = vmatmul.mubr.bf16.gmra.mxu0 %v3136
      %v4236 = vpop.f32.mrf.mxu0
      %v4237 = vadd.f32 0.0, %v4236
      %v4238 = vpop.f32.mrf.mxu0
      %v4239 = vpop.f32.mrf.mxu0
      %v4240 = vadd.f32 0.0, %v4239
      %v4241 = vpop.f32.mrf.mxu0
      %4242 = vmatprep.mubr.bf16.mxu0 0
      %4243 = vmatmul.mubr.bf16.gmra.mxu0 %v3139
      %v4244 = vpop.f32.mrf.mxu0
      %v4245 = vadd.f32 0.0, %v4244
      %v4246 = vpop.f32.mrf.mxu0
      %v4247 = vpop.f32.mrf.mxu0
      %v4248 = vadd.f32 0.0, %v4247
      %v4249 = vpop.f32.mrf.mxu0
      %4250 = vdwg.mxu0
      %v4251 = vadd.f32 %v3578, %v3932
      %v4252 = vadd.f32 %v3582, %v3936
      %v4253 = vadd.f32 %v3588, %v3942
      %v4254 = vadd.f32 %v3592, %v3946
      %v4255 = vadd.f32 %v3598, %v3952
      %v4256 = vadd.f32 %v3602, %v3956
      %v4257 = vadd.f32 %v3608, %v3962
      %v4258 = vadd.f32 %v3612, %v3966
      %v4259 = vadd.f32 %v3618, %v3972
      %v4260 = vadd.f32 %v3622, %v3976
      %v4261 = vadd.f32 %v3628, %v3982
      %v4262 = vadd.f32 %v3632, %v3986
      %v4263 = vadd.f32 %v3638, %v3992
      %v4264 = vadd.f32 %v3642, %v3996
      %v4265 = vadd.f32 %v3648, %v4002
      %v4266 = vadd.f32 %v3652, %v4006
      %v4267 = vadd.f32 %v3658, %v4012
      %v4268 = vadd.f32 %v3662, %v4016
      %v4269 = vadd.f32 %v3668, %v4022
      %v4270 = vadd.f32 %v3672, %v4026
      %v4271 = vadd.f32 %v3678, %v4032
      %v4272 = vadd.f32 %v3682, %v4036
      %v4273 = vadd.f32 %v3688, %v4042
      %v4274 = vadd.f32 %v3692, %v4046
      %v4275 = vadd.f32 %v3698, %v4052
      %v4276 = vadd.f32 %v3702, %v4056
      %v4277 = vadd.f32 %v3708, %v4062
      %v4278 = vadd.f32 %v3712, %v4066
      %v4279 = vadd.f32 %v3718, %v4072
      %v4280 = vadd.f32 %v3722, %v4076
      %v4281 = vadd.f32 %v3728, %v4082
      %v4282 = vadd.f32 %v3732, %v4086
      %v4283 = vadd.f32 %v4251, %v2280
      %v4284 = vadd.f32 %v4252, %v2280
      %v4285 = vadd.f32 %v4253, %v2280
      %v4286 = vadd.f32 %v4254, %v2280
      %v4287 = vadd.f32 %v4255, %v2280
      %v4288 = vadd.f32 %v4256, %v2280
      %v4289 = vadd.f32 %v4257, %v2280
      %v4290 = vadd.f32 %v4258, %v2280
      %v4291 = vadd.f32 %v4259, %v2280
      %v4292 = vadd.f32 %v4260, %v2280
      %v4293 = vadd.f32 %v4261, %v2280
      %v4294 = vadd.f32 %v4262, %v2280
      %v4295 = vadd.f32 %v4263, %v2280
      %v4296 = vadd.f32 %v4264, %v2280
      %v4297 = vadd.f32 %v4265, %v2280
      %v4298 = vadd.f32 %v4266, %v2280
      %v4299 = vadd.f32 %v4267, %v2280
      %v4300 = vadd.f32 %v4268, %v2280
      %v4301 = vadd.f32 %v4269, %v2280
      %v4302 = vadd.f32 %v4270, %v2280
      %v4303 = vadd.f32 %v4271, %v2280
      %v4304 = vadd.f32 %v4272, %v2280
      %v4305 = vadd.f32 %v4273, %v2280
      %v4306 = vadd.f32 %v4274, %v2280
      %v4307 = vadd.f32 %v4275, %v2280
      %v4308 = vadd.f32 %v4276, %v2280
      %v4309 = vadd.f32 %v4277, %v2280
      %v4310 = vadd.f32 %v4278, %v2280
      %v4311 = vadd.f32 %v4279, %v2280
      %v4312 = vadd.f32 %v4280, %v2280
      %v4313 = vadd.f32 %v4281, %v2280
      %v4314 = vadd.f32 %v4282, %v2280
      %v4315 = vxor.u32 %v4283, 2147483648
      %v4316 = vxor.u32 %v4284, 2147483648
      %v4317 = vxor.u32 %v4285, 2147483648
      %v4318 = vxor.u32 %v4286, 2147483648
      %v4319 = vxor.u32 %v4287, 2147483648
      %v4320 = vxor.u32 %v4288, 2147483648
      %v4321 = vxor.u32 %v4289, 2147483648
      %v4322 = vxor.u32 %v4290, 2147483648
      %v4323 = vxor.u32 %v4291, 2147483648
      %v4324 = vxor.u32 %v4292, 2147483648
      %v4325 = vxor.u32 %v4293, 2147483648
      %v4326 = vxor.u32 %v4294, 2147483648
      %v4327 = vxor.u32 %v4295, 2147483648
      %v4328 = vxor.u32 %v4296, 2147483648
      %v4329 = vxor.u32 %v4297, 2147483648
      %v4330 = vxor.u32 %v4298, 2147483648
      %v4331 = vxor.u32 %v4299, 2147483648
      %v4332 = vxor.u32 %v4300, 2147483648
      %v4333 = vxor.u32 %v4301, 2147483648
      %v4334 = vxor.u32 %v4302, 2147483648
      %v4335 = vxor.u32 %v4303, 2147483648
      %v4336 = vxor.u32 %v4304, 2147483648
      %v4337 = vxor.u32 %v4305, 2147483648
      %v4338 = vxor.u32 %v4306, 2147483648
      %v4339 = vxor.u32 %v4307, 2147483648
      %v4340 = vxor.u32 %v4308, 2147483648
      %v4341 = vxor.u32 %v4309, 2147483648
      %v4342 = vxor.u32 %v4310, 2147483648
      %v4343 = vxor.u32 %v4311, 2147483648
      %v4344 = vxor.u32 %v4312, 2147483648
      %v4345 = vxor.u32 %v4313, 2147483648
      %v4346 = vxor.u32 %v4314, 2147483648
      %v4347 = vmul.f32 %v4315, 1.442695
      %v4348 = vpow.pop %v4347
      %v4349 = vmul.f32 %v4316, 1.442695
      %v4350 = vpow.pop %v4349
      %v4351 = vmul.f32 %v4317, 1.442695
      %v4352 = vpow.pop %v4351
      %v4353 = vmul.f32 %v4318, 1.442695
      %v4354 = vpow.pop %v4353
      %v4355 = vmul.f32 %v4319, 1.442695
      %v4356 = vpow.pop %v4355
      %v4357 = vmul.f32 %v4320, 1.442695
      %v4358 = vpow.pop %v4357
      %v4359 = vmul.f32 %v4321, 1.442695
      %v4360 = vpow.pop %v4359
      %v4361 = vmul.f32 %v4322, 1.442695
      %v4362 = vpow.pop %v4361
      %v4363 = vmul.f32 %v4323, 1.442695
      %v4364 = vpow.pop %v4363
      %v4365 = vmul.f32 %v4324, 1.442695
      %v4366 = vpow.pop %v4365
      %v4367 = vmul.f32 %v4325, 1.442695
      %v4368 = vpow.pop %v4367
      %v4369 = vmul.f32 %v4326, 1.442695
      %v4370 = vpow.pop %v4369
      %v4371 = vmul.f32 %v4327, 1.442695
      %v4372 = vpow.pop %v4371
      %v4373 = vmul.f32 %v4328, 1.442695
      %v4374 = vpow.pop %v4373
      %v4375 = vmul.f32 %v4329, 1.442695
      %v4376 = vpow.pop %v4375
      %v4377 = vmul.f32 %v4330, 1.442695
      %v4378 = vpow.pop %v4377
      %v4379 = vmul.f32 %v4331, 1.442695
      %v4380 = vpow.pop %v4379
      %v4381 = vmul.f32 %v4332, 1.442695
      %v4382 = vpow.pop %v4381
      %v4383 = vmul.f32 %v4333, 1.442695
      %v4384 = vpow.pop %v4383
      %v4385 = vmul.f32 %v4334, 1.442695
      %v4386 = vpow.pop %v4385
      %v4387 = vmul.f32 %v4335, 1.442695
      %v4388 = vpow.pop %v4387
      %v4389 = vmul.f32 %v4336, 1.442695
      %v4390 = vpow.pop %v4389
      %v4391 = vmul.f32 %v4337, 1.442695
      %v4392 = vpow.pop %v4391
      %v4393 = vmul.f32 %v4338, 1.442695
      %v4394 = vpow.pop %v4393
      %v4395 = vmul.f32 %v4339, 1.442695
      %v4396 = vpow.pop %v4395
      %v4397 = vmul.f32 %v4340, 1.442695
      %v4398 = vpow.pop %v4397
      %v4399 = vmul.f32 %v4341, 1.442695
      %v4400 = vpow.pop %v4399
      %v4401 = vmul.f32 %v4342, 1.442695
      %v4402 = vpow.pop %v4401
      %v4403 = vmul.f32 %v4343, 1.442695
      %v4404 = vpow.pop %v4403
      %v4405 = vmul.f32 %v4344, 1.442695
      %v4406 = vpow.pop %v4405
      %v4407 = vmul.f32 %v4345, 1.442695
      %v4408 = vpow.pop %v4407
      %v4409 = vmul.f32 %v4346, 1.442695
      %v4410 = vpow.pop %v4409
      %v4411 = vadd.f32 %v4348, 1.0
      %v4412 = vadd.f32 %v4350, 1.0
      %v4413 = vadd.f32 %v4352, 1.0
      %v4414 = vadd.f32 %v4354, 1.0
      %v4415 = vadd.f32 %v4356, 1.0
      %v4416 = vadd.f32 %v4358, 1.0
      %v4417 = vadd.f32 %v4360, 1.0
      %v4418 = vadd.f32 %v4362, 1.0
      %v4419 = vadd.f32 %v4364, 1.0
      %v4420 = vadd.f32 %v4366, 1.0
      %v4421 = vadd.f32 %v4368, 1.0
      %v4422 = vadd.f32 %v4370, 1.0
      %v4423 = vadd.f32 %v4372, 1.0
      %v4424 = vadd.f32 %v4374, 1.0
      %v4425 = vadd.f32 %v4376, 1.0
      %v4426 = vadd.f32 %v4378, 1.0
      %v4427 = vadd.f32 %v4380, 1.0
      %v4428 = vadd.f32 %v4382, 1.0
      %v4429 = vadd.f32 %v4384, 1.0
      %v4430 = vadd.f32 %v4386, 1.0
      %v4431 = vadd.f32 %v4388, 1.0
      %v4432 = vadd.f32 %v4390, 1.0
      %v4433 = vadd.f32 %v4392, 1.0
      %v4434 = vadd.f32 %v4394, 1.0
      %v4435 = vadd.f32 %v4396, 1.0
      %v4436 = vadd.f32 %v4398, 1.0
      %v4437 = vadd.f32 %v4400, 1.0
      %v4438 = vadd.f32 %v4402, 1.0
      %v4439 = vadd.f32 %v4404, 1.0
      %v4440 = vadd.f32 %v4406, 1.0
      %v4441 = vadd.f32 %v4408, 1.0
      %v4442 = vadd.f32 %v4410, 1.0
      %v4443 = vrcp.pop %v4411
      %v4444 = vmul.f32 1.0, %v4443
      %v4445 = vrcp.pop %v4412
      %v4446 = vmul.f32 1.0, %v4445
      %v4447 = vrcp.pop %v4413
      %v4448 = vmul.f32 1.0, %v4447
      %v4449 = vrcp.pop %v4414
      %v4450 = vmul.f32 1.0, %v4449
      %v4451 = vrcp.pop %v4415
      %v4452 = vmul.f32 1.0, %v4451
      %v4453 = vrcp.pop %v4416
      %v4454 = vmul.f32 1.0, %v4453
      %v4455 = vrcp.pop %v4417
      %v4456 = vmul.f32 1.0, %v4455
      %v4457 = vrcp.pop %v4418
      %v4458 = vmul.f32 1.0, %v4457
      %v4459 = vrcp.pop %v4419
      %v4460 = vmul.f32 1.0, %v4459
      %v4461 = vrcp.pop %v4420
      %v4462 = vmul.f32 1.0, %v4461
      %v4463 = vrcp.pop %v4421
      %v4464 = vmul.f32 1.0, %v4463
      %v4465 = vrcp.pop %v4422
      %v4466 = vmul.f32 1.0, %v4465
      %v4467 = vrcp.pop %v4423
      %v4468 = vmul.f32 1.0, %v4467
      %v4469 = vrcp.pop %v4424
      %v4470 = vmul.f32 1.0, %v4469
      %v4471 = vrcp.pop %v4425
      %v4472 = vmul.f32 1.0, %v4471
      %v4473 = vrcp.pop %v4426
      %v4474 = vmul.f32 1.0, %v4473
      %v4475 = vrcp.pop %v4427
      %v4476 = vmul.f32 1.0, %v4475
      %v4477 = vrcp.pop %v4428
      %v4478 = vmul.f32 1.0, %v4477
      %v4479 = vrcp.pop %v4429
      %v4480 = vmul.f32 1.0, %v4479
      %v4481 = vrcp.pop %v4430
      %v4482 = vmul.f32 1.0, %v4481
      %v4483 = vrcp.pop %v4431
      %v4484 = vmul.f32 1.0, %v4483
      %v4485 = vrcp.pop %v4432
      %v4486 = vmul.f32 1.0, %v4485
      %v4487 = vrcp.pop %v4433
      %v4488 = vmul.f32 1.0, %v4487
      %v4489 = vrcp.pop %v4434
      %v4490 = vmul.f32 1.0, %v4489
      %v4491 = vrcp.pop %v4435
      %v4492 = vmul.f32 1.0, %v4491
      %v4493 = vrcp.pop %v4436
      %v4494 = vmul.f32 1.0, %v4493
      %v4495 = vrcp.pop %v4437
      %v4496 = vmul.f32 1.0, %v4495
      %v4497 = vrcp.pop %v4438
      %v4498 = vmul.f32 1.0, %v4497
      %v4499 = vrcp.pop %v4439
      %v4500 = vmul.f32 1.0, %v4499
      %v4501 = vrcp.pop %v4440
      %v4502 = vmul.f32 1.0, %v4501
      %v4503 = vrcp.pop %v4441
      %v4504 = vmul.f32 1.0, %v4503
      %v4505 = vrcp.pop %v4442
      %v4506 = vmul.f32 1.0, %v4505
      %v4507 = vadd.f32 %v3580, %v3934
      %v4508 = vadd.f32 %v3584, %v3938
      %v4509 = vadd.f32 %v3590, %v3944
      %v4510 = vadd.f32 %v3594, %v3948
      %v4511 = vadd.f32 %v3600, %v3954
      %v4512 = vadd.f32 %v3604, %v3958
      %v4513 = vadd.f32 %v3610, %v3964
      %v4514 = vadd.f32 %v3614, %v3968
      %v4515 = vadd.f32 %v3620, %v3974
      %v4516 = vadd.f32 %v3624, %v3978
      %v4517 = vadd.f32 %v3630, %v3984
      %v4518 = vadd.f32 %v3634, %v3988
      %v4519 = vadd.f32 %v3640, %v3994
      %v4520 = vadd.f32 %v3644, %v3998
      %v4521 = vadd.f32 %v3650, %v4004
      %v4522 = vadd.f32 %v3654, %v4008
      %v4523 = vadd.f32 %v3660, %v4014
      %v4524 = vadd.f32 %v3664, %v4018
      %v4525 = vadd.f32 %v3670, %v4024
      %v4526 = vadd.f32 %v3674, %v4028
      %v4527 = vadd.f32 %v3680, %v4034
      %v4528 = vadd.f32 %v3684, %v4038
      %v4529 = vadd.f32 %v3690, %v4044
      %v4530 = vadd.f32 %v3694, %v4048
      %v4531 = vadd.f32 %v3700, %v4054
      %v4532 = vadd.f32 %v3704, %v4058
      %v4533 = vadd.f32 %v3710, %v4064
      %v4534 = vadd.f32 %v3714, %v4068
      %v4535 = vadd.f32 %v3720, %v4074
      %v4536 = vadd.f32 %v3724, %v4078
      %v4537 = vadd.f32 %v3730, %v4084
      %v4538 = vadd.f32 %v3734, %v4088
      %v4539 = vadd.f32 %v4507, %v2542
      %v4540 = vadd.f32 %v4508, %v2542
      %v4541 = vadd.f32 %v4509, %v2542
      %v4542 = vadd.f32 %v4510, %v2542
      %v4543 = vadd.f32 %v4511, %v2542
      %v4544 = vadd.f32 %v4512, %v2542
      %v4545 = vadd.f32 %v4513, %v2542
      %v4546 = vadd.f32 %v4514, %v2542
      %v4547 = vadd.f32 %v4515, %v2542
      %v4548 = vadd.f32 %v4516, %v2542
      %v4549 = vadd.f32 %v4517, %v2542
      %v4550 = vadd.f32 %v4518, %v2542
      %v4551 = vadd.f32 %v4519, %v2542
      %v4552 = vadd.f32 %v4520, %v2542
      %v4553 = vadd.f32 %v4521, %v2542
      %v4554 = vadd.f32 %v4522, %v2542
      %v4555 = vadd.f32 %v4523, %v2542
      %v4556 = vadd.f32 %v4524, %v2542
      %v4557 = vadd.f32 %v4525, %v2542
      %v4558 = vadd.f32 %v4526, %v2542
      %v4559 = vadd.f32 %v4527, %v2542
      %v4560 = vadd.f32 %v4528, %v2542
      %v4561 = vadd.f32 %v4529, %v2542
      %v4562 = vadd.f32 %v4530, %v2542
      %v4563 = vadd.f32 %v4531, %v2542
      %v4564 = vadd.f32 %v4532, %v2542
      %v4565 = vadd.f32 %v4533, %v2542
      %v4566 = vadd.f32 %v4534, %v2542
      %v4567 = vadd.f32 %v4535, %v2542
      %v4568 = vadd.f32 %v4536, %v2542
      %v4569 = vadd.f32 %v4537, %v2542
      %v4570 = vadd.f32 %v4538, %v2542
      %v4571 = vxor.u32 %v4539, 2147483648
      %v4572 = vxor.u32 %v4540, 2147483648
      %v4573 = vxor.u32 %v4541, 2147483648
      %v4574 = vxor.u32 %v4542, 2147483648
      %v4575 = vxor.u32 %v4543, 2147483648
      %v4576 = vxor.u32 %v4544, 2147483648
      %v4577 = vxor.u32 %v4545, 2147483648
      %v4578 = vxor.u32 %v4546, 2147483648
      %v4579 = vxor.u32 %v4547, 2147483648
      %v4580 = vxor.u32 %v4548, 2147483648
      %v4581 = vxor.u32 %v4549, 2147483648
      %v4582 = vxor.u32 %v4550, 2147483648
      %v4583 = vxor.u32 %v4551, 2147483648
      %v4584 = vxor.u32 %v4552, 2147483648
      %v4585 = vxor.u32 %v4553, 2147483648
      %v4586 = vxor.u32 %v4554, 2147483648
      %v4587 = vxor.u32 %v4555, 2147483648
      %v4588 = vxor.u32 %v4556, 2147483648
      %v4589 = vxor.u32 %v4557, 2147483648
      %v4590 = vxor.u32 %v4558, 2147483648
      %v4591 = vxor.u32 %v4559, 2147483648
      %v4592 = vxor.u32 %v4560, 2147483648
      %v4593 = vxor.u32 %v4561, 2147483648
      %v4594 = vxor.u32 %v4562, 2147483648
      %v4595 = vxor.u32 %v4563, 2147483648
      %v4596 = vxor.u32 %v4564, 2147483648
      %v4597 = vxor.u32 %v4565, 2147483648
      %v4598 = vxor.u32 %v4566, 2147483648
      %v4599 = vxor.u32 %v4567, 2147483648
      %v4600 = vxor.u32 %v4568, 2147483648
      %v4601 = vxor.u32 %v4569, 2147483648
      %v4602 = vxor.u32 %v4570, 2147483648
      %v4603 = vmul.f32 %v4571, 1.442695
      %v4604 = vpow.pop %v4603
      %v4605 = vmul.f32 %v4572, 1.442695
      %v4606 = vpow.pop %v4605
      %v4607 = vmul.f32 %v4573, 1.442695
      %v4608 = vpow.pop %v4607
      %v4609 = vmul.f32 %v4574, 1.442695
      %v4610 = vpow.pop %v4609
      %v4611 = vmul.f32 %v4575, 1.442695
      %v4612 = vpow.pop %v4611
      %v4613 = vmul.f32 %v4576, 1.442695
      %v4614 = vpow.pop %v4613
      %v4615 = vmul.f32 %v4577, 1.442695
      %v4616 = vpow.pop %v4615
      %v4617 = vmul.f32 %v4578, 1.442695
      %v4618 = vpow.pop %v4617
      %v4619 = vmul.f32 %v4579, 1.442695
      %v4620 = vpow.pop %v4619
      %v4621 = vmul.f32 %v4580, 1.442695
      %v4622 = vpow.pop %v4621
      %v4623 = vmul.f32 %v4581, 1.442695
      %v4624 = vpow.pop %v4623
      %v4625 = vmul.f32 %v4582, 1.442695
      %v4626 = vpow.pop %v4625
      %v4627 = vmul.f32 %v4583, 1.442695
      %v4628 = vpow.pop %v4627
      %v4629 = vmul.f32 %v4584, 1.442695
      %v4630 = vpow.pop %v4629
      %v4631 = vmul.f32 %v4585, 1.442695
      %v4632 = vpow.pop %v4631
      %v4633 = vmul.f32 %v4586, 1.442695
      %v4634 = vpow.pop %v4633
      %v4635 = vmul.f32 %v4587, 1.442695
      %v4636 = vpow.pop %v4635
      %v4637 = vmul.f32 %v4588, 1.442695
      %v4638 = vpow.pop %v4637
      %v4639 = vmul.f32 %v4589, 1.442695
      %v4640 = vpow.pop %v4639
      %v4641 = vmul.f32 %v4590, 1.442695
      %v4642 = vpow.pop %v4641
      %v4643 = vmul.f32 %v4591, 1.442695
      %v4644 = vpow.pop %v4643
      %v4645 = vmul.f32 %v4592, 1.442695
      %v4646 = vpow.pop %v4645
      %v4647 = vmul.f32 %v4593, 1.442695
      %v4648 = vpow.pop %v4647
      %v4649 = vmul.f32 %v4594, 1.442695
      %v4650 = vpow.pop %v4649
      %v4651 = vmul.f32 %v4595, 1.442695
      %v4652 = vpow.pop %v4651
      %v4653 = vmul.f32 %v4596, 1.442695
      %v4654 = vpow.pop %v4653
      %v4655 = vmul.f32 %v4597, 1.442695
      %v4656 = vpow.pop %v4655
      %v4657 = vmul.f32 %v4598, 1.442695
      %v4658 = vpow.pop %v4657
      %v4659 = vmul.f32 %v4599, 1.442695
      %v4660 = vpow.pop %v4659
      %v4661 = vmul.f32 %v4600, 1.442695
      %v4662 = vpow.pop %v4661
      %v4663 = vmul.f32 %v4601, 1.442695
      %v4664 = vpow.pop %v4663
      %v4665 = vmul.f32 %v4602, 1.442695
      %v4666 = vpow.pop %v4665
      %v4667 = vadd.f32 %v4604, 1.0
      %v4668 = vadd.f32 %v4606, 1.0
      %v4669 = vadd.f32 %v4608, 1.0
      %v4670 = vadd.f32 %v4610, 1.0
      %v4671 = vadd.f32 %v4612, 1.0
      %v4672 = vadd.f32 %v4614, 1.0
      %v4673 = vadd.f32 %v4616, 1.0
      %v4674 = vadd.f32 %v4618, 1.0
      %v4675 = vadd.f32 %v4620, 1.0
      %v4676 = vadd.f32 %v4622, 1.0
      %v4677 = vadd.f32 %v4624, 1.0
      %v4678 = vadd.f32 %v4626, 1.0
      %v4679 = vadd.f32 %v4628, 1.0
      %v4680 = vadd.f32 %v4630, 1.0
      %v4681 = vadd.f32 %v4632, 1.0
      %v4682 = vadd.f32 %v4634, 1.0
      %v4683 = vadd.f32 %v4636, 1.0
      %v4684 = vadd.f32 %v4638, 1.0
      %v4685 = vadd.f32 %v4640, 1.0
      %v4686 = vadd.f32 %v4642, 1.0
      %v4687 = vadd.f32 %v4644, 1.0
      %v4688 = vadd.f32 %v4646, 1.0
      %v4689 = vadd.f32 %v4648, 1.0
      %v4690 = vadd.f32 %v4650, 1.0
      %v4691 = vadd.f32 %v4652, 1.0
      %v4692 = vadd.f32 %v4654, 1.0
      %v4693 = vadd.f32 %v4656, 1.0
      %v4694 = vadd.f32 %v4658, 1.0
      %v4695 = vadd.f32 %v4660, 1.0
      %v4696 = vadd.f32 %v4662, 1.0
      %v4697 = vadd.f32 %v4664, 1.0
      %v4698 = vadd.f32 %v4666, 1.0
      %v4699 = vrcp.pop %v4667
      %v4700 = vmul.f32 1.0, %v4699
      %v4701 = vrcp.pop %v4668
      %v4702 = vmul.f32 1.0, %v4701
      %v4703 = vrcp.pop %v4669
      %v4704 = vmul.f32 1.0, %v4703
      %v4705 = vrcp.pop %v4670
      %v4706 = vmul.f32 1.0, %v4705
      %v4707 = vrcp.pop %v4671
      %v4708 = vmul.f32 1.0, %v4707
      %v4709 = vrcp.pop %v4672
      %v4710 = vmul.f32 1.0, %v4709
      %v4711 = vrcp.pop %v4673
      %v4712 = vmul.f32 1.0, %v4711
      %v4713 = vrcp.pop %v4674
      %v4714 = vmul.f32 1.0, %v4713
      %v4715 = vrcp.pop %v4675
      %v4716 = vmul.f32 1.0, %v4715
      %v4717 = vrcp.pop %v4676
      %v4718 = vmul.f32 1.0, %v4717
      %v4719 = vrcp.pop %v4677
      %v4720 = vmul.f32 1.0, %v4719
      %v4721 = vrcp.pop %v4678
      %v4722 = vmul.f32 1.0, %v4721
      %v4723 = vrcp.pop %v4679
      %v4724 = vmul.f32 1.0, %v4723
      %v4725 = vrcp.pop %v4680
      %v4726 = vmul.f32 1.0, %v4725
      %v4727 = vrcp.pop %v4681
      %v4728 = vmul.f32 1.0, %v4727
      %v4729 = vrcp.pop %v4682
      %v4730 = vmul.f32 1.0, %v4729
      %v4731 = vrcp.pop %v4683
      %v4732 = vmul.f32 1.0, %v4731
      %v4733 = vrcp.pop %v4684
      %v4734 = vmul.f32 1.0, %v4733
      %v4735 = vrcp.pop %v4685
      %v4736 = vmul.f32 1.0, %v4735
      %v4737 = vrcp.pop %v4686
      %v4738 = vmul.f32 1.0, %v4737
      %v4739 = vrcp.pop %v4687
      %v4740 = vmul.f32 1.0, %v4739
      %v4741 = vrcp.pop %v4688
      %v4742 = vmul.f32 1.0, %v4741
      %v4743 = vrcp.pop %v4689
      %v4744 = vmul.f32 1.0, %v4743
      %v4745 = vrcp.pop %v4690
      %v4746 = vmul.f32 1.0, %v4745
      %v4747 = vrcp.pop %v4691
      %v4748 = vmul.f32 1.0, %v4747
      %v4749 = vrcp.pop %v4692
      %v4750 = vmul.f32 1.0, %v4749
      %v4751 = vrcp.pop %v4693
      %v4752 = vmul.f32 1.0, %v4751
      %v4753 = vrcp.pop %v4694
      %v4754 = vmul.f32 1.0, %v4753
      %v4755 = vrcp.pop %v4695
      %v4756 = vmul.f32 1.0, %v4755
      %v4757 = vrcp.pop %v4696
      %v4758 = vmul.f32 1.0, %v4757
      %v4759 = vrcp.pop %v4697
      %v4760 = vmul.f32 1.0, %v4759
      %v4761 = vrcp.pop %v4698
      %v4762 = vmul.f32 1.0, %v4761
      %v4763 = vadd.f32 %v3771, %v2772
      %v4764 = vadd.f32 %v3774, %v2772
      %v4765 = vadd.f32 %v3779, %v2772
      %v4766 = vadd.f32 %v3782, %v2772
      %v4767 = vadd.f32 %v3787, %v2772
      %v4768 = vadd.f32 %v3790, %v2772
      %v4769 = vadd.f32 %v3795, %v2772
      %v4770 = vadd.f32 %v3798, %v2772
      %v4771 = vadd.f32 %v3803, %v2772
      %v4772 = vadd.f32 %v3806, %v2772
      %v4773 = vadd.f32 %v3811, %v2772
      %v4774 = vadd.f32 %v3814, %v2772
      %v4775 = vadd.f32 %v3819, %v2772
      %v4776 = vadd.f32 %v3822, %v2772
      %v4777 = vadd.f32 %v3827, %v2772
      %v4778 = vadd.f32 %v3830, %v2772
      %v4779 = vadd.f32 %v3835, %v2772
      %v4780 = vadd.f32 %v3838, %v2772
      %v4781 = vadd.f32 %v3843, %v2772
      %v4782 = vadd.f32 %v3846, %v2772
      %v4783 = vadd.f32 %v3851, %v2772
      %v4784 = vadd.f32 %v3854, %v2772
      %v4785 = vadd.f32 %v3859, %v2772
      %v4786 = vadd.f32 %v3862, %v2772
      %v4787 = vadd.f32 %v3867, %v2772
      %v4788 = vadd.f32 %v3870, %v2772
      %v4789 = vadd.f32 %v3875, %v2772
      %v4790 = vadd.f32 %v3878, %v2772
      %v4791 = vadd.f32 %v3883, %v2772
      %v4792 = vadd.f32 %v3886, %v2772
      %v4793 = vadd.f32 %v3891, %v2772
      %v4794 = vadd.f32 %v3894, %v2772
      %v4795 = vadd.f32 %v4125, %v2810
      %v4796 = vadd.f32 %v4128, %v2810
      %v4797 = vadd.f32 %v4133, %v2810
      %v4798 = vadd.f32 %v4136, %v2810
      %v4799 = vadd.f32 %v4141, %v2810
      %v4800 = vadd.f32 %v4144, %v2810
      %v4801 = vadd.f32 %v4149, %v2810
      %v4802 = vadd.f32 %v4152, %v2810
      %v4803 = vadd.f32 %v4157, %v2810
      %v4804 = vadd.f32 %v4160, %v2810
      %v4805 = vadd.f32 %v4165, %v2810
      %v4806 = vadd.f32 %v4168, %v2810
      %v4807 = vadd.f32 %v4173, %v2810
      %v4808 = vadd.f32 %v4176, %v2810
      %v4809 = vadd.f32 %v4181, %v2810
      %v4810 = vadd.f32 %v4184, %v2810
      %v4811 = vadd.f32 %v4189, %v2810
      %v4812 = vadd.f32 %v4192, %v2810
      %v4813 = vadd.f32 %v4197, %v2810
      %v4814 = vadd.f32 %v4200, %v2810
      %v4815 = vadd.f32 %v4205, %v2810
      %v4816 = vadd.f32 %v4208, %v2810
      %v4817 = vadd.f32 %v4213, %v2810
      %v4818 = vadd.f32 %v4216, %v2810
      %v4819 = vadd.f32 %v4221, %v2810
      %v4820 = vadd.f32 %v4224, %v2810
      %v4821 = vadd.f32 %v4229, %v2810
      %v4822 = vadd.f32 %v4232, %v2810
      %v4823 = vadd.f32 %v4237, %v2810
      %v4824 = vadd.f32 %v4240, %v2810
      %v4825 = vadd.f32 %v4245, %v2810
      %v4826 = vadd.f32 %v4248, %v2810
      %v4827 = vmul.f32 %v4444, %v4795
      %v4828 = vmul.f32 %v4446, %v4796
      %v4829 = vmul.f32 %v4448, %v4797
      %v4830 = vmul.f32 %v4450, %v4798
      %v4831 = vmul.f32 %v4452, %v4799
      %v4832 = vmul.f32 %v4454, %v4800
      %v4833 = vmul.f32 %v4456, %v4801
      %v4834 = vmul.f32 %v4458, %v4802
      %v4835 = vmul.f32 %v4460, %v4803
      %v4836 = vmul.f32 %v4462, %v4804
      %v4837 = vmul.f32 %v4464, %v4805
      %v4838 = vmul.f32 %v4466, %v4806
      %v4839 = vmul.f32 %v4468, %v4807
      %v4840 = vmul.f32 %v4470, %v4808
      %v4841 = vmul.f32 %v4472, %v4809
      %v4842 = vmul.f32 %v4474, %v4810
      %v4843 = vmul.f32 %v4476, %v4811
      %v4844 = vmul.f32 %v4478, %v4812
      %v4845 = vmul.f32 %v4480, %v4813
      %v4846 = vmul.f32 %v4482, %v4814
      %v4847 = vmul.f32 %v4484, %v4815
      %v4848 = vmul.f32 %v4486, %v4816
      %v4849 = vmul.f32 %v4488, %v4817
      %v4850 = vmul.f32 %v4490, %v4818
      %v4851 = vmul.f32 %v4492, %v4819
      %v4852 = vmul.f32 %v4494, %v4820
      %v4853 = vmul.f32 %v4496, %v4821
      %v4854 = vmul.f32 %v4498, %v4822
      %v4855 = vmul.f32 %v4500, %v4823
      %v4856 = vmul.f32 %v4502, %v4824
      %v4857 = vmul.f32 %v4504, %v4825
      %v4858 = vmul.f32 %v4506, %v4826
      %v4859 = vadd.f32 %v4763, %v4827
      %v4860 = vadd.f32 %v4764, %v4828
      %v4861 = vadd.f32 %v4765, %v4829
      %v4862 = vadd.f32 %v4766, %v4830
      %v4863 = vadd.f32 %v4767, %v4831
      %v4864 = vadd.f32 %v4768, %v4832
      %v4865 = vadd.f32 %v4769, %v4833
      %v4866 = vadd.f32 %v4770, %v4834
      %v4867 = vadd.f32 %v4771, %v4835
      %v4868 = vadd.f32 %v4772, %v4836
      %v4869 = vadd.f32 %v4773, %v4837
      %v4870 = vadd.f32 %v4774, %v4838
      %v4871 = vadd.f32 %v4775, %v4839
      %v4872 = vadd.f32 %v4776, %v4840
      %v4873 = vadd.f32 %v4777, %v4841
      %v4874 = vadd.f32 %v4778, %v4842
      %v4875 = vadd.f32 %v4779, %v4843
      %v4876 = vadd.f32 %v4780, %v4844
      %v4877 = vadd.f32 %v4781, %v4845
      %v4878 = vadd.f32 %v4782, %v4846
      %v4879 = vadd.f32 %v4783, %v4847
      %v4880 = vadd.f32 %v4784, %v4848
      %v4881 = vadd.f32 %v4785, %v4849
      %v4882 = vadd.f32 %v4786, %v4850
      %v4883 = vadd.f32 %v4787, %v4851
      %v4884 = vadd.f32 %v4788, %v4852
      %v4885 = vadd.f32 %v4789, %v4853
      %v4886 = vadd.f32 %v4790, %v4854
      %v4887 = vadd.f32 %v4791, %v4855
      %v4888 = vadd.f32 %v4792, %v4856
      %v4889 = vadd.f32 %v4793, %v4857
      %v4890 = vadd.f32 %v4794, %v4858
      %v4891 = vtanh.pop %v4859
      %v4892 = vtanh.pop %v4860
      %v4893 = vtanh.pop %v4861
      %v4894 = vtanh.pop %v4862
      %v4895 = vtanh.pop %v4863
      %v4896 = vtanh.pop %v4864
      %v4897 = vtanh.pop %v4865
      %v4898 = vtanh.pop %v4866
      %v4899 = vtanh.pop %v4867
      %v4900 = vtanh.pop %v4868
      %v4901 = vtanh.pop %v4869
      %v4902 = vtanh.pop %v4870
      %v4903 = vtanh.pop %v4871
      %v4904 = vtanh.pop %v4872
      %v4905 = vtanh.pop %v4873
      %v4906 = vtanh.pop %v4874
      %v4907 = vtanh.pop %v4875
      %v4908 = vtanh.pop %v4876
      %v4909 = vtanh.pop %v4877
      %v4910 = vtanh.pop %v4878
      %v4911 = vtanh.pop %v4879
      %v4912 = vtanh.pop %v4880
      %v4913 = vtanh.pop %v4881
      %v4914 = vtanh.pop %v4882
      %v4915 = vtanh.pop %v4883
      %v4916 = vtanh.pop %v4884
      %v4917 = vtanh.pop %v4885
      %v4918 = vtanh.pop %v4886
      %v4919 = vtanh.pop %v4887
      %v4920 = vtanh.pop %v4888
      %v4921 = vtanh.pop %v4889
      %v4922 = vtanh.pop %v4890
      %v4923 = vsub.f32 1.0, %v4700
      %v4924 = vsub.f32 1.0, %v4702
      %v4925 = vsub.f32 1.0, %v4704
      %v4926 = vsub.f32 1.0, %v4706
      %v4927 = vsub.f32 1.0, %v4708
      %v4928 = vsub.f32 1.0, %v4710
      %v4929 = vsub.f32 1.0, %v4712
      %v4930 = vsub.f32 1.0, %v4714
      %v4931 = vsub.f32 1.0, %v4716
      %v4932 = vsub.f32 1.0, %v4718
      %v4933 = vsub.f32 1.0, %v4720
      %v4934 = vsub.f32 1.0, %v4722
      %v4935 = vsub.f32 1.0, %v4724
      %v4936 = vsub.f32 1.0, %v4726
      %v4937 = vsub.f32 1.0, %v4728
      %v4938 = vsub.f32 1.0, %v4730
      %v4939 = vsub.f32 1.0, %v4732
      %v4940 = vsub.f32 1.0, %v4734
      %v4941 = vsub.f32 1.0, %v4736
      %v4942 = vsub.f32 1.0, %v4738
      %v4943 = vsub.f32 1.0, %v4740
      %v4944 = vsub.f32 1.0, %v4742
      %v4945 = vsub.f32 1.0, %v4744
      %v4946 = vsub.f32 1.0, %v4746
      %v4947 = vsub.f32 1.0, %v4748
      %v4948 = vsub.f32 1.0, %v4750
      %v4949 = vsub.f32 1.0, %v4752
      %v4950 = vsub.f32 1.0, %v4754
      %v4951 = vsub.f32 1.0, %v4756
      %v4952 = vsub.f32 1.0, %v4758
      %v4953 = vsub.f32 1.0, %v4760
      %v4954 = vsub.f32 1.0, %v4762
      %v4955 = vmul.f32 %v4923, %v4891
      %v4956 = vmul.f32 %v4924, %v4892
      %v4957 = vmul.f32 %v4925, %v4893
      %v4958 = vmul.f32 %v4926, %v4894
      %v4959 = vmul.f32 %v4927, %v4895
      %v4960 = vmul.f32 %v4928, %v4896
      %v4961 = vmul.f32 %v4929, %v4897
      %v4962 = vmul.f32 %v4930, %v4898
      %v4963 = vmul.f32 %v4931, %v4899
      %v4964 = vmul.f32 %v4932, %v4900
      %v4965 = vmul.f32 %v4933, %v4901
      %v4966 = vmul.f32 %v4934, %v4902
      %v4967 = vmul.f32 %v4935, %v4903
      %v4968 = vmul.f32 %v4936, %v4904
      %v4969 = vmul.f32 %v4937, %v4905
      %v4970 = vmul.f32 %v4938, %v4906
      %v4971 = vmul.f32 %v4939, %v4907
      %v4972 = vmul.f32 %v4940, %v4908
      %v4973 = vmul.f32 %v4941, %v4909
      %v4974 = vmul.f32 %v4942, %v4910
      %v4975 = vmul.f32 %v4943, %v4911
      %v4976 = vmul.f32 %v4944, %v4912
      %v4977 = vmul.f32 %v4945, %v4913
      %v4978 = vmul.f32 %v4946, %v4914
      %v4979 = vmul.f32 %v4947, %v4915
      %v4980 = vmul.f32 %v4948, %v4916
      %v4981 = vmul.f32 %v4949, %v4917
      %v4982 = vmul.f32 %v4950, %v4918
      %v4983 = vmul.f32 %v4951, %v4919
      %v4984 = vmul.f32 %v4952, %v4920
      %v4985 = vmul.f32 %v4953, %v4921
      %v4986 = vmul.f32 %v4954, %v4922
      %v4987 = vmul.f32 %v4700, %v3036
      %v4988 = vmul.f32 %v4702, %v3037
      %v4989 = vmul.f32 %v4704, %v3038
      %v4990 = vmul.f32 %v4706, %v3039
      %v4991 = vmul.f32 %v4708, %v3040
      %v4992 = vmul.f32 %v4710, %v3041
      %v4993 = vmul.f32 %v4712, %v3042
      %v4994 = vmul.f32 %v4714, %v3043
      %v4995 = vmul.f32 %v4716, %v3044
      %v4996 = vmul.f32 %v4718, %v3045
      %v4997 = vmul.f32 %v4720, %v3046
      %v4998 = vmul.f32 %v4722, %v3047
      %v4999 = vmul.f32 %v4724, %v3048
      %v5000 = vmul.f32 %v4726, %v3049
      %v5001 = vmul.f32 %v4728, %v3050
      %v5002 = vmul.f32 %v4730, %v3051
      %v5003 = vmul.f32 %v4732, %v3052
      %v5004 = vmul.f32 %v4734, %v3053
      %v5005 = vmul.f32 %v4736, %v3054
      %v5006 = vmul.f32 %v4738, %v3055
      %v5007 = vmul.f32 %v4740, %v3056
      %v5008 = vmul.f32 %v4742, %v3057
      %v5009 = vmul.f32 %v4744, %v3058
      %v5010 = vmul.f32 %v4746, %v3059
      %v5011 = vmul.f32 %v4748, %v3060
      %v5012 = vmul.f32 %v4750, %v3061
      %v5013 = vmul.f32 %v4752, %v3062
      %v5014 = vmul.f32 %v4754, %v3063
      %v5015 = vmul.f32 %v4756, %v3064
      %v5016 = vmul.f32 %v4758, %v3065
      %v5017 = vmul.f32 %v4760, %v3066
      %v5018 = vmul.f32 %v4762, %v3067
      %v5019 = vadd.f32 %v4955, %v4987
      %v5020 = vadd.f32 %v4956, %v4988
      %v5021 = vadd.f32 %v4957, %v4989
      %v5022 = vadd.f32 %v4958, %v4990
      %v5023 = vadd.f32 %v4959, %v4991
      %v5024 = vadd.f32 %v4960, %v4992
      %v5025 = vadd.f32 %v4961, %v4993
      %v5026 = vadd.f32 %v4962, %v4994
      %v5027 = vadd.f32 %v4963, %v4995
      %v5028 = vadd.f32 %v4964, %v4996
      %v5029 = vadd.f32 %v4965, %v4997
      %v5030 = vadd.f32 %v4966, %v4998
      %v5031 = vadd.f32 %v4967, %v4999
      %v5032 = vadd.f32 %v4968, %v5000
      %v5033 = vadd.f32 %v4969, %v5001
      %v5034 = vadd.f32 %v4970, %v5002
      %v5035 = vadd.f32 %v4971, %v5003
      %v5036 = vadd.f32 %v4972, %v5004
      %v5037 = vadd.f32 %v4973, %v5005
      %v5038 = vadd.f32 %v4974, %v5006
      %v5039 = vadd.f32 %v4975, %v5007
      %v5040 = vadd.f32 %v4976, %v5008
      %v5041 = vadd.f32 %v4977, %v5009
      %v5042 = vadd.f32 %v4978, %v5010
      %v5043 = vadd.f32 %v4979, %v5011
      %v5044 = vadd.f32 %v4980, %v5012
      %v5045 = vadd.f32 %v4981, %v5013
      %v5046 = vadd.f32 %v4982, %v5014
      %v5047 = vadd.f32 %v4983, %v5015
      %v5048 = vadd.f32 %v4984, %v5016
      %v5049 = vadd.f32 %v4985, %v5017
      %v5050 = vadd.f32 %v4986, %v5018
      %v5051 = vpack.c.bf16 %v5020, %v5019
      %v5052 = vpack.c.bf16 %v5022, %v5021
      %v5053 = vpack.c.bf16 %v5024, %v5023
      %v5054 = vpack.c.bf16 %v5026, %v5025
      %v5055 = vpack.c.bf16 %v5028, %v5027
      %v5056 = vpack.c.bf16 %v5030, %v5029
      %v5057 = vpack.c.bf16 %v5032, %v5031
      %v5058 = vpack.c.bf16 %v5034, %v5033
      %v5059 = vpack.c.bf16 %v5036, %v5035
      %v5060 = vpack.c.bf16 %v5038, %v5037
      %v5061 = vpack.c.bf16 %v5040, %v5039
      %v5062 = vpack.c.bf16 %v5042, %v5041
      %v5063 = vpack.c.bf16 %v5044, %v5043
      %v5064 = vpack.c.bf16 %v5046, %v5045
      %v5065 = vpack.c.bf16 %v5048, %v5047
      %v5066 = vpack.c.bf16 %v5050, %v5049
      %s5067 = scalar_lea.vmem %s3, 16
      %v5068 = vld [vmem:[%s5067] sm:$0xf]
      %v5069 = vld [vmem:[%s5067 + $0x4] sm:$0xf]
      %v5072 = vunpack.c.l.b16 %v5068
      %v5073 = vunpack.c.l.b16 %v5069
      %v5074 = vpack.c.b16 %v5073, %v5072
      %v5077 = vsel %vm893, %v5051, 0
      %v5080 = vsel %vm893, %v5052, 0
      %v5083 = vsel %vm893, %v5053, 0
      %v5086 = vsel %vm893, %v5054, 0
      %v5089 = vsel %vm893, %v5055, 0
      %v5092 = vsel %vm893, %v5056, 0
      %v5095 = vsel %vm893, %v5057, 0
      %v5098 = vsel %vm893, %v5058, 0
      %v5101 = vsel %vm893, %v5059, 0
      %v5104 = vsel %vm893, %v5060, 0
      %v5107 = vsel %vm893, %v5061, 0
      %v5110 = vsel %vm893, %v5062, 0
      %v5113 = vsel %vm893, %v5063, 0
      %v5116 = vsel %vm893, %v5064, 0
      %v5119 = vsel %vm893, %v5065, 0
      %v5122 = vsel %vm893, %v5066, 0
      %5124 = vmatprep.subr.bf16.mxu0 0
      %5125 = vmatpush1.bf16.msra.mxu0 0
      %5126 = vmatprep.subr.bf16.mxu0 0
      %5127 = vmatpush1.bf16.msra.mxu0 0
      %5128 = vmatprep.subr.bf16.mxu0 0
      %5129 = vmatpush1.bf16.msra.mxu0 0
      %5130 = vmatprep.subr.bf16.mxu0 0
      %5131 = vmatpush1.bf16.msra.mxu0 0
      %5132 = vmatprep.subr.bf16.mxu0 0
      %5133 = vmatpush1.bf16.msra.mxu0 0
      %5134 = vmatprep.subr.bf16.mxu0 0
      %5135 = vmatpush1.bf16.msra.mxu0 0
      %5136 = vmatprep.subr.bf16.mxu0 0
      %5137 = vmatpush1.bf16.msra.mxu0 0
      %5138 = vmatprep.subr.bf16.mxu0 0
      %5139 = vmatpush1.bf16.msra.mxu0 %v5074
      %5140 = vmatprep.subr.bf16.mxu0 0
      %5141 = vmatpush2.bf16.msra.mxu0 0
      %5142 = vmatprep.subr.bf16.mxu0 0
      %5143 = vmatpush2.bf16.msra.mxu0 0
      %5144 = vmatprep.subr.bf16.mxu0 0
      %5145 = vmatpush2.bf16.msra.mxu0 0
      %5146 = vmatprep.subr.bf16.mxu0 0
      %5147 = vmatpush2.bf16.msra.mxu0 0
      %5148 = vmatprep.subr.bf16.mxu0 0
      %5149 = vmatpush2.bf16.msra.mxu0 0
      %5150 = vmatprep.subr.bf16.mxu0 0
      %5151 = vmatpush2.bf16.msra.mxu0 0
      %5152 = vmatprep.subr.bf16.mxu0 0
      %5153 = vmatpush2.bf16.msra.mxu0 0
      %5154 = vmatprep.subr.bf16.mxu0 0
      %5155 = vmatpush2.bf16.msra.mxu0 0
      %5156 = vmatprep.mubr.bf16.mxu0 0
      %5157 = vmatmul.mubr.bf16.gmra.mxu0 %v5077
      %v5158 = vpop.f32.mrf.mxu0
      %v5159 = vadd.f32 0.0, %v5158
      %v5160 = vpop.f32.mrf.mxu0
      %v5161 = vpop.f32.mrf.mxu0
      %v5162 = vadd.f32 0.0, %v5161
      %v5163 = vpop.f32.mrf.mxu0
      %5164 = vmatprep.mubr.bf16.mxu0 0
      %5165 = vmatmul.mubr.bf16.gmra.mxu0 %v5080
      %v5166 = vpop.f32.mrf.mxu0
      %v5167 = vadd.f32 0.0, %v5166
      %v5168 = vpop.f32.mrf.mxu0
      %v5169 = vpop.f32.mrf.mxu0
      %v5170 = vadd.f32 0.0, %v5169
      %v5171 = vpop.f32.mrf.mxu0
      %5172 = vmatprep.mubr.bf16.mxu0 0
      %5173 = vmatmul.mubr.bf16.gmra.mxu0 %v5083
      %v5174 = vpop.f32.mrf.mxu0
      %v5175 = vadd.f32 0.0, %v5174
      %v5176 = vpop.f32.mrf.mxu0
      %v5177 = vpop.f32.mrf.mxu0
      %v5178 = vadd.f32 0.0, %v5177
      %v5179 = vpop.f32.mrf.mxu0
      %5180 = vmatprep.mubr.bf16.mxu0 0
      %5181 = vmatmul.mubr.bf16.gmra.mxu0 %v5086
      %v5182 = vpop.f32.mrf.mxu0
      %v5183 = vadd.f32 0.0, %v5182
      %v5184 = vpop.f32.mrf.mxu0
      %v5185 = vpop.f32.mrf.mxu0
      %v5186 = vadd.f32 0.0, %v5185
      %v5187 = vpop.f32.mrf.mxu0
      %5188 = vmatprep.mubr.bf16.mxu0 0
      %5189 = vmatmul.mubr.bf16.gmra.mxu0 %v5089
      %v5190 = vpop.f32.mrf.mxu0
      %v5191 = vadd.f32 0.0, %v5190
      %v5192 = vpop.f32.mrf.mxu0
      %v5193 = vpop.f32.mrf.mxu0
      %v5194 = vadd.f32 0.0, %v5193
      %v5195 = vpop.f32.mrf.mxu0
      %5196 = vmatprep.mubr.bf16.mxu0 0
      %5197 = vmatmul.mubr.bf16.gmra.mxu0 %v5092
      %v5198 = vpop.f32.mrf.mxu0
      %v5199 = vadd.f32 0.0, %v5198
      %v5200 = vpop.f32.mrf.mxu0
      %v5201 = vpop.f32.mrf.mxu0
      %v5202 = vadd.f32 0.0, %v5201
      %v5203 = vpop.f32.mrf.mxu0
      %5204 = vmatprep.mubr.bf16.mxu0 0
      %5205 = vmatmul.mubr.bf16.gmra.mxu0 %v5095
      %v5206 = vpop.f32.mrf.mxu0
      %v5207 = vadd.f32 0.0, %v5206
      %v5208 = vpop.f32.mrf.mxu0
      %v5209 = vpop.f32.mrf.mxu0
      %v5210 = vadd.f32 0.0, %v5209
      %v5211 = vpop.f32.mrf.mxu0
      %5212 = vmatprep.mubr.bf16.mxu0 0
      %5213 = vmatmul.mubr.bf16.gmra.mxu0 %v5098
      %v5214 = vpop.f32.mrf.mxu0
      %v5215 = vadd.f32 0.0, %v5214
      %v5216 = vpop.f32.mrf.mxu0
      %v5217 = vpop.f32.mrf.mxu0
      %v5218 = vadd.f32 0.0, %v5217
      %v5219 = vpop.f32.mrf.mxu0
      %5220 = vmatprep.mubr.bf16.mxu0 0
      %5221 = vmatmul.mubr.bf16.gmra.mxu0 %v5101
      %v5222 = vpop.f32.mrf.mxu0
      %v5223 = vadd.f32 0.0, %v5222
      %v5224 = vpop.f32.mrf.mxu0
      %v5225 = vpop.f32.mrf.mxu0
      %v5226 = vadd.f32 0.0, %v5225
      %v5227 = vpop.f32.mrf.mxu0
      %5228 = vmatprep.mubr.bf16.mxu0 0
      %5229 = vmatmul.mubr.bf16.gmra.mxu0 %v5104
      %v5230 = vpop.f32.mrf.mxu0
      %v5231 = vadd.f32 0.0, %v5230
      %v5232 = vpop.f32.mrf.mxu0
      %v5233 = vpop.f32.mrf.mxu0
      %v5234 = vadd.f32 0.0, %v5233
      %v5235 = vpop.f32.mrf.mxu0
      %5236 = vmatprep.mubr.bf16.mxu0 0
      %5237 = vmatmul.mubr.bf16.gmra.mxu0 %v5107
      %v5238 = vpop.f32.mrf.mxu0
      %v5239 = vadd.f32 0.0, %v5238
      %v5240 = vpop.f32.mrf.mxu0
      %v5241 = vpop.f32.mrf.mxu0
      %v5242 = vadd.f32 0.0, %v5241
      %v5243 = vpop.f32.mrf.mxu0
      %5244 = vmatprep.mubr.bf16.mxu0 0
      %5245 = vmatmul.mubr.bf16.gmra.mxu0 %v5110
      %v5246 = vpop.f32.mrf.mxu0
      %v5247 = vadd.f32 0.0, %v5246
      %v5248 = vpop.f32.mrf.mxu0
      %v5249 = vpop.f32.mrf.mxu0
      %v5250 = vadd.f32 0.0, %v5249
      %v5251 = vpop.f32.mrf.mxu0
      %5252 = vmatprep.mubr.bf16.mxu0 0
      %5253 = vmatmul.mubr.bf16.gmra.mxu0 %v5113
      %v5254 = vpop.f32.mrf.mxu0
      %v5255 = vadd.f32 0.0, %v5254
      %v5256 = vpop.f32.mrf.mxu0
      %v5257 = vpop.f32.mrf.mxu0
      %v5258 = vadd.f32 0.0, %v5257
      %v5259 = vpop.f32.mrf.mxu0
      %5260 = vmatprep.mubr.bf16.mxu0 0
      %5261 = vmatmul.mubr.bf16.gmra.mxu0 %v5116
      %v5262 = vpop.f32.mrf.mxu0
      %v5263 = vadd.f32 0.0, %v5262
      %v5264 = vpop.f32.mrf.mxu0
      %v5265 = vpop.f32.mrf.mxu0
      %v5266 = vadd.f32 0.0, %v5265
      %v5267 = vpop.f32.mrf.mxu0
      %5268 = vmatprep.mubr.bf16.mxu0 0
      %5269 = vmatmul.mubr.bf16.gmra.mxu0 %v5119
      %v5270 = vpop.f32.mrf.mxu0
      %v5271 = vadd.f32 0.0, %v5270
      %v5272 = vpop.f32.mrf.mxu0
      %v5273 = vpop.f32.mrf.mxu0
      %v5274 = vadd.f32 0.0, %v5273
      %v5275 = vpop.f32.mrf.mxu0
      %5276 = vmatprep.mubr.bf16.mxu0 0
      %5277 = vmatmul.mubr.bf16.gmra.mxu0 %v5122
      %v5278 = vpop.f32.mrf.mxu0
      %v5279 = vadd.f32 0.0, %v5278
      %v5280 = vpop.f32.mrf.mxu0
      %v5281 = vpop.f32.mrf.mxu0
      %v5282 = vadd.f32 0.0, %v5281
      %v5283 = vpop.f32.mrf.mxu0
      %5284 = vdwg.mxu0
      %v5285 = vpack.c.bf16 %v5162, %v5159
      %v5286 = vpack.c.bf16 %v5170, %v5167
      %v5287 = vpack.c.bf16 %v5178, %v5175
      %v5288 = vpack.c.bf16 %v5186, %v5183
      %v5289 = vpack.c.bf16 %v5194, %v5191
      %v5290 = vpack.c.bf16 %v5202, %v5199
      %v5291 = vpack.c.bf16 %v5210, %v5207
      %v5292 = vpack.c.bf16 %v5218, %v5215
      %v5293 = vpack.c.bf16 %v5226, %v5223
      %v5294 = vpack.c.bf16 %v5234, %v5231
      %v5295 = vpack.c.bf16 %v5242, %v5239
      %v5296 = vpack.c.bf16 %v5250, %v5247
      %v5297 = vpack.c.bf16 %v5258, %v5255
      %v5298 = vpack.c.bf16 %v5266, %v5263
      %v5299 = vpack.c.bf16 %v5274, %v5271
      %v5300 = vpack.c.bf16 %v5282, %v5279
      %5301 = vmatprep.subr.bf16.mxu0 0
      %5302 = vmatpush1.bf16.msra.mxu0 %v5292
      %5303 = vmatprep.subr.bf16.mxu0 0
      %5304 = vmatpush1.bf16.msra.mxu0 %v5291
      %5305 = vmatprep.subr.bf16.mxu0 0
      %5306 = vmatpush1.bf16.msra.mxu0 %v5290
      %5307 = vmatprep.subr.bf16.mxu0 0
      %5308 = vmatpush1.bf16.msra.mxu0 %v5289
      %5309 = vmatprep.subr.bf16.mxu0 0
      %5310 = vmatpush1.bf16.msra.mxu0 %v5288
      %5311 = vmatprep.subr.bf16.mxu0 0
      %5312 = vmatpush1.bf16.msra.mxu0 %v5287
      %5313 = vmatprep.subr.bf16.mxu0 0
      %5314 = vmatpush1.bf16.msra.mxu0 %v5286
      %5315 = vmatprep.subr.bf16.mxu0 0
      %5316 = vmatpush1.bf16.msra.mxu0 %v5285
      %5317 = vmatprep.subr.bf16.mxu0 0
      %5318 = vmatpush2.bf16.msra.mxu0 %v5300
      %5319 = vmatprep.subr.bf16.mxu0 0
      %5320 = vmatpush2.bf16.msra.mxu0 %v5299
      %5321 = vmatprep.subr.bf16.mxu0 0
      %5322 = vmatpush2.bf16.msra.mxu0 %v5298
      %5323 = vmatprep.subr.bf16.mxu0 0
      %5324 = vmatpush2.bf16.msra.mxu0 %v5297
      %5325 = vmatprep.subr.bf16.mxu0 0
      %5326 = vmatpush2.bf16.msra.mxu0 %v5296
      %5327 = vmatprep.subr.bf16.mxu0 0
      %5328 = vmatpush2.bf16.msra.mxu0 %v5295
      %5329 = vmatprep.subr.bf16.mxu0 0
      %5330 = vmatpush2.bf16.msra.mxu0 %v5294
      %5331 = vmatprep.subr.bf16.mxu0 0
      %5332 = vmatpush2.bf16.msra.mxu0 %v5293
      %5333 = vmatprep.mubr.bf16.mxu0 %v1216
      %5334 = vmatmul.mubr.bf16.gmra.mxu0 %v1215
      %v5335 = vpop.f32.mrf.mxu0
      %v5336 = vadd.f32 0.0, %v5335
      %v5337 = vpop.f32.mrf.mxu0
      %v5338 = vpop.f32.mrf.mxu0
      %v5339 = vadd.f32 0.0, %v5338
      %v5340 = vpop.f32.mrf.mxu0
      %5341 = vmatprep.mubr.bf16.mxu0 %v1218
      %5342 = vmatmul.mubr.bf16.gmra.mxu0 %v1217
      %v5343 = vpop.f32.mrf.mxu0
      %v5344 = vadd.f32 0.0, %v5343
      %v5345 = vpop.f32.mrf.mxu0
      %v5346 = vpop.f32.mrf.mxu0
      %v5347 = vadd.f32 0.0, %v5346
      %v5348 = vpop.f32.mrf.mxu0
      %5349 = vmatprep.mubr.bf16.mxu0 %v1220
      %5350 = vmatmul.mubr.bf16.gmra.mxu0 %v1219
      %v5351 = vpop.f32.mrf.mxu0
      %v5352 = vadd.f32 0.0, %v5351
      %v5353 = vpop.f32.mrf.mxu0
      %v5354 = vpop.f32.mrf.mxu0
      %v5355 = vadd.f32 0.0, %v5354
      %v5356 = vpop.f32.mrf.mxu0
      %5357 = vmatprep.mubr.bf16.mxu0 %v1222
      %5358 = vmatmul.mubr.bf16.gmra.mxu0 %v1221
      %v5359 = vpop.f32.mrf.mxu0
      %v5360 = vadd.f32 0.0, %v5359
      %v5361 = vpop.f32.mrf.mxu0
      %v5362 = vpop.f32.mrf.mxu0
      %v5363 = vadd.f32 0.0, %v5362
      %v5364 = vpop.f32.mrf.mxu0
      %5365 = vmatprep.mubr.bf16.mxu0 %v1224
      %5366 = vmatmul.mubr.bf16.gmra.mxu0 %v1223
      %v5367 = vpop.f32.mrf.mxu0
      %v5368 = vadd.f32 0.0, %v5367
      %v5369 = vpop.f32.mrf.mxu0
      %v5370 = vpop.f32.mrf.mxu0
      %v5371 = vadd.f32 0.0, %v5370
      %v5372 = vpop.f32.mrf.mxu0
      %5373 = vmatprep.mubr.bf16.mxu0 %v1226
      %5374 = vmatmul.mubr.bf16.gmra.mxu0 %v1225
      %v5375 = vpop.f32.mrf.mxu0
      %v5376 = vadd.f32 0.0, %v5375
      %v5377 = vpop.f32.mrf.mxu0
      %v5378 = vpop.f32.mrf.mxu0
      %v5379 = vadd.f32 0.0, %v5378
      %v5380 = vpop.f32.mrf.mxu0
      %5381 = vmatprep.mubr.bf16.mxu0 %v1228
      %5382 = vmatmul.mubr.bf16.gmra.mxu0 %v1227
      %v5383 = vpop.f32.mrf.mxu0
      %v5384 = vadd.f32 0.0, %v5383
      %v5385 = vpop.f32.mrf.mxu0
      %v5386 = vpop.f32.mrf.mxu0
      %v5387 = vadd.f32 0.0, %v5386
      %v5388 = vpop.f32.mrf.mxu0
      %5389 = vmatprep.mubr.bf16.mxu0 %v1230
      %5390 = vmatmul.mubr.bf16.gmra.mxu0 %v1229
      %v5391 = vpop.f32.mrf.mxu0
      %v5392 = vadd.f32 0.0, %v5391
      %v5393 = vpop.f32.mrf.mxu0
      %v5394 = vpop.f32.mrf.mxu0
      %v5395 = vadd.f32 0.0, %v5394
      %v5396 = vpop.f32.mrf.mxu0
      %5397 = vmatprep.mubr.bf16.mxu0 %v1232
      %5398 = vmatmul.mubr.bf16.gmra.mxu0 %v1231
      %v5399 = vpop.f32.mrf.mxu0
      %v5400 = vadd.f32 0.0, %v5399
      %v5401 = vpop.f32.mrf.mxu0
      %v5402 = vpop.f32.mrf.mxu0
      %v5403 = vadd.f32 0.0, %v5402
      %v5404 = vpop.f32.mrf.mxu0
      %5405 = vmatprep.mubr.bf16.mxu0 %v1234
      %5406 = vmatmul.mubr.bf16.gmra.mxu0 %v1233
      %v5407 = vpop.f32.mrf.mxu0
      %v5408 = vadd.f32 0.0, %v5407
      %v5409 = vpop.f32.mrf.mxu0
      %v5410 = vpop.f32.mrf.mxu0
      %v5411 = vadd.f32 0.0, %v5410
      %v5412 = vpop.f32.mrf.mxu0
      %5413 = vmatprep.mubr.bf16.mxu0 %v1236
      %5414 = vmatmul.mubr.bf16.gmra.mxu0 %v1235
      %v5415 = vpop.f32.mrf.mxu0
      %v5416 = vadd.f32 0.0, %v5415
      %v5417 = vpop.f32.mrf.mxu0
      %v5418 = vpop.f32.mrf.mxu0
      %v5419 = vadd.f32 0.0, %v5418
      %v5420 = vpop.f32.mrf.mxu0
      %5421 = vmatprep.mubr.bf16.mxu0 %v1238
      %5422 = vmatmul.mubr.bf16.gmra.mxu0 %v1237
      %v5423 = vpop.f32.mrf.mxu0
      %v5424 = vadd.f32 0.0, %v5423
      %v5425 = vpop.f32.mrf.mxu0
      %v5426 = vpop.f32.mrf.mxu0
      %v5427 = vadd.f32 0.0, %v5426
      %v5428 = vpop.f32.mrf.mxu0
      %5429 = vmatprep.mubr.bf16.mxu0 %v1240
      %5430 = vmatmul.mubr.bf16.gmra.mxu0 %v1239
      %v5431 = vpop.f32.mrf.mxu0
      %v5432 = vadd.f32 0.0, %v5431
      %v5433 = vpop.f32.mrf.mxu0
      %v5434 = vpop.f32.mrf.mxu0
      %v5435 = vadd.f32 0.0, %v5434
      %v5436 = vpop.f32.mrf.mxu0
      %5437 = vmatprep.mubr.bf16.mxu0 %v1242
      %5438 = vmatmul.mubr.bf16.gmra.mxu0 %v1241
      %v5439 = vpop.f32.mrf.mxu0
      %v5440 = vadd.f32 0.0, %v5439
      %v5441 = vpop.f32.mrf.mxu0
      %v5442 = vpop.f32.mrf.mxu0
      %v5443 = vadd.f32 0.0, %v5442
      %v5444 = vpop.f32.mrf.mxu0
      %5445 = vmatprep.mubr.bf16.mxu0 %v1244
      %5446 = vmatmul.mubr.bf16.gmra.mxu0 %v1243
      %v5447 = vpop.f32.mrf.mxu0
      %v5448 = vadd.f32 0.0, %v5447
      %v5449 = vpop.f32.mrf.mxu0
      %v5450 = vpop.f32.mrf.mxu0
      %v5451 = vadd.f32 0.0, %v5450
      %v5452 = vpop.f32.mrf.mxu0
      %5453 = vmatprep.mubr.bf16.mxu0 %v1246
      %5454 = vmatmul.mubr.bf16.gmra.mxu0 %v1245
      %v5455 = vpop.f32.mrf.mxu0
      %v5456 = vadd.f32 0.0, %v5455
      %v5457 = vpop.f32.mrf.mxu0
      %v5458 = vpop.f32.mrf.mxu0
      %v5459 = vadd.f32 0.0, %v5458
      %v5460 = vpop.f32.mrf.mxu0
      %5461 = vdwg.mxu0
      %v5462 = vpack.c.bf16 %v5339, %v5336
      %v5463 = vpack.c.bf16 %v5347, %v5344
      %v5464 = vpack.c.bf16 %v5355, %v5352
      %v5465 = vpack.c.bf16 %v5363, %v5360
      %v5466 = vpack.c.bf16 %v5371, %v5368
      %v5467 = vpack.c.bf16 %v5379, %v5376
      %v5468 = vpack.c.bf16 %v5387, %v5384
      %v5469 = vpack.c.bf16 %v5395, %v5392
      %v5470 = vpack.c.bf16 %v5403, %v5400
      %v5471 = vpack.c.bf16 %v5411, %v5408
      %v5472 = vpack.c.bf16 %v5419, %v5416
      %v5473 = vpack.c.bf16 %v5427, %v5424
      %v5474 = vpack.c.bf16 %v5435, %v5432
      %v5475 = vpack.c.bf16 %v5443, %v5440
      %v5476 = vpack.c.bf16 %v5451, %v5448
      %v5477 = vpack.c.bf16 %v5459, %v5456
      %v5479 = vsel %vm893, %v5462, 0
      %v5482 = vsel %vm893, %v5463, 0
      %v5485 = vsel %vm893, %v5464, 0
      %v5488 = vsel %vm893, %v5465, 0
      %v5491 = vsel %vm893, %v5466, 0
      %v5494 = vsel %vm893, %v5467, 0
      %v5497 = vsel %vm893, %v5468, 0
      %v5500 = vsel %vm893, %v5469, 0
      %v5503 = vsel %vm893, %v5470, 0
      %v5506 = vsel %vm893, %v5471, 0
      %v5509 = vsel %vm893, %v5472, 0
      %v5512 = vsel %vm893, %v5473, 0
      %v5515 = vsel %vm893, %v5474, 0
      %v5518 = vsel %vm893, %v5475, 0
      %v5521 = vsel %vm893, %v5476, 0
      %v5524 = vsel %vm893, %v5477, 0
      %5526 = vmatprep.subr.bf16.mxu0 0
      %5527 = vmatpush1.bf16.msra.mxu0 0
      %5528 = vmatprep.subr.bf16.mxu0 0
      %5529 = vmatpush1.bf16.msra.mxu0 0
      %5530 = vmatprep.subr.bf16.mxu0 0
      %5531 = vmatpush1.bf16.msra.mxu0 0
      %5532 = vmatprep.subr.bf16.mxu0 0
      %5533 = vmatpush1.bf16.msra.mxu0 0
      %5534 = vmatprep.subr.bf16.mxu0 0
      %5535 = vmatpush1.bf16.msra.mxu0 0
      %5536 = vmatprep.subr.bf16.mxu0 0
      %5537 = vmatpush1.bf16.msra.mxu0 0
      %5538 = vmatprep.subr.bf16.mxu0 0
      %5539 = vmatpush1.bf16.msra.mxu0 0
      %5540 = vmatprep.subr.bf16.mxu0 %v1467
      %5541 = vmatpush1.bf16.msra.mxu0 %v1466
      %5542 = vmatprep.subr.bf16.mxu0 0
      %5543 = vmatpush2.bf16.msra.mxu0 0
      %5544 = vmatprep.subr.bf16.mxu0 0
      %5545 = vmatpush2.bf16.msra.mxu0 0
      %5546 = vmatprep.subr.bf16.mxu0 0
      %5547 = vmatpush2.bf16.msra.mxu0 0
      %5548 = vmatprep.subr.bf16.mxu0 0
      %5549 = vmatpush2.bf16.msra.mxu0 0
      %5550 = vmatprep.subr.bf16.mxu0 0
      %5551 = vmatpush2.bf16.msra.mxu0 0
      %5552 = vmatprep.subr.bf16.mxu0 0
      %5553 = vmatpush2.bf16.msra.mxu0 0
      %5554 = vmatprep.subr.bf16.mxu0 0
      %5555 = vmatpush2.bf16.msra.mxu0 0
      %5556 = vmatprep.subr.bf16.mxu0 0
      %5557 = vmatpush2.bf16.msra.mxu0 0
      %5558 = vmatprep.mubr.bf16.mxu0 0
      %5559 = vmatmul.mubr.bf16.gmra.mxu0 %v5479
      %v5560 = vpop.f32.mrf.mxu0
      %v5561 = vadd.f32 0.0, %v5560
      %v5562 = vpop.f32.mrf.mxu0
      %v5563 = vadd.f32 0.0, %v5562
      %v5564 = vpop.f32.mrf.mxu0
      %v5565 = vadd.f32 0.0, %v5564
      %v5566 = vpop.f32.mrf.mxu0
      %v5567 = vadd.f32 0.0, %v5566
      %5568 = vmatprep.mubr.bf16.mxu0 0
      %5569 = vmatmul.mubr.bf16.gmra.mxu0 %v5482
      %v5570 = vpop.f32.mrf.mxu0
      %v5571 = vadd.f32 0.0, %v5570
      %v5572 = vpop.f32.mrf.mxu0
      %v5573 = vadd.f32 0.0, %v5572
      %v5574 = vpop.f32.mrf.mxu0
      %v5575 = vadd.f32 0.0, %v5574
      %v5576 = vpop.f32.mrf.mxu0
      %v5577 = vadd.f32 0.0, %v5576
      %5578 = vmatprep.mubr.bf16.mxu0 0
      %5579 = vmatmul.mubr.bf16.gmra.mxu0 %v5485
      %v5580 = vpop.f32.mrf.mxu0
      %v5581 = vadd.f32 0.0, %v5580
      %v5582 = vpop.f32.mrf.mxu0
      %v5583 = vadd.f32 0.0, %v5582
      %v5584 = vpop.f32.mrf.mxu0
      %v5585 = vadd.f32 0.0, %v5584
      %v5586 = vpop.f32.mrf.mxu0
      %v5587 = vadd.f32 0.0, %v5586
      %5588 = vmatprep.mubr.bf16.mxu0 0
      %5589 = vmatmul.mubr.bf16.gmra.mxu0 %v5488
      %v5590 = vpop.f32.mrf.mxu0
      %v5591 = vadd.f32 0.0, %v5590
      %v5592 = vpop.f32.mrf.mxu0
      %v5593 = vadd.f32 0.0, %v5592
      %v5594 = vpop.f32.mrf.mxu0
      %v5595 = vadd.f32 0.0, %v5594
      %v5596 = vpop.f32.mrf.mxu0
      %v5597 = vadd.f32 0.0, %v5596
      %5598 = vmatprep.mubr.bf16.mxu0 0
      %5599 = vmatmul.mubr.bf16.gmra.mxu0 %v5491
      %v5600 = vpop.f32.mrf.mxu0
      %v5601 = vadd.f32 0.0, %v5600
      %v5602 = vpop.f32.mrf.mxu0
      %v5603 = vadd.f32 0.0, %v5602
      %v5604 = vpop.f32.mrf.mxu0
      %v5605 = vadd.f32 0.0, %v5604
      %v5606 = vpop.f32.mrf.mxu0
      %v5607 = vadd.f32 0.0, %v5606
      %5608 = vmatprep.mubr.bf16.mxu0 0
      %5609 = vmatmul.mubr.bf16.gmra.mxu0 %v5494
      %v5610 = vpop.f32.mrf.mxu0
      %v5611 = vadd.f32 0.0, %v5610
      %v5612 = vpop.f32.mrf.mxu0
      %v5613 = vadd.f32 0.0, %v5612
      %v5614 = vpop.f32.mrf.mxu0
      %v5615 = vadd.f32 0.0, %v5614
      %v5616 = vpop.f32.mrf.mxu0
      %v5617 = vadd.f32 0.0, %v5616
      %5618 = vmatprep.mubr.bf16.mxu0 0
      %5619 = vmatmul.mubr.bf16.gmra.mxu0 %v5497
      %v5620 = vpop.f32.mrf.mxu0
      %v5621 = vadd.f32 0.0, %v5620
      %v5622 = vpop.f32.mrf.mxu0
      %v5623 = vadd.f32 0.0, %v5622
      %v5624 = vpop.f32.mrf.mxu0
      %v5625 = vadd.f32 0.0, %v5624
      %v5626 = vpop.f32.mrf.mxu0
      %v5627 = vadd.f32 0.0, %v5626
      %5628 = vmatprep.mubr.bf16.mxu0 0
      %5629 = vmatmul.mubr.bf16.gmra.mxu0 %v5500
      %v5630 = vpop.f32.mrf.mxu0
      %v5631 = vadd.f32 0.0, %v5630
      %v5632 = vpop.f32.mrf.mxu0
      %v5633 = vadd.f32 0.0, %v5632
      %v5634 = vpop.f32.mrf.mxu0
      %v5635 = vadd.f32 0.0, %v5634
      %v5636 = vpop.f32.mrf.mxu0
      %v5637 = vadd.f32 0.0, %v5636
      %5638 = vmatprep.mubr.bf16.mxu0 0
      %5639 = vmatmul.mubr.bf16.gmra.mxu0 %v5503
      %v5640 = vpop.f32.mrf.mxu0
      %v5641 = vadd.f32 0.0, %v5640
      %v5642 = vpop.f32.mrf.mxu0
      %v5643 = vadd.f32 0.0, %v5642
      %v5644 = vpop.f32.mrf.mxu0
      %v5645 = vadd.f32 0.0, %v5644
      %v5646 = vpop.f32.mrf.mxu0
      %v5647 = vadd.f32 0.0, %v5646
      %5648 = vmatprep.mubr.bf16.mxu0 0
      %5649 = vmatmul.mubr.bf16.gmra.mxu0 %v5506
      %v5650 = vpop.f32.mrf.mxu0
      %v5651 = vadd.f32 0.0, %v5650
      %v5652 = vpop.f32.mrf.mxu0
      %v5653 = vadd.f32 0.0, %v5652
      %v5654 = vpop.f32.mrf.mxu0
      %v5655 = vadd.f32 0.0, %v5654
      %v5656 = vpop.f32.mrf.mxu0
      %v5657 = vadd.f32 0.0, %v5656
      %5658 = vmatprep.mubr.bf16.mxu0 0
      %5659 = vmatmul.mubr.bf16.gmra.mxu0 %v5509
      %v5660 = vpop.f32.mrf.mxu0
      %v5661 = vadd.f32 0.0, %v5660
      %v5662 = vpop.f32.mrf.mxu0
      %v5663 = vadd.f32 0.0, %v5662
      %v5664 = vpop.f32.mrf.mxu0
      %v5665 = vadd.f32 0.0, %v5664
      %v5666 = vpop.f32.mrf.mxu0
      %v5667 = vadd.f32 0.0, %v5666
      %5668 = vmatprep.mubr.bf16.mxu0 0
      %5669 = vmatmul.mubr.bf16.gmra.mxu0 %v5512
      %v5670 = vpop.f32.mrf.mxu0
      %v5671 = vadd.f32 0.0, %v5670
      %v5672 = vpop.f32.mrf.mxu0
      %v5673 = vadd.f32 0.0, %v5672
      %v5674 = vpop.f32.mrf.mxu0
      %v5675 = vadd.f32 0.0, %v5674
      %v5676 = vpop.f32.mrf.mxu0
      %v5677 = vadd.f32 0.0, %v5676
      %5678 = vmatprep.mubr.bf16.mxu0 0
      %5679 = vmatmul.mubr.bf16.gmra.mxu0 %v5515
      %v5680 = vpop.f32.mrf.mxu0
      %v5681 = vadd.f32 0.0, %v5680
      %v5682 = vpop.f32.mrf.mxu0
      %v5683 = vadd.f32 0.0, %v5682
      %v5684 = vpop.f32.mrf.mxu0
      %v5685 = vadd.f32 0.0, %v5684
      %v5686 = vpop.f32.mrf.mxu0
      %v5687 = vadd.f32 0.0, %v5686
      %5688 = vmatprep.mubr.bf16.mxu0 0
      %5689 = vmatmul.mubr.bf16.gmra.mxu0 %v5518
      %v5690 = vpop.f32.mrf.mxu0
      %v5691 = vadd.f32 0.0, %v5690
      %v5692 = vpop.f32.mrf.mxu0
      %v5693 = vadd.f32 0.0, %v5692
      %v5694 = vpop.f32.mrf.mxu0
      %v5695 = vadd.f32 0.0, %v5694
      %v5696 = vpop.f32.mrf.mxu0
      %v5697 = vadd.f32 0.0, %v5696
      %5698 = vmatprep.mubr.bf16.mxu0 0
      %5699 = vmatmul.mubr.bf16.gmra.mxu0 %v5521
      %v5700 = vpop.f32.mrf.mxu0
      %v5701 = vadd.f32 0.0, %v5700
      %v5702 = vpop.f32.mrf.mxu0
      %v5703 = vadd.f32 0.0, %v5702
      %v5704 = vpop.f32.mrf.mxu0
      %v5705 = vadd.f32 0.0, %v5704
      %v5706 = vpop.f32.mrf.mxu0
      %v5707 = vadd.f32 0.0, %v5706
      %5708 = vmatprep.mubr.bf16.mxu0 0
      %5709 = vmatmul.mubr.bf16.gmra.mxu0 %v5524
      %v5710 = vpop.f32.mrf.mxu0
      %v5711 = vadd.f32 0.0, %v5710
      %v5712 = vpop.f32.mrf.mxu0
      %v5713 = vadd.f32 0.0, %v5712
      %v5714 = vpop.f32.mrf.mxu0
      %v5715 = vadd.f32 0.0, %v5714
      %v5716 = vpop.f32.mrf.mxu0
      %v5717 = vadd.f32 0.0, %v5716
      %5718 = vdwg.mxu0
      %5719 = vmatprep.subr.bf16.mxu0 0
      %5720 = vmatpush1.bf16.msra.mxu0 0
      %5721 = vmatprep.subr.bf16.mxu0 0
      %5722 = vmatpush1.bf16.msra.mxu0 0
      %5723 = vmatprep.subr.bf16.mxu0 0
      %5724 = vmatpush1.bf16.msra.mxu0 0
      %5725 = vmatprep.subr.bf16.mxu0 0
      %5726 = vmatpush1.bf16.msra.mxu0 0
      %5727 = vmatprep.subr.bf16.mxu0 0
      %5728 = vmatpush1.bf16.msra.mxu0 0
      %5729 = vmatprep.subr.bf16.mxu0 0
      %5730 = vmatpush1.bf16.msra.mxu0 0
      %5731 = vmatprep.subr.bf16.mxu0 0
      %5732 = vmatpush1.bf16.msra.mxu0 0
      %5733 = vmatprep.subr.bf16.mxu0 0
      %5734 = vmatpush1.bf16.msra.mxu0 %v1468
      %5735 = vmatprep.subr.bf16.mxu0 0
      %5736 = vmatpush2.bf16.msra.mxu0 0
      %5737 = vmatprep.subr.bf16.mxu0 0
      %5738 = vmatpush2.bf16.msra.mxu0 0
      %5739 = vmatprep.subr.bf16.mxu0 0
      %5740 = vmatpush2.bf16.msra.mxu0 0
      %5741 = vmatprep.subr.bf16.mxu0 0
      %5742 = vmatpush2.bf16.msra.mxu0 0
      %5743 = vmatprep.subr.bf16.mxu0 0
      %5744 = vmatpush2.bf16.msra.mxu0 0
      %5745 = vmatprep.subr.bf16.mxu0 0
      %5746 = vmatpush2.bf16.msra.mxu0 0
      %5747 = vmatprep.subr.bf16.mxu0 0
      %5748 = vmatpush2.bf16.msra.mxu0 0
      %5749 = vmatprep.subr.bf16.mxu0 0
      %5750 = vmatpush2.bf16.msra.mxu0 0
      %5751 = vmatprep.mubr.bf16.mxu0 0
      %5752 = vmatmul.mubr.bf16.gmra.mxu0 %v5479
      %v5753 = vpop.f32.mrf.mxu0
      %v5754 = vadd.f32 0.0, %v5753
      %v5755 = vpop.f32.mrf.mxu0
      %v5756 = vpop.f32.mrf.mxu0
      %v5757 = vadd.f32 0.0, %v5756
      %v5758 = vpop.f32.mrf.mxu0
      %5759 = vmatprep.mubr.bf16.mxu0 0
      %5760 = vmatmul.mubr.bf16.gmra.mxu0 %v5482
      %v5761 = vpop.f32.mrf.mxu0
      %v5762 = vadd.f32 0.0, %v5761
      %v5763 = vpop.f32.mrf.mxu0
      %v5764 = vpop.f32.mrf.mxu0
      %v5765 = vadd.f32 0.0, %v5764
      %v5766 = vpop.f32.mrf.mxu0
      %5767 = vmatprep.mubr.bf16.mxu0 0
      %5768 = vmatmul.mubr.bf16.gmra.mxu0 %v5485
      %v5769 = vpop.f32.mrf.mxu0
      %v5770 = vadd.f32 0.0, %v5769
      %v5771 = vpop.f32.mrf.mxu0
      %v5772 = vpop.f32.mrf.mxu0
      %v5773 = vadd.f32 0.0, %v5772
      %v5774 = vpop.f32.mrf.mxu0
      %5775 = vmatprep.mubr.bf16.mxu0 0
      %5776 = vmatmul.mubr.bf16.gmra.mxu0 %v5488
      %v5777 = vpop.f32.mrf.mxu0
      %v5778 = vadd.f32 0.0, %v5777
      %v5779 = vpop.f32.mrf.mxu0
      %v5780 = vpop.f32.mrf.mxu0
      %v5781 = vadd.f32 0.0, %v5780
      %v5782 = vpop.f32.mrf.mxu0
      %5783 = vmatprep.mubr.bf16.mxu0 0
      %5784 = vmatmul.mubr.bf16.gmra.mxu0 %v5491
      %v5785 = vpop.f32.mrf.mxu0
      %v5786 = vadd.f32 0.0, %v5785
      %v5787 = vpop.f32.mrf.mxu0
      %v5788 = vpop.f32.mrf.mxu0
      %v5789 = vadd.f32 0.0, %v5788
      %v5790 = vpop.f32.mrf.mxu0
      %5791 = vmatprep.mubr.bf16.mxu0 0
      %5792 = vmatmul.mubr.bf16.gmra.mxu0 %v5494
      %v5793 = vpop.f32.mrf.mxu0
      %v5794 = vadd.f32 0.0, %v5793
      %v5795 = vpop.f32.mrf.mxu0
      %v5796 = vpop.f32.mrf.mxu0
      %v5797 = vadd.f32 0.0, %v5796
      %v5798 = vpop.f32.mrf.mxu0
      %5799 = vmatprep.mubr.bf16.mxu0 0
      %5800 = vmatmul.mubr.bf16.gmra.mxu0 %v5497
      %v5801 = vpop.f32.mrf.mxu0
      %v5802 = vadd.f32 0.0, %v5801
      %v5803 = vpop.f32.mrf.mxu0
      %v5804 = vpop.f32.mrf.mxu0
      %v5805 = vadd.f32 0.0, %v5804
      %v5806 = vpop.f32.mrf.mxu0
      %5807 = vmatprep.mubr.bf16.mxu0 0
      %5808 = vmatmul.mubr.bf16.gmra.mxu0 %v5500
      %v5809 = vpop.f32.mrf.mxu0
      %v5810 = vadd.f32 0.0, %v5809
      %v5811 = vpop.f32.mrf.mxu0
      %v5812 = vpop.f32.mrf.mxu0
      %v5813 = vadd.f32 0.0, %v5812
      %v5814 = vpop.f32.mrf.mxu0
      %5815 = vmatprep.mubr.bf16.mxu0 0
      %5816 = vmatmul.mubr.bf16.gmra.mxu0 %v5503
      %v5817 = vpop.f32.mrf.mxu0
      %v5818 = vadd.f32 0.0, %v5817
      %v5819 = vpop.f32.mrf.mxu0
      %v5820 = vpop.f32.mrf.mxu0
      %v5821 = vadd.f32 0.0, %v5820
      %v5822 = vpop.f32.mrf.mxu0
      %5823 = vmatprep.mubr.bf16.mxu0 0
      %5824 = vmatmul.mubr.bf16.gmra.mxu0 %v5506
      %v5825 = vpop.f32.mrf.mxu0
      %v5826 = vadd.f32 0.0, %v5825
      %v5827 = vpop.f32.mrf.mxu0
      %v5828 = vpop.f32.mrf.mxu0
      %v5829 = vadd.f32 0.0, %v5828
      %v5830 = vpop.f32.mrf.mxu0
      %5831 = vmatprep.mubr.bf16.mxu0 0
      %5832 = vmatmul.mubr.bf16.gmra.mxu0 %v5509
      %v5833 = vpop.f32.mrf.mxu0
      %v5834 = vadd.f32 0.0, %v5833
      %v5835 = vpop.f32.mrf.mxu0
      %v5836 = vpop.f32.mrf.mxu0
      %v5837 = vadd.f32 0.0, %v5836
      %v5838 = vpop.f32.mrf.mxu0
      %5839 = vmatprep.mubr.bf16.mxu0 0
      %5840 = vmatmul.mubr.bf16.gmra.mxu0 %v5512
      %v5841 = vpop.f32.mrf.mxu0
      %v5842 = vadd.f32 0.0, %v5841
      %v5843 = vpop.f32.mrf.mxu0
      %v5844 = vpop.f32.mrf.mxu0
      %v5845 = vadd.f32 0.0, %v5844
      %v5846 = vpop.f32.mrf.mxu0
      %5847 = vmatprep.mubr.bf16.mxu0 0
      %5848 = vmatmul.mubr.bf16.gmra.mxu0 %v5515
      %v5849 = vpop.f32.mrf.mxu0
      %v5850 = vadd.f32 0.0, %v5849
      %v5851 = vpop.f32.mrf.mxu0
      %v5852 = vpop.f32.mrf.mxu0
      %v5853 = vadd.f32 0.0, %v5852
      %v5854 = vpop.f32.mrf.mxu0
      %5855 = vmatprep.mubr.bf16.mxu0 0
      %5856 = vmatmul.mubr.bf16.gmra.mxu0 %v5518
      %v5857 = vpop.f32.mrf.mxu0
      %v5858 = vadd.f32 0.0, %v5857
      %v5859 = vpop.f32.mrf.mxu0
      %v5860 = vpop.f32.mrf.mxu0
      %v5861 = vadd.f32 0.0, %v5860
      %v5862 = vpop.f32.mrf.mxu0
      %5863 = vmatprep.mubr.bf16.mxu0 0
      %5864 = vmatmul.mubr.bf16.gmra.mxu0 %v5521
      %v5865 = vpop.f32.mrf.mxu0
      %v5866 = vadd.f32 0.0, %v5865
      %v5867 = vpop.f32.mrf.mxu0
      %v5868 = vpop.f32.mrf.mxu0
      %v5869 = vadd.f32 0.0, %v5868
      %v5870 = vpop.f32.mrf.mxu0
      %5871 = vmatprep.mubr.bf16.mxu0 0
      %5872 = vmatmul.mubr.bf16.gmra.mxu0 %v5524
      %v5873 = vpop.f32.mrf.mxu0
      %v5874 = vadd.f32 0.0, %v5873
      %v5875 = vpop.f32.mrf.mxu0
      %v5876 = vpop.f32.mrf.mxu0
      %v5877 = vadd.f32 0.0, %v5876
      %v5878 = vpop.f32.mrf.mxu0
      %5879 = vdwg.mxu0
      %5880 = vmatprep.subr.bf16.mxu0 0
      %5881 = vmatpush1.bf16.msra.mxu0 0
      %5882 = vmatprep.subr.bf16.mxu0 0
      %5883 = vmatpush1.bf16.msra.mxu0 0
      %5884 = vmatprep.subr.bf16.mxu0 0
      %5885 = vmatpush1.bf16.msra.mxu0 0
      %5886 = vmatprep.subr.bf16.mxu0 0
      %5887 = vmatpush1.bf16.msra.mxu0 0
      %5888 = vmatprep.subr.bf16.mxu0 0
      %5889 = vmatpush1.bf16.msra.mxu0 0
      %5890 = vmatprep.subr.bf16.mxu0 0
      %5891 = vmatpush1.bf16.msra.mxu0 0
      %5892 = vmatprep.subr.bf16.mxu0 0
      %5893 = vmatpush1.bf16.msra.mxu0 0
      %5894 = vmatprep.subr.bf16.mxu0 %v1885
      %5895 = vmatpush1.bf16.msra.mxu0 %v1884
      %5896 = vmatprep.subr.bf16.mxu0 0
      %5897 = vmatpush2.bf16.msra.mxu0 0
      %5898 = vmatprep.subr.bf16.mxu0 0
      %5899 = vmatpush2.bf16.msra.mxu0 0
      %5900 = vmatprep.subr.bf16.mxu0 0
      %5901 = vmatpush2.bf16.msra.mxu0 0
      %5902 = vmatprep.subr.bf16.mxu0 0
      %5903 = vmatpush2.bf16.msra.mxu0 0
      %5904 = vmatprep.subr.bf16.mxu0 0
      %5905 = vmatpush2.bf16.msra.mxu0 0
      %5906 = vmatprep.subr.bf16.mxu0 0
      %5907 = vmatpush2.bf16.msra.mxu0 0
      %5908 = vmatprep.subr.bf16.mxu0 0
      %5909 = vmatpush2.bf16.msra.mxu0 0
      %5910 = vmatprep.subr.bf16.mxu0 0
      %5911 = vmatpush2.bf16.msra.mxu0 0
      %5912 = vmatprep.mubr.bf16.mxu0 0
      %5913 = vmatmul.mubr.bf16.gmra.mxu0 %v5077
      %v5914 = vpop.f32.mrf.mxu0
      %v5915 = vadd.f32 0.0, %v5914
      %v5916 = vpop.f32.mrf.mxu0
      %v5917 = vadd.f32 0.0, %v5916
      %v5918 = vpop.f32.mrf.mxu0
      %v5919 = vadd.f32 0.0, %v5918
      %v5920 = vpop.f32.mrf.mxu0
      %v5921 = vadd.f32 0.0, %v5920
      %5922 = vmatprep.mubr.bf16.mxu0 0
      %5923 = vmatmul.mubr.bf16.gmra.mxu0 %v5080
      %v5924 = vpop.f32.mrf.mxu0
      %v5925 = vadd.f32 0.0, %v5924
      %v5926 = vpop.f32.mrf.mxu0
      %v5927 = vadd.f32 0.0, %v5926
      %v5928 = vpop.f32.mrf.mxu0
      %v5929 = vadd.f32 0.0, %v5928
      %v5930 = vpop.f32.mrf.mxu0
      %v5931 = vadd.f32 0.0, %v5930
      %5932 = vmatprep.mubr.bf16.mxu0 0
      %5933 = vmatmul.mubr.bf16.gmra.mxu0 %v5083
      %v5934 = vpop.f32.mrf.mxu0
      %v5935 = vadd.f32 0.0, %v5934
      %v5936 = vpop.f32.mrf.mxu0
      %v5937 = vadd.f32 0.0, %v5936
      %v5938 = vpop.f32.mrf.mxu0
      %v5939 = vadd.f32 0.0, %v5938
      %v5940 = vpop.f32.mrf.mxu0
      %v5941 = vadd.f32 0.0, %v5940
      %5942 = vmatprep.mubr.bf16.mxu0 0
      %5943 = vmatmul.mubr.bf16.gmra.mxu0 %v5086
      %v5944 = vpop.f32.mrf.mxu0
      %v5945 = vadd.f32 0.0, %v5944
      %v5946 = vpop.f32.mrf.mxu0
      %v5947 = vadd.f32 0.0, %v5946
      %v5948 = vpop.f32.mrf.mxu0
      %v5949 = vadd.f32 0.0, %v5948
      %v5950 = vpop.f32.mrf.mxu0
      %v5951 = vadd.f32 0.0, %v5950
      %5952 = vmatprep.mubr.bf16.mxu0 0
      %5953 = vmatmul.mubr.bf16.gmra.mxu0 %v5089
      %v5954 = vpop.f32.mrf.mxu0
      %v5955 = vadd.f32 0.0, %v5954
      %v5956 = vpop.f32.mrf.mxu0
      %v5957 = vadd.f32 0.0, %v5956
      %v5958 = vpop.f32.mrf.mxu0
      %v5959 = vadd.f32 0.0, %v5958
      %v5960 = vpop.f32.mrf.mxu0
      %v5961 = vadd.f32 0.0, %v5960
      %5962 = vmatprep.mubr.bf16.mxu0 0
      %5963 = vmatmul.mubr.bf16.gmra.mxu0 %v5092
      %v5964 = vpop.f32.mrf.mxu0
      %v5965 = vadd.f32 0.0, %v5964
      %v5966 = vpop.f32.mrf.mxu0
      %v5967 = vadd.f32 0.0, %v5966
      %v5968 = vpop.f32.mrf.mxu0
      %v5969 = vadd.f32 0.0, %v5968
      %v5970 = vpop.f32.mrf.mxu0
      %v5971 = vadd.f32 0.0, %v5970
      %5972 = vmatprep.mubr.bf16.mxu0 0
      %5973 = vmatmul.mubr.bf16.gmra.mxu0 %v5095
      %v5974 = vpop.f32.mrf.mxu0
      %v5975 = vadd.f32 0.0, %v5974
      %v5976 = vpop.f32.mrf.mxu0
      %v5977 = vadd.f32 0.0, %v5976
      %v5978 = vpop.f32.mrf.mxu0
      %v5979 = vadd.f32 0.0, %v5978
      %v5980 = vpop.f32.mrf.mxu0
      %v5981 = vadd.f32 0.0, %v5980
      %5982 = vmatprep.mubr.bf16.mxu0 0
      %5983 = vmatmul.mubr.bf16.gmra.mxu0 %v5098
      %v5984 = vpop.f32.mrf.mxu0
      %v5985 = vadd.f32 0.0, %v5984
      %v5986 = vpop.f32.mrf.mxu0
      %v5987 = vadd.f32 0.0, %v5986
      %v5988 = vpop.f32.mrf.mxu0
      %v5989 = vadd.f32 0.0, %v5988
      %v5990 = vpop.f32.mrf.mxu0
      %v5991 = vadd.f32 0.0, %v5990
      %5992 = vmatprep.mubr.bf16.mxu0 0
      %5993 = vmatmul.mubr.bf16.gmra.mxu0 %v5101
      %v5994 = vpop.f32.mrf.mxu0
      %v5995 = vadd.f32 0.0, %v5994
      %v5996 = vpop.f32.mrf.mxu0
      %v5997 = vadd.f32 0.0, %v5996
      %v5998 = vpop.f32.mrf.mxu0
      %v5999 = vadd.f32 0.0, %v5998
      %v6000 = vpop.f32.mrf.mxu0
      %v6001 = vadd.f32 0.0, %v6000
      %6002 = vmatprep.mubr.bf16.mxu0 0
      %6003 = vmatmul.mubr.bf16.gmra.mxu0 %v5104
      %v6004 = vpop.f32.mrf.mxu0
      %v6005 = vadd.f32 0.0, %v6004
      %v6006 = vpop.f32.mrf.mxu0
      %v6007 = vadd.f32 0.0, %v6006
      %v6008 = vpop.f32.mrf.mxu0
      %v6009 = vadd.f32 0.0, %v6008
      %v6010 = vpop.f32.mrf.mxu0
      %v6011 = vadd.f32 0.0, %v6010
      %6012 = vmatprep.mubr.bf16.mxu0 0
      %6013 = vmatmul.mubr.bf16.gmra.mxu0 %v5107
      %v6014 = vpop.f32.mrf.mxu0
      %v6015 = vadd.f32 0.0, %v6014
      %v6016 = vpop.f32.mrf.mxu0
      %v6017 = vadd.f32 0.0, %v6016
      %v6018 = vpop.f32.mrf.mxu0
      %v6019 = vadd.f32 0.0, %v6018
      %v6020 = vpop.f32.mrf.mxu0
      %v6021 = vadd.f32 0.0, %v6020
      %6022 = vmatprep.mubr.bf16.mxu0 0
      %6023 = vmatmul.mubr.bf16.gmra.mxu0 %v5110
      %v6024 = vpop.f32.mrf.mxu0
      %v6025 = vadd.f32 0.0, %v6024
      %v6026 = vpop.f32.mrf.mxu0
      %v6027 = vadd.f32 0.0, %v6026
      %v6028 = vpop.f32.mrf.mxu0
      %v6029 = vadd.f32 0.0, %v6028
      %v6030 = vpop.f32.mrf.mxu0
      %v6031 = vadd.f32 0.0, %v6030
      %6032 = vmatprep.mubr.bf16.mxu0 0
      %6033 = vmatmul.mubr.bf16.gmra.mxu0 %v5113
      %v6034 = vpop.f32.mrf.mxu0
      %v6035 = vadd.f32 0.0, %v6034
      %v6036 = vpop.f32.mrf.mxu0
      %v6037 = vadd.f32 0.0, %v6036
      %v6038 = vpop.f32.mrf.mxu0
      %v6039 = vadd.f32 0.0, %v6038
      %v6040 = vpop.f32.mrf.mxu0
      %v6041 = vadd.f32 0.0, %v6040
      %6042 = vmatprep.mubr.bf16.mxu0 0
      %6043 = vmatmul.mubr.bf16.gmra.mxu0 %v5116
      %v6044 = vpop.f32.mrf.mxu0
      %v6045 = vadd.f32 0.0, %v6044
      %v6046 = vpop.f32.mrf.mxu0
      %v6047 = vadd.f32 0.0, %v6046
      %v6048 = vpop.f32.mrf.mxu0
      %v6049 = vadd.f32 0.0, %v6048
      %v6050 = vpop.f32.mrf.mxu0
      %v6051 = vadd.f32 0.0, %v6050
      %6052 = vmatprep.mubr.bf16.mxu0 0
      %6053 = vmatmul.mubr.bf16.gmra.mxu0 %v5119
      %v6054 = vpop.f32.mrf.mxu0
      %v6055 = vadd.f32 0.0, %v6054
      %v6056 = vpop.f32.mrf.mxu0
      %v6057 = vadd.f32 0.0, %v6056
      %v6058 = vpop.f32.mrf.mxu0
      %v6059 = vadd.f32 0.0, %v6058
      %v6060 = vpop.f32.mrf.mxu0
      %v6061 = vadd.f32 0.0, %v6060
      %6062 = vmatprep.mubr.bf16.mxu0 0
      %6063 = vmatmul.mubr.bf16.gmra.mxu0 %v5122
      %v6064 = vpop.f32.mrf.mxu0
      %v6065 = vadd.f32 0.0, %v6064
      %v6066 = vpop.f32.mrf.mxu0
      %v6067 = vadd.f32 0.0, %v6066
      %v6068 = vpop.f32.mrf.mxu0
      %v6069 = vadd.f32 0.0, %v6068
      %v6070 = vpop.f32.mrf.mxu0
      %v6071 = vadd.f32 0.0, %v6070
      %6072 = vdwg.mxu0
      %6073 = vmatprep.subr.bf16.mxu0 0
      %6074 = vmatpush1.bf16.msra.mxu0 0
      %6075 = vmatprep.subr.bf16.mxu0 0
      %6076 = vmatpush1.bf16.msra.mxu0 0
      %6077 = vmatprep.subr.bf16.mxu0 0
      %6078 = vmatpush1.bf16.msra.mxu0 0
      %6079 = vmatprep.subr.bf16.mxu0 0
      %6080 = vmatpush1.bf16.msra.mxu0 0
      %6081 = vmatprep.subr.bf16.mxu0 0
      %6082 = vmatpush1.bf16.msra.mxu0 0
      %6083 = vmatprep.subr.bf16.mxu0 0
      %6084 = vmatpush1.bf16.msra.mxu0 0
      %6085 = vmatprep.subr.bf16.mxu0 0
      %6086 = vmatpush1.bf16.msra.mxu0 0
      %6087 = vmatprep.subr.bf16.mxu0 0
      %6088 = vmatpush1.bf16.msra.mxu0 %v1886
      %6089 = vmatprep.subr.bf16.mxu0 0
      %6090 = vmatpush2.bf16.msra.mxu0 0
      %6091 = vmatprep.subr.bf16.mxu0 0
      %6092 = vmatpush2.bf16.msra.mxu0 0
      %6093 = vmatprep.subr.bf16.mxu0 0
      %6094 = vmatpush2.bf16.msra.mxu0 0
      %6095 = vmatprep.subr.bf16.mxu0 0
      %6096 = vmatpush2.bf16.msra.mxu0 0
      %6097 = vmatprep.subr.bf16.mxu0 0
      %6098 = vmatpush2.bf16.msra.mxu0 0
      %6099 = vmatprep.subr.bf16.mxu0 0
      %6100 = vmatpush2.bf16.msra.mxu0 0
      %6101 = vmatprep.subr.bf16.mxu0 0
      %6102 = vmatpush2.bf16.msra.mxu0 0
      %6103 = vmatprep.subr.bf16.mxu0 0
      %6104 = vmatpush2.bf16.msra.mxu0 0
      %6105 = vmatprep.mubr.bf16.mxu0 0
      %6106 = vmatmul.mubr.bf16.gmra.mxu0 %v5077
      %v6107 = vpop.f32.mrf.mxu0
      %v6108 = vadd.f32 0.0, %v6107
      %v6109 = vpop.f32.mrf.mxu0
      %v6110 = vpop.f32.mrf.mxu0
      %v6111 = vadd.f32 0.0, %v6110
      %v6112 = vpop.f32.mrf.mxu0
      %6113 = vmatprep.mubr.bf16.mxu0 0
      %6114 = vmatmul.mubr.bf16.gmra.mxu0 %v5080
      %v6115 = vpop.f32.mrf.mxu0
      %v6116 = vadd.f32 0.0, %v6115
      %v6117 = vpop.f32.mrf.mxu0
      %v6118 = vpop.f32.mrf.mxu0
      %v6119 = vadd.f32 0.0, %v6118
      %v6120 = vpop.f32.mrf.mxu0
      %6121 = vmatprep.mubr.bf16.mxu0 0
      %6122 = vmatmul.mubr.bf16.gmra.mxu0 %v5083
      %v6123 = vpop.f32.mrf.mxu0
      %v6124 = vadd.f32 0.0, %v6123
      %v6125 = vpop.f32.mrf.mxu0
      %v6126 = vpop.f32.mrf.mxu0
      %v6127 = vadd.f32 0.0, %v6126
      %v6128 = vpop.f32.mrf.mxu0
      %6129 = vmatprep.mubr.bf16.mxu0 0
      %6130 = vmatmul.mubr.bf16.gmra.mxu0 %v5086
      %v6131 = vpop.f32.mrf.mxu0
      %v6132 = vadd.f32 0.0, %v6131
      %v6133 = vpop.f32.mrf.mxu0
      %v6134 = vpop.f32.mrf.mxu0
      %v6135 = vadd.f32 0.0, %v6134
      %v6136 = vpop.f32.mrf.mxu0
      %6137 = vmatprep.mubr.bf16.mxu0 0
      %6138 = vmatmul.mubr.bf16.gmra.mxu0 %v5089
      %v6139 = vpop.f32.mrf.mxu0
      %v6140 = vadd.f32 0.0, %v6139
      %v6141 = vpop.f32.mrf.mxu0
      %v6142 = vpop.f32.mrf.mxu0
      %v6143 = vadd.f32 0.0, %v6142
      %v6144 = vpop.f32.mrf.mxu0
      %6145 = vmatprep.mubr.bf16.mxu0 0
      %6146 = vmatmul.mubr.bf16.gmra.mxu0 %v5092
      %v6147 = vpop.f32.mrf.mxu0
      %v6148 = vadd.f32 0.0, %v6147
      %v6149 = vpop.f32.mrf.mxu0
      %v6150 = vpop.f32.mrf.mxu0
      %v6151 = vadd.f32 0.0, %v6150
      %v6152 = vpop.f32.mrf.mxu0
      %6153 = vmatprep.mubr.bf16.mxu0 0
      %6154 = vmatmul.mubr.bf16.gmra.mxu0 %v5095
      %v6155 = vpop.f32.mrf.mxu0
      %v6156 = vadd.f32 0.0, %v6155
      %v6157 = vpop.f32.mrf.mxu0
      %v6158 = vpop.f32.mrf.mxu0
      %v6159 = vadd.f32 0.0, %v6158
      %v6160 = vpop.f32.mrf.mxu0
      %6161 = vmatprep.mubr.bf16.mxu0 0
      %6162 = vmatmul.mubr.bf16.gmra.mxu0 %v5098
      %v6163 = vpop.f32.mrf.mxu0
      %v6164 = vadd.f32 0.0, %v6163
      %v6165 = vpop.f32.mrf.mxu0
      %v6166 = vpop.f32.mrf.mxu0
      %v6167 = vadd.f32 0.0, %v6166
      %v6168 = vpop.f32.mrf.mxu0
      %6169 = vmatprep.mubr.bf16.mxu0 0
      %6170 = vmatmul.mubr.bf16.gmra.mxu0 %v5101
      %v6171 = vpop.f32.mrf.mxu0
      %v6172 = vadd.f32 0.0, %v6171
      %v6173 = vpop.f32.mrf.mxu0
      %v6174 = vpop.f32.mrf.mxu0
      %v6175 = vadd.f32 0.0, %v6174
      %v6176 = vpop.f32.mrf.mxu0
      %6177 = vmatprep.mubr.bf16.mxu0 0
      %6178 = vmatmul.mubr.bf16.gmra.mxu0 %v5104
      %v6179 = vpop.f32.mrf.mxu0
      %v6180 = vadd.f32 0.0, %v6179
      %v6181 = vpop.f32.mrf.mxu0
      %v6182 = vpop.f32.mrf.mxu0
      %v6183 = vadd.f32 0.0, %v6182
      %v6184 = vpop.f32.mrf.mxu0
      %6185 = vmatprep.mubr.bf16.mxu0 0
      %6186 = vmatmul.mubr.bf16.gmra.mxu0 %v5107
      %v6187 = vpop.f32.mrf.mxu0
      %v6188 = vadd.f32 0.0, %v6187
      %v6189 = vpop.f32.mrf.mxu0
      %v6190 = vpop.f32.mrf.mxu0
      %v6191 = vadd.f32 0.0, %v6190
      %v6192 = vpop.f32.mrf.mxu0
      %6193 = vmatprep.mubr.bf16.mxu0 0
      %6194 = vmatmul.mubr.bf16.gmra.mxu0 %v5110
      %v6195 = vpop.f32.mrf.mxu0
      %v6196 = vadd.f32 0.0, %v6195
      %v6197 = vpop.f32.mrf.mxu0
      %v6198 = vpop.f32.mrf.mxu0
      %v6199 = vadd.f32 0.0, %v6198
      %v6200 = vpop.f32.mrf.mxu0
      %6201 = vmatprep.mubr.bf16.mxu0 0
      %6202 = vmatmul.mubr.bf16.gmra.mxu0 %v5113
      %v6203 = vpop.f32.mrf.mxu0
      %v6204 = vadd.f32 0.0, %v6203
      %v6205 = vpop.f32.mrf.mxu0
      %v6206 = vpop.f32.mrf.mxu0
      %v6207 = vadd.f32 0.0, %v6206
      %v6208 = vpop.f32.mrf.mxu0
      %6209 = vmatprep.mubr.bf16.mxu0 0
      %6210 = vmatmul.mubr.bf16.gmra.mxu0 %v5116
      %v6211 = vpop.f32.mrf.mxu0
      %v6212 = vadd.f32 0.0, %v6211
      %v6213 = vpop.f32.mrf.mxu0
      %v6214 = vpop.f32.mrf.mxu0
      %v6215 = vadd.f32 0.0, %v6214
      %v6216 = vpop.f32.mrf.mxu0
      %6217 = vmatprep.mubr.bf16.mxu0 0
      %6218 = vmatmul.mubr.bf16.gmra.mxu0 %v5119
      %v6219 = vpop.f32.mrf.mxu0
      %v6220 = vadd.f32 0.0, %v6219
      %v6221 = vpop.f32.mrf.mxu0
      %v6222 = vpop.f32.mrf.mxu0
      %v6223 = vadd.f32 0.0, %v6222
      %v6224 = vpop.f32.mrf.mxu0
      %6225 = vmatprep.mubr.bf16.mxu0 0
      %6226 = vmatmul.mubr.bf16.gmra.mxu0 %v5122
      %v6227 = vpop.f32.mrf.mxu0
      %v6228 = vadd.f32 0.0, %v6227
      %v6229 = vpop.f32.mrf.mxu0
      %v6230 = vpop.f32.mrf.mxu0
      %v6231 = vadd.f32 0.0, %v6230
      %v6232 = vpop.f32.mrf.mxu0
      %6233 = vdwg.mxu0
      %v6234 = vadd.f32 %v5561, %v5915
      %v6235 = vadd.f32 %v5565, %v5919
      %v6236 = vadd.f32 %v5571, %v5925
      %v6237 = vadd.f32 %v5575, %v5929
      %v6238 = vadd.f32 %v5581, %v5935
      %v6239 = vadd.f32 %v5585, %v5939
      %v6240 = vadd.f32 %v5591, %v5945
      %v6241 = vadd.f32 %v5595, %v5949
      %v6242 = vadd.f32 %v5601, %v5955
      %v6243 = vadd.f32 %v5605, %v5959
      %v6244 = vadd.f32 %v5611, %v5965
      %v6245 = vadd.f32 %v5615, %v5969
      %v6246 = vadd.f32 %v5621, %v5975
      %v6247 = vadd.f32 %v5625, %v5979
      %v6248 = vadd.f32 %v5631, %v5985
      %v6249 = vadd.f32 %v5635, %v5989
      %v6250 = vadd.f32 %v5641, %v5995
      %v6251 = vadd.f32 %v5645, %v5999
      %v6252 = vadd.f32 %v5651, %v6005
      %v6253 = vadd.f32 %v5655, %v6009
      %v6254 = vadd.f32 %v5661, %v6015
      %v6255 = vadd.f32 %v5665, %v6019
      %v6256 = vadd.f32 %v5671, %v6025
      %v6257 = vadd.f32 %v5675, %v6029
      %v6258 = vadd.f32 %v5681, %v6035
      %v6259 = vadd.f32 %v5685, %v6039
      %v6260 = vadd.f32 %v5691, %v6045
      %v6261 = vadd.f32 %v5695, %v6049
      %v6262 = vadd.f32 %v5701, %v6055
      %v6263 = vadd.f32 %v5705, %v6059
      %v6264 = vadd.f32 %v5711, %v6065
      %v6265 = vadd.f32 %v5715, %v6069
      %v6266 = vadd.f32 %v6234, %v2280
      %v6267 = vadd.f32 %v6235, %v2280
      %v6268 = vadd.f32 %v6236, %v2280
      %v6269 = vadd.f32 %v6237, %v2280
      %v6270 = vadd.f32 %v6238, %v2280
      %v6271 = vadd.f32 %v6239, %v2280
      %v6272 = vadd.f32 %v6240, %v2280
      %v6273 = vadd.f32 %v6241, %v2280
      %v6274 = vadd.f32 %v6242, %v2280
      %v6275 = vadd.f32 %v6243, %v2280
      %v6276 = vadd.f32 %v6244, %v2280
      %v6277 = vadd.f32 %v6245, %v2280
      %v6278 = vadd.f32 %v6246, %v2280
      %v6279 = vadd.f32 %v6247, %v2280
      %v6280 = vadd.f32 %v6248, %v2280
      %v6281 = vadd.f32 %v6249, %v2280
      %v6282 = vadd.f32 %v6250, %v2280
      %v6283 = vadd.f32 %v6251, %v2280
      %v6284 = vadd.f32 %v6252, %v2280
      %v6285 = vadd.f32 %v6253, %v2280
      %v6286 = vadd.f32 %v6254, %v2280
      %v6287 = vadd.f32 %v6255, %v2280
      %v6288 = vadd.f32 %v6256, %v2280
      %v6289 = vadd.f32 %v6257, %v2280
      %v6290 = vadd.f32 %v6258, %v2280
      %v6291 = vadd.f32 %v6259, %v2280
      %v6292 = vadd.f32 %v6260, %v2280
      %v6293 = vadd.f32 %v6261, %v2280
      %v6294 = vadd.f32 %v6262, %v2280
      %v6295 = vadd.f32 %v6263, %v2280
      %v6296 = vadd.f32 %v6264, %v2280
      %v6297 = vadd.f32 %v6265, %v2280
      %v6298 = vxor.u32 %v6266, 2147483648
      %v6299 = vxor.u32 %v6267, 2147483648
      %v6300 = vxor.u32 %v6268, 2147483648
      %v6301 = vxor.u32 %v6269, 2147483648
      %v6302 = vxor.u32 %v6270, 2147483648
      %v6303 = vxor.u32 %v6271, 2147483648
      %v6304 = vxor.u32 %v6272, 2147483648
      %v6305 = vxor.u32 %v6273, 2147483648
      %v6306 = vxor.u32 %v6274, 2147483648
      %v6307 = vxor.u32 %v6275, 2147483648
      %v6308 = vxor.u32 %v6276, 2147483648
      %v6309 = vxor.u32 %v6277, 2147483648
      %v6310 = vxor.u32 %v6278, 2147483648
      %v6311 = vxor.u32 %v6279, 2147483648
      %v6312 = vxor.u32 %v6280, 2147483648
      %v6313 = vxor.u32 %v6281, 2147483648
      %v6314 = vxor.u32 %v6282, 2147483648
      %v6315 = vxor.u32 %v6283, 2147483648
      %v6316 = vxor.u32 %v6284, 2147483648
      %v6317 = vxor.u32 %v6285, 2147483648
      %v6318 = vxor.u32 %v6286, 2147483648
      %v6319 = vxor.u32 %v6287, 2147483648
      %v6320 = vxor.u32 %v6288, 2147483648
      %v6321 = vxor.u32 %v6289, 2147483648
      %v6322 = vxor.u32 %v6290, 2147483648
      %v6323 = vxor.u32 %v6291, 2147483648
      %v6324 = vxor.u32 %v6292, 2147483648
      %v6325 = vxor.u32 %v6293, 2147483648
      %v6326 = vxor.u32 %v6294, 2147483648
      %v6327 = vxor.u32 %v6295, 2147483648
      %v6328 = vxor.u32 %v6296, 2147483648
      %v6329 = vxor.u32 %v6297, 2147483648
      %v6330 = vmul.f32 %v6298, 1.442695
      %v6331 = vpow.pop %v6330
      %v6332 = vmul.f32 %v6299, 1.442695
      %v6333 = vpow.pop %v6332
      %v6334 = vmul.f32 %v6300, 1.442695
      %v6335 = vpow.pop %v6334
      %v6336 = vmul.f32 %v6301, 1.442695
      %v6337 = vpow.pop %v6336
      %v6338 = vmul.f32 %v6302, 1.442695
      %v6339 = vpow.pop %v6338
      %v6340 = vmul.f32 %v6303, 1.442695
      %v6341 = vpow.pop %v6340
      %v6342 = vmul.f32 %v6304, 1.442695
      %v6343 = vpow.pop %v6342
      %v6344 = vmul.f32 %v6305, 1.442695
      %v6345 = vpow.pop %v6344
      %v6346 = vmul.f32 %v6306, 1.442695
      %v6347 = vpow.pop %v6346
      %v6348 = vmul.f32 %v6307, 1.442695
      %v6349 = vpow.pop %v6348
      %v6350 = vmul.f32 %v6308, 1.442695
      %v6351 = vpow.pop %v6350
      %v6352 = vmul.f32 %v6309, 1.442695
      %v6353 = vpow.pop %v6352
      %v6354 = vmul.f32 %v6310, 1.442695
      %v6355 = vpow.pop %v6354
      %v6356 = vmul.f32 %v6311, 1.442695
      %v6357 = vpow.pop %v6356
      %v6358 = vmul.f32 %v6312, 1.442695
      %v6359 = vpow.pop %v6358
      %v6360 = vmul.f32 %v6313, 1.442695
      %v6361 = vpow.pop %v6360
      %v6362 = vmul.f32 %v6314, 1.442695
      %v6363 = vpow.pop %v6362
      %v6364 = vmul.f32 %v6315, 1.442695
      %v6365 = vpow.pop %v6364
      %v6366 = vmul.f32 %v6316, 1.442695
      %v6367 = vpow.pop %v6366
      %v6368 = vmul.f32 %v6317, 1.442695
      %v6369 = vpow.pop %v6368
      %v6370 = vmul.f32 %v6318, 1.442695
      %v6371 = vpow.pop %v6370
      %v6372 = vmul.f32 %v6319, 1.442695
      %v6373 = vpow.pop %v6372
      %v6374 = vmul.f32 %v6320, 1.442695
      %v6375 = vpow.pop %v6374
      %v6376 = vmul.f32 %v6321, 1.442695
      %v6377 = vpow.pop %v6376
      %v6378 = vmul.f32 %v6322, 1.442695
      %v6379 = vpow.pop %v6378
      %v6380 = vmul.f32 %v6323, 1.442695
      %v6381 = vpow.pop %v6380
      %v6382 = vmul.f32 %v6324, 1.442695
      %v6383 = vpow.pop %v6382
      %v6384 = vmul.f32 %v6325, 1.442695
      %v6385 = vpow.pop %v6384
      %v6386 = vmul.f32 %v6326, 1.442695
      %v6387 = vpow.pop %v6386
      %v6388 = vmul.f32 %v6327, 1.442695
      %v6389 = vpow.pop %v6388
      %v6390 = vmul.f32 %v6328, 1.442695
      %v6391 = vpow.pop %v6390
      %v6392 = vmul.f32 %v6329, 1.442695
      %v6393 = vpow.pop %v6392
      %v6394 = vadd.f32 %v6331, 1.0
      %v6395 = vadd.f32 %v6333, 1.0
      %v6396 = vadd.f32 %v6335, 1.0
      %v6397 = vadd.f32 %v6337, 1.0
      %v6398 = vadd.f32 %v6339, 1.0
      %v6399 = vadd.f32 %v6341, 1.0
      %v6400 = vadd.f32 %v6343, 1.0
      %v6401 = vadd.f32 %v6345, 1.0
      %v6402 = vadd.f32 %v6347, 1.0
      %v6403 = vadd.f32 %v6349, 1.0
      %v6404 = vadd.f32 %v6351, 1.0
      %v6405 = vadd.f32 %v6353, 1.0
      %v6406 = vadd.f32 %v6355, 1.0
      %v6407 = vadd.f32 %v6357, 1.0
      %v6408 = vadd.f32 %v6359, 1.0
      %v6409 = vadd.f32 %v6361, 1.0
      %v6410 = vadd.f32 %v6363, 1.0
      %v6411 = vadd.f32 %v6365, 1.0
      %v6412 = vadd.f32 %v6367, 1.0
      %v6413 = vadd.f32 %v6369, 1.0
      %v6414 = vadd.f32 %v6371, 1.0
      %v6415 = vadd.f32 %v6373, 1.0
      %v6416 = vadd.f32 %v6375, 1.0
      %v6417 = vadd.f32 %v6377, 1.0
      %v6418 = vadd.f32 %v6379, 1.0
      %v6419 = vadd.f32 %v6381, 1.0
      %v6420 = vadd.f32 %v6383, 1.0
      %v6421 = vadd.f32 %v6385, 1.0
      %v6422 = vadd.f32 %v6387, 1.0
      %v6423 = vadd.f32 %v6389, 1.0
      %v6424 = vadd.f32 %v6391, 1.0
      %v6425 = vadd.f32 %v6393, 1.0
      %v6426 = vrcp.pop %v6394
      %v6427 = vmul.f32 1.0, %v6426
      %v6428 = vrcp.pop %v6395
      %v6429 = vmul.f32 1.0, %v6428
      %v6430 = vrcp.pop %v6396
      %v6431 = vmul.f32 1.0, %v6430
      %v6432 = vrcp.pop %v6397
      %v6433 = vmul.f32 1.0, %v6432
      %v6434 = vrcp.pop %v6398
      %v6435 = vmul.f32 1.0, %v6434
      %v6436 = vrcp.pop %v6399
      %v6437 = vmul.f32 1.0, %v6436
      %v6438 = vrcp.pop %v6400
      %v6439 = vmul.f32 1.0, %v6438
      %v6440 = vrcp.pop %v6401
      %v6441 = vmul.f32 1.0, %v6440
      %v6442 = vrcp.pop %v6402
      %v6443 = vmul.f32 1.0, %v6442
      %v6444 = vrcp.pop %v6403
      %v6445 = vmul.f32 1.0, %v6444
      %v6446 = vrcp.pop %v6404
      %v6447 = vmul.f32 1.0, %v6446
      %v6448 = vrcp.pop %v6405
      %v6449 = vmul.f32 1.0, %v6448
      %v6450 = vrcp.pop %v6406
      %v6451 = vmul.f32 1.0, %v6450
      %v6452 = vrcp.pop %v6407
      %v6453 = vmul.f32 1.0, %v6452
      %v6454 = vrcp.pop %v6408
      %v6455 = vmul.f32 1.0, %v6454
      %v6456 = vrcp.pop %v6409
      %v6457 = vmul.f32 1.0, %v6456
      %v6458 = vrcp.pop %v6410
      %v6459 = vmul.f32 1.0, %v6458
      %v6460 = vrcp.pop %v6411
      %v6461 = vmul.f32 1.0, %v6460
      %v6462 = vrcp.pop %v6412
      %v6463 = vmul.f32 1.0, %v6462
      %v6464 = vrcp.pop %v6413
      %v6465 = vmul.f32 1.0, %v6464
      %v6466 = vrcp.pop %v6414
      %v6467 = vmul.f32 1.0, %v6466
      %v6468 = vrcp.pop %v6415
      %v6469 = vmul.f32 1.0, %v6468
      %v6470 = vrcp.pop %v6416
      %v6471 = vmul.f32 1.0, %v6470
      %v6472 = vrcp.pop %v6417
      %v6473 = vmul.f32 1.0, %v6472
      %v6474 = vrcp.pop %v6418
      %v6475 = vmul.f32 1.0, %v6474
      %v6476 = vrcp.pop %v6419
      %v6477 = vmul.f32 1.0, %v6476
      %v6478 = vrcp.pop %v6420
      %v6479 = vmul.f32 1.0, %v6478
      %v6480 = vrcp.pop %v6421
      %v6481 = vmul.f32 1.0, %v6480
      %v6482 = vrcp.pop %v6422
      %v6483 = vmul.f32 1.0, %v6482
      %v6484 = vrcp.pop %v6423
      %v6485 = vmul.f32 1.0, %v6484
      %v6486 = vrcp.pop %v6424
      %v6487 = vmul.f32 1.0, %v6486
      %v6488 = vrcp.pop %v6425
      %v6489 = vmul.f32 1.0, %v6488
      %v6490 = vadd.f32 %v5563, %v5917
      %v6491 = vadd.f32 %v5567, %v5921
      %v6492 = vadd.f32 %v5573, %v5927
      %v6493 = vadd.f32 %v5577, %v5931
      %v6494 = vadd.f32 %v5583, %v5937
      %v6495 = vadd.f32 %v5587, %v5941
      %v6496 = vadd.f32 %v5593, %v5947
      %v6497 = vadd.f32 %v5597, %v5951
      %v6498 = vadd.f32 %v5603, %v5957
      %v6499 = vadd.f32 %v5607, %v5961
      %v6500 = vadd.f32 %v5613, %v5967
      %v6501 = vadd.f32 %v5617, %v5971
      %v6502 = vadd.f32 %v5623, %v5977
      %v6503 = vadd.f32 %v5627, %v5981
      %v6504 = vadd.f32 %v5633, %v5987
      %v6505 = vadd.f32 %v5637, %v5991
      %v6506 = vadd.f32 %v5643, %v5997
      %v6507 = vadd.f32 %v5647, %v6001
      %v6508 = vadd.f32 %v5653, %v6007
      %v6509 = vadd.f32 %v5657, %v6011
      %v6510 = vadd.f32 %v5663, %v6017
      %v6511 = vadd.f32 %v5667, %v6021
      %v6512 = vadd.f32 %v5673, %v6027
      %v6513 = vadd.f32 %v5677, %v6031
      %v6514 = vadd.f32 %v5683, %v6037
      %v6515 = vadd.f32 %v5687, %v6041
      %v6516 = vadd.f32 %v5693, %v6047
      %v6517 = vadd.f32 %v5697, %v6051
      %v6518 = vadd.f32 %v5703, %v6057
      %v6519 = vadd.f32 %v5707, %v6061
      %v6520 = vadd.f32 %v5713, %v6067
      %v6521 = vadd.f32 %v5717, %v6071
      %v6522 = vadd.f32 %v6490, %v2542
      %v6523 = vadd.f32 %v6491, %v2542
      %v6524 = vadd.f32 %v6492, %v2542
      %v6525 = vadd.f32 %v6493, %v2542
      %v6526 = vadd.f32 %v6494, %v2542
      %v6527 = vadd.f32 %v6495, %v2542
      %v6528 = vadd.f32 %v6496, %v2542
      %v6529 = vadd.f32 %v6497, %v2542
      %v6530 = vadd.f32 %v6498, %v2542
      %v6531 = vadd.f32 %v6499, %v2542
      %v6532 = vadd.f32 %v6500, %v2542
      %v6533 = vadd.f32 %v6501, %v2542
      %v6534 = vadd.f32 %v6502, %v2542
      %v6535 = vadd.f32 %v6503, %v2542
      %v6536 = vadd.f32 %v6504, %v2542
      %v6537 = vadd.f32 %v6505, %v2542
      %v6538 = vadd.f32 %v6506, %v2542
      %v6539 = vadd.f32 %v6507, %v2542
      %v6540 = vadd.f32 %v6508, %v2542
      %v6541 = vadd.f32 %v6509, %v2542
      %v6542 = vadd.f32 %v6510, %v2542
      %v6543 = vadd.f32 %v6511, %v2542
      %v6544 = vadd.f32 %v6512, %v2542
      %v6545 = vadd.f32 %v6513, %v2542
      %v6546 = vadd.f32 %v6514, %v2542
      %v6547 = vadd.f32 %v6515, %v2542
      %v6548 = vadd.f32 %v6516, %v2542
      %v6549 = vadd.f32 %v6517, %v2542
      %v6550 = vadd.f32 %v6518, %v2542
      %v6551 = vadd.f32 %v6519, %v2542
      %v6552 = vadd.f32 %v6520, %v2542
      %v6553 = vadd.f32 %v6521, %v2542
      %v6554 = vxor.u32 %v6522, 2147483648
      %v6555 = vxor.u32 %v6523, 2147483648
      %v6556 = vxor.u32 %v6524, 2147483648
      %v6557 = vxor.u32 %v6525, 2147483648
      %v6558 = vxor.u32 %v6526, 2147483648
      %v6559 = vxor.u32 %v6527, 2147483648
      %v6560 = vxor.u32 %v6528, 2147483648
      %v6561 = vxor.u32 %v6529, 2147483648
      %v6562 = vxor.u32 %v6530, 2147483648
      %v6563 = vxor.u32 %v6531, 2147483648
      %v6564 = vxor.u32 %v6532, 2147483648
      %v6565 = vxor.u32 %v6533, 2147483648
      %v6566 = vxor.u32 %v6534, 2147483648
      %v6567 = vxor.u32 %v6535, 2147483648
      %v6568 = vxor.u32 %v6536, 2147483648
      %v6569 = vxor.u32 %v6537, 2147483648
      %v6570 = vxor.u32 %v6538, 2147483648
      %v6571 = vxor.u32 %v6539, 2147483648
      %v6572 = vxor.u32 %v6540, 2147483648
      %v6573 = vxor.u32 %v6541, 2147483648
      %v6574 = vxor.u32 %v6542, 2147483648
      %v6575 = vxor.u32 %v6543, 2147483648
      %v6576 = vxor.u32 %v6544, 2147483648
      %v6577 = vxor.u32 %v6545, 2147483648
      %v6578 = vxor.u32 %v6546, 2147483648
      %v6579 = vxor.u32 %v6547, 2147483648
      %v6580 = vxor.u32 %v6548, 2147483648
      %v6581 = vxor.u32 %v6549, 2147483648
      %v6582 = vxor.u32 %v6550, 2147483648
      %v6583 = vxor.u32 %v6551, 2147483648
      %v6584 = vxor.u32 %v6552, 2147483648
      %v6585 = vxor.u32 %v6553, 2147483648
      %v6586 = vmul.f32 %v6554, 1.442695
      %v6587 = vpow.pop %v6586
      %v6588 = vmul.f32 %v6555, 1.442695
      %v6589 = vpow.pop %v6588
      %v6590 = vmul.f32 %v6556, 1.442695
      %v6591 = vpow.pop %v6590
      %v6592 = vmul.f32 %v6557, 1.442695
      %v6593 = vpow.pop %v6592
      %v6594 = vmul.f32 %v6558, 1.442695
      %v6595 = vpow.pop %v6594
      %v6596 = vmul.f32 %v6559, 1.442695
      %v6597 = vpow.pop %v6596
      %v6598 = vmul.f32 %v6560, 1.442695
      %v6599 = vpow.pop %v6598
      %v6600 = vmul.f32 %v6561, 1.442695
      %v6601 = vpow.pop %v6600
      %v6602 = vmul.f32 %v6562, 1.442695
      %v6603 = vpow.pop %v6602
      %v6604 = vmul.f32 %v6563, 1.442695
      %v6605 = vpow.pop %v6604
      %v6606 = vmul.f32 %v6564, 1.442695
      %v6607 = vpow.pop %v6606
      %v6608 = vmul.f32 %v6565, 1.442695
      %v6609 = vpow.pop %v6608
      %v6610 = vmul.f32 %v6566, 1.442695
      %v6611 = vpow.pop %v6610
      %v6612 = vmul.f32 %v6567, 1.442695
      %v6613 = vpow.pop %v6612
      %v6614 = vmul.f32 %v6568, 1.442695
      %v6615 = vpow.pop %v6614
      %v6616 = vmul.f32 %v6569, 1.442695
      %v6617 = vpow.pop %v6616
      %v6618 = vmul.f32 %v6570, 1.442695
      %v6619 = vpow.pop %v6618
      %v6620 = vmul.f32 %v6571, 1.442695
      %v6621 = vpow.pop %v6620
      %v6622 = vmul.f32 %v6572, 1.442695
      %v6623 = vpow.pop %v6622
      %v6624 = vmul.f32 %v6573, 1.442695
      %v6625 = vpow.pop %v6624
      %v6626 = vmul.f32 %v6574, 1.442695
      %v6627 = vpow.pop %v6626
      %v6628 = vmul.f32 %v6575, 1.442695
      %v6629 = vpow.pop %v6628
      %v6630 = vmul.f32 %v6576, 1.442695
      %v6631 = vpow.pop %v6630
      %v6632 = vmul.f32 %v6577, 1.442695
      %v6633 = vpow.pop %v6632
      %v6634 = vmul.f32 %v6578, 1.442695
      %v6635 = vpow.pop %v6634
      %v6636 = vmul.f32 %v6579, 1.442695
      %v6637 = vpow.pop %v6636
      %v6638 = vmul.f32 %v6580, 1.442695
      %v6639 = vpow.pop %v6638
      %v6640 = vmul.f32 %v6581, 1.442695
      %v6641 = vpow.pop %v6640
      %v6642 = vmul.f32 %v6582, 1.442695
      %v6643 = vpow.pop %v6642
      %v6644 = vmul.f32 %v6583, 1.442695
      %v6645 = vpow.pop %v6644
      %v6646 = vmul.f32 %v6584, 1.442695
      %v6647 = vpow.pop %v6646
      %v6648 = vmul.f32 %v6585, 1.442695
      %v6649 = vpow.pop %v6648
      %v6650 = vadd.f32 %v6587, 1.0
      %v6651 = vadd.f32 %v6589, 1.0
      %v6652 = vadd.f32 %v6591, 1.0
      %v6653 = vadd.f32 %v6593, 1.0
      %v6654 = vadd.f32 %v6595, 1.0
      %v6655 = vadd.f32 %v6597, 1.0
      %v6656 = vadd.f32 %v6599, 1.0
      %v6657 = vadd.f32 %v6601, 1.0
      %v6658 = vadd.f32 %v6603, 1.0
      %v6659 = vadd.f32 %v6605, 1.0
      %v6660 = vadd.f32 %v6607, 1.0
      %v6661 = vadd.f32 %v6609, 1.0
      %v6662 = vadd.f32 %v6611, 1.0
      %v6663 = vadd.f32 %v6613, 1.0
      %v6664 = vadd.f32 %v6615, 1.0
      %v6665 = vadd.f32 %v6617, 1.0
      %v6666 = vadd.f32 %v6619, 1.0
      %v6667 = vadd.f32 %v6621, 1.0
      %v6668 = vadd.f32 %v6623, 1.0
      %v6669 = vadd.f32 %v6625, 1.0
      %v6670 = vadd.f32 %v6627, 1.0
      %v6671 = vadd.f32 %v6629, 1.0
      %v6672 = vadd.f32 %v6631, 1.0
      %v6673 = vadd.f32 %v6633, 1.0
      %v6674 = vadd.f32 %v6635, 1.0
      %v6675 = vadd.f32 %v6637, 1.0
      %v6676 = vadd.f32 %v6639, 1.0
      %v6677 = vadd.f32 %v6641, 1.0
      %v6678 = vadd.f32 %v6643, 1.0
      %v6679 = vadd.f32 %v6645, 1.0
      %v6680 = vadd.f32 %v6647, 1.0
      %v6681 = vadd.f32 %v6649, 1.0
      %v6682 = vrcp.pop %v6650
      %v6683 = vmul.f32 1.0, %v6682
      %v6684 = vrcp.pop %v6651
      %v6685 = vmul.f32 1.0, %v6684
      %v6686 = vrcp.pop %v6652
      %v6687 = vmul.f32 1.0, %v6686
      %v6688 = vrcp.pop %v6653
      %v6689 = vmul.f32 1.0, %v6688
      %v6690 = vrcp.pop %v6654
      %v6691 = vmul.f32 1.0, %v6690
      %v6692 = vrcp.pop %v6655
      %v6693 = vmul.f32 1.0, %v6692
      %v6694 = vrcp.pop %v6656
      %v6695 = vmul.f32 1.0, %v6694
      %v6696 = vrcp.pop %v6657
      %v6697 = vmul.f32 1.0, %v6696
      %v6698 = vrcp.pop %v6658
      %v6699 = vmul.f32 1.0, %v6698
      %v6700 = vrcp.pop %v6659
      %v6701 = vmul.f32 1.0, %v6700
      %v6702 = vrcp.pop %v6660
      %v6703 = vmul.f32 1.0, %v6702
      %v6704 = vrcp.pop %v6661
      %v6705 = vmul.f32 1.0, %v6704
      %v6706 = vrcp.pop %v6662
      %v6707 = vmul.f32 1.0, %v6706
      %v6708 = vrcp.pop %v6663
      %v6709 = vmul.f32 1.0, %v6708
      %v6710 = vrcp.pop %v6664
      %v6711 = vmul.f32 1.0, %v6710
      %v6712 = vrcp.pop %v6665
      %v6713 = vmul.f32 1.0, %v6712
      %v6714 = vrcp.pop %v6666
      %v6715 = vmul.f32 1.0, %v6714
      %v6716 = vrcp.pop %v6667
      %v6717 = vmul.f32 1.0, %v6716
      %v6718 = vrcp.pop %v6668
      %v6719 = vmul.f32 1.0, %v6718
      %v6720 = vrcp.pop %v6669
      %v6721 = vmul.f32 1.0, %v6720
      %v6722 = vrcp.pop %v6670
      %v6723 = vmul.f32 1.0, %v6722
      %v6724 = vrcp.pop %v6671
      %v6725 = vmul.f32 1.0, %v6724
      %v6726 = vrcp.pop %v6672
      %v6727 = vmul.f32 1.0, %v6726
      %v6728 = vrcp.pop %v6673
      %v6729 = vmul.f32 1.0, %v6728
      %v6730 = vrcp.pop %v6674
      %v6731 = vmul.f32 1.0, %v6730
      %v6732 = vrcp.pop %v6675
      %v6733 = vmul.f32 1.0, %v6732
      %v6734 = vrcp.pop %v6676
      %v6735 = vmul.f32 1.0, %v6734
      %v6736 = vrcp.pop %v6677
      %v6737 = vmul.f32 1.0, %v6736
      %v6738 = vrcp.pop %v6678
      %v6739 = vmul.f32 1.0, %v6738
      %v6740 = vrcp.pop %v6679
      %v6741 = vmul.f32 1.0, %v6740
      %v6742 = vrcp.pop %v6680
      %v6743 = vmul.f32 1.0, %v6742
      %v6744 = vrcp.pop %v6681
      %v6745 = vmul.f32 1.0, %v6744
      %v6746 = vadd.f32 %v5754, %v2772
      %v6747 = vadd.f32 %v5757, %v2772
      %v6748 = vadd.f32 %v5762, %v2772
      %v6749 = vadd.f32 %v5765, %v2772
      %v6750 = vadd.f32 %v5770, %v2772
      %v6751 = vadd.f32 %v5773, %v2772
      %v6752 = vadd.f32 %v5778, %v2772
      %v6753 = vadd.f32 %v5781, %v2772
      %v6754 = vadd.f32 %v5786, %v2772
      %v6755 = vadd.f32 %v5789, %v2772
      %v6756 = vadd.f32 %v5794, %v2772
      %v6757 = vadd.f32 %v5797, %v2772
      %v6758 = vadd.f32 %v5802, %v2772
      %v6759 = vadd.f32 %v5805, %v2772
      %v6760 = vadd.f32 %v5810, %v2772
      %v6761 = vadd.f32 %v5813, %v2772
      %v6762 = vadd.f32 %v5818, %v2772
      %v6763 = vadd.f32 %v5821, %v2772
      %v6764 = vadd.f32 %v5826, %v2772
      %v6765 = vadd.f32 %v5829, %v2772
      %v6766 = vadd.f32 %v5834, %v2772
      %v6767 = vadd.f32 %v5837, %v2772
      %v6768 = vadd.f32 %v5842, %v2772
      %v6769 = vadd.f32 %v5845, %v2772
      %v6770 = vadd.f32 %v5850, %v2772
      %v6771 = vadd.f32 %v5853, %v2772
      %v6772 = vadd.f32 %v5858, %v2772
      %v6773 = vadd.f32 %v5861, %v2772
      %v6774 = vadd.f32 %v5866, %v2772
      %v6775 = vadd.f32 %v5869, %v2772
      %v6776 = vadd.f32 %v5874, %v2772
      %v6777 = vadd.f32 %v5877, %v2772
      %v6778 = vadd.f32 %v6108, %v2810
      %v6779 = vadd.f32 %v6111, %v2810
      %v6780 = vadd.f32 %v6116, %v2810
      %v6781 = vadd.f32 %v6119, %v2810
      %v6782 = vadd.f32 %v6124, %v2810
      %v6783 = vadd.f32 %v6127, %v2810
      %v6784 = vadd.f32 %v6132, %v2810
      %v6785 = vadd.f32 %v6135, %v2810
      %v6786 = vadd.f32 %v6140, %v2810
      %v6787 = vadd.f32 %v6143, %v2810
      %v6788 = vadd.f32 %v6148, %v2810
      %v6789 = vadd.f32 %v6151, %v2810
      %v6790 = vadd.f32 %v6156, %v2810
      %v6791 = vadd.f32 %v6159, %v2810
      %v6792 = vadd.f32 %v6164, %v2810
      %v6793 = vadd.f32 %v6167, %v2810
      %v6794 = vadd.f32 %v6172, %v2810
      %v6795 = vadd.f32 %v6175, %v2810
      %v6796 = vadd.f32 %v6180, %v2810
      %v6797 = vadd.f32 %v6183, %v2810
      %v6798 = vadd.f32 %v6188, %v2810
      %v6799 = vadd.f32 %v6191, %v2810
      %v6800 = vadd.f32 %v6196, %v2810
      %v6801 = vadd.f32 %v6199, %v2810
      %v6802 = vadd.f32 %v6204, %v2810
      %v6803 = vadd.f32 %v6207, %v2810
      %v6804 = vadd.f32 %v6212, %v2810
      %v6805 = vadd.f32 %v6215, %v2810
      %v6806 = vadd.f32 %v6220, %v2810
      %v6807 = vadd.f32 %v6223, %v2810
      %v6808 = vadd.f32 %v6228, %v2810
      %v6809 = vadd.f32 %v6231, %v2810
      %v6810 = vmul.f32 %v6427, %v6778
      %v6811 = vmul.f32 %v6429, %v6779
      %v6812 = vmul.f32 %v6431, %v6780
      %v6813 = vmul.f32 %v6433, %v6781
      %v6814 = vmul.f32 %v6435, %v6782
      %v6815 = vmul.f32 %v6437, %v6783
      %v6816 = vmul.f32 %v6439, %v6784
      %v6817 = vmul.f32 %v6441, %v6785
      %v6818 = vmul.f32 %v6443, %v6786
      %v6819 = vmul.f32 %v6445, %v6787
      %v6820 = vmul.f32 %v6447, %v6788
      %v6821 = vmul.f32 %v6449, %v6789
      %v6822 = vmul.f32 %v6451, %v6790
      %v6823 = vmul.f32 %v6453, %v6791
      %v6824 = vmul.f32 %v6455, %v6792
      %v6825 = vmul.f32 %v6457, %v6793
      %v6826 = vmul.f32 %v6459, %v6794
      %v6827 = vmul.f32 %v6461, %v6795
      %v6828 = vmul.f32 %v6463, %v6796
      %v6829 = vmul.f32 %v6465, %v6797
      %v6830 = vmul.f32 %v6467, %v6798
      %v6831 = vmul.f32 %v6469, %v6799
      %v6832 = vmul.f32 %v6471, %v6800
      %v6833 = vmul.f32 %v6473, %v6801
      %v6834 = vmul.f32 %v6475, %v6802
      %v6835 = vmul.f32 %v6477, %v6803
      %v6836 = vmul.f32 %v6479, %v6804
      %v6837 = vmul.f32 %v6481, %v6805
      %v6838 = vmul.f32 %v6483, %v6806
      %v6839 = vmul.f32 %v6485, %v6807
      %v6840 = vmul.f32 %v6487, %v6808
      %v6841 = vmul.f32 %v6489, %v6809
      %v6842 = vadd.f32 %v6746, %v6810
      %v6843 = vadd.f32 %v6747, %v6811
      %v6844 = vadd.f32 %v6748, %v6812
      %v6845 = vadd.f32 %v6749, %v6813
      %v6846 = vadd.f32 %v6750, %v6814
      %v6847 = vadd.f32 %v6751, %v6815
      %v6848 = vadd.f32 %v6752, %v6816
      %v6849 = vadd.f32 %v6753, %v6817
      %v6850 = vadd.f32 %v6754, %v6818
      %v6851 = vadd.f32 %v6755, %v6819
      %v6852 = vadd.f32 %v6756, %v6820
      %v6853 = vadd.f32 %v6757, %v6821
      %v6854 = vadd.f32 %v6758, %v6822
      %v6855 = vadd.f32 %v6759, %v6823
      %v6856 = vadd.f32 %v6760, %v6824
      %v6857 = vadd.f32 %v6761, %v6825
      %v6858 = vadd.f32 %v6762, %v6826
      %v6859 = vadd.f32 %v6763, %v6827
      %v6860 = vadd.f32 %v6764, %v6828
      %v6861 = vadd.f32 %v6765, %v6829
      %v6862 = vadd.f32 %v6766, %v6830
      %v6863 = vadd.f32 %v6767, %v6831
      %v6864 = vadd.f32 %v6768, %v6832
      %v6865 = vadd.f32 %v6769, %v6833
      %v6866 = vadd.f32 %v6770, %v6834
      %v6867 = vadd.f32 %v6771, %v6835
      %v6868 = vadd.f32 %v6772, %v6836
      %v6869 = vadd.f32 %v6773, %v6837
      %v6870 = vadd.f32 %v6774, %v6838
      %v6871 = vadd.f32 %v6775, %v6839
      %v6872 = vadd.f32 %v6776, %v6840
      %v6873 = vadd.f32 %v6777, %v6841
      %v6874 = vtanh.pop %v6842
      %v6875 = vtanh.pop %v6843
      %v6876 = vtanh.pop %v6844
      %v6877 = vtanh.pop %v6845
      %v6878 = vtanh.pop %v6846
      %v6879 = vtanh.pop %v6847
      %v6880 = vtanh.pop %v6848
      %v6881 = vtanh.pop %v6849
      %v6882 = vtanh.pop %v6850
      %v6883 = vtanh.pop %v6851
      %v6884 = vtanh.pop %v6852
      %v6885 = vtanh.pop %v6853
      %v6886 = vtanh.pop %v6854
      %v6887 = vtanh.pop %v6855
      %v6888 = vtanh.pop %v6856
      %v6889 = vtanh.pop %v6857
      %v6890 = vtanh.pop %v6858
      %v6891 = vtanh.pop %v6859
      %v6892 = vtanh.pop %v6860
      %v6893 = vtanh.pop %v6861
      %v6894 = vtanh.pop %v6862
      %v6895 = vtanh.pop %v6863
      %v6896 = vtanh.pop %v6864
      %v6897 = vtanh.pop %v6865
      %v6898 = vtanh.pop %v6866
      %v6899 = vtanh.pop %v6867
      %v6900 = vtanh.pop %v6868
      %v6901 = vtanh.pop %v6869
      %v6902 = vtanh.pop %v6870
      %v6903 = vtanh.pop %v6871
      %v6904 = vtanh.pop %v6872
      %v6905 = vtanh.pop %v6873
      %v6906 = vsub.f32 1.0, %v6683
      %v6907 = vsub.f32 1.0, %v6685
      %v6908 = vsub.f32 1.0, %v6687
      %v6909 = vsub.f32 1.0, %v6689
      %v6910 = vsub.f32 1.0, %v6691
      %v6911 = vsub.f32 1.0, %v6693
      %v6912 = vsub.f32 1.0, %v6695
      %v6913 = vsub.f32 1.0, %v6697
      %v6914 = vsub.f32 1.0, %v6699
      %v6915 = vsub.f32 1.0, %v6701
      %v6916 = vsub.f32 1.0, %v6703
      %v6917 = vsub.f32 1.0, %v6705
      %v6918 = vsub.f32 1.0, %v6707
      %v6919 = vsub.f32 1.0, %v6709
      %v6920 = vsub.f32 1.0, %v6711
      %v6921 = vsub.f32 1.0, %v6713
      %v6922 = vsub.f32 1.0, %v6715
      %v6923 = vsub.f32 1.0, %v6717
      %v6924 = vsub.f32 1.0, %v6719
      %v6925 = vsub.f32 1.0, %v6721
      %v6926 = vsub.f32 1.0, %v6723
      %v6927 = vsub.f32 1.0, %v6725
      %v6928 = vsub.f32 1.0, %v6727
      %v6929 = vsub.f32 1.0, %v6729
      %v6930 = vsub.f32 1.0, %v6731
      %v6931 = vsub.f32 1.0, %v6733
      %v6932 = vsub.f32 1.0, %v6735
      %v6933 = vsub.f32 1.0, %v6737
      %v6934 = vsub.f32 1.0, %v6739
      %v6935 = vsub.f32 1.0, %v6741
      %v6936 = vsub.f32 1.0, %v6743
      %v6937 = vsub.f32 1.0, %v6745
      %v6938 = vmul.f32 %v6906, %v6874
      %v6939 = vmul.f32 %v6907, %v6875
      %v6940 = vmul.f32 %v6908, %v6876
      %v6941 = vmul.f32 %v6909, %v6877
      %v6942 = vmul.f32 %v6910, %v6878
      %v6943 = vmul.f32 %v6911, %v6879
      %v6944 = vmul.f32 %v6912, %v6880
      %v6945 = vmul.f32 %v6913, %v6881
      %v6946 = vmul.f32 %v6914, %v6882
      %v6947 = vmul.f32 %v6915, %v6883
      %v6948 = vmul.f32 %v6916, %v6884
      %v6949 = vmul.f32 %v6917, %v6885
      %v6950 = vmul.f32 %v6918, %v6886
      %v6951 = vmul.f32 %v6919, %v6887
      %v6952 = vmul.f32 %v6920, %v6888
      %v6953 = vmul.f32 %v6921, %v6889
      %v6954 = vmul.f32 %v6922, %v6890
      %v6955 = vmul.f32 %v6923, %v6891
      %v6956 = vmul.f32 %v6924, %v6892
      %v6957 = vmul.f32 %v6925, %v6893
      %v6958 = vmul.f32 %v6926, %v6894
      %v6959 = vmul.f32 %v6927, %v6895
      %v6960 = vmul.f32 %v6928, %v6896
      %v6961 = vmul.f32 %v6929, %v6897
      %v6962 = vmul.f32 %v6930, %v6898
      %v6963 = vmul.f32 %v6931, %v6899
      %v6964 = vmul.f32 %v6932, %v6900
      %v6965 = vmul.f32 %v6933, %v6901
      %v6966 = vmul.f32 %v6934, %v6902
      %v6967 = vmul.f32 %v6935, %v6903
      %v6968 = vmul.f32 %v6936, %v6904
      %v6969 = vmul.f32 %v6937, %v6905
      %v6970 = vmul.f32 %v6683, %v5019
      %v6971 = vmul.f32 %v6685, %v5020
      %v6972 = vmul.f32 %v6687, %v5021
      %v6973 = vmul.f32 %v6689, %v5022
      %v6974 = vmul.f32 %v6691, %v5023
      %v6975 = vmul.f32 %v6693, %v5024
      %v6976 = vmul.f32 %v6695, %v5025
      %v6977 = vmul.f32 %v6697, %v5026
      %v6978 = vmul.f32 %v6699, %v5027
      %v6979 = vmul.f32 %v6701, %v5028
      %v6980 = vmul.f32 %v6703, %v5029
      %v6981 = vmul.f32 %v6705, %v5030
      %v6982 = vmul.f32 %v6707, %v5031
      %v6983 = vmul.f32 %v6709, %v5032
      %v6984 = vmul.f32 %v6711, %v5033
      %v6985 = vmul.f32 %v6713, %v5034
      %v6986 = vmul.f32 %v6715, %v5035
      %v6987 = vmul.f32 %v6717, %v5036
      %v6988 = vmul.f32 %v6719, %v5037
      %v6989 = vmul.f32 %v6721, %v5038
      %v6990 = vmul.f32 %v6723, %v5039
      %v6991 = vmul.f32 %v6725, %v5040
      %v6992 = vmul.f32 %v6727, %v5041
      %v6993 = vmul.f32 %v6729, %v5042
      %v6994 = vmul.f32 %v6731, %v5043
      %v6995 = vmul.f32 %v6733, %v5044
      %v6996 = vmul.f32 %v6735, %v5045
      %v6997 = vmul.f32 %v6737, %v5046
      %v6998 = vmul.f32 %v6739, %v5047
      %v6999 = vmul.f32 %v6741, %v5048
      %v7000 = vmul.f32 %v6743, %v5049
      %v7001 = vmul.f32 %v6745, %v5050
      %v7002 = vadd.f32 %v6938, %v6970
      %v7003 = vadd.f32 %v6939, %v6971
      %v7004 = vadd.f32 %v6940, %v6972
      %v7005 = vadd.f32 %v6941, %v6973
      %v7006 = vadd.f32 %v6942, %v6974
      %v7007 = vadd.f32 %v6943, %v6975
      %v7008 = vadd.f32 %v6944, %v6976
      %v7009 = vadd.f32 %v6945, %v6977
      %v7010 = vadd.f32 %v6946, %v6978
      %v7011 = vadd.f32 %v6947, %v6979
      %v7012 = vadd.f32 %v6948, %v6980
      %v7013 = vadd.f32 %v6949, %v6981
      %v7014 = vadd.f32 %v6950, %v6982
      %v7015 = vadd.f32 %v6951, %v6983
      %v7016 = vadd.f32 %v6952, %v6984
      %v7017 = vadd.f32 %v6953, %v6985
      %v7018 = vadd.f32 %v6954, %v6986
      %v7019 = vadd.f32 %v6955, %v6987
      %v7020 = vadd.f32 %v6956, %v6988
      %v7021 = vadd.f32 %v6957, %v6989
      %v7022 = vadd.f32 %v6958, %v6990
      %v7023 = vadd.f32 %v6959, %v6991
      %v7024 = vadd.f32 %v6960, %v6992
      %v7025 = vadd.f32 %v6961, %v6993
      %v7026 = vadd.f32 %v6962, %v6994
      %v7027 = vadd.f32 %v6963, %v6995
      %v7028 = vadd.f32 %v6964, %v6996
      %v7029 = vadd.f32 %v6965, %v6997
      %v7030 = vadd.f32 %v6966, %v6998
      %v7031 = vadd.f32 %v6967, %v6999
      %v7032 = vadd.f32 %v6968, %v7000
      %v7033 = vadd.f32 %v6969, %v7001
      %v7034 = vpack.c.bf16 %v7003, %v7002
      %v7035 = vpack.c.bf16 %v7005, %v7004
      %v7036 = vpack.c.bf16 %v7007, %v7006
      %v7037 = vpack.c.bf16 %v7009, %v7008
      %v7038 = vpack.c.bf16 %v7011, %v7010
      %v7039 = vpack.c.bf16 %v7013, %v7012
      %v7040 = vpack.c.bf16 %v7015, %v7014
      %v7041 = vpack.c.bf16 %v7017, %v7016
      %v7042 = vpack.c.bf16 %v7019, %v7018
      %v7043 = vpack.c.bf16 %v7021, %v7020
      %v7044 = vpack.c.bf16 %v7023, %v7022
      %v7045 = vpack.c.bf16 %v7025, %v7024
      %v7046 = vpack.c.bf16 %v7027, %v7026
      %v7047 = vpack.c.bf16 %v7029, %v7028
      %v7048 = vpack.c.bf16 %v7031, %v7030
      %v7049 = vpack.c.bf16 %v7033, %v7032
      %v7050 = vld [vmem:[%s10] sm:$0xf]
      %v7051 = vld [vmem:[%s10 + $0x4] sm:$0xf]
      %v7052 = vld [vmem:[%s777] sm:$0xf]
      %v7053 = vld [vmem:[%s777 + $0x4] sm:$0xf]
      %v7054 = vld [vmem:[%s777 + $0x8] sm:$0xf]
      %v7055 = vld [vmem:[%s777 + $0xc] sm:$0xf]
      %v7056 = vld [vmem:[%s777 + $0x10] sm:$0xf]
      %v7057 = vld [vmem:[%s777 + $0x14] sm:$0xf]
      %v7058 = vld [vmem:[%s777 + $0x18] sm:$0xf]
      %v7059 = vld [vmem:[%s777 + $0x1c] sm:$0xf]
      %v7060 = vld [vmem:[%s777 + $0x20] sm:$0xf]
      %v7061 = vld [vmem:[%s777 + $0x24] sm:$0xf]
      %v7062 = vld [vmem:[%s777 + $0x28] sm:$0xf]
      %v7063 = vld [vmem:[%s777 + $0x2c] sm:$0xf]
      %v7064 = vld [vmem:[%s777 + $0x30] sm:$0xf]
      %v7065 = vld [vmem:[%s777 + $0x34] sm:$0xf]
      %v7066 = vld [vmem:[%s777 + $0x38] sm:$0xf]
      %v7067 = vld [vmem:[%s777 + $0x3c] sm:$0xf]
      %v7068 = vld [vmem:[%s777 + $0x40] sm:$0xf]
      %v7069 = vld [vmem:[%s777 + $0x44] sm:$0xf]
      %v7070 = vld [vmem:[%s777 + $0x48] sm:$0xf]
      %v7071 = vld [vmem:[%s777 + $0x4c] sm:$0xf]
      %v7072 = vld [vmem:[%s777 + $0x50] sm:$0xf]
      %v7073 = vld [vmem:[%s777 + $0x54] sm:$0xf]
      %v7074 = vld [vmem:[%s777 + $0x58] sm:$0xf]
      %v7075 = vld [vmem:[%s777 + $0x5c] sm:$0xf]
      %v7076 = vld [vmem:[%s777 + $0x60] sm:$0xf]
      %v7077 = vld [vmem:[%s777 + $0x64] sm:$0xf]
      %v7078 = vld [vmem:[%s777 + $0x68] sm:$0xf]
      %v7079 = vld [vmem:[%s777 + $0x6c] sm:$0xf]
      %v7080 = vld [vmem:[%s777 + $0x70] sm:$0xf]
      %v7081 = vld [vmem:[%s777 + $0x74] sm:$0xf]
      %v7082 = vld [vmem:[%s777 + $0x78] sm:$0xf]
      %v7083 = vld [vmem:[%s777 + $0x7c] sm:$0xf]
      %v7084 = vld [vmem:[%s11] sm:$0xf]
      %v7117 = vunpack.c.l.b16 %v7052
      %v7118 = vunpack.c.l.b16 %v7053
      %v7119 = vunpack.c.l.b16 %v7054
      %v7120 = vunpack.c.l.b16 %v7055
      %v7121 = vunpack.c.l.b16 %v7056
      %v7122 = vunpack.c.l.b16 %v7057
      %v7123 = vunpack.c.l.b16 %v7058
      %v7124 = vunpack.c.l.b16 %v7059
      %v7125 = vunpack.c.l.b16 %v7060
      %v7126 = vunpack.c.l.b16 %v7061
      %v7127 = vunpack.c.l.b16 %v7062
      %v7128 = vunpack.c.l.b16 %v7063
      %v7129 = vunpack.c.l.b16 %v7064
      %v7130 = vunpack.c.l.b16 %v7065
      %v7131 = vunpack.c.l.b16 %v7066
      %v7132 = vunpack.c.l.b16 %v7067
      %v7133 = vunpack.c.l.b16 %v7068
      %v7134 = vunpack.c.l.b16 %v7069
      %v7135 = vunpack.c.l.b16 %v7070
      %v7136 = vunpack.c.l.b16 %v7071
      %v7137 = vunpack.c.l.b16 %v7072
      %v7138 = vunpack.c.l.b16 %v7073
      %v7139 = vunpack.c.l.b16 %v7074
      %v7140 = vunpack.c.l.b16 %v7075
      %v7141 = vunpack.c.l.b16 %v7076
      %v7142 = vunpack.c.l.b16 %v7077
      %v7143 = vunpack.c.l.b16 %v7078
      %v7144 = vunpack.c.l.b16 %v7079
      %v7145 = vunpack.c.l.b16 %v7080
      %v7146 = vunpack.c.l.b16 %v7081
      %v7147 = vunpack.c.l.b16 %v7082
      %v7148 = vunpack.c.l.b16 %v7083
      %v7149 = vpack.c.b16 %v7118, %v7117
      %v7150 = vpack.c.b16 %v7120, %v7119
      %v7151 = vpack.c.b16 %v7122, %v7121
      %v7152 = vpack.c.b16 %v7124, %v7123
      %v7153 = vpack.c.b16 %v7126, %v7125
      %v7154 = vpack.c.b16 %v7128, %v7127
      %v7155 = vpack.c.b16 %v7130, %v7129
      %v7156 = vpack.c.b16 %v7132, %v7131
      %v7157 = vpack.c.b16 %v7134, %v7133
      %v7158 = vpack.c.b16 %v7136, %v7135
      %v7159 = vpack.c.b16 %v7138, %v7137
      %v7160 = vpack.c.b16 %v7140, %v7139
      %v7161 = vpack.c.b16 %v7142, %v7141
      %v7162 = vpack.c.b16 %v7144, %v7143
      %v7163 = vpack.c.b16 %v7146, %v7145
      %v7164 = vpack.c.b16 %v7148, %v7147
      %vm7165 = vcmask 64512
      %v7167 = vsel %vm7165, %v7149, 0
      %v7170 = vsel %vm7165, %v7150, 0
      %v7173 = vsel %vm7165, %v7151, 0
      %v7176 = vsel %vm7165, %v7152, 0
      %v7179 = vsel %vm7165, %v7153, 0
      %v7182 = vsel %vm7165, %v7154, 0
      %v7185 = vsel %vm7165, %v7155, 0
      %v7188 = vsel %vm7165, %v7156, 0
      %v7191 = vsel %vm7165, %v7157, 0
      %v7194 = vsel %vm7165, %v7158, 0
      %v7197 = vsel %vm7165, %v7159, 0
      %v7200 = vsel %vm7165, %v7160, 0
      %v7203 = vsel %vm7165, %v7161, 0
      %v7206 = vsel %vm7165, %v7162, 0
      %v7209 = vsel %vm7165, %v7163, 0
      %v7212 = vsel %vm7165, %v7164, 0
      %vm7214 = vcmask 1043456
      %v7216 = vsel %vm7214, %v7084, 0
      %7218 = vmatprep.subr.bf16.mxu0 0
      %7219 = vmatpush1.bf16.msra.mxu0 0
      %7220 = vmatprep.subr.bf16.mxu0 0
      %7221 = vmatpush1.bf16.msra.mxu0 0
      %7222 = vmatprep.subr.bf16.mxu0 0
      %7223 = vmatpush1.bf16.msra.mxu0 0
      %7224 = vmatprep.subr.bf16.mxu0 0
      %7225 = vmatpush1.bf16.msra.mxu0 0
      %7226 = vmatprep.subr.bf16.mxu0 0
      %7227 = vmatpush1.bf16.msra.mxu0 0
      %7228 = vmatprep.subr.bf16.mxu0 0
      %7229 = vmatpush1.bf16.msra.mxu0 0
      %7230 = vmatprep.subr.bf16.mxu0 0
      %7231 = vmatpush1.bf16.msra.mxu0 0
      %7232 = vmatprep.subr.bf16.mxu0 0
      %7233 = vmatpush1.bf16.msra.mxu0 %v7216
      %7234 = vmatprep.subr.bf16.mxu0 0
      %7235 = vmatpush2.bf16.msra.mxu0 0
      %7236 = vmatprep.subr.bf16.mxu0 0
      %7237 = vmatpush2.bf16.msra.mxu0 0
      %7238 = vmatprep.subr.bf16.mxu0 0
      %7239 = vmatpush2.bf16.msra.mxu0 0
      %7240 = vmatprep.subr.bf16.mxu0 0
      %7241 = vmatpush2.bf16.msra.mxu0 0
      %7242 = vmatprep.subr.bf16.mxu0 0
      %7243 = vmatpush2.bf16.msra.mxu0 0
      %7244 = vmatprep.subr.bf16.mxu0 0
      %7245 = vmatpush2.bf16.msra.mxu0 0
      %7246 = vmatprep.subr.bf16.mxu0 0
      %7247 = vmatpush2.bf16.msra.mxu0 0
      %7248 = vmatprep.subr.bf16.mxu0 0
      %7249 = vmatpush2.bf16.msra.mxu0 0
      %7250 = vmatprep.mubr.bf16.mxu0 0
      %7251 = vmatmul.mubr.bf16.gmra.mxu0 %v7167
      %v7252 = vpop.f32.mrf.mxu0
      %v7253 = vadd.f32 0.0, %v7252
      %v7254 = vpop.f32.mrf.mxu0
      %v7255 = vpop.f32.mrf.mxu0
      %v7256 = vadd.f32 0.0, %v7255
      %v7257 = vpop.f32.mrf.mxu0
      %7258 = vmatprep.mubr.bf16.mxu0 0
      %7259 = vmatmul.mubr.bf16.gmra.mxu0 %v7170
      %v7260 = vpop.f32.mrf.mxu0
      %v7261 = vadd.f32 0.0, %v7260
      %v7262 = vpop.f32.mrf.mxu0
      %v7263 = vpop.f32.mrf.mxu0
      %v7264 = vadd.f32 0.0, %v7263
      %v7265 = vpop.f32.mrf.mxu0
      %7266 = vmatprep.mubr.bf16.mxu0 0
      %7267 = vmatmul.mubr.bf16.gmra.mxu0 %v7173
      %v7268 = vpop.f32.mrf.mxu0
      %v7269 = vadd.f32 0.0, %v7268
      %v7270 = vpop.f32.mrf.mxu0
      %v7271 = vpop.f32.mrf.mxu0
      %v7272 = vadd.f32 0.0, %v7271
      %v7273 = vpop.f32.mrf.mxu0
      %7274 = vmatprep.mubr.bf16.mxu0 0
      %7275 = vmatmul.mubr.bf16.gmra.mxu0 %v7176
      %v7276 = vpop.f32.mrf.mxu0
      %v7277 = vadd.f32 0.0, %v7276
      %v7278 = vpop.f32.mrf.mxu0
      %v7279 = vpop.f32.mrf.mxu0
      %v7280 = vadd.f32 0.0, %v7279
      %v7281 = vpop.f32.mrf.mxu0
      %7282 = vmatprep.mubr.bf16.mxu0 0
      %7283 = vmatmul.mubr.bf16.gmra.mxu0 %v7179
      %v7284 = vpop.f32.mrf.mxu0
      %v7285 = vadd.f32 0.0, %v7284
      %v7286 = vpop.f32.mrf.mxu0
      %v7287 = vpop.f32.mrf.mxu0
      %v7288 = vadd.f32 0.0, %v7287
      %v7289 = vpop.f32.mrf.mxu0
      %7290 = vmatprep.mubr.bf16.mxu0 0
      %7291 = vmatmul.mubr.bf16.gmra.mxu0 %v7182
      %v7292 = vpop.f32.mrf.mxu0
      %v7293 = vadd.f32 0.0, %v7292
      %v7294 = vpop.f32.mrf.mxu0
      %v7295 = vpop.f32.mrf.mxu0
      %v7296 = vadd.f32 0.0, %v7295
      %v7297 = vpop.f32.mrf.mxu0
      %7298 = vmatprep.mubr.bf16.mxu0 0
      %7299 = vmatmul.mubr.bf16.gmra.mxu0 %v7185
      %v7300 = vpop.f32.mrf.mxu0
      %v7301 = vadd.f32 0.0, %v7300
      %v7302 = vpop.f32.mrf.mxu0
      %v7303 = vpop.f32.mrf.mxu0
      %v7304 = vadd.f32 0.0, %v7303
      %v7305 = vpop.f32.mrf.mxu0
      %7306 = vmatprep.mubr.bf16.mxu0 0
      %7307 = vmatmul.mubr.bf16.gmra.mxu0 %v7188
      %v7308 = vpop.f32.mrf.mxu0
      %v7309 = vadd.f32 0.0, %v7308
      %v7310 = vpop.f32.mrf.mxu0
      %v7311 = vpop.f32.mrf.mxu0
      %v7312 = vadd.f32 0.0, %v7311
      %v7313 = vpop.f32.mrf.mxu0
      %7314 = vmatprep.mubr.bf16.mxu0 0
      %7315 = vmatmul.mubr.bf16.gmra.mxu0 %v7191
      %v7316 = vpop.f32.mrf.mxu0
      %v7317 = vadd.f32 0.0, %v7316
      %v7318 = vpop.f32.mrf.mxu0
      %v7319 = vpop.f32.mrf.mxu0
      %v7320 = vadd.f32 0.0, %v7319
      %v7321 = vpop.f32.mrf.mxu0
      %7322 = vmatprep.mubr.bf16.mxu0 0
      %7323 = vmatmul.mubr.bf16.gmra.mxu0 %v7194
      %v7324 = vpop.f32.mrf.mxu0
      %v7325 = vadd.f32 0.0, %v7324
      %v7326 = vpop.f32.mrf.mxu0
      %v7327 = vpop.f32.mrf.mxu0
      %v7328 = vadd.f32 0.0, %v7327
      %v7329 = vpop.f32.mrf.mxu0
      %7330 = vmatprep.mubr.bf16.mxu0 0
      %7331 = vmatmul.mubr.bf16.gmra.mxu0 %v7197
      %v7332 = vpop.f32.mrf.mxu0
      %v7333 = vadd.f32 0.0, %v7332
      %v7334 = vpop.f32.mrf.mxu0
      %v7335 = vpop.f32.mrf.mxu0
      %v7336 = vadd.f32 0.0, %v7335
      %v7337 = vpop.f32.mrf.mxu0
      %7338 = vmatprep.mubr.bf16.mxu0 0
      %7339 = vmatmul.mubr.bf16.gmra.mxu0 %v7200
      %v7340 = vpop.f32.mrf.mxu0
      %v7341 = vadd.f32 0.0, %v7340
      %v7342 = vpop.f32.mrf.mxu0
      %v7343 = vpop.f32.mrf.mxu0
      %v7344 = vadd.f32 0.0, %v7343
      %v7345 = vpop.f32.mrf.mxu0
      %7346 = vmatprep.mubr.bf16.mxu0 0
      %7347 = vmatmul.mubr.bf16.gmra.mxu0 %v7203
      %v7348 = vpop.f32.mrf.mxu0
      %v7349 = vadd.f32 0.0, %v7348
      %v7350 = vpop.f32.mrf.mxu0
      %v7351 = vpop.f32.mrf.mxu0
      %v7352 = vadd.f32 0.0, %v7351
      %v7353 = vpop.f32.mrf.mxu0
      %7354 = vmatprep.mubr.bf16.mxu0 0
      %7355 = vmatmul.mubr.bf16.gmra.mxu0 %v7206
      %v7356 = vpop.f32.mrf.mxu0
      %v7357 = vadd.f32 0.0, %v7356
      %v7358 = vpop.f32.mrf.mxu0
      %v7359 = vpop.f32.mrf.mxu0
      %v7360 = vadd.f32 0.0, %v7359
      %v7361 = vpop.f32.mrf.mxu0
      %7362 = vmatprep.mubr.bf16.mxu0 0
      %7363 = vmatmul.mubr.bf16.gmra.mxu0 %v7209
      %v7364 = vpop.f32.mrf.mxu0
      %v7365 = vadd.f32 0.0, %v7364
      %v7366 = vpop.f32.mrf.mxu0
      %v7367 = vpop.f32.mrf.mxu0
      %v7368 = vadd.f32 0.0, %v7367
      %v7369 = vpop.f32.mrf.mxu0
      %7370 = vmatprep.mubr.bf16.mxu0 0
      %7371 = vmatmul.mubr.bf16.gmra.mxu0 %v7212
      %v7372 = vpop.f32.mrf.mxu0
      %v7373 = vadd.f32 0.0, %v7372
      %v7374 = vpop.f32.mrf.mxu0
      %v7375 = vpop.f32.mrf.mxu0
      %v7376 = vadd.f32 0.0, %v7375
      %v7377 = vpop.f32.mrf.mxu0
      %7378 = vdwg.mxu0
      %v7381 = vunpack.c.l.b16 %v7050
      %v7382 = vunpack.c.l.b16 %v7051
      %v7383 = vpack.c.b16 %v7382, %v7381
      %v7386 = vsel %vm893, %v7034, 0
      %v7389 = vsel %vm893, %v7035, 0
      %v7392 = vsel %vm893, %v7036, 0
      %v7395 = vsel %vm893, %v7037, 0
      %v7398 = vsel %vm893, %v7038, 0
      %v7401 = vsel %vm893, %v7039, 0
      %v7404 = vsel %vm893, %v7040, 0
      %v7407 = vsel %vm893, %v7041, 0
      %v7410 = vsel %vm893, %v7042, 0
      %v7413 = vsel %vm893, %v7043, 0
      %v7416 = vsel %vm893, %v7044, 0
      %v7419 = vsel %vm893, %v7045, 0
      %v7422 = vsel %vm893, %v7046, 0
      %v7425 = vsel %vm893, %v7047, 0
      %v7428 = vsel %vm893, %v7048, 0
      %v7431 = vsel %vm893, %v7049, 0
      %7433 = vmatprep.subr.bf16.mxu0 0
      %7434 = vmatpush1.bf16.msra.mxu0 0
      %7435 = vmatprep.subr.bf16.mxu0 0
      %7436 = vmatpush1.bf16.msra.mxu0 0
      %7437 = vmatprep.subr.bf16.mxu0 0
      %7438 = vmatpush1.bf16.msra.mxu0 0
      %7439 = vmatprep.subr.bf16.mxu0 0
      %7440 = vmatpush1.bf16.msra.mxu0 0
      %7441 = vmatprep.subr.bf16.mxu0 0
      %7442 = vmatpush1.bf16.msra.mxu0 0
      %7443 = vmatprep.subr.bf16.mxu0 0
      %7444 = vmatpush1.bf16.msra.mxu0 0
      %7445 = vmatprep.subr.bf16.mxu0 0
      %7446 = vmatpush1.bf16.msra.mxu0 0
      %7447 = vmatprep.subr.bf16.mxu0 0
      %7448 = vmatpush1.bf16.msra.mxu0 %v7383
      %7449 = vmatprep.subr.bf16.mxu0 0
      %7450 = vmatpush2.bf16.msra.mxu0 0
      %7451 = vmatprep.subr.bf16.mxu0 0
      %7452 = vmatpush2.bf16.msra.mxu0 0
      %7453 = vmatprep.subr.bf16.mxu0 0
      %7454 = vmatpush2.bf16.msra.mxu0 0
      %7455 = vmatprep.subr.bf16.mxu0 0
      %7456 = vmatpush2.bf16.msra.mxu0 0
      %7457 = vmatprep.subr.bf16.mxu0 0
      %7458 = vmatpush2.bf16.msra.mxu0 0
      %7459 = vmatprep.subr.bf16.mxu0 0
      %7460 = vmatpush2.bf16.msra.mxu0 0
      %7461 = vmatprep.subr.bf16.mxu0 0
      %7462 = vmatpush2.bf16.msra.mxu0 0
      %7463 = vmatprep.subr.bf16.mxu0 0
      %7464 = vmatpush2.bf16.msra.mxu0 0
      %7465 = vmatprep.mubr.bf16.mxu0 0
      %7466 = vmatmul.mubr.bf16.gmra.mxu0 %v7386
      %v7467 = vpop.f32.mrf.mxu0
      %v7468 = vadd.f32 %v7253, %v7467
      %v7469 = vpop.f32.mrf.mxu0
      %v7470 = vpop.f32.mrf.mxu0
      %v7471 = vadd.f32 %v7256, %v7470
      %v7472 = vpop.f32.mrf.mxu0
      %7473 = vmatprep.mubr.bf16.mxu0 0
      %7474 = vmatmul.mubr.bf16.gmra.mxu0 %v7389
      %v7475 = vpop.f32.mrf.mxu0
      %v7476 = vadd.f32 %v7261, %v7475
      %v7477 = vpop.f32.mrf.mxu0
      %v7478 = vpop.f32.mrf.mxu0
      %v7479 = vadd.f32 %v7264, %v7478
      %v7480 = vpop.f32.mrf.mxu0
      %7481 = vmatprep.mubr.bf16.mxu0 0
      %7482 = vmatmul.mubr.bf16.gmra.mxu0 %v7392
      %v7483 = vpop.f32.mrf.mxu0
      %v7484 = vadd.f32 %v7269, %v7483
      %v7485 = vpop.f32.mrf.mxu0
      %v7486 = vpop.f32.mrf.mxu0
      %v7487 = vadd.f32 %v7272, %v7486
      %v7488 = vpop.f32.mrf.mxu0
      %7489 = vmatprep.mubr.bf16.mxu0 0
      %7490 = vmatmul.mubr.bf16.gmra.mxu0 %v7395
      %v7491 = vpop.f32.mrf.mxu0
      %v7492 = vadd.f32 %v7277, %v7491
      %v7493 = vpop.f32.mrf.mxu0
      %v7494 = vpop.f32.mrf.mxu0
      %v7495 = vadd.f32 %v7280, %v7494
      %v7496 = vpop.f32.mrf.mxu0
      %7497 = vmatprep.mubr.bf16.mxu0 0
      %7498 = vmatmul.mubr.bf16.gmra.mxu0 %v7398
      %v7499 = vpop.f32.mrf.mxu0
      %v7500 = vadd.f32 %v7285, %v7499
      %v7501 = vpop.f32.mrf.mxu0
      %v7502 = vpop.f32.mrf.mxu0
      %v7503 = vadd.f32 %v7288, %v7502
      %v7504 = vpop.f32.mrf.mxu0
      %7505 = vmatprep.mubr.bf16.mxu0 0
      %7506 = vmatmul.mubr.bf16.gmra.mxu0 %v7401
      %v7507 = vpop.f32.mrf.mxu0
      %v7508 = vadd.f32 %v7293, %v7507
      %v7509 = vpop.f32.mrf.mxu0
      %v7510 = vpop.f32.mrf.mxu0
      %v7511 = vadd.f32 %v7296, %v7510
      %v7512 = vpop.f32.mrf.mxu0
      %7513 = vmatprep.mubr.bf16.mxu0 0
      %7514 = vmatmul.mubr.bf16.gmra.mxu0 %v7404
      %v7515 = vpop.f32.mrf.mxu0
      %v7516 = vadd.f32 %v7301, %v7515
      %v7517 = vpop.f32.mrf.mxu0
      %v7518 = vpop.f32.mrf.mxu0
      %v7519 = vadd.f32 %v7304, %v7518
      %v7520 = vpop.f32.mrf.mxu0
      %7521 = vmatprep.mubr.bf16.mxu0 0
      %7522 = vmatmul.mubr.bf16.gmra.mxu0 %v7407
      %v7523 = vpop.f32.mrf.mxu0
      %v7524 = vadd.f32 %v7309, %v7523
      %v7525 = vpop.f32.mrf.mxu0
      %v7526 = vpop.f32.mrf.mxu0
      %v7527 = vadd.f32 %v7312, %v7526
      %v7528 = vpop.f32.mrf.mxu0
      %7529 = vmatprep.mubr.bf16.mxu0 0
      %7530 = vmatmul.mubr.bf16.gmra.mxu0 %v7410
      %v7531 = vpop.f32.mrf.mxu0
      %v7532 = vadd.f32 %v7317, %v7531
      %v7533 = vpop.f32.mrf.mxu0
      %v7534 = vpop.f32.mrf.mxu0
      %v7535 = vadd.f32 %v7320, %v7534
      %v7536 = vpop.f32.mrf.mxu0
      %7537 = vmatprep.mubr.bf16.mxu0 0
      %7538 = vmatmul.mubr.bf16.gmra.mxu0 %v7413
      %v7539 = vpop.f32.mrf.mxu0
      %v7540 = vadd.f32 %v7325, %v7539
      %v7541 = vpop.f32.mrf.mxu0
      %v7542 = vpop.f32.mrf.mxu0
      %v7543 = vadd.f32 %v7328, %v7542
      %v7544 = vpop.f32.mrf.mxu0
      %7545 = vmatprep.mubr.bf16.mxu0 0
      %7546 = vmatmul.mubr.bf16.gmra.mxu0 %v7416
      %v7547 = vpop.f32.mrf.mxu0
      %v7548 = vadd.f32 %v7333, %v7547
      %v7549 = vpop.f32.mrf.mxu0
      %v7550 = vpop.f32.mrf.mxu0
      %v7551 = vadd.f32 %v7336, %v7550
      %v7552 = vpop.f32.mrf.mxu0
      %7553 = vmatprep.mubr.bf16.mxu0 0
      %7554 = vmatmul.mubr.bf16.gmra.mxu0 %v7419
      %v7555 = vpop.f32.mrf.mxu0
      %v7556 = vadd.f32 %v7341, %v7555
      %v7557 = vpop.f32.mrf.mxu0
      %v7558 = vpop.f32.mrf.mxu0
      %v7559 = vadd.f32 %v7344, %v7558
      %v7560 = vpop.f32.mrf.mxu0
      %7561 = vmatprep.mubr.bf16.mxu0 0
      %7562 = vmatmul.mubr.bf16.gmra.mxu0 %v7422
      %v7563 = vpop.f32.mrf.mxu0
      %v7564 = vadd.f32 %v7349, %v7563
      %v7565 = vpop.f32.mrf.mxu0
      %v7566 = vpop.f32.mrf.mxu0
      %v7567 = vadd.f32 %v7352, %v7566
      %v7568 = vpop.f32.mrf.mxu0
      %7569 = vmatprep.mubr.bf16.mxu0 0
      %7570 = vmatmul.mubr.bf16.gmra.mxu0 %v7425
      %v7571 = vpop.f32.mrf.mxu0
      %v7572 = vadd.f32 %v7357, %v7571
      %v7573 = vpop.f32.mrf.mxu0
      %v7574 = vpop.f32.mrf.mxu0
      %v7575 = vadd.f32 %v7360, %v7574
      %v7576 = vpop.f32.mrf.mxu0
      %7577 = vmatprep.mubr.bf16.mxu0 0
      %7578 = vmatmul.mubr.bf16.gmra.mxu0 %v7428
      %v7579 = vpop.f32.mrf.mxu0
      %v7580 = vadd.f32 %v7365, %v7579
      %v7581 = vpop.f32.mrf.mxu0
      %v7582 = vpop.f32.mrf.mxu0
      %v7583 = vadd.f32 %v7368, %v7582
      %v7584 = vpop.f32.mrf.mxu0
      %7585 = vmatprep.mubr.bf16.mxu0 0
      %7586 = vmatmul.mubr.bf16.gmra.mxu0 %v7431
      %v7587 = vpop.f32.mrf.mxu0
      %v7588 = vadd.f32 %v7373, %v7587
      %v7589 = vpop.f32.mrf.mxu0
      %v7590 = vpop.f32.mrf.mxu0
      %v7591 = vadd.f32 %v7376, %v7590
      %v7592 = vpop.f32.mrf.mxu0
      %7593 = vdwg.mxu0
      %v7594 = vpack.c.bf16 %v7471, %v7468
      %v7595 = vpack.c.bf16 %v7479, %v7476
      %v7596 = vpack.c.bf16 %v7487, %v7484
      %v7597 = vpack.c.bf16 %v7495, %v7492
      %v7598 = vpack.c.bf16 %v7503, %v7500
      %v7599 = vpack.c.bf16 %v7511, %v7508
      %v7600 = vpack.c.bf16 %v7519, %v7516
      %v7601 = vpack.c.bf16 %v7527, %v7524
      %v7602 = vpack.c.bf16 %v7535, %v7532
      %v7603 = vpack.c.bf16 %v7543, %v7540
      %v7604 = vpack.c.bf16 %v7551, %v7548
      %v7605 = vpack.c.bf16 %v7559, %v7556
      %v7606 = vpack.c.bf16 %v7567, %v7564
      %v7607 = vpack.c.bf16 %v7575, %v7572
      %v7608 = vpack.c.bf16 %v7583, %v7580
      %v7609 = vpack.c.bf16 %v7591, %v7588
      %v7610 = vld [vmem:[%s13] sm:$0xff]
      %v7611 = vld [vmem:[%s13 + $0x8] sm:$0xff]
      %v7612 = vld [vmem:[%s13 + $0x10] sm:$0xff]
      %v7613 = vld [vmem:[%s13 + $0x18] sm:$0xff]
      %v7614 = vld [vmem:[%s13 + $0x20] sm:$0xff]
      %v7615 = vld [vmem:[%s13 + $0x28] sm:$0xff]
      %v7616 = vld [vmem:[%s13 + $0x30] sm:$0xff]
      %v7617 = vld [vmem:[%s13 + $0x38] sm:$0xff]
      %v7618 = vld [vmem:[%s13 + $0x40] sm:$0xff]
      %v7619 = vld [vmem:[%s13 + $0x48] sm:$0xff]
      %v7620 = vld [vmem:[%s13 + $0x50] sm:$0xff]
      %v7621 = vld [vmem:[%s13 + $0x58] sm:$0xff]
      %v7622 = vld [vmem:[%s13 + $0x60] sm:$0xff]
      %v7623 = vld [vmem:[%s13 + $0x68] sm:$0xff]
      %v7624 = vld [vmem:[%s13 + $0x70] sm:$0xff]
      %v7625 = vld [vmem:[%s13 + $0x78] sm:$0xff]
      %v7626 = vld [vmem:[%s13 + $0x80] sm:$0xff]
      %v7627 = vld [vmem:[%s13 + $0x88] sm:$0xff]
      %v7628 = vld [vmem:[%s13 + $0x90] sm:$0xff]
      %v7629 = vld [vmem:[%s13 + $0x98] sm:$0xff]
      %v7630 = vld [vmem:[%s13 + $0xa0] sm:$0xff]
      %v7631 = vld [vmem:[%s13 + $0xa8] sm:$0xff]
      %v7632 = vld [vmem:[%s13 + $0xb0] sm:$0xff]
      %v7633 = vld [vmem:[%s13 + $0xb8] sm:$0xff]
      %v7634 = vld [vmem:[%s14] sm:$0xf]
      %v7635 = vld [vmem:[%s14 + $0x4] sm:$0xf]
      %v7636 = vld [vmem:[%s14 + $0x8] sm:$0xf]
      %v7637 = vld [vmem:[%s14 + $0xc] sm:$0xf]
      %v7638 = vld [vmem:[%s14 + $0x10] sm:$0xf]
      %v7644 = vunpack.c.l.b16 %v7634
      %v7645 = vunpack.c.l.b16 %v7635
      %v7646 = vunpack.c.l.b16 %v7636
      %v7647 = vunpack.c.l.b16 %v7637
      %v7648 = vunpack.c.l.b16 %v7638
      %v7649 = vpack.c.b16 %v7645, %v7644
      %v7650 = vpack.c.b16 %v7647, %v7646
      %v7651 = vpack.c.b16 %v7648, %v7648
      %vm7654 = vcmask 326656
      %v7656 = vsel %vm7654, %v7594, 0
      %v7659 = vsel %vm7654, %v7595, 0
      %v7662 = vsel %vm7654, %v7596, 0
      %v7665 = vsel %vm7654, %v7597, 0
      %v7668 = vsel %vm7654, %v7598, 0
      %v7671 = vsel %vm7654, %v7599, 0
      %v7674 = vsel %vm7654, %v7600, 0
      %v7677 = vsel %vm7654, %v7601, 0
      %v7680 = vsel %vm7654, %v7602, 0
      %v7683 = vsel %vm7654, %v7603, 0
      %v7686 = vsel %vm7654, %v7604, 0
      %v7689 = vsel %vm7654, %v7605, 0
      %v7692 = vsel %vm7654, %v7606, 0
      %v7695 = vsel %vm7654, %v7607, 0
      %v7698 = vsel %vm7654, %v7608, 0
      %v7701 = vsel %vm7654, %v7609, 0
      %v7704 = vsel %vm7214, %v7651, 0
      %7706 = vmatprep.subr.bf16.mxu0 0
      %7707 = vmatpush1.bf16.msra.mxu0 0
      %7708 = vmatprep.subr.bf16.mxu0 0
      %7709 = vmatpush1.bf16.msra.mxu0 0
      %7710 = vmatprep.subr.bf16.mxu0 0
      %7711 = vmatpush1.bf16.msra.mxu0 0
      %7712 = vmatprep.subr.bf16.mxu0 0
      %7713 = vmatpush1.bf16.msra.mxu0 0
      %7714 = vmatprep.subr.bf16.mxu0 0
      %7715 = vmatpush1.bf16.msra.mxu0 0
      %7716 = vmatprep.subr.bf16.mxu0 0
      %7717 = vmatpush1.bf16.msra.mxu0 %v7704
      %7718 = vmatprep.subr.bf16.mxu0 0
      %7719 = vmatpush1.bf16.msra.mxu0 %v7650
      %7720 = vmatprep.subr.bf16.mxu0 0
      %7721 = vmatpush1.bf16.msra.mxu0 %v7649
      %7722 = vmatprep.subr.bf16.mxu0 0
      %7723 = vmatpush2.bf16.msra.mxu0 0
      %7724 = vmatprep.subr.bf16.mxu0 0
      %7725 = vmatpush2.bf16.msra.mxu0 0
      %7726 = vmatprep.subr.bf16.mxu0 0
      %7727 = vmatpush2.bf16.msra.mxu0 0
      %7728 = vmatprep.subr.bf16.mxu0 0
      %7729 = vmatpush2.bf16.msra.mxu0 0
      %7730 = vmatprep.subr.bf16.mxu0 0
      %7731 = vmatpush2.bf16.msra.mxu0 0
      %7732 = vmatprep.subr.bf16.mxu0 0
      %7733 = vmatpush2.bf16.msra.mxu0 0
      %7734 = vmatprep.subr.bf16.mxu0 0
      %7735 = vmatpush2.bf16.msra.mxu0 0
      %7736 = vmatprep.subr.bf16.mxu0 0
      %7737 = vmatpush2.bf16.msra.mxu0 0
      %7738 = vmatprep.mubr.bf16.mxu0 0
      %7739 = vmatmul.mubr.bf16.gmra.mxu0 %v7656
      %v7740 = vpop.f32.mrf.mxu0
      %v7741 = vadd.f32 0.0, %v7740
      %v7742 = vpop.f32.mrf.mxu0
      %v7743 = vpop.f32.mrf.mxu0
      %v7744 = vadd.f32 0.0, %v7743
      %v7745 = vpop.f32.mrf.mxu0
      %7746 = vmatprep.mubr.bf16.mxu0 0
      %7747 = vmatmul.mubr.bf16.gmra.mxu0 %v7659
      %v7748 = vpop.f32.mrf.mxu0
      %v7749 = vadd.f32 0.0, %v7748
      %v7750 = vpop.f32.mrf.mxu0
      %v7751 = vpop.f32.mrf.mxu0
      %v7752 = vadd.f32 0.0, %v7751
      %v7753 = vpop.f32.mrf.mxu0
      %7754 = vmatprep.mubr.bf16.mxu0 0
      %7755 = vmatmul.mubr.bf16.gmra.mxu0 %v7662
      %v7756 = vpop.f32.mrf.mxu0
      %v7757 = vadd.f32 0.0, %v7756
      %v7758 = vpop.f32.mrf.mxu0
      %v7759 = vpop.f32.mrf.mxu0
      %v7760 = vadd.f32 0.0, %v7759
      %v7761 = vpop.f32.mrf.mxu0
      %7762 = vmatprep.mubr.bf16.mxu0 0
      %7763 = vmatmul.mubr.bf16.gmra.mxu0 %v7665
      %v7764 = vpop.f32.mrf.mxu0
      %v7765 = vadd.f32 0.0, %v7764
      %v7766 = vpop.f32.mrf.mxu0
      %v7767 = vpop.f32.mrf.mxu0
      %v7768 = vadd.f32 0.0, %v7767
      %v7769 = vpop.f32.mrf.mxu0
      %7770 = vmatprep.mubr.bf16.mxu0 0
      %7771 = vmatmul.mubr.bf16.gmra.mxu0 %v7668
      %v7772 = vpop.f32.mrf.mxu0
      %v7773 = vadd.f32 0.0, %v7772
      %v7774 = vpop.f32.mrf.mxu0
      %v7775 = vpop.f32.mrf.mxu0
      %v7776 = vadd.f32 0.0, %v7775
      %v7777 = vpop.f32.mrf.mxu0
      %7778 = vmatprep.mubr.bf16.mxu0 0
      %7779 = vmatmul.mubr.bf16.gmra.mxu0 %v7671
      %v7780 = vpop.f32.mrf.mxu0
      %v7781 = vadd.f32 0.0, %v7780
      %v7782 = vpop.f32.mrf.mxu0
      %v7783 = vpop.f32.mrf.mxu0
      %v7784 = vadd.f32 0.0, %v7783
      %v7785 = vpop.f32.mrf.mxu0
      %7786 = vmatprep.mubr.bf16.mxu0 0
      %7787 = vmatmul.mubr.bf16.gmra.mxu0 %v7674
      %v7788 = vpop.f32.mrf.mxu0
      %v7789 = vadd.f32 0.0, %v7788
      %v7790 = vpop.f32.mrf.mxu0
      %v7791 = vpop.f32.mrf.mxu0
      %v7792 = vadd.f32 0.0, %v7791
      %v7793 = vpop.f32.mrf.mxu0
      %7794 = vmatprep.mubr.bf16.mxu0 0
      %7795 = vmatmul.mubr.bf16.gmra.mxu0 %v7677
      %v7796 = vpop.f32.mrf.mxu0
      %v7797 = vadd.f32 0.0, %v7796
      %v7798 = vpop.f32.mrf.mxu0
      %v7799 = vpop.f32.mrf.mxu0
      %v7800 = vadd.f32 0.0, %v7799
      %v7801 = vpop.f32.mrf.mxu0
      %7802 = vmatprep.mubr.bf16.mxu0 0
      %7803 = vmatmul.mubr.bf16.gmra.mxu0 %v7680
      %v7804 = vpop.f32.mrf.mxu0
      %v7805 = vadd.f32 0.0, %v7804
      %v7806 = vpop.f32.mrf.mxu0
      %v7807 = vpop.f32.mrf.mxu0
      %v7808 = vadd.f32 0.0, %v7807
      %v7809 = vpop.f32.mrf.mxu0
      %7810 = vmatprep.mubr.bf16.mxu0 0
      %7811 = vmatmul.mubr.bf16.gmra.mxu0 %v7683
      %v7812 = vpop.f32.mrf.mxu0
      %v7813 = vadd.f32 0.0, %v7812
      %v7814 = vpop.f32.mrf.mxu0
      %v7815 = vpop.f32.mrf.mxu0
      %v7816 = vadd.f32 0.0, %v7815
      %v7817 = vpop.f32.mrf.mxu0
      %7818 = vmatprep.mubr.bf16.mxu0 0
      %7819 = vmatmul.mubr.bf16.gmra.mxu0 %v7686
      %v7820 = vpop.f32.mrf.mxu0
      %v7821 = vadd.f32 0.0, %v7820
      %v7822 = vpop.f32.mrf.mxu0
      %v7823 = vpop.f32.mrf.mxu0
      %v7824 = vadd.f32 0.0, %v7823
      %v7825 = vpop.f32.mrf.mxu0
      %7826 = vmatprep.mubr.bf16.mxu0 0
      %7827 = vmatmul.mubr.bf16.gmra.mxu0 %v7689
      %v7828 = vpop.f32.mrf.mxu0
      %v7829 = vadd.f32 0.0, %v7828
      %v7830 = vpop.f32.mrf.mxu0
      %v7831 = vpop.f32.mrf.mxu0
      %v7832 = vadd.f32 0.0, %v7831
      %v7833 = vpop.f32.mrf.mxu0
      %7834 = vmatprep.mubr.bf16.mxu0 0
      %7835 = vmatmul.mubr.bf16.gmra.mxu0 %v7692
      %v7836 = vpop.f32.mrf.mxu0
      %v7837 = vadd.f32 0.0, %v7836
      %v7838 = vpop.f32.mrf.mxu0
      %v7839 = vpop.f32.mrf.mxu0
      %v7840 = vadd.f32 0.0, %v7839
      %v7841 = vpop.f32.mrf.mxu0
      %7842 = vmatprep.mubr.bf16.mxu0 0
      %7843 = vmatmul.mubr.bf16.gmra.mxu0 %v7695
      %v7844 = vpop.f32.mrf.mxu0
      %v7845 = vadd.f32 0.0, %v7844
      %v7846 = vpop.f32.mrf.mxu0
      %v7847 = vpop.f32.mrf.mxu0
      %v7848 = vadd.f32 0.0, %v7847
      %v7849 = vpop.f32.mrf.mxu0
      %7850 = vmatprep.mubr.bf16.mxu0 0
      %7851 = vmatmul.mubr.bf16.gmra.mxu0 %v7698
      %v7852 = vpop.f32.mrf.mxu0
      %v7853 = vadd.f32 0.0, %v7852
      %v7854 = vpop.f32.mrf.mxu0
      %v7855 = vpop.f32.mrf.mxu0
      %v7856 = vadd.f32 0.0, %v7855
      %v7857 = vpop.f32.mrf.mxu0
      %7858 = vmatprep.mubr.bf16.mxu0 0
      %7859 = vmatmul.mubr.bf16.gmra.mxu0 %v7701
      %v7860 = vpop.f32.mrf.mxu0
      %v7861 = vadd.f32 0.0, %v7860
      %v7862 = vpop.f32.mrf.mxu0
      %v7863 = vpop.f32.mrf.mxu0
      %v7864 = vadd.f32 0.0, %v7863
      %v7865 = vpop.f32.mrf.mxu0
      %7866 = vdwg.mxu0
      %v7867 = vpack.c.bf16 %v7744, %v7741
      %v7868 = vpack.c.bf16 %v7752, %v7749
      %v7869 = vpack.c.bf16 %v7760, %v7757
      %v7870 = vpack.c.bf16 %v7768, %v7765
      %v7871 = vpack.c.bf16 %v7776, %v7773
      %v7872 = vpack.c.bf16 %v7784, %v7781
      %v7873 = vpack.c.bf16 %v7792, %v7789
      %v7874 = vpack.c.bf16 %v7800, %v7797
      %v7875 = vpack.c.bf16 %v7808, %v7805
      %v7876 = vpack.c.bf16 %v7816, %v7813
      %v7877 = vpack.c.bf16 %v7824, %v7821
      %v7878 = vpack.c.bf16 %v7832, %v7829
      %v7879 = vpack.c.bf16 %v7840, %v7837
      %v7880 = vpack.c.bf16 %v7848, %v7845
      %v7881 = vpack.c.bf16 %v7856, %v7853
      %v7882 = vpack.c.bf16 %v7864, %v7861
      %v7883 = vld [vmem:[%s12] sm:$0xff]
      %v7884 = vld [vmem:[%s12 + $0x8] sm:$0xff]
      %v7885 = vld [vmem:[%s12 + $0x10] sm:$0xff]
      %v7886 = vld [vmem:[%s12 + $0x18] sm:$0xff]
      %v7887 = vld [vmem:[%s12 + $0x20] sm:$0xff]
      %v7888 = vld [vmem:[%s12 + $0x28] sm:$0xff]
      %v7889 = vld [vmem:[%s12 + $0x30] sm:$0xff]
      %v7890 = vld [vmem:[%s12 + $0x38] sm:$0xff]
      %v7891 = vld [vmem:[%s12 + $0x40] sm:$0xff]
      %v7892 = vld [vmem:[%s12 + $0x48] sm:$0xff]
      %v7893 = vld [vmem:[%s12 + $0x50] sm:$0xff]
      %v7894 = vld [vmem:[%s12 + $0x58] sm:$0xff]
      %v7895 = vld [vmem:[%s12 + $0x60] sm:$0xff]
      %v7896 = vld [vmem:[%s12 + $0x68] sm:$0xff]
      %v7897 = vld [vmem:[%s12 + $0x70] sm:$0xff]
      %v7898 = vld [vmem:[%s12 + $0x78] sm:$0xff]
      %v7899 = vld [vmem:[%s12 + $0x80] sm:$0xff]
      %v7900 = vld [vmem:[%s12 + $0x88] sm:$0xff]
      %v7901 = vld [vmem:[%s12 + $0x90] sm:$0xff]
      %v7902 = vld [vmem:[%s12 + $0x98] sm:$0xff]
      %v7903 = vld [vmem:[%s12 + $0xa0] sm:$0xff]
      %v7904 = vld [vmem:[%s12 + $0xa8] sm:$0xff]
      %v7905 = vld [vmem:[%s12 + $0xb0] sm:$0xff]
      %v7906 = vld [vmem:[%s12 + $0xb8] sm:$0xff]
      %v7931 = vunpack.c.l.b16 %v7883
      %v7932 = vunpack.c.h.b16 %v7883
      %v7933 = vunpack.c.l.b16 %v7884
      %v7934 = vunpack.c.h.b16 %v7884
      %v7935 = vunpack.c.l.b16 %v7885
      %v7936 = vunpack.c.h.b16 %v7885
      %v7937 = vunpack.c.l.b16 %v7886
      %v7938 = vunpack.c.h.b16 %v7886
      %v7939 = vunpack.c.l.b16 %v7887
      %v7940 = vunpack.c.h.b16 %v7887
      %v7941 = vunpack.c.l.b16 %v7888
      %v7942 = vunpack.c.h.b16 %v7888
      %v7943 = vunpack.c.l.b16 %v7889
      %v7944 = vunpack.c.h.b16 %v7889
      %v7945 = vunpack.c.l.b16 %v7890
      %v7946 = vunpack.c.h.b16 %v7890
      %v7947 = vunpack.c.l.b16 %v7891
      %v7948 = vunpack.c.h.b16 %v7891
      %v7949 = vunpack.c.l.b16 %v7892
      %v7950 = vunpack.c.h.b16 %v7892
      %v7951 = vunpack.c.l.b16 %v7893
      %v7952 = vunpack.c.h.b16 %v7893
      %v7953 = vunpack.c.l.b16 %v7894
      %v7954 = vunpack.c.h.b16 %v7894
      %v7955 = vunpack.c.l.b16 %v7895
      %v7956 = vunpack.c.h.b16 %v7895
      %v7957 = vunpack.c.l.b16 %v7896
      %v7958 = vunpack.c.h.b16 %v7896
      %v7959 = vunpack.c.l.b16 %v7897
      %v7960 = vunpack.c.h.b16 %v7897
      %v7961 = vunpack.c.l.b16 %v7898
      %v7962 = vunpack.c.h.b16 %v7898
      %v7963 = vunpack.c.l.b16 %v7899
      %v7964 = vunpack.c.h.b16 %v7899
      %v7965 = vunpack.c.l.b16 %v7900
      %v7966 = vunpack.c.h.b16 %v7900
      %v7967 = vunpack.c.l.b16 %v7901
      %v7968 = vunpack.c.h.b16 %v7901
      %v7969 = vunpack.c.l.b16 %v7902
      %v7970 = vunpack.c.h.b16 %v7902
      %v7971 = vunpack.c.l.b16 %v7903
      %v7972 = vunpack.c.h.b16 %v7903
      %v7973 = vunpack.c.l.b16 %v7904
      %v7974 = vunpack.c.h.b16 %v7904
      %v7975 = vunpack.c.l.b16 %v7905
      %v7976 = vunpack.c.h.b16 %v7905
      %v7977 = vunpack.c.l.b16 %v7906
      %v7978 = vunpack.c.h.b16 %v7906
      %v7979 = vpack.c.b16 %v7933, %v7931
      %v7980 = vpack.c.b16 %v7934, %v7932
      %v7981 = vpack.c.b16 %v7937, %v7935
      %v7982 = vpack.c.b16 %v7938, %v7936
      %v7983 = vpack.c.b16 %v7941, %v7939
      %v7984 = vpack.c.b16 %v7942, %v7940
      %v7985 = vpack.c.b16 %v7945, %v7943
      %v7986 = vpack.c.b16 %v7946, %v7944
      %v7987 = vpack.c.b16 %v7949, %v7947
      %v7988 = vpack.c.b16 %v7950, %v7948
      %v7989 = vpack.c.b16 %v7953, %v7951
      %v7990 = vpack.c.b16 %v7954, %v7952
      %v7991 = vpack.c.b16 %v7957, %v7955
      %v7992 = vpack.c.b16 %v7958, %v7956
      %v7993 = vpack.c.b16 %v7961, %v7959
      %v7994 = vpack.c.b16 %v7962, %v7960
      %v7995 = vpack.c.b16 %v7965, %v7963
      %v7996 = vpack.c.b16 %v7966, %v7964
      %v7997 = vpack.c.b16 %v7969, %v7967
      %v7998 = vpack.c.b16 %v7970, %v7968
      %v7999 = vpack.c.b16 %v7973, %v7971
      %v8000 = vpack.c.b16 %v7974, %v7972
      %v8001 = vpack.c.b16 %v7977, %v7975
      %v8002 = vpack.c.b16 %v7978, %v7976
      %8027 = vmatprep.subr.bf16.mxu0 0
      %8028 = vmatpush1.bf16.msra.mxu0 %v7874
      %8029 = vmatprep.subr.bf16.mxu0 0
      %8030 = vmatpush1.bf16.msra.mxu0 %v7873
      %8031 = vmatprep.subr.bf16.mxu0 0
      %8032 = vmatpush1.bf16.msra.mxu0 %v7872
      %8033 = vmatprep.subr.bf16.mxu0 0
      %8034 = vmatpush1.bf16.msra.mxu0 %v7871
      %8035 = vmatprep.subr.bf16.mxu0 0
      %8036 = vmatpush1.bf16.msra.mxu0 %v7870
      %8037 = vmatprep.subr.bf16.mxu0 0
      %8038 = vmatpush1.bf16.msra.mxu0 %v7869
      %8039 = vmatprep.subr.bf16.mxu0 0
      %8040 = vmatpush1.bf16.msra.mxu0 %v7868
      %8041 = vmatprep.subr.bf16.mxu0 0
      %8042 = vmatpush1.bf16.msra.mxu0 %v7867
      %8043 = vmatprep.subr.bf16.mxu0 0
      %8044 = vmatpush2.bf16.msra.mxu0 %v7882
      %8045 = vmatprep.subr.bf16.mxu0 0
      %8046 = vmatpush2.bf16.msra.mxu0 %v7881
      %8047 = vmatprep.subr.bf16.mxu0 0
      %8048 = vmatpush2.bf16.msra.mxu0 %v7880
      %8049 = vmatprep.subr.bf16.mxu0 0
      %8050 = vmatpush2.bf16.msra.mxu0 %v7879
      %8051 = vmatprep.subr.bf16.mxu0 0
      %8052 = vmatpush2.bf16.msra.mxu0 %v7878
      %8053 = vmatprep.subr.bf16.mxu0 0
      %8054 = vmatpush2.bf16.msra.mxu0 %v7877
      %8055 = vmatprep.subr.bf16.mxu0 0
      %8056 = vmatpush2.bf16.msra.mxu0 %v7876
      %8057 = vmatprep.subr.bf16.mxu0 0
      %8058 = vmatpush2.bf16.msra.mxu0 %v7875
      %8059 = vmatprep.mubr.bf16.mxu0 %v7980
      %8060 = vmatmul.mubr.bf16.gmra.mxu0 %v7979
      %v8061 = vpop.f32.mrf.mxu0
      %v8062 = vadd.f32 0.0, %v8061
      %v8063 = vpop.f32.mrf.mxu0
      %v8064 = vpop.f32.mrf.mxu0
      %v8065 = vadd.f32 0.0, %v8064
      %v8066 = vpop.f32.mrf.mxu0
      %8067 = vmatprep.mubr.bf16.mxu0 %v7982
      %8068 = vmatmul.mubr.bf16.gmra.mxu0 %v7981
      %v8069 = vpop.f32.mrf.mxu0
      %v8070 = vadd.f32 0.0, %v8069
      %v8071 = vpop.f32.mrf.mxu0
      %v8072 = vpop.f32.mrf.mxu0
      %v8073 = vadd.f32 0.0, %v8072
      %v8074 = vpop.f32.mrf.mxu0
      %8075 = vmatprep.mubr.bf16.mxu0 %v7984
      %8076 = vmatmul.mubr.bf16.gmra.mxu0 %v7983
      %v8077 = vpop.f32.mrf.mxu0
      %v8078 = vadd.f32 0.0, %v8077
      %v8079 = vpop.f32.mrf.mxu0
      %v8080 = vpop.f32.mrf.mxu0
      %v8081 = vadd.f32 0.0, %v8080
      %v8082 = vpop.f32.mrf.mxu0
      %8083 = vmatprep.mubr.bf16.mxu0 %v7986
      %8084 = vmatmul.mubr.bf16.gmra.mxu0 %v7985
      %v8085 = vpop.f32.mrf.mxu0
      %v8086 = vadd.f32 0.0, %v8085
      %v8087 = vpop.f32.mrf.mxu0
      %v8088 = vpop.f32.mrf.mxu0
      %v8089 = vadd.f32 0.0, %v8088
      %v8090 = vpop.f32.mrf.mxu0
      %8091 = vmatprep.mubr.bf16.mxu0 %v7988
      %8092 = vmatmul.mubr.bf16.gmra.mxu0 %v7987
      %v8093 = vpop.f32.mrf.mxu0
      %v8094 = vadd.f32 0.0, %v8093
      %v8095 = vpop.f32.mrf.mxu0
      %v8096 = vpop.f32.mrf.mxu0
      %v8097 = vadd.f32 0.0, %v8096
      %v8098 = vpop.f32.mrf.mxu0
      %8099 = vmatprep.mubr.bf16.mxu0 %v7990
      %8100 = vmatmul.mubr.bf16.gmra.mxu0 %v7989
      %v8101 = vpop.f32.mrf.mxu0
      %v8102 = vadd.f32 0.0, %v8101
      %v8103 = vpop.f32.mrf.mxu0
      %v8104 = vpop.f32.mrf.mxu0
      %v8105 = vadd.f32 0.0, %v8104
      %v8106 = vpop.f32.mrf.mxu0
      %8107 = vmatprep.mubr.bf16.mxu0 %v7992
      %8108 = vmatmul.mubr.bf16.gmra.mxu0 %v7991
      %v8109 = vpop.f32.mrf.mxu0
      %v8110 = vadd.f32 0.0, %v8109
      %v8111 = vpop.f32.mrf.mxu0
      %v8112 = vpop.f32.mrf.mxu0
      %v8113 = vadd.f32 0.0, %v8112
      %v8114 = vpop.f32.mrf.mxu0
      %8115 = vmatprep.mubr.bf16.mxu0 %v7994
      %8116 = vmatmul.mubr.bf16.gmra.mxu0 %v7993
      %v8117 = vpop.f32.mrf.mxu0
      %v8118 = vadd.f32 0.0, %v8117
      %v8119 = vpop.f32.mrf.mxu0
      %v8120 = vpop.f32.mrf.mxu0
      %v8121 = vadd.f32 0.0, %v8120
      %v8122 = vpop.f32.mrf.mxu0
      %8123 = vmatprep.mubr.bf16.mxu0 %v7996
      %8124 = vmatmul.mubr.bf16.gmra.mxu0 %v7995
      %v8125 = vpop.f32.mrf.mxu0
      %v8126 = vadd.f32 0.0, %v8125
      %v8127 = vpop.f32.mrf.mxu0
      %v8128 = vpop.f32.mrf.mxu0
      %v8129 = vadd.f32 0.0, %v8128
      %v8130 = vpop.f32.mrf.mxu0
      %8131 = vmatprep.mubr.bf16.mxu0 %v7998
      %8132 = vmatmul.mubr.bf16.gmra.mxu0 %v7997
      %v8133 = vpop.f32.mrf.mxu0
      %v8134 = vadd.f32 0.0, %v8133
      %v8135 = vpop.f32.mrf.mxu0
      %v8136 = vpop.f32.mrf.mxu0
      %v8137 = vadd.f32 0.0, %v8136
      %v8138 = vpop.f32.mrf.mxu0
      %8139 = vmatprep.mubr.bf16.mxu0 %v8000
      %8140 = vmatmul.mubr.bf16.gmra.mxu0 %v7999
      %v8141 = vpop.f32.mrf.mxu0
      %v8142 = vadd.f32 0.0, %v8141
      %v8143 = vpop.f32.mrf.mxu0
      %v8144 = vpop.f32.mrf.mxu0
      %v8145 = vadd.f32 0.0, %v8144
      %v8146 = vpop.f32.mrf.mxu0
      %8147 = vmatprep.mubr.bf16.mxu0 %v8002
      %8148 = vmatmul.mubr.bf16.gmra.mxu0 %v8001
      %v8149 = vpop.f32.mrf.mxu0
      %v8150 = vadd.f32 0.0, %v8149
      %v8151 = vpop.f32.mrf.mxu0
      %v8152 = vpop.f32.mrf.mxu0
      %v8153 = vadd.f32 0.0, %v8152
      %v8154 = vpop.f32.mrf.mxu0
      %8155 = vdwg.mxu0
      %8157 = vset.pattern.permute.xlu0 0
      %8158 = vperm.xlu0 %8157, %v7610
      %v8159 = vpop.permute.xlu0 %8158
      %8162 = vset.pattern.permute.xlu0 0
      %8163 = vperm.xlu0 %8162, %v7611
      %v8164 = vpop.permute.xlu0 %8163
      %8167 = vset.pattern.permute.xlu0 0
      %8168 = vperm.xlu0 %8167, %v7612
      %v8169 = vpop.permute.xlu0 %8168
      %8172 = vset.pattern.permute.xlu0 0
      %8173 = vperm.xlu0 %8172, %v7613
      %v8174 = vpop.permute.xlu0 %8173
      %8177 = vset.pattern.permute.xlu0 0
      %8178 = vperm.xlu0 %8177, %v7614
      %v8179 = vpop.permute.xlu0 %8178
      %8182 = vset.pattern.permute.xlu0 0
      %8183 = vperm.xlu0 %8182, %v7615
      %v8184 = vpop.permute.xlu0 %8183
      %8187 = vset.pattern.permute.xlu0 0
      %8188 = vperm.xlu0 %8187, %v7616
      %v8189 = vpop.permute.xlu0 %8188
      %8192 = vset.pattern.permute.xlu0 0
      %8193 = vperm.xlu0 %8192, %v7617
      %v8194 = vpop.permute.xlu0 %8193
      %8197 = vset.pattern.permute.xlu0 0
      %8198 = vperm.xlu0 %8197, %v7618
      %v8199 = vpop.permute.xlu0 %8198
      %8202 = vset.pattern.permute.xlu0 0
      %8203 = vperm.xlu0 %8202, %v7619
      %v8204 = vpop.permute.xlu0 %8203
      %8207 = vset.pattern.permute.xlu0 0
      %8208 = vperm.xlu0 %8207, %v7620
      %v8209 = vpop.permute.xlu0 %8208
      %8212 = vset.pattern.permute.xlu0 0
      %8213 = vperm.xlu0 %8212, %v7621
      %v8214 = vpop.permute.xlu0 %8213
      %8217 = vset.pattern.permute.xlu0 0
      %8218 = vperm.xlu0 %8217, %v7622
      %v8219 = vpop.permute.xlu0 %8218
      %8222 = vset.pattern.permute.xlu0 0
      %8223 = vperm.xlu0 %8222, %v7623
      %v8224 = vpop.permute.xlu0 %8223
      %8227 = vset.pattern.permute.xlu0 0
      %8228 = vperm.xlu0 %8227, %v7624
      %v8229 = vpop.permute.xlu0 %8228
      %8232 = vset.pattern.permute.xlu0 0
      %8233 = vperm.xlu0 %8232, %v7625
      %v8234 = vpop.permute.xlu0 %8233
      %8237 = vset.pattern.permute.xlu0 0
      %8238 = vperm.xlu0 %8237, %v7626
      %v8239 = vpop.permute.xlu0 %8238
      %8242 = vset.pattern.permute.xlu0 0
      %8243 = vperm.xlu0 %8242, %v7627
      %v8244 = vpop.permute.xlu0 %8243
      %8247 = vset.pattern.permute.xlu0 0
      %8248 = vperm.xlu0 %8247, %v7628
      %v8249 = vpop.permute.xlu0 %8248
      %8252 = vset.pattern.permute.xlu0 0
      %8253 = vperm.xlu0 %8252, %v7629
      %v8254 = vpop.permute.xlu0 %8253
      %8257 = vset.pattern.permute.xlu0 0
      %8258 = vperm.xlu0 %8257, %v7630
      %v8259 = vpop.permute.xlu0 %8258
      %8262 = vset.pattern.permute.xlu0 0
      %8263 = vperm.xlu0 %8262, %v7631
      %v8264 = vpop.permute.xlu0 %8263
      %8267 = vset.pattern.permute.xlu0 0
      %8268 = vperm.xlu0 %8267, %v7632
      %v8269 = vpop.permute.xlu0 %8268
      %8272 = vset.pattern.permute.xlu0 0
      %8273 = vperm.xlu0 %8272, %v7633
      %v8274 = vpop.permute.xlu0 %8273
      %v8276 = vadd.f32 %v8159, %v8062
      %v8277 = vadd.f32 %v8164, %v8065
      %v8278 = vadd.f32 %v8169, %v8070
      %v8279 = vadd.f32 %v8174, %v8073
      %v8280 = vadd.f32 %v8179, %v8078
      %v8281 = vadd.f32 %v8184, %v8081
      %v8282 = vadd.f32 %v8189, %v8086
      %v8283 = vadd.f32 %v8194, %v8089
      %v8284 = vadd.f32 %v8199, %v8094
      %v8285 = vadd.f32 %v8204, %v8097
      %v8286 = vadd.f32 %v8209, %v8102
      %v8287 = vadd.f32 %v8214, %v8105
      %v8288 = vadd.f32 %v8219, %v8110
      %v8289 = vadd.f32 %v8224, %v8113
      %v8290 = vadd.f32 %v8229, %v8118
      %v8291 = vadd.f32 %v8234, %v8121
      %v8292 = vadd.f32 %v8239, %v8126
      %v8293 = vadd.f32 %v8244, %v8129
      %v8294 = vadd.f32 %v8249, %v8134
      %v8295 = vadd.f32 %v8254, %v8137
      %v8296 = vadd.f32 %v8259, %v8142
      %v8297 = vadd.f32 %v8264, %v8145
      %v8298 = vadd.f32 %v8269, %v8150
      %v8299 = vadd.f32 %v8274, %v8153
      %s8300 = scalar_lea.vmem %s14, 20
      %v8301 = vld [vmem:[%s8300] sm:$0xf]
      %v8302 = vld [vmem:[%s8300 + $0x4] sm:$0xf]
      %v8303 = vld [vmem:[%s8300 + $0x8] sm:$0xf]
      %v8304 = vld [vmem:[%s8300 + $0xc] sm:$0xf]
      %v8305 = vld [vmem:[%s8300 + $0x10] sm:$0xf]
      %v8311 = vunpack.c.l.b16 %v8301
      %v8312 = vunpack.c.l.b16 %v8302
      %v8313 = vunpack.c.l.b16 %v8303
      %v8314 = vunpack.c.l.b16 %v8304
      %v8315 = vunpack.c.l.b16 %v8305
      %v8316 = vpack.c.b16 %v8312, %v8311
      %v8317 = vpack.c.b16 %v8314, %v8313
      %v8318 = vpack.c.b16 %v8315, %v8315
      %v8322 = vsel %vm7214, %v8318, 0
      %8324 = vmatprep.subr.bf16.mxu0 0
      %8325 = vmatpush1.bf16.msra.mxu0 0
      %8326 = vmatprep.subr.bf16.mxu0 0
      %8327 = vmatpush1.bf16.msra.mxu0 0
      %8328 = vmatprep.subr.bf16.mxu0 0
      %8329 = vmatpush1.bf16.msra.mxu0 0
      %8330 = vmatprep.subr.bf16.mxu0 0
      %8331 = vmatpush1.bf16.msra.mxu0 0
      %8332 = vmatprep.subr.bf16.mxu0 0
      %8333 = vmatpush1.bf16.msra.mxu0 0
      %8334 = vmatprep.subr.bf16.mxu0 0
      %8335 = vmatpush1.bf16.msra.mxu0 %v8322
      %8336 = vmatprep.subr.bf16.mxu0 0
      %8337 = vmatpush1.bf16.msra.mxu0 %v8317
      %8338 = vmatprep.subr.bf16.mxu0 0
      %8339 = vmatpush1.bf16.msra.mxu0 %v8316
      %8340 = vmatprep.subr.bf16.mxu0 0
      %8341 = vmatpush2.bf16.msra.mxu0 0
      %8342 = vmatprep.subr.bf16.mxu0 0
      %8343 = vmatpush2.bf16.msra.mxu0 0
      %8344 = vmatprep.subr.bf16.mxu0 0
      %8345 = vmatpush2.bf16.msra.mxu0 0
      %8346 = vmatprep.subr.bf16.mxu0 0
      %8347 = vmatpush2.bf16.msra.mxu0 0
      %8348 = vmatprep.subr.bf16.mxu0 0
      %8349 = vmatpush2.bf16.msra.mxu0 0
      %8350 = vmatprep.subr.bf16.mxu0 0
      %8351 = vmatpush2.bf16.msra.mxu0 0
      %8352 = vmatprep.subr.bf16.mxu0 0
      %8353 = vmatpush2.bf16.msra.mxu0 0
      %8354 = vmatprep.subr.bf16.mxu0 0
      %8355 = vmatpush2.bf16.msra.mxu0 0
      %8356 = vmatprep.mubr.bf16.mxu0 0
      %8357 = vmatmul.mubr.bf16.gmra.mxu0 %v7656
      %v8358 = vpop.f32.mrf.mxu0
      %v8359 = vadd.f32 0.0, %v8358
      %v8360 = vpop.f32.mrf.mxu0
      %v8361 = vpop.f32.mrf.mxu0
      %v8362 = vadd.f32 0.0, %v8361
      %v8363 = vpop.f32.mrf.mxu0
      %8364 = vmatprep.mubr.bf16.mxu0 0
      %8365 = vmatmul.mubr.bf16.gmra.mxu0 %v7659
      %v8366 = vpop.f32.mrf.mxu0
      %v8367 = vadd.f32 0.0, %v8366
      %v8368 = vpop.f32.mrf.mxu0
      %v8369 = vpop.f32.mrf.mxu0
      %v8370 = vadd.f32 0.0, %v8369
      %v8371 = vpop.f32.mrf.mxu0
      %8372 = vmatprep.mubr.bf16.mxu0 0
      %8373 = vmatmul.mubr.bf16.gmra.mxu0 %v7662
      %v8374 = vpop.f32.mrf.mxu0
      %v8375 = vadd.f32 0.0, %v8374
      %v8376 = vpop.f32.mrf.mxu0
      %v8377 = vpop.f32.mrf.mxu0
      %v8378 = vadd.f32 0.0, %v8377
      %v8379 = vpop.f32.mrf.mxu0
      %8380 = vmatprep.mubr.bf16.mxu0 0
      %8381 = vmatmul.mubr.bf16.gmra.mxu0 %v7665
      %v8382 = vpop.f32.mrf.mxu0
      %v8383 = vadd.f32 0.0, %v8382
      %v8384 = vpop.f32.mrf.mxu0
      %v8385 = vpop.f32.mrf.mxu0
      %v8386 = vadd.f32 0.0, %v8385
      %v8387 = vpop.f32.mrf.mxu0
      %8388 = vmatprep.mubr.bf16.mxu0 0
      %8389 = vmatmul.mubr.bf16.gmra.mxu0 %v7668
      %v8390 = vpop.f32.mrf.mxu0
      %v8391 = vadd.f32 0.0, %v8390
      %v8392 = vpop.f32.mrf.mxu0
      %v8393 = vpop.f32.mrf.mxu0
      %v8394 = vadd.f32 0.0, %v8393
      %v8395 = vpop.f32.mrf.mxu0
      %8396 = vmatprep.mubr.bf16.mxu0 0
      %8397 = vmatmul.mubr.bf16.gmra.mxu0 %v7671
      %v8398 = vpop.f32.mrf.mxu0
      %v8399 = vadd.f32 0.0, %v8398
      %v8400 = vpop.f32.mrf.mxu0
      %v8401 = vpop.f32.mrf.mxu0
      %v8402 = vadd.f32 0.0, %v8401
      %v8403 = vpop.f32.mrf.mxu0
      %8404 = vmatprep.mubr.bf16.mxu0 0
      %8405 = vmatmul.mubr.bf16.gmra.mxu0 %v7674
      %v8406 = vpop.f32.mrf.mxu0
      %v8407 = vadd.f32 0.0, %v8406
      %v8408 = vpop.f32.mrf.mxu0
      %v8409 = vpop.f32.mrf.mxu0
      %v8410 = vadd.f32 0.0, %v8409
      %v8411 = vpop.f32.mrf.mxu0
      %8412 = vmatprep.mubr.bf16.mxu0 0
      %8413 = vmatmul.mubr.bf16.gmra.mxu0 %v7677
      %v8414 = vpop.f32.mrf.mxu0
      %v8415 = vadd.f32 0.0, %v8414
      %v8416 = vpop.f32.mrf.mxu0
      %v8417 = vpop.f32.mrf.mxu0
      %v8418 = vadd.f32 0.0, %v8417
      %v8419 = vpop.f32.mrf.mxu0
      %8420 = vmatprep.mubr.bf16.mxu0 0
      %8421 = vmatmul.mubr.bf16.gmra.mxu0 %v7680
      %v8422 = vpop.f32.mrf.mxu0
      %v8423 = vadd.f32 0.0, %v8422
      %v8424 = vpop.f32.mrf.mxu0
      %v8425 = vpop.f32.mrf.mxu0
      %v8426 = vadd.f32 0.0, %v8425
      %v8427 = vpop.f32.mrf.mxu0
      %8428 = vmatprep.mubr.bf16.mxu0 0
      %8429 = vmatmul.mubr.bf16.gmra.mxu0 %v7683
      %v8430 = vpop.f32.mrf.mxu0
      %v8431 = vadd.f32 0.0, %v8430
      %v8432 = vpop.f32.mrf.mxu0
      %v8433 = vpop.f32.mrf.mxu0
      %v8434 = vadd.f32 0.0, %v8433
      %v8435 = vpop.f32.mrf.mxu0
      %8436 = vmatprep.mubr.bf16.mxu0 0
      %8437 = vmatmul.mubr.bf16.gmra.mxu0 %v7686
      %v8438 = vpop.f32.mrf.mxu0
      %v8439 = vadd.f32 0.0, %v8438
      %v8440 = vpop.f32.mrf.mxu0
      %v8441 = vpop.f32.mrf.mxu0
      %v8442 = vadd.f32 0.0, %v8441
      %v8443 = vpop.f32.mrf.mxu0
      %8444 = vmatprep.mubr.bf16.mxu0 0
      %8445 = vmatmul.mubr.bf16.gmra.mxu0 %v7689
      %v8446 = vpop.f32.mrf.mxu0
      %v8447 = vadd.f32 0.0, %v8446
      %v8448 = vpop.f32.mrf.mxu0
      %v8449 = vpop.f32.mrf.mxu0
      %v8450 = vadd.f32 0.0, %v8449
      %v8451 = vpop.f32.mrf.mxu0
      %8452 = vmatprep.mubr.bf16.mxu0 0
      %8453 = vmatmul.mubr.bf16.gmra.mxu0 %v7692
      %v8454 = vpop.f32.mrf.mxu0
      %v8455 = vadd.f32 0.0, %v8454
      %v8456 = vpop.f32.mrf.mxu0
      %v8457 = vpop.f32.mrf.mxu0
      %v8458 = vadd.f32 0.0, %v8457
      %v8459 = vpop.f32.mrf.mxu0
      %8460 = vmatprep.mubr.bf16.mxu0 0
      %8461 = vmatmul.mubr.bf16.gmra.mxu0 %v7695
      %v8462 = vpop.f32.mrf.mxu0
      %v8463 = vadd.f32 0.0, %v8462
      %v8464 = vpop.f32.mrf.mxu0
      %v8465 = vpop.f32.mrf.mxu0
      %v8466 = vadd.f32 0.0, %v8465
      %v8467 = vpop.f32.mrf.mxu0
      %8468 = vmatprep.mubr.bf16.mxu0 0
      %8469 = vmatmul.mubr.bf16.gmra.mxu0 %v7698
      %v8470 = vpop.f32.mrf.mxu0
      %v8471 = vadd.f32 0.0, %v8470
      %v8472 = vpop.f32.mrf.mxu0
      %v8473 = vpop.f32.mrf.mxu0
      %v8474 = vadd.f32 0.0, %v8473
      %v8475 = vpop.f32.mrf.mxu0
      %8476 = vmatprep.mubr.bf16.mxu0 0
      %8477 = vmatmul.mubr.bf16.gmra.mxu0 %v7701
      %v8478 = vpop.f32.mrf.mxu0
      %v8479 = vadd.f32 0.0, %v8478
      %v8480 = vpop.f32.mrf.mxu0
      %v8481 = vpop.f32.mrf.mxu0
      %v8482 = vadd.f32 0.0, %v8481
      %v8483 = vpop.f32.mrf.mxu0
      %8484 = vdwg.mxu0
      %v8485 = vpack.c.bf16 %v8362, %v8359
      %v8486 = vpack.c.bf16 %v8370, %v8367
      %v8487 = vpack.c.bf16 %v8378, %v8375
      %v8488 = vpack.c.bf16 %v8386, %v8383
      %v8489 = vpack.c.bf16 %v8394, %v8391
      %v8490 = vpack.c.bf16 %v8402, %v8399
      %v8491 = vpack.c.bf16 %v8410, %v8407
      %v8492 = vpack.c.bf16 %v8418, %v8415
      %v8493 = vpack.c.bf16 %v8426, %v8423
      %v8494 = vpack.c.bf16 %v8434, %v8431
      %v8495 = vpack.c.bf16 %v8442, %v8439
      %v8496 = vpack.c.bf16 %v8450, %v8447
      %v8497 = vpack.c.bf16 %v8458, %v8455
      %v8498 = vpack.c.bf16 %v8466, %v8463
      %v8499 = vpack.c.bf16 %v8474, %v8471
      %v8500 = vpack.c.bf16 %v8482, %v8479
      %s8501 = scalar_lea.vmem %s12, 192
      %v8502 = vld [vmem:[%s8501] sm:$0xff]
      %v8503 = vld [vmem:[%s8501 + $0x8] sm:$0xff]
      %v8504 = vld [vmem:[%s8501 + $0x10] sm:$0xff]
      %v8505 = vld [vmem:[%s8501 + $0x18] sm:$0xff]
      %v8506 = vld [vmem:[%s8501 + $0x20] sm:$0xff]
      %v8507 = vld [vmem:[%s8501 + $0x28] sm:$0xff]
      %v8508 = vld [vmem:[%s8501 + $0x30] sm:$0xff]
      %v8509 = vld [vmem:[%s8501 + $0x38] sm:$0xff]
      %v8510 = vld [vmem:[%s8501 + $0x40] sm:$0xff]
      %v8511 = vld [vmem:[%s8501 + $0x48] sm:$0xff]
      %v8512 = vld [vmem:[%s8501 + $0x50] sm:$0xff]
      %v8513 = vld [vmem:[%s8501 + $0x58] sm:$0xff]
      %v8514 = vld [vmem:[%s8501 + $0x60] sm:$0xff]
      %v8515 = vld [vmem:[%s8501 + $0x68] sm:$0xff]
      %v8516 = vld [vmem:[%s8501 + $0x70] sm:$0xff]
      %v8517 = vld [vmem:[%s8501 + $0x78] sm:$0xff]
      %v8518 = vld [vmem:[%s8501 + $0x80] sm:$0xff]
      %v8519 = vld [vmem:[%s8501 + $0x88] sm:$0xff]
      %v8520 = vld [vmem:[%s8501 + $0x90] sm:$0xff]
      %v8521 = vld [vmem:[%s8501 + $0x98] sm:$0xff]
      %v8522 = vld [vmem:[%s8501 + $0xa0] sm:$0xff]
      %v8523 = vld [vmem:[%s8501 + $0xa8] sm:$0xff]
      %v8524 = vld [vmem:[%s8501 + $0xb0] sm:$0xff]
      %v8525 = vld [vmem:[%s8501 + $0xb8] sm:$0xff]
      %v8550 = vunpack.c.l.b16 %v8502
      %v8551 = vunpack.c.h.b16 %v8502
      %v8552 = vunpack.c.l.b16 %v8503
      %v8553 = vunpack.c.h.b16 %v8503
      %v8554 = vunpack.c.l.b16 %v8504
      %v8555 = vunpack.c.h.b16 %v8504
      %v8556 = vunpack.c.l.b16 %v8505
      %v8557 = vunpack.c.h.b16 %v8505
      %v8558 = vunpack.c.l.b16 %v8506
      %v8559 = vunpack.c.h.b16 %v8506
      %v8560 = vunpack.c.l.b16 %v8507
      %v8561 = vunpack.c.h.b16 %v8507
      %v8562 = vunpack.c.l.b16 %v8508
      %v8563 = vunpack.c.h.b16 %v8508
      %v8564 = vunpack.c.l.b16 %v8509
      %v8565 = vunpack.c.h.b16 %v8509
      %v8566 = vunpack.c.l.b16 %v8510
      %v8567 = vunpack.c.h.b16 %v8510
      %v8568 = vunpack.c.l.b16 %v8511
      %v8569 = vunpack.c.h.b16 %v8511
      %v8570 = vunpack.c.l.b16 %v8512
      %v8571 = vunpack.c.h.b16 %v8512
      %v8572 = vunpack.c.l.b16 %v8513
      %v8573 = vunpack.c.h.b16 %v8513
      %v8574 = vunpack.c.l.b16 %v8514
      %v8575 = vunpack.c.h.b16 %v8514
      %v8576 = vunpack.c.l.b16 %v8515
      %v8577 = vunpack.c.h.b16 %v8515
      %v8578 = vunpack.c.l.b16 %v8516
      %v8579 = vunpack.c.h.b16 %v8516
      %v8580 = vunpack.c.l.b16 %v8517
      %v8581 = vunpack.c.h.b16 %v8517
      %v8582 = vunpack.c.l.b16 %v8518
      %v8583 = vunpack.c.h.b16 %v8518
      %v8584 = vunpack.c.l.b16 %v8519
      %v8585 = vunpack.c.h.b16 %v8519
      %v8586 = vunpack.c.l.b16 %v8520
      %v8587 = vunpack.c.h.b16 %v8520
      %v8588 = vunpack.c.l.b16 %v8521
      %v8589 = vunpack.c.h.b16 %v8521
      %v8590 = vunpack.c.l.b16 %v8522
      %v8591 = vunpack.c.h.b16 %v8522
      %v8592 = vunpack.c.l.b16 %v8523
      %v8593 = vunpack.c.h.b16 %v8523
      %v8594 = vunpack.c.l.b16 %v8524
      %v8595 = vunpack.c.h.b16 %v8524
      %v8596 = vunpack.c.l.b16 %v8525
      %v8597 = vunpack.c.h.b16 %v8525
      %v8598 = vpack.c.b16 %v8552, %v8550
      %v8599 = vpack.c.b16 %v8553, %v8551
      %v8600 = vpack.c.b16 %v8556, %v8554
      %v8601 = vpack.c.b16 %v8557, %v8555
      %v8602 = vpack.c.b16 %v8560, %v8558
      %v8603 = vpack.c.b16 %v8561, %v8559
      %v8604 = vpack.c.b16 %v8564, %v8562
      %v8605 = vpack.c.b16 %v8565, %v8563
      %v8606 = vpack.c.b16 %v8568, %v8566
      %v8607 = vpack.c.b16 %v8569, %v8567
      %v8608 = vpack.c.b16 %v8572, %v8570
      %v8609 = vpack.c.b16 %v8573, %v8571
      %v8610 = vpack.c.b16 %v8576, %v8574
      %v8611 = vpack.c.b16 %v8577, %v8575
      %v8612 = vpack.c.b16 %v8580, %v8578
      %v8613 = vpack.c.b16 %v8581, %v8579
      %v8614 = vpack.c.b16 %v8584, %v8582
      %v8615 = vpack.c.b16 %v8585, %v8583
      %v8616 = vpack.c.b16 %v8588, %v8586
      %v8617 = vpack.c.b16 %v8589, %v8587
      %v8618 = vpack.c.b16 %v8592, %v8590
      %v8619 = vpack.c.b16 %v8593, %v8591
      %v8620 = vpack.c.b16 %v8596, %v8594
      %v8621 = vpack.c.b16 %v8597, %v8595
      %8646 = vmatprep.subr.bf16.mxu0 0
      %8647 = vmatpush1.bf16.msra.mxu0 %v8492
      %8648 = vmatprep.subr.bf16.mxu0 0
      %8649 = vmatpush1.bf16.msra.mxu0 %v8491
      %8650 = vmatprep.subr.bf16.mxu0 0
      %8651 = vmatpush1.bf16.msra.mxu0 %v8490
      %8652 = vmatprep.subr.bf16.mxu0 0
      %8653 = vmatpush1.bf16.msra.mxu0 %v8489
      %8654 = vmatprep.subr.bf16.mxu0 0
      %8655 = vmatpush1.bf16.msra.mxu0 %v8488
      %8656 = vmatprep.subr.bf16.mxu0 0
      %8657 = vmatpush1.bf16.msra.mxu0 %v8487
      %8658 = vmatprep.subr.bf16.mxu0 0
      %8659 = vmatpush1.bf16.msra.mxu0 %v8486
      %8660 = vmatprep.subr.bf16.mxu0 0
      %8661 = vmatpush1.bf16.msra.mxu0 %v8485
      %8662 = vmatprep.subr.bf16.mxu0 0
      %8663 = vmatpush2.bf16.msra.mxu0 %v8500
      %8664 = vmatprep.subr.bf16.mxu0 0
      %8665 = vmatpush2.bf16.msra.mxu0 %v8499
      %8666 = vmatprep.subr.bf16.mxu0 0
      %8667 = vmatpush2.bf16.msra.mxu0 %v8498
      %8668 = vmatprep.subr.bf16.mxu0 0
      %8669 = vmatpush2.bf16.msra.mxu0 %v8497
      %8670 = vmatprep.subr.bf16.mxu0 0
      %8671 = vmatpush2.bf16.msra.mxu0 %v8496
      %8672 = vmatprep.subr.bf16.mxu0 0
      %8673 = vmatpush2.bf16.msra.mxu0 %v8495
      %8674 = vmatprep.subr.bf16.mxu0 0
      %8675 = vmatpush2.bf16.msra.mxu0 %v8494
      %8676 = vmatprep.subr.bf16.mxu0 0
      %8677 = vmatpush2.bf16.msra.mxu0 %v8493
      %8678 = vmatprep.mubr.bf16.mxu0 %v8599
      %8679 = vmatmul.mubr.bf16.gmra.mxu0 %v8598
      %v8680 = vpop.f32.mrf.mxu0
      %v8681 = vadd.f32 0.0, %v8680
      %v8682 = vpop.f32.mrf.mxu0
      %v8683 = vpop.f32.mrf.mxu0
      %v8684 = vadd.f32 0.0, %v8683
      %v8685 = vpop.f32.mrf.mxu0
      %8686 = vmatprep.mubr.bf16.mxu0 %v8601
      %8687 = vmatmul.mubr.bf16.gmra.mxu0 %v8600
      %v8688 = vpop.f32.mrf.mxu0
      %v8689 = vadd.f32 0.0, %v8688
      %v8690 = vpop.f32.mrf.mxu0
      %v8691 = vpop.f32.mrf.mxu0
      %v8692 = vadd.f32 0.0, %v8691
      %v8693 = vpop.f32.mrf.mxu0
      %8694 = vmatprep.mubr.bf16.mxu0 %v8603
      %8695 = vmatmul.mubr.bf16.gmra.mxu0 %v8602
      %v8696 = vpop.f32.mrf.mxu0
      %v8697 = vadd.f32 0.0, %v8696
      %v8698 = vpop.f32.mrf.mxu0
      %v8699 = vpop.f32.mrf.mxu0
      %v8700 = vadd.f32 0.0, %v8699
      %v8701 = vpop.f32.mrf.mxu0
      %8702 = vmatprep.mubr.bf16.mxu0 %v8605
      %8703 = vmatmul.mubr.bf16.gmra.mxu0 %v8604
      %v8704 = vpop.f32.mrf.mxu0
      %v8705 = vadd.f32 0.0, %v8704
      %v8706 = vpop.f32.mrf.mxu0
      %v8707 = vpop.f32.mrf.mxu0
      %v8708 = vadd.f32 0.0, %v8707
      %v8709 = vpop.f32.mrf.mxu0
      %8710 = vmatprep.mubr.bf16.mxu0 %v8607
      %8711 = vmatmul.mubr.bf16.gmra.mxu0 %v8606
      %v8712 = vpop.f32.mrf.mxu0
      %v8713 = vadd.f32 0.0, %v8712
      %v8714 = vpop.f32.mrf.mxu0
      %v8715 = vpop.f32.mrf.mxu0
      %v8716 = vadd.f32 0.0, %v8715
      %v8717 = vpop.f32.mrf.mxu0
      %8718 = vmatprep.mubr.bf16.mxu0 %v8609
      %8719 = vmatmul.mubr.bf16.gmra.mxu0 %v8608
      %v8720 = vpop.f32.mrf.mxu0
      %v8721 = vadd.f32 0.0, %v8720
      %v8722 = vpop.f32.mrf.mxu0
      %v8723 = vpop.f32.mrf.mxu0
      %v8724 = vadd.f32 0.0, %v8723
      %v8725 = vpop.f32.mrf.mxu0
      %8726 = vmatprep.mubr.bf16.mxu0 %v8611
      %8727 = vmatmul.mubr.bf16.gmra.mxu0 %v8610
      %v8728 = vpop.f32.mrf.mxu0
      %v8729 = vadd.f32 0.0, %v8728
      %v8730 = vpop.f32.mrf.mxu0
      %v8731 = vpop.f32.mrf.mxu0
      %v8732 = vadd.f32 0.0, %v8731
      %v8733 = vpop.f32.mrf.mxu0
      %8734 = vmatprep.mubr.bf16.mxu0 %v8613
      %8735 = vmatmul.mubr.bf16.gmra.mxu0 %v8612
      %v8736 = vpop.f32.mrf.mxu0
      %v8737 = vadd.f32 0.0, %v8736
      %v8738 = vpop.f32.mrf.mxu0
      %v8739 = vpop.f32.mrf.mxu0
      %v8740 = vadd.f32 0.0, %v8739
      %v8741 = vpop.f32.mrf.mxu0
      %8742 = vmatprep.mubr.bf16.mxu0 %v8615
      %8743 = vmatmul.mubr.bf16.gmra.mxu0 %v8614
      %v8744 = vpop.f32.mrf.mxu0
      %v8745 = vadd.f32 0.0, %v8744
      %v8746 = vpop.f32.mrf.mxu0
      %v8747 = vpop.f32.mrf.mxu0
      %v8748 = vadd.f32 0.0, %v8747
      %v8749 = vpop.f32.mrf.mxu0
      %8750 = vmatprep.mubr.bf16.mxu0 %v8617
      %8751 = vmatmul.mubr.bf16.gmra.mxu0 %v8616
      %v8752 = vpop.f32.mrf.mxu0
      %v8753 = vadd.f32 0.0, %v8752
      %v8754 = vpop.f32.mrf.mxu0
      %v8755 = vpop.f32.mrf.mxu0
      %v8756 = vadd.f32 0.0, %v8755
      %v8757 = vpop.f32.mrf.mxu0
      %8758 = vmatprep.mubr.bf16.mxu0 %v8619
      %8759 = vmatmul.mubr.bf16.gmra.mxu0 %v8618
      %v8760 = vpop.f32.mrf.mxu0
      %v8761 = vadd.f32 0.0, %v8760
      %v8762 = vpop.f32.mrf.mxu0
      %v8763 = vpop.f32.mrf.mxu0
      %v8764 = vadd.f32 0.0, %v8763
      %v8765 = vpop.f32.mrf.mxu0
      %8766 = vmatprep.mubr.bf16.mxu0 %v8621
      %8767 = vmatmul.mubr.bf16.gmra.mxu0 %v8620
      %v8768 = vpop.f32.mrf.mxu0
      %v8769 = vadd.f32 0.0, %v8768
      %v8770 = vpop.f32.mrf.mxu0
      %v8771 = vpop.f32.mrf.mxu0
      %v8772 = vadd.f32 0.0, %v8771
      %v8773 = vpop.f32.mrf.mxu0
      %8774 = vdwg.mxu0
      %v8775 = vadd.f32 %v8276, %v8681
      %v8776 = vadd.f32 %v8277, %v8684
      %v8777 = vadd.f32 %v8278, %v8689
      %v8778 = vadd.f32 %v8279, %v8692
      %v8779 = vadd.f32 %v8280, %v8697
      %v8780 = vadd.f32 %v8281, %v8700
      %v8781 = vadd.f32 %v8282, %v8705
      %v8782 = vadd.f32 %v8283, %v8708
      %v8783 = vadd.f32 %v8284, %v8713
      %v8784 = vadd.f32 %v8285, %v8716
      %v8785 = vadd.f32 %v8286, %v8721
      %v8786 = vadd.f32 %v8287, %v8724
      %v8787 = vadd.f32 %v8288, %v8729
      %v8788 = vadd.f32 %v8289, %v8732
      %v8789 = vadd.f32 %v8290, %v8737
      %v8790 = vadd.f32 %v8291, %v8740
      %v8791 = vadd.f32 %v8292, %v8745
      %v8792 = vadd.f32 %v8293, %v8748
      %v8793 = vadd.f32 %v8294, %v8753
      %v8794 = vadd.f32 %v8295, %v8756
      %v8795 = vadd.f32 %v8296, %v8761
      %v8796 = vadd.f32 %v8297, %v8764
      %v8797 = vadd.f32 %v8298, %v8769
      %v8798 = vadd.f32 %v8299, %v8772
      %s8799 = scalar_lea.vmem %s14, 40
      %v8800 = vld [vmem:[%s8799] sm:$0xf]
      %v8801 = vld [vmem:[%s8799 + $0x4] sm:$0xf]
      %v8802 = vld [vmem:[%s8799 + $0x8] sm:$0xf]
      %v8803 = vld [vmem:[%s8799 + $0xc] sm:$0xf]
      %v8804 = vld [vmem:[%s8799 + $0x10] sm:$0xf]
      %v8810 = vunpack.c.l.b16 %v8800
      %v8811 = vunpack.c.l.b16 %v8801
      %v8812 = vunpack.c.l.b16 %v8802
      %v8813 = vunpack.c.l.b16 %v8803
      %v8814 = vunpack.c.l.b16 %v8804
      %v8815 = vpack.c.b16 %v8811, %v8810
      %v8816 = vpack.c.b16 %v8813, %v8812
      %v8817 = vpack.c.b16 %v8814, %v8814
      %v8821 = vsel %vm7214, %v8817, 0
      %8823 = vmatprep.subr.bf16.mxu0 0
      %8824 = vmatpush1.bf16.msra.mxu0 0
      %8825 = vmatprep.subr.bf16.mxu0 0
      %8826 = vmatpush1.bf16.msra.mxu0 0
      %8827 = vmatprep.subr.bf16.mxu0 0
      %8828 = vmatpush1.bf16.msra.mxu0 0
      %8829 = vmatprep.subr.bf16.mxu0 0
      %8830 = vmatpush1.bf16.msra.mxu0 0
      %8831 = vmatprep.subr.bf16.mxu0 0
      %8832 = vmatpush1.bf16.msra.mxu0 0
      %8833 = vmatprep.subr.bf16.mxu0 0
      %8834 = vmatpush1.bf16.msra.mxu0 %v8821
      %8835 = vmatprep.subr.bf16.mxu0 0
      %8836 = vmatpush1.bf16.msra.mxu0 %v8816
      %8837 = vmatprep.subr.bf16.mxu0 0
      %8838 = vmatpush1.bf16.msra.mxu0 %v8815
      %8839 = vmatprep.subr.bf16.mxu0 0
      %8840 = vmatpush2.bf16.msra.mxu0 0
      %8841 = vmatprep.subr.bf16.mxu0 0
      %8842 = vmatpush2.bf16.msra.mxu0 0
      %8843 = vmatprep.subr.bf16.mxu0 0
      %8844 = vmatpush2.bf16.msra.mxu0 0
      %8845 = vmatprep.subr.bf16.mxu0 0
      %8846 = vmatpush2.bf16.msra.mxu0 0
      %8847 = vmatprep.subr.bf16.mxu0 0
      %8848 = vmatpush2.bf16.msra.mxu0 0
      %8849 = vmatprep.subr.bf16.mxu0 0
      %8850 = vmatpush2.bf16.msra.mxu0 0
      %8851 = vmatprep.subr.bf16.mxu0 0
      %8852 = vmatpush2.bf16.msra.mxu0 0
      %8853 = vmatprep.subr.bf16.mxu0 0
      %8854 = vmatpush2.bf16.msra.mxu0 0
      %8855 = vmatprep.mubr.bf16.mxu0 0
      %8856 = vmatmul.mubr.bf16.gmra.mxu0 %v7656
      %v8857 = vpop.f32.mrf.mxu0
      %v8858 = vadd.f32 0.0, %v8857
      %v8859 = vpop.f32.mrf.mxu0
      %v8860 = vpop.f32.mrf.mxu0
      %v8861 = vadd.f32 0.0, %v8860
      %v8862 = vpop.f32.mrf.mxu0
      %8863 = vmatprep.mubr.bf16.mxu0 0
      %8864 = vmatmul.mubr.bf16.gmra.mxu0 %v7659
      %v8865 = vpop.f32.mrf.mxu0
      %v8866 = vadd.f32 0.0, %v8865
      %v8867 = vpop.f32.mrf.mxu0
      %v8868 = vpop.f32.mrf.mxu0
      %v8869 = vadd.f32 0.0, %v8868
      %v8870 = vpop.f32.mrf.mxu0
      %8871 = vmatprep.mubr.bf16.mxu0 0
      %8872 = vmatmul.mubr.bf16.gmra.mxu0 %v7662
      %v8873 = vpop.f32.mrf.mxu0
      %v8874 = vadd.f32 0.0, %v8873
      %v8875 = vpop.f32.mrf.mxu0
      %v8876 = vpop.f32.mrf.mxu0
      %v8877 = vadd.f32 0.0, %v8876
      %v8878 = vpop.f32.mrf.mxu0
      %8879 = vmatprep.mubr.bf16.mxu0 0
      %8880 = vmatmul.mubr.bf16.gmra.mxu0 %v7665
      %v8881 = vpop.f32.mrf.mxu0
      %v8882 = vadd.f32 0.0, %v8881
      %v8883 = vpop.f32.mrf.mxu0
      %v8884 = vpop.f32.mrf.mxu0
      %v8885 = vadd.f32 0.0, %v8884
      %v8886 = vpop.f32.mrf.mxu0
      %8887 = vmatprep.mubr.bf16.mxu0 0
      %8888 = vmatmul.mubr.bf16.gmra.mxu0 %v7668
      %v8889 = vpop.f32.mrf.mxu0
      %v8890 = vadd.f32 0.0, %v8889
      %v8891 = vpop.f32.mrf.mxu0
      %v8892 = vpop.f32.mrf.mxu0
      %v8893 = vadd.f32 0.0, %v8892
      %v8894 = vpop.f32.mrf.mxu0
      %8895 = vmatprep.mubr.bf16.mxu0 0
      %8896 = vmatmul.mubr.bf16.gmra.mxu0 %v7671
      %v8897 = vpop.f32.mrf.mxu0
      %v8898 = vadd.f32 0.0, %v8897
      %v8899 = vpop.f32.mrf.mxu0
      %v8900 = vpop.f32.mrf.mxu0
      %v8901 = vadd.f32 0.0, %v8900
      %v8902 = vpop.f32.mrf.mxu0
      %8903 = vmatprep.mubr.bf16.mxu0 0
      %8904 = vmatmul.mubr.bf16.gmra.mxu0 %v7674
      %v8905 = vpop.f32.mrf.mxu0
      %v8906 = vadd.f32 0.0, %v8905
      %v8907 = vpop.f32.mrf.mxu0
      %v8908 = vpop.f32.mrf.mxu0
      %v8909 = vadd.f32 0.0, %v8908
      %v8910 = vpop.f32.mrf.mxu0
      %8911 = vmatprep.mubr.bf16.mxu0 0
      %8912 = vmatmul.mubr.bf16.gmra.mxu0 %v7677
      %v8913 = vpop.f32.mrf.mxu0
      %v8914 = vadd.f32 0.0, %v8913
      %v8915 = vpop.f32.mrf.mxu0
      %v8916 = vpop.f32.mrf.mxu0
      %v8917 = vadd.f32 0.0, %v8916
      %v8918 = vpop.f32.mrf.mxu0
      %8919 = vmatprep.mubr.bf16.mxu0 0
      %8920 = vmatmul.mubr.bf16.gmra.mxu0 %v7680
      %v8921 = vpop.f32.mrf.mxu0
      %v8922 = vadd.f32 0.0, %v8921
      %v8923 = vpop.f32.mrf.mxu0
      %v8924 = vpop.f32.mrf.mxu0
      %v8925 = vadd.f32 0.0, %v8924
      %v8926 = vpop.f32.mrf.mxu0
      %8927 = vmatprep.mubr.bf16.mxu0 0
      %8928 = vmatmul.mubr.bf16.gmra.mxu0 %v7683
      %v8929 = vpop.f32.mrf.mxu0
      %v8930 = vadd.f32 0.0, %v8929
      %v8931 = vpop.f32.mrf.mxu0
      %v8932 = vpop.f32.mrf.mxu0
      %v8933 = vadd.f32 0.0, %v8932
      %v8934 = vpop.f32.mrf.mxu0
      %8935 = vmatprep.mubr.bf16.mxu0 0
      %8936 = vmatmul.mubr.bf16.gmra.mxu0 %v7686
      %v8937 = vpop.f32.mrf.mxu0
      %v8938 = vadd.f32 0.0, %v8937
      %v8939 = vpop.f32.mrf.mxu0
      %v8940 = vpop.f32.mrf.mxu0
      %v8941 = vadd.f32 0.0, %v8940
      %v8942 = vpop.f32.mrf.mxu0
      %8943 = vmatprep.mubr.bf16.mxu0 0
      %8944 = vmatmul.mubr.bf16.gmra.mxu0 %v7689
      %v8945 = vpop.f32.mrf.mxu0
      %v8946 = vadd.f32 0.0, %v8945
      %v8947 = vpop.f32.mrf.mxu0
      %v8948 = vpop.f32.mrf.mxu0
      %v8949 = vadd.f32 0.0, %v8948
      %v8950 = vpop.f32.mrf.mxu0
      %8951 = vmatprep.mubr.bf16.mxu0 0
      %8952 = vmatmul.mubr.bf16.gmra.mxu0 %v7692
      %v8953 = vpop.f32.mrf.mxu0
      %v8954 = vadd.f32 0.0, %v8953
      %v8955 = vpop.f32.mrf.mxu0
      %v8956 = vpop.f32.mrf.mxu0
      %v8957 = vadd.f32 0.0, %v8956
      %v8958 = vpop.f32.mrf.mxu0
      %8959 = vmatprep.mubr.bf16.mxu0 0
      %8960 = vmatmul.mubr.bf16.gmra.mxu0 %v7695
      %v8961 = vpop.f32.mrf.mxu0
      %v8962 = vadd.f32 0.0, %v8961
      %v8963 = vpop.f32.mrf.mxu0
      %v8964 = vpop.f32.mrf.mxu0
      %v8965 = vadd.f32 0.0, %v8964
      %v8966 = vpop.f32.mrf.mxu0
      %8967 = vmatprep.mubr.bf16.mxu0 0
      %8968 = vmatmul.mubr.bf16.gmra.mxu0 %v7698
      %v8969 = vpop.f32.mrf.mxu0
      %v8970 = vadd.f32 0.0, %v8969
      %v8971 = vpop.f32.mrf.mxu0
      %v8972 = vpop.f32.mrf.mxu0
      %v8973 = vadd.f32 0.0, %v8972
      %v8974 = vpop.f32.mrf.mxu0
      %8975 = vmatprep.mubr.bf16.mxu0 0
      %8976 = vmatmul.mubr.bf16.gmra.mxu0 %v7701
      %v8977 = vpop.f32.mrf.mxu0
      %v8978 = vadd.f32 0.0, %v8977
      %v8979 = vpop.f32.mrf.mxu0
      %v8980 = vpop.f32.mrf.mxu0
      %v8981 = vadd.f32 0.0, %v8980
      %v8982 = vpop.f32.mrf.mxu0
      %8983 = vdwg.mxu0
      %v8984 = vpack.c.bf16 %v8861, %v8858
      %v8985 = vpack.c.bf16 %v8869, %v8866
      %v8986 = vpack.c.bf16 %v8877, %v8874
      %v8987 = vpack.c.bf16 %v8885, %v8882
      %v8988 = vpack.c.bf16 %v8893, %v8890
      %v8989 = vpack.c.bf16 %v8901, %v8898
      %v8990 = vpack.c.bf16 %v8909, %v8906
      %v8991 = vpack.c.bf16 %v8917, %v8914
      %v8992 = vpack.c.bf16 %v8925, %v8922
      %v8993 = vpack.c.bf16 %v8933, %v8930
      %v8994 = vpack.c.bf16 %v8941, %v8938
      %v8995 = vpack.c.bf16 %v8949, %v8946
      %v8996 = vpack.c.bf16 %v8957, %v8954
      %v8997 = vpack.c.bf16 %v8965, %v8962
      %v8998 = vpack.c.bf16 %v8973, %v8970
      %v8999 = vpack.c.bf16 %v8981, %v8978
      %s9000 = scalar_lea.vmem %s12, 384
      %v9001 = vld [vmem:[%s9000] sm:$0xff]
      %v9002 = vld [vmem:[%s9000 + $0x8] sm:$0xff]
      %v9003 = vld [vmem:[%s9000 + $0x10] sm:$0xff]
      %v9004 = vld [vmem:[%s9000 + $0x18] sm:$0xff]
      %v9005 = vld [vmem:[%s9000 + $0x20] sm:$0xff]
      %v9006 = vld [vmem:[%s9000 + $0x28] sm:$0xff]
      %v9007 = vld [vmem:[%s9000 + $0x30] sm:$0xff]
      %v9008 = vld [vmem:[%s9000 + $0x38] sm:$0xff]
      %v9009 = vld [vmem:[%s9000 + $0x40] sm:$0xff]
      %v9010 = vld [vmem:[%s9000 + $0x48] sm:$0xff]
      %v9011 = vld [vmem:[%s9000 + $0x50] sm:$0xff]
      %v9012 = vld [vmem:[%s9000 + $0x58] sm:$0xff]
      %v9013 = vld [vmem:[%s9000 + $0x60] sm:$0xff]
      %v9014 = vld [vmem:[%s9000 + $0x68] sm:$0xff]
      %v9015 = vld [vmem:[%s9000 + $0x70] sm:$0xff]
      %v9016 = vld [vmem:[%s9000 + $0x78] sm:$0xff]
      %v9017 = vld [vmem:[%s9000 + $0x80] sm:$0xff]
      %v9018 = vld [vmem:[%s9000 + $0x88] sm:$0xff]
      %v9019 = vld [vmem:[%s9000 + $0x90] sm:$0xff]
      %v9020 = vld [vmem:[%s9000 + $0x98] sm:$0xff]
      %v9021 = vld [vmem:[%s9000 + $0xa0] sm:$0xff]
      %v9022 = vld [vmem:[%s9000 + $0xa8] sm:$0xff]
      %v9023 = vld [vmem:[%s9000 + $0xb0] sm:$0xff]
      %v9024 = vld [vmem:[%s9000 + $0xb8] sm:$0xff]
      %v9049 = vunpack.c.l.b16 %v9001
      %v9050 = vunpack.c.h.b16 %v9001
      %v9051 = vunpack.c.l.b16 %v9002
      %v9052 = vunpack.c.h.b16 %v9002
      %v9053 = vunpack.c.l.b16 %v9003
      %v9054 = vunpack.c.h.b16 %v9003
      %v9055 = vunpack.c.l.b16 %v9004
      %v9056 = vunpack.c.h.b16 %v9004
      %v9057 = vunpack.c.l.b16 %v9005
      %v9058 = vunpack.c.h.b16 %v9005
      %v9059 = vunpack.c.l.b16 %v9006
      %v9060 = vunpack.c.h.b16 %v9006
      %v9061 = vunpack.c.l.b16 %v9007
      %v9062 = vunpack.c.h.b16 %v9007
      %v9063 = vunpack.c.l.b16 %v9008
      %v9064 = vunpack.c.h.b16 %v9008
      %v9065 = vunpack.c.l.b16 %v9009
      %v9066 = vunpack.c.h.b16 %v9009
      %v9067 = vunpack.c.l.b16 %v9010
      %v9068 = vunpack.c.h.b16 %v9010
      %v9069 = vunpack.c.l.b16 %v9011
      %v9070 = vunpack.c.h.b16 %v9011
      %v9071 = vunpack.c.l.b16 %v9012
      %v9072 = vunpack.c.h.b16 %v9012
      %v9073 = vunpack.c.l.b16 %v9013
      %v9074 = vunpack.c.h.b16 %v9013
      %v9075 = vunpack.c.l.b16 %v9014
      %v9076 = vunpack.c.h.b16 %v9014
      %v9077 = vunpack.c.l.b16 %v9015
      %v9078 = vunpack.c.h.b16 %v9015
      %v9079 = vunpack.c.l.b16 %v9016
      %v9080 = vunpack.c.h.b16 %v9016
      %v9081 = vunpack.c.l.b16 %v9017
      %v9082 = vunpack.c.h.b16 %v9017
      %v9083 = vunpack.c.l.b16 %v9018
      %v9084 = vunpack.c.h.b16 %v9018
      %v9085 = vunpack.c.l.b16 %v9019
      %v9086 = vunpack.c.h.b16 %v9019
      %v9087 = vunpack.c.l.b16 %v9020
      %v9088 = vunpack.c.h.b16 %v9020
      %v9089 = vunpack.c.l.b16 %v9021
      %v9090 = vunpack.c.h.b16 %v9021
      %v9091 = vunpack.c.l.b16 %v9022
      %v9092 = vunpack.c.h.b16 %v9022
      %v9093 = vunpack.c.l.b16 %v9023
      %v9094 = vunpack.c.h.b16 %v9023
      %v9095 = vunpack.c.l.b16 %v9024
      %v9096 = vunpack.c.h.b16 %v9024
      %v9097 = vpack.c.b16 %v9051, %v9049
      %v9098 = vpack.c.b16 %v9052, %v9050
      %v9099 = vpack.c.b16 %v9055, %v9053
      %v9100 = vpack.c.b16 %v9056, %v9054
      %v9101 = vpack.c.b16 %v9059, %v9057
      %v9102 = vpack.c.b16 %v9060, %v9058
      %v9103 = vpack.c.b16 %v9063, %v9061
      %v9104 = vpack.c.b16 %v9064, %v9062
      %v9105 = vpack.c.b16 %v9067, %v9065
      %v9106 = vpack.c.b16 %v9068, %v9066
      %v9107 = vpack.c.b16 %v9071, %v9069
      %v9108 = vpack.c.b16 %v9072, %v9070
      %v9109 = vpack.c.b16 %v9075, %v9073
      %v9110 = vpack.c.b16 %v9076, %v9074
      %v9111 = vpack.c.b16 %v9079, %v9077
      %v9112 = vpack.c.b16 %v9080, %v9078
      %v9113 = vpack.c.b16 %v9083, %v9081
      %v9114 = vpack.c.b16 %v9084, %v9082
      %v9115 = vpack.c.b16 %v9087, %v9085
      %v9116 = vpack.c.b16 %v9088, %v9086
      %v9117 = vpack.c.b16 %v9091, %v9089
      %v9118 = vpack.c.b16 %v9092, %v9090
      %v9119 = vpack.c.b16 %v9095, %v9093
      %v9120 = vpack.c.b16 %v9096, %v9094
      %9145 = vmatprep.subr.bf16.mxu0 0
      %9146 = vmatpush1.bf16.msra.mxu0 %v8991
      %9147 = vmatprep.subr.bf16.mxu0 0
      %9148 = vmatpush1.bf16.msra.mxu0 %v8990
      %9149 = vmatprep.subr.bf16.mxu0 0
      %9150 = vmatpush1.bf16.msra.mxu0 %v8989
      %9151 = vmatprep.subr.bf16.mxu0 0
      %9152 = vmatpush1.bf16.msra.mxu0 %v8988
      %9153 = vmatprep.subr.bf16.mxu0 0
      %9154 = vmatpush1.bf16.msra.mxu0 %v8987
      %9155 = vmatprep.subr.bf16.mxu0 0
      %9156 = vmatpush1.bf16.msra.mxu0 %v8986
      %9157 = vmatprep.subr.bf16.mxu0 0
      %9158 = vmatpush1.bf16.msra.mxu0 %v8985
      %9159 = vmatprep.subr.bf16.mxu0 0
      %9160 = vmatpush1.bf16.msra.mxu0 %v8984
      %9161 = vmatprep.subr.bf16.mxu0 0
      %9162 = vmatpush2.bf16.msra.mxu0 %v8999
      %9163 = vmatprep.subr.bf16.mxu0 0
      %9164 = vmatpush2.bf16.msra.mxu0 %v8998
      %9165 = vmatprep.subr.bf16.mxu0 0
      %9166 = vmatpush2.bf16.msra.mxu0 %v8997
      %9167 = vmatprep.subr.bf16.mxu0 0
      %9168 = vmatpush2.bf16.msra.mxu0 %v8996
      %9169 = vmatprep.subr.bf16.mxu0 0
      %9170 = vmatpush2.bf16.msra.mxu0 %v8995
      %9171 = vmatprep.subr.bf16.mxu0 0
      %9172 = vmatpush2.bf16.msra.mxu0 %v8994
      %9173 = vmatprep.subr.bf16.mxu0 0
      %9174 = vmatpush2.bf16.msra.mxu0 %v8993
      %9175 = vmatprep.subr.bf16.mxu0 0
      %9176 = vmatpush2.bf16.msra.mxu0 %v8992
      %9177 = vmatprep.mubr.bf16.mxu0 %v9098
      %9178 = vmatmul.mubr.bf16.gmra.mxu0 %v9097
      %v9179 = vpop.f32.mrf.mxu0
      %v9180 = vadd.f32 0.0, %v9179
      %v9181 = vpop.f32.mrf.mxu0
      %v9182 = vpop.f32.mrf.mxu0
      %v9183 = vadd.f32 0.0, %v9182
      %v9184 = vpop.f32.mrf.mxu0
      %9185 = vmatprep.mubr.bf16.mxu0 %v9100
      %9186 = vmatmul.mubr.bf16.gmra.mxu0 %v9099
      %v9187 = vpop.f32.mrf.mxu0
      %v9188 = vadd.f32 0.0, %v9187
      %v9189 = vpop.f32.mrf.mxu0
      %v9190 = vpop.f32.mrf.mxu0
      %v9191 = vadd.f32 0.0, %v9190
      %v9192 = vpop.f32.mrf.mxu0
      %9193 = vmatprep.mubr.bf16.mxu0 %v9102
      %9194 = vmatmul.mubr.bf16.gmra.mxu0 %v9101
      %v9195 = vpop.f32.mrf.mxu0
      %v9196 = vadd.f32 0.0, %v9195
      %v9197 = vpop.f32.mrf.mxu0
      %v9198 = vpop.f32.mrf.mxu0
      %v9199 = vadd.f32 0.0, %v9198
      %v9200 = vpop.f32.mrf.mxu0
      %9201 = vmatprep.mubr.bf16.mxu0 %v9104
      %9202 = vmatmul.mubr.bf16.gmra.mxu0 %v9103
      %v9203 = vpop.f32.mrf.mxu0
      %v9204 = vadd.f32 0.0, %v9203
      %v9205 = vpop.f32.mrf.mxu0
      %v9206 = vpop.f32.mrf.mxu0
      %v9207 = vadd.f32 0.0, %v9206
      %v9208 = vpop.f32.mrf.mxu0
      %9209 = vmatprep.mubr.bf16.mxu0 %v9106
      %9210 = vmatmul.mubr.bf16.gmra.mxu0 %v9105
      %v9211 = vpop.f32.mrf.mxu0
      %v9212 = vadd.f32 0.0, %v9211
      %v9213 = vpop.f32.mrf.mxu0
      %v9214 = vpop.f32.mrf.mxu0
      %v9215 = vadd.f32 0.0, %v9214
      %v9216 = vpop.f32.mrf.mxu0
      %9217 = vmatprep.mubr.bf16.mxu0 %v9108
      %9218 = vmatmul.mubr.bf16.gmra.mxu0 %v9107
      %v9219 = vpop.f32.mrf.mxu0
      %v9220 = vadd.f32 0.0, %v9219
      %v9221 = vpop.f32.mrf.mxu0
      %v9222 = vpop.f32.mrf.mxu0
      %v9223 = vadd.f32 0.0, %v9222
      %v9224 = vpop.f32.mrf.mxu0
      %9225 = vmatprep.mubr.bf16.mxu0 %v9110
      %9226 = vmatmul.mubr.bf16.gmra.mxu0 %v9109
      %v9227 = vpop.f32.mrf.mxu0
      %v9228 = vadd.f32 0.0, %v9227
      %v9229 = vpop.f32.mrf.mxu0
      %v9230 = vpop.f32.mrf.mxu0
      %v9231 = vadd.f32 0.0, %v9230
      %v9232 = vpop.f32.mrf.mxu0
      %9233 = vmatprep.mubr.bf16.mxu0 %v9112
      %9234 = vmatmul.mubr.bf16.gmra.mxu0 %v9111
      %v9235 = vpop.f32.mrf.mxu0
      %v9236 = vadd.f32 0.0, %v9235
      %v9237 = vpop.f32.mrf.mxu0
      %v9238 = vpop.f32.mrf.mxu0
      %v9239 = vadd.f32 0.0, %v9238
      %v9240 = vpop.f32.mrf.mxu0
      %9241 = vmatprep.mubr.bf16.mxu0 %v9114
      %9242 = vmatmul.mubr.bf16.gmra.mxu0 %v9113
      %v9243 = vpop.f32.mrf.mxu0
      %v9244 = vadd.f32 0.0, %v9243
      %v9245 = vpop.f32.mrf.mxu0
      %v9246 = vpop.f32.mrf.mxu0
      %v9247 = vadd.f32 0.0, %v9246
      %v9248 = vpop.f32.mrf.mxu0
      %9249 = vmatprep.mubr.bf16.mxu0 %v9116
      %9250 = vmatmul.mubr.bf16.gmra.mxu0 %v9115
      %v9251 = vpop.f32.mrf.mxu0
      %v9252 = vadd.f32 0.0, %v9251
      %v9253 = vpop.f32.mrf.mxu0
      %v9254 = vpop.f32.mrf.mxu0
      %v9255 = vadd.f32 0.0, %v9254
      %v9256 = vpop.f32.mrf.mxu0
      %9257 = vmatprep.mubr.bf16.mxu0 %v9118
      %9258 = vmatmul.mubr.bf16.gmra.mxu0 %v9117
      %v9259 = vpop.f32.mrf.mxu0
      %v9260 = vadd.f32 0.0, %v9259
      %v9261 = vpop.f32.mrf.mxu0
      %v9262 = vpop.f32.mrf.mxu0
      %v9263 = vadd.f32 0.0, %v9262
      %v9264 = vpop.f32.mrf.mxu0
      %9265 = vmatprep.mubr.bf16.mxu0 %v9120
      %9266 = vmatmul.mubr.bf16.gmra.mxu0 %v9119
      %v9267 = vpop.f32.mrf.mxu0
      %v9268 = vadd.f32 0.0, %v9267
      %v9269 = vpop.f32.mrf.mxu0
      %v9270 = vpop.f32.mrf.mxu0
      %v9271 = vadd.f32 0.0, %v9270
      %v9272 = vpop.f32.mrf.mxu0
      %9273 = vdwg.mxu0
      %v9274 = vadd.f32 %v8775, %v9180
      %v9275 = vadd.f32 %v8776, %v9183
      %v9276 = vadd.f32 %v8777, %v9188
      %v9277 = vadd.f32 %v8778, %v9191
      %v9278 = vadd.f32 %v8779, %v9196
      %v9279 = vadd.f32 %v8780, %v9199
      %v9280 = vadd.f32 %v8781, %v9204
      %v9281 = vadd.f32 %v8782, %v9207
      %v9282 = vadd.f32 %v8783, %v9212
      %v9283 = vadd.f32 %v8784, %v9215
      %v9284 = vadd.f32 %v8785, %v9220
      %v9285 = vadd.f32 %v8786, %v9223
      %v9286 = vadd.f32 %v8787, %v9228
      %v9287 = vadd.f32 %v8788, %v9231
      %v9288 = vadd.f32 %v8789, %v9236
      %v9289 = vadd.f32 %v8790, %v9239
      %v9290 = vadd.f32 %v8791, %v9244
      %v9291 = vadd.f32 %v8792, %v9247
      %v9292 = vadd.f32 %v8793, %v9252
      %v9293 = vadd.f32 %v8794, %v9255
      %v9294 = vadd.f32 %v8795, %v9260
      %v9295 = vadd.f32 %v8796, %v9263
      %v9296 = vadd.f32 %v8797, %v9268
      %v9297 = vadd.f32 %v8798, %v9271
      %v9298 = vmax.f32 %v9274, 0.0
      %v9299 = vmax.f32 %v9275, 0.0
      %v9300 = vmax.f32 %v9276, 0.0
      %v9301 = vmax.f32 %v9277, 0.0
      %v9302 = vmax.f32 %v9278, 0.0
      %v9303 = vmax.f32 %v9279, 0.0
      %v9304 = vmax.f32 %v9280, 0.0
      %v9305 = vmax.f32 %v9281, 0.0
      %v9306 = vmax.f32 %v9282, 0.0
      %v9307 = vmax.f32 %v9283, 0.0
      %v9308 = vmax.f32 %v9284, 0.0
      %v9309 = vmax.f32 %v9285, 0.0
      %v9310 = vmax.f32 %v9286, 0.0
      %v9311 = vmax.f32 %v9287, 0.0
      %v9312 = vmax.f32 %v9288, 0.0
      %v9313 = vmax.f32 %v9289, 0.0
      %v9314 = vmax.f32 %v9290, 0.0
      %v9315 = vmax.f32 %v9291, 0.0
      %v9316 = vmax.f32 %v9292, 0.0
      %v9317 = vmax.f32 %v9293, 0.0
      %v9318 = vmax.f32 %v9294, 0.0
      %v9319 = vmax.f32 %v9295, 0.0
      %v9320 = vmax.f32 %v9296, 0.0
      %v9321 = vmax.f32 %v9297, 0.0
      %v9322 = vpack.c.bf16 %v9299, %v9298
      %v9323 = vpack.c.bf16 %v9301, %v9300
      %v9324 = vpack.c.bf16 %v9303, %v9302
      %v9325 = vpack.c.bf16 %v9305, %v9304
      %v9326 = vpack.c.bf16 %v9307, %v9306
      %v9327 = vpack.c.bf16 %v9309, %v9308
      %v9328 = vpack.c.bf16 %v9311, %v9310
      %v9329 = vpack.c.bf16 %v9313, %v9312
      %v9330 = vpack.c.bf16 %v9315, %v9314
      %v9331 = vpack.c.bf16 %v9317, %v9316
      %v9332 = vpack.c.bf16 %v9319, %v9318
      %v9333 = vpack.c.bf16 %v9321, %v9320
      %v9334 = vld [vmem:[%s15] sm:$0xf]
      %v9335 = vld [vmem:[%s15 + $0x4] sm:$0xf]
      %v9336 = vld [vmem:[%s15 + $0x8] sm:$0xf]
      %v9337 = vld [vmem:[%s15 + $0xc] sm:$0xf]
      %v9338 = vld [vmem:[%s15 + $0x10] sm:$0xf]
      %v9344 = vunpack.c.l.b16 %v9334
      %v9345 = vunpack.c.l.b16 %v9335
      %v9346 = vunpack.c.l.b16 %v9336
      %v9347 = vunpack.c.l.b16 %v9337
      %v9348 = vunpack.c.l.b16 %v9338
      %v9349 = vpack.c.b16 %v9345, %v9344
      %v9350 = vpack.c.b16 %v9347, %v9346
      %v9351 = vpack.c.b16 %v9348, %v9348
      %v9355 = vsel %vm7654, %v9322, 0
      %v9358 = vsel %vm7654, %v9323, 0
      %v9361 = vsel %vm7654, %v9324, 0
      %v9364 = vsel %vm7654, %v9325, 0
      %v9367 = vsel %vm7654, %v9326, 0
      %v9370 = vsel %vm7654, %v9327, 0
      %v9373 = vsel %vm7654, %v9328, 0
      %v9376 = vsel %vm7654, %v9329, 0
      %v9379 = vsel %vm7654, %v9330, 0
      %v9382 = vsel %vm7654, %v9331, 0
      %v9385 = vsel %vm7654, %v9332, 0
      %v9388 = vsel %vm7654, %v9333, 0
      %v9391 = vsel %vm7214, %v9351, 0
      %9393 = vmatprep.subr.bf16.mxu0 0
      %9394 = vmatpush1.bf16.msra.mxu0 0
      %9395 = vmatprep.subr.bf16.mxu0 0
      %9396 = vmatpush1.bf16.msra.mxu0 0
      %9397 = vmatprep.subr.bf16.mxu0 0
      %9398 = vmatpush1.bf16.msra.mxu0 0
      %9399 = vmatprep.subr.bf16.mxu0 0
      %9400 = vmatpush1.bf16.msra.mxu0 0
      %9401 = vmatprep.subr.bf16.mxu0 0
      %9402 = vmatpush1.bf16.msra.mxu0 0
      %9403 = vmatprep.subr.bf16.mxu0 0
      %9404 = vmatpush1.bf16.msra.mxu0 %v9391
      %9405 = vmatprep.subr.bf16.mxu0 0
      %9406 = vmatpush1.bf16.msra.mxu0 %v9350
      %9407 = vmatprep.subr.bf16.mxu0 0
      %9408 = vmatpush1.bf16.msra.mxu0 %v9349
      %9409 = vmatprep.subr.bf16.mxu0 0
      %9410 = vmatpush2.bf16.msra.mxu0 0
      %9411 = vmatprep.subr.bf16.mxu0 0
      %9412 = vmatpush2.bf16.msra.mxu0 0
      %9413 = vmatprep.subr.bf16.mxu0 0
      %9414 = vmatpush2.bf16.msra.mxu0 0
      %9415 = vmatprep.subr.bf16.mxu0 0
      %9416 = vmatpush2.bf16.msra.mxu0 0
      %9417 = vmatprep.subr.bf16.mxu0 0
      %9418 = vmatpush2.bf16.msra.mxu0 0
      %9419 = vmatprep.subr.bf16.mxu0 0
      %9420 = vmatpush2.bf16.msra.mxu0 0
      %9421 = vmatprep.subr.bf16.mxu0 0
      %9422 = vmatpush2.bf16.msra.mxu0 0
      %9423 = vmatprep.subr.bf16.mxu0 0
      %9424 = vmatpush2.bf16.msra.mxu0 0
      %9425 = vmatprep.mubr.bf16.mxu0 0
      %9426 = vmatmul.mubr.bf16.gmra.mxu0 %v9355
      %v9427 = vpop.f32.mrf.mxu0
      %v9428 = vadd.f32 0.0, %v9427
      %v9429 = vpop.f32.mrf.mxu0
      %v9430 = vpop.f32.mrf.mxu0
      %v9431 = vadd.f32 0.0, %v9430
      %v9432 = vpop.f32.mrf.mxu0
      %9433 = vmatprep.mubr.bf16.mxu0 0
      %9434 = vmatmul.mubr.bf16.gmra.mxu0 %v9358
      %v9435 = vpop.f32.mrf.mxu0
      %v9436 = vadd.f32 0.0, %v9435
      %v9437 = vpop.f32.mrf.mxu0
      %v9438 = vpop.f32.mrf.mxu0
      %v9439 = vadd.f32 0.0, %v9438
      %v9440 = vpop.f32.mrf.mxu0
      %9441 = vmatprep.mubr.bf16.mxu0 0
      %9442 = vmatmul.mubr.bf16.gmra.mxu0 %v9361
      %v9443 = vpop.f32.mrf.mxu0
      %v9444 = vadd.f32 0.0, %v9443
      %v9445 = vpop.f32.mrf.mxu0
      %v9446 = vpop.f32.mrf.mxu0
      %v9447 = vadd.f32 0.0, %v9446
      %v9448 = vpop.f32.mrf.mxu0
      %9449 = vmatprep.mubr.bf16.mxu0 0
      %9450 = vmatmul.mubr.bf16.gmra.mxu0 %v9364
      %v9451 = vpop.f32.mrf.mxu0
      %v9452 = vadd.f32 0.0, %v9451
      %v9453 = vpop.f32.mrf.mxu0
      %v9454 = vpop.f32.mrf.mxu0
      %v9455 = vadd.f32 0.0, %v9454
      %v9456 = vpop.f32.mrf.mxu0
      %9457 = vmatprep.mubr.bf16.mxu0 0
      %9458 = vmatmul.mubr.bf16.gmra.mxu0 %v9367
      %v9459 = vpop.f32.mrf.mxu0
      %v9460 = vadd.f32 0.0, %v9459
      %v9461 = vpop.f32.mrf.mxu0
      %v9462 = vpop.f32.mrf.mxu0
      %v9463 = vadd.f32 0.0, %v9462
      %v9464 = vpop.f32.mrf.mxu0
      %9465 = vmatprep.mubr.bf16.mxu0 0
      %9466 = vmatmul.mubr.bf16.gmra.mxu0 %v9370
      %v9467 = vpop.f32.mrf.mxu0
      %v9468 = vadd.f32 0.0, %v9467
      %v9469 = vpop.f32.mrf.mxu0
      %v9470 = vpop.f32.mrf.mxu0
      %v9471 = vadd.f32 0.0, %v9470
      %v9472 = vpop.f32.mrf.mxu0
      %9473 = vmatprep.mubr.bf16.mxu0 0
      %9474 = vmatmul.mubr.bf16.gmra.mxu0 %v9373
      %v9475 = vpop.f32.mrf.mxu0
      %v9476 = vadd.f32 0.0, %v9475
      %v9477 = vpop.f32.mrf.mxu0
      %v9478 = vpop.f32.mrf.mxu0
      %v9479 = vadd.f32 0.0, %v9478
      %v9480 = vpop.f32.mrf.mxu0
      %9481 = vmatprep.mubr.bf16.mxu0 0
      %9482 = vmatmul.mubr.bf16.gmra.mxu0 %v9376
      %v9483 = vpop.f32.mrf.mxu0
      %v9484 = vadd.f32 0.0, %v9483
      %v9485 = vpop.f32.mrf.mxu0
      %v9486 = vpop.f32.mrf.mxu0
      %v9487 = vadd.f32 0.0, %v9486
      %v9488 = vpop.f32.mrf.mxu0
      %9489 = vmatprep.mubr.bf16.mxu0 0
      %9490 = vmatmul.mubr.bf16.gmra.mxu0 %v9379
      %v9491 = vpop.f32.mrf.mxu0
      %v9492 = vadd.f32 0.0, %v9491
      %v9493 = vpop.f32.mrf.mxu0
      %v9494 = vpop.f32.mrf.mxu0
      %v9495 = vadd.f32 0.0, %v9494
      %v9496 = vpop.f32.mrf.mxu0
      %9497 = vmatprep.mubr.bf16.mxu0 0
      %9498 = vmatmul.mubr.bf16.gmra.mxu0 %v9382
      %v9499 = vpop.f32.mrf.mxu0
      %v9500 = vadd.f32 0.0, %v9499
      %v9501 = vpop.f32.mrf.mxu0
      %v9502 = vpop.f32.mrf.mxu0
      %v9503 = vadd.f32 0.0, %v9502
      %v9504 = vpop.f32.mrf.mxu0
      %9505 = vmatprep.mubr.bf16.mxu0 0
      %9506 = vmatmul.mubr.bf16.gmra.mxu0 %v9385
      %v9507 = vpop.f32.mrf.mxu0
      %v9508 = vadd.f32 0.0, %v9507
      %v9509 = vpop.f32.mrf.mxu0
      %v9510 = vpop.f32.mrf.mxu0
      %v9511 = vadd.f32 0.0, %v9510
      %v9512 = vpop.f32.mrf.mxu0
      %9513 = vmatprep.mubr.bf16.mxu0 0
      %9514 = vmatmul.mubr.bf16.gmra.mxu0 %v9388
      %v9515 = vpop.f32.mrf.mxu0
      %v9516 = vadd.f32 0.0, %v9515
      %v9517 = vpop.f32.mrf.mxu0
      %v9518 = vpop.f32.mrf.mxu0
      %v9519 = vadd.f32 0.0, %v9518
      %v9520 = vpop.f32.mrf.mxu0
      %9521 = vdwg.mxu0
      %s9522 = scalar_lea.vmem %s15, 20
      %v9523 = vld [vmem:[%s9522] sm:$0xf]
      %v9524 = vld [vmem:[%s9522 + $0x4] sm:$0xf]
      %v9525 = vld [vmem:[%s9522 + $0x8] sm:$0xf]
      %v9526 = vld [vmem:[%s9522 + $0xc] sm:$0xf]
      %v9527 = vld [vmem:[%s9522 + $0x10] sm:$0xf]
      %v9533 = vunpack.c.l.b16 %v9523
      %v9534 = vunpack.c.l.b16 %v9524
      %v9535 = vunpack.c.l.b16 %v9525
      %v9536 = vunpack.c.l.b16 %v9526
      %v9537 = vunpack.c.l.b16 %v9527
      %v9538 = vpack.c.b16 %v9534, %v9533
      %v9539 = vpack.c.b16 %v9536, %v9535
      %v9540 = vpack.c.b16 %v9537, %v9537
      %v9544 = vsel %vm7214, %v9540, 0
      %9546 = vmatprep.subr.bf16.mxu0 0
      %9547 = vmatpush1.bf16.msra.mxu0 0
      %9548 = vmatprep.subr.bf16.mxu0 0
      %9549 = vmatpush1.bf16.msra.mxu0 0
      %9550 = vmatprep.subr.bf16.mxu0 0
      %9551 = vmatpush1.bf16.msra.mxu0 0
      %9552 = vmatprep.subr.bf16.mxu0 0
      %9553 = vmatpush1.bf16.msra.mxu0 0
      %9554 = vmatprep.subr.bf16.mxu0 0
      %9555 = vmatpush1.bf16.msra.mxu0 0
      %9556 = vmatprep.subr.bf16.mxu0 0
      %9557 = vmatpush1.bf16.msra.mxu0 %v9544
      %9558 = vmatprep.subr.bf16.mxu0 0
      %9559 = vmatpush1.bf16.msra.mxu0 %v9539
      %9560 = vmatprep.subr.bf16.mxu0 0
      %9561 = vmatpush1.bf16.msra.mxu0 %v9538
      %9562 = vmatprep.subr.bf16.mxu0 0
      %9563 = vmatpush2.bf16.msra.mxu0 0
      %9564 = vmatprep.subr.bf16.mxu0 0
      %9565 = vmatpush2.bf16.msra.mxu0 0
      %9566 = vmatprep.subr.bf16.mxu0 0
      %9567 = vmatpush2.bf16.msra.mxu0 0
      %9568 = vmatprep.subr.bf16.mxu0 0
      %9569 = vmatpush2.bf16.msra.mxu0 0
      %9570 = vmatprep.subr.bf16.mxu0 0
      %9571 = vmatpush2.bf16.msra.mxu0 0
      %9572 = vmatprep.subr.bf16.mxu0 0
      %9573 = vmatpush2.bf16.msra.mxu0 0
      %9574 = vmatprep.subr.bf16.mxu0 0
      %9575 = vmatpush2.bf16.msra.mxu0 0
      %9576 = vmatprep.subr.bf16.mxu0 0
      %9577 = vmatpush2.bf16.msra.mxu0 0
      %9578 = vmatprep.mubr.bf16.mxu0 0
      %9579 = vmatmul.mubr.bf16.gmra.mxu0 %v9355
      %v9580 = vpop.f32.mrf.mxu0
      %v9581 = vadd.f32 0.0, %v9580
      %v9582 = vpop.f32.mrf.mxu0
      %v9583 = vpop.f32.mrf.mxu0
      %v9584 = vadd.f32 0.0, %v9583
      %v9585 = vpop.f32.mrf.mxu0
      %9586 = vmatprep.mubr.bf16.mxu0 0
      %9587 = vmatmul.mubr.bf16.gmra.mxu0 %v9358
      %v9588 = vpop.f32.mrf.mxu0
      %v9589 = vadd.f32 0.0, %v9588
      %v9590 = vpop.f32.mrf.mxu0
      %v9591 = vpop.f32.mrf.mxu0
      %v9592 = vadd.f32 0.0, %v9591
      %v9593 = vpop.f32.mrf.mxu0
      %9594 = vmatprep.mubr.bf16.mxu0 0
      %9595 = vmatmul.mubr.bf16.gmra.mxu0 %v9361
      %v9596 = vpop.f32.mrf.mxu0
      %v9597 = vadd.f32 0.0, %v9596
      %v9598 = vpop.f32.mrf.mxu0
      %v9599 = vpop.f32.mrf.mxu0
      %v9600 = vadd.f32 0.0, %v9599
      %v9601 = vpop.f32.mrf.mxu0
      %9602 = vmatprep.mubr.bf16.mxu0 0
      %9603 = vmatmul.mubr.bf16.gmra.mxu0 %v9364
      %v9604 = vpop.f32.mrf.mxu0
      %v9605 = vadd.f32 0.0, %v9604
      %v9606 = vpop.f32.mrf.mxu0
      %v9607 = vpop.f32.mrf.mxu0
      %v9608 = vadd.f32 0.0, %v9607
      %v9609 = vpop.f32.mrf.mxu0
      %9610 = vmatprep.mubr.bf16.mxu0 0
      %9611 = vmatmul.mubr.bf16.gmra.mxu0 %v9367
      %v9612 = vpop.f32.mrf.mxu0
      %v9613 = vadd.f32 0.0, %v9612
      %v9614 = vpop.f32.mrf.mxu0
      %v9615 = vpop.f32.mrf.mxu0
      %v9616 = vadd.f32 0.0, %v9615
      %v9617 = vpop.f32.mrf.mxu0
      %9618 = vmatprep.mubr.bf16.mxu0 0
      %9619 = vmatmul.mubr.bf16.gmra.mxu0 %v9370
      %v9620 = vpop.f32.mrf.mxu0
      %v9621 = vadd.f32 0.0, %v9620
      %v9622 = vpop.f32.mrf.mxu0
      %v9623 = vpop.f32.mrf.mxu0
      %v9624 = vadd.f32 0.0, %v9623
      %v9625 = vpop.f32.mrf.mxu0
      %9626 = vmatprep.mubr.bf16.mxu0 0
      %9627 = vmatmul.mubr.bf16.gmra.mxu0 %v9373
      %v9628 = vpop.f32.mrf.mxu0
      %v9629 = vadd.f32 0.0, %v9628
      %v9630 = vpop.f32.mrf.mxu0
      %v9631 = vpop.f32.mrf.mxu0
      %v9632 = vadd.f32 0.0, %v9631
      %v9633 = vpop.f32.mrf.mxu0
      %9634 = vmatprep.mubr.bf16.mxu0 0
      %9635 = vmatmul.mubr.bf16.gmra.mxu0 %v9376
      %v9636 = vpop.f32.mrf.mxu0
      %v9637 = vadd.f32 0.0, %v9636
      %v9638 = vpop.f32.mrf.mxu0
      %v9639 = vpop.f32.mrf.mxu0
      %v9640 = vadd.f32 0.0, %v9639
      %v9641 = vpop.f32.mrf.mxu0
      %9642 = vmatprep.mubr.bf16.mxu0 0
      %9643 = vmatmul.mubr.bf16.gmra.mxu0 %v9379
      %v9644 = vpop.f32.mrf.mxu0
      %v9645 = vadd.f32 0.0, %v9644
      %v9646 = vpop.f32.mrf.mxu0
      %v9647 = vpop.f32.mrf.mxu0
      %v9648 = vadd.f32 0.0, %v9647
      %v9649 = vpop.f32.mrf.mxu0
      %9650 = vmatprep.mubr.bf16.mxu0 0
      %9651 = vmatmul.mubr.bf16.gmra.mxu0 %v9382
      %v9652 = vpop.f32.mrf.mxu0
      %v9653 = vadd.f32 0.0, %v9652
      %v9654 = vpop.f32.mrf.mxu0
      %v9655 = vpop.f32.mrf.mxu0
      %v9656 = vadd.f32 0.0, %v9655
      %v9657 = vpop.f32.mrf.mxu0
      %9658 = vmatprep.mubr.bf16.mxu0 0
      %9659 = vmatmul.mubr.bf16.gmra.mxu0 %v9385
      %v9660 = vpop.f32.mrf.mxu0
      %v9661 = vadd.f32 0.0, %v9660
      %v9662 = vpop.f32.mrf.mxu0
      %v9663 = vpop.f32.mrf.mxu0
      %v9664 = vadd.f32 0.0, %v9663
      %v9665 = vpop.f32.mrf.mxu0
      %9666 = vmatprep.mubr.bf16.mxu0 0
      %9667 = vmatmul.mubr.bf16.gmra.mxu0 %v9388
      %v9668 = vpop.f32.mrf.mxu0
      %v9669 = vadd.f32 0.0, %v9668
      %v9670 = vpop.f32.mrf.mxu0
      %v9671 = vpop.f32.mrf.mxu0
      %v9672 = vadd.f32 0.0, %v9671
      %v9673 = vpop.f32.mrf.mxu0
      %9674 = vdwg.mxu0
      %v9675 = vmax.f32 %v9428, %v9581
      %v9676 = vmax.f32 %v9431, %v9584
      %v9677 = vmax.f32 %v9436, %v9589
      %v9678 = vmax.f32 %v9439, %v9592
      %v9679 = vmax.f32 %v9444, %v9597
      %v9680 = vmax.f32 %v9447, %v9600
      %v9681 = vmax.f32 %v9452, %v9605
      %v9682 = vmax.f32 %v9455, %v9608
      %v9683 = vmax.f32 %v9460, %v9613
      %v9684 = vmax.f32 %v9463, %v9616
      %v9685 = vmax.f32 %v9468, %v9621
      %v9686 = vmax.f32 %v9471, %v9624
      %v9687 = vmax.f32 %v9476, %v9629
      %v9688 = vmax.f32 %v9479, %v9632
      %v9689 = vmax.f32 %v9484, %v9637
      %v9690 = vmax.f32 %v9487, %v9640
      %v9691 = vmax.f32 %v9492, %v9645
      %v9692 = vmax.f32 %v9495, %v9648
      %v9693 = vmax.f32 %v9500, %v9653
      %v9694 = vmax.f32 %v9503, %v9656
      %v9695 = vmax.f32 %v9508, %v9661
      %v9696 = vmax.f32 %v9511, %v9664
      %v9697 = vmax.f32 %v9516, %v9669
      %v9698 = vmax.f32 %v9519, %v9672
      %s9699 = scalar_lea.vmem %s15, 40
      %v9700 = vld [vmem:[%s9699] sm:$0xf]
      %v9701 = vld [vmem:[%s9699 + $0x4] sm:$0xf]
      %v9702 = vld [vmem:[%s9699 + $0x8] sm:$0xf]
      %v9703 = vld [vmem:[%s9699 + $0xc] sm:$0xf]
      %v9704 = vld [vmem:[%s9699 + $0x10] sm:$0xf]
      %v9710 = vunpack.c.l.b16 %v9700
      %v9711 = vunpack.c.l.b16 %v9701
      %v9712 = vunpack.c.l.b16 %v9702
      %v9713 = vunpack.c.l.b16 %v9703
      %v9714 = vunpack.c.l.b16 %v9704
      %v9715 = vpack.c.b16 %v9711, %v9710
      %v9716 = vpack.c.b16 %v9713, %v9712
      %v9717 = vpack.c.b16 %v9714, %v9714
      %v9721 = vsel %vm7214, %v9717, 0
      %9723 = vmatprep.subr.bf16.mxu0 0
      %9724 = vmatpush1.bf16.msra.mxu0 0
      %9725 = vmatprep.subr.bf16.mxu0 0
      %9726 = vmatpush1.bf16.msra.mxu0 0
      %9727 = vmatprep.subr.bf16.mxu0 0
      %9728 = vmatpush1.bf16.msra.mxu0 0
      %9729 = vmatprep.subr.bf16.mxu0 0
      %9730 = vmatpush1.bf16.msra.mxu0 0
      %9731 = vmatprep.subr.bf16.mxu0 0
      %9732 = vmatpush1.bf16.msra.mxu0 0
      %9733 = vmatprep.subr.bf16.mxu0 0
      %9734 = vmatpush1.bf16.msra.mxu0 %v9721
      %9735 = vmatprep.subr.bf16.mxu0 0
      %9736 = vmatpush1.bf16.msra.mxu0 %v9716
      %9737 = vmatprep.subr.bf16.mxu0 0
      %9738 = vmatpush1.bf16.msra.mxu0 %v9715
      %9739 = vmatprep.subr.bf16.mxu0 0
      %9740 = vmatpush2.bf16.msra.mxu0 0
      %9741 = vmatprep.subr.bf16.mxu0 0
      %9742 = vmatpush2.bf16.msra.mxu0 0
      %9743 = vmatprep.subr.bf16.mxu0 0
      %9744 = vmatpush2.bf16.msra.mxu0 0
      %9745 = vmatprep.subr.bf16.mxu0 0
      %9746 = vmatpush2.bf16.msra.mxu0 0
      %9747 = vmatprep.subr.bf16.mxu0 0
      %9748 = vmatpush2.bf16.msra.mxu0 0
      %9749 = vmatprep.subr.bf16.mxu0 0
      %9750 = vmatpush2.bf16.msra.mxu0 0
      %9751 = vmatprep.subr.bf16.mxu0 0
      %9752 = vmatpush2.bf16.msra.mxu0 0
      %9753 = vmatprep.subr.bf16.mxu0 0
      %9754 = vmatpush2.bf16.msra.mxu0 0
      %9755 = vmatprep.mubr.bf16.mxu0 0
      %9756 = vmatmul.mubr.bf16.gmra.mxu0 %v9355
      %v9757 = vpop.f32.mrf.mxu0
      %v9758 = vadd.f32 0.0, %v9757
      %v9759 = vpop.f32.mrf.mxu0
      %v9760 = vpop.f32.mrf.mxu0
      %v9761 = vadd.f32 0.0, %v9760
      %v9762 = vpop.f32.mrf.mxu0
      %9763 = vmatprep.mubr.bf16.mxu0 0
      %9764 = vmatmul.mubr.bf16.gmra.mxu0 %v9358
      %v9765 = vpop.f32.mrf.mxu0
      %v9766 = vadd.f32 0.0, %v9765
      %v9767 = vpop.f32.mrf.mxu0
      %v9768 = vpop.f32.mrf.mxu0
      %v9769 = vadd.f32 0.0, %v9768
      %v9770 = vpop.f32.mrf.mxu0
      %9771 = vmatprep.mubr.bf16.mxu0 0
      %9772 = vmatmul.mubr.bf16.gmra.mxu0 %v9361
      %v9773 = vpop.f32.mrf.mxu0
      %v9774 = vadd.f32 0.0, %v9773
      %v9775 = vpop.f32.mrf.mxu0
      %v9776 = vpop.f32.mrf.mxu0
      %v9777 = vadd.f32 0.0, %v9776
      %v9778 = vpop.f32.mrf.mxu0
      %9779 = vmatprep.mubr.bf16.mxu0 0
      %9780 = vmatmul.mubr.bf16.gmra.mxu0 %v9364
      %v9781 = vpop.f32.mrf.mxu0
      %v9782 = vadd.f32 0.0, %v9781
      %v9783 = vpop.f32.mrf.mxu0
      %v9784 = vpop.f32.mrf.mxu0
      %v9785 = vadd.f32 0.0, %v9784
      %v9786 = vpop.f32.mrf.mxu0
      %9787 = vmatprep.mubr.bf16.mxu0 0
      %9788 = vmatmul.mubr.bf16.gmra.mxu0 %v9367
      %v9789 = vpop.f32.mrf.mxu0
      %v9790 = vadd.f32 0.0, %v9789
      %v9791 = vpop.f32.mrf.mxu0
      %v9792 = vpop.f32.mrf.mxu0
      %v9793 = vadd.f32 0.0, %v9792
      %v9794 = vpop.f32.mrf.mxu0
      %9795 = vmatprep.mubr.bf16.mxu0 0
      %9796 = vmatmul.mubr.bf16.gmra.mxu0 %v9370
      %v9797 = vpop.f32.mrf.mxu0
      %v9798 = vadd.f32 0.0, %v9797
      %v9799 = vpop.f32.mrf.mxu0
      %v9800 = vpop.f32.mrf.mxu0
      %v9801 = vadd.f32 0.0, %v9800
      %v9802 = vpop.f32.mrf.mxu0
      %9803 = vmatprep.mubr.bf16.mxu0 0
      %9804 = vmatmul.mubr.bf16.gmra.mxu0 %v9373
      %v9805 = vpop.f32.mrf.mxu0
      %v9806 = vadd.f32 0.0, %v9805
      %v9807 = vpop.f32.mrf.mxu0
      %v9808 = vpop.f32.mrf.mxu0
      %v9809 = vadd.f32 0.0, %v9808
      %v9810 = vpop.f32.mrf.mxu0
      %9811 = vmatprep.mubr.bf16.mxu0 0
      %9812 = vmatmul.mubr.bf16.gmra.mxu0 %v9376
      %v9813 = vpop.f32.mrf.mxu0
      %v9814 = vadd.f32 0.0, %v9813
      %v9815 = vpop.f32.mrf.mxu0
      %v9816 = vpop.f32.mrf.mxu0
      %v9817 = vadd.f32 0.0, %v9816
      %v9818 = vpop.f32.mrf.mxu0
      %9819 = vmatprep.mubr.bf16.mxu0 0
      %9820 = vmatmul.mubr.bf16.gmra.mxu0 %v9379
      %v9821 = vpop.f32.mrf.mxu0
      %v9822 = vadd.f32 0.0, %v9821
      %v9823 = vpop.f32.mrf.mxu0
      %v9824 = vpop.f32.mrf.mxu0
      %v9825 = vadd.f32 0.0, %v9824
      %v9826 = vpop.f32.mrf.mxu0
      %9827 = vmatprep.mubr.bf16.mxu0 0
      %9828 = vmatmul.mubr.bf16.gmra.mxu0 %v9382
      %v9829 = vpop.f32.mrf.mxu0
      %v9830 = vadd.f32 0.0, %v9829
      %v9831 = vpop.f32.mrf.mxu0
      %v9832 = vpop.f32.mrf.mxu0
      %v9833 = vadd.f32 0.0, %v9832
      %v9834 = vpop.f32.mrf.mxu0
      %9835 = vmatprep.mubr.bf16.mxu0 0
      %9836 = vmatmul.mubr.bf16.gmra.mxu0 %v9385
      %v9837 = vpop.f32.mrf.mxu0
      %v9838 = vadd.f32 0.0, %v9837
      %v9839 = vpop.f32.mrf.mxu0
      %v9840 = vpop.f32.mrf.mxu0
      %v9841 = vadd.f32 0.0, %v9840
      %v9842 = vpop.f32.mrf.mxu0
      %9843 = vmatprep.mubr.bf16.mxu0 0
      %9844 = vmatmul.mubr.bf16.gmra.mxu0 %v9388
      %v9845 = vpop.f32.mrf.mxu0
      %v9846 = vadd.f32 0.0, %v9845
      %v9847 = vpop.f32.mrf.mxu0
      %v9848 = vpop.f32.mrf.mxu0
      %v9849 = vadd.f32 0.0, %v9848
      %v9850 = vpop.f32.mrf.mxu0
      %9851 = vdwg.mxu0
      %v9852 = vmax.f32 %v9675, %v9758
      %v9853 = vmax.f32 %v9676, %v9761
      %v9854 = vmax.f32 %v9677, %v9766
      %v9855 = vmax.f32 %v9678, %v9769
      %v9856 = vmax.f32 %v9679, %v9774
      %v9857 = vmax.f32 %v9680, %v9777
      %v9858 = vmax.f32 %v9681, %v9782
      %v9859 = vmax.f32 %v9682, %v9785
      %v9860 = vmax.f32 %v9683, %v9790
      %v9861 = vmax.f32 %v9684, %v9793
      %v9862 = vmax.f32 %v9685, %v9798
      %v9863 = vmax.f32 %v9686, %v9801
      %v9864 = vmax.f32 %v9687, %v9806
      %v9865 = vmax.f32 %v9688, %v9809
      %v9866 = vmax.f32 %v9689, %v9814
      %v9867 = vmax.f32 %v9690, %v9817
      %v9868 = vmax.f32 %v9691, %v9822
      %v9869 = vmax.f32 %v9692, %v9825
      %v9870 = vmax.f32 %v9693, %v9830
      %v9871 = vmax.f32 %v9694, %v9833
      %v9872 = vmax.f32 %v9695, %v9838
      %v9873 = vmax.f32 %v9696, %v9841
      %v9874 = vmax.f32 %v9697, %v9846
      %v9875 = vmax.f32 %v9698, %v9849
      %v9876 = vld [vmem:[%s16] sm:$0xff]
      %v9877 = vld [vmem:[%s16 + $0x8] sm:$0xff]
      %v9878 = vld [vmem:[%s16 + $0x10] sm:$0xff]
      %v9879 = vld [vmem:[%s16 + $0x18] sm:$0xff]
      %v9880 = vld [vmem:[%s16 + $0x20] sm:$0xff]
      %v9881 = vld [vmem:[%s16 + $0x28] sm:$0xff]
      %v9882 = vld [vmem:[%s16 + $0x30] sm:$0xff]
      %v9883 = vld [vmem:[%s16 + $0x38] sm:$0xff]
      %v9884 = vld [vmem:[%s16 + $0x40] sm:$0xff]
      %v9885 = vld [vmem:[%s16 + $0x48] sm:$0xff]
      %v9886 = vld [vmem:[%s16 + $0x50] sm:$0xff]
      %v9887 = vld [vmem:[%s16 + $0x58] sm:$0xff]
      %v9888 = vld [vmem:[%s16 + $0x60] sm:$0xff]
      %v9889 = vld [vmem:[%s16 + $0x68] sm:$0xff]
      %v9890 = vld [vmem:[%s16 + $0x70] sm:$0xff]
      %v9891 = vld [vmem:[%s16 + $0x78] sm:$0xff]
      %v9892 = vpack.c.bf16 %v9853, %v9852
      %v9893 = vpack.c.bf16 %v9855, %v9854
      %v9894 = vpack.c.bf16 %v9857, %v9856
      %v9895 = vpack.c.bf16 %v9859, %v9858
      %v9896 = vpack.c.bf16 %v9861, %v9860
      %v9897 = vpack.c.bf16 %v9863, %v9862
      %v9898 = vpack.c.bf16 %v9865, %v9864
      %v9899 = vpack.c.bf16 %v9867, %v9866
      %v9900 = vpack.c.bf16 %v9869, %v9868
      %v9901 = vpack.c.bf16 %v9871, %v9870
      %v9902 = vpack.c.bf16 %v9873, %v9872
      %v9903 = vpack.c.bf16 %v9875, %v9874
      %v9920 = vunpack.c.l.b16 %v9876
      %v9921 = vunpack.c.h.b16 %v9876
      %v9922 = vunpack.c.l.b16 %v9877
      %v9923 = vunpack.c.h.b16 %v9877
      %v9924 = vunpack.c.l.b16 %v9878
      %v9925 = vunpack.c.h.b16 %v9878
      %v9926 = vunpack.c.l.b16 %v9879
      %v9927 = vunpack.c.h.b16 %v9879
      %v9928 = vunpack.c.l.b16 %v9880
      %v9929 = vunpack.c.h.b16 %v9880
      %v9930 = vunpack.c.l.b16 %v9881
      %v9931 = vunpack.c.h.b16 %v9881
      %v9932 = vunpack.c.l.b16 %v9882
      %v9933 = vunpack.c.h.b16 %v9882
      %v9934 = vunpack.c.l.b16 %v9883
      %v9935 = vunpack.c.h.b16 %v9883
      %v9936 = vunpack.c.l.b16 %v9884
      %v9937 = vunpack.c.h.b16 %v9884
      %v9938 = vunpack.c.l.b16 %v9885
      %v9939 = vunpack.c.h.b16 %v9885
      %v9940 = vunpack.c.l.b16 %v9886
      %v9941 = vunpack.c.h.b16 %v9886
      %v9942 = vunpack.c.l.b16 %v9887
      %v9943 = vunpack.c.h.b16 %v9887
      %v9944 = vunpack.c.l.b16 %v9888
      %v9945 = vunpack.c.h.b16 %v9888
      %v9946 = vunpack.c.l.b16 %v9889
      %v9947 = vunpack.c.h.b16 %v9889
      %v9948 = vunpack.c.l.b16 %v9890
      %v9949 = vunpack.c.h.b16 %v9890
      %v9950 = vunpack.c.l.b16 %v9891
      %v9951 = vunpack.c.h.b16 %v9891
      %v9952 = vpack.c.b16 %v9922, %v9920
      %v9953 = vpack.c.b16 %v9923, %v9921
      %v9954 = vpack.c.b16 %v9926, %v9924
      %v9955 = vpack.c.b16 %v9927, %v9925
      %v9956 = vpack.c.b16 %v9930, %v9928
      %v9957 = vpack.c.b16 %v9931, %v9929
      %v9958 = vpack.c.b16 %v9934, %v9932
      %v9959 = vpack.c.b16 %v9935, %v9933
      %v9960 = vpack.c.b16 %v9938, %v9936
      %v9961 = vpack.c.b16 %v9939, %v9937
      %v9962 = vpack.c.b16 %v9942, %v9940
      %v9963 = vpack.c.b16 %v9943, %v9941
      %v9964 = vpack.c.b16 %v9946, %v9944
      %v9965 = vpack.c.b16 %v9947, %v9945
      %v9966 = vpack.c.b16 %v9950, %v9948
      %v9967 = vpack.c.b16 %v9951, %v9949
      %vm9976 = vcmask 523264
      %v9978 = vsel %vm9976, %v9953, 0
      %v9981 = vsel %vm9976, %v9955, 0
      %v9984 = vsel %vm9976, %v9957, 0
      %v9987 = vsel %vm9976, %v9959, 0
      %v9990 = vsel %vm9976, %v9961, 0
      %v9993 = vsel %vm9976, %v9963, 0
      %v9996 = vsel %vm9976, %v9965, 0
      %v9999 = vsel %vm9976, %v9967, 0
      %10001 = vmatprep.subr.bf16.mxu0 0
      %10002 = vmatpush1.bf16.msra.mxu0 %v9899
      %10003 = vmatprep.subr.bf16.mxu0 0
      %10004 = vmatpush1.bf16.msra.mxu0 %v9898
      %10005 = vmatprep.subr.bf16.mxu0 0
      %10006 = vmatpush1.bf16.msra.mxu0 %v9897
      %10007 = vmatprep.subr.bf16.mxu0 0
      %10008 = vmatpush1.bf16.msra.mxu0 %v9896
      %10009 = vmatprep.subr.bf16.mxu0 0
      %10010 = vmatpush1.bf16.msra.mxu0 %v9895
      %10011 = vmatprep.subr.bf16.mxu0 0
      %10012 = vmatpush1.bf16.msra.mxu0 %v9894
      %10013 = vmatprep.subr.bf16.mxu0 0
      %10014 = vmatpush1.bf16.msra.mxu0 %v9893
      %10015 = vmatprep.subr.bf16.mxu0 0
      %10016 = vmatpush1.bf16.msra.mxu0 %v9892
      %10017 = vmatprep.subr.bf16.mxu0 0
      %10018 = vmatpush2.bf16.msra.mxu0 0
      %10019 = vmatprep.subr.bf16.mxu0 0
      %10020 = vmatpush2.bf16.msra.mxu0 0
      %10021 = vmatprep.subr.bf16.mxu0 0
      %10022 = vmatpush2.bf16.msra.mxu0 0
      %10023 = vmatprep.subr.bf16.mxu0 0
      %10024 = vmatpush2.bf16.msra.mxu0 0
      %10025 = vmatprep.subr.bf16.mxu0 0
      %10026 = vmatpush2.bf16.msra.mxu0 %v9903
      %10027 = vmatprep.subr.bf16.mxu0 0
      %10028 = vmatpush2.bf16.msra.mxu0 %v9902
      %10029 = vmatprep.subr.bf16.mxu0 0
      %10030 = vmatpush2.bf16.msra.mxu0 %v9901
      %10031 = vmatprep.subr.bf16.mxu0 0
      %10032 = vmatpush2.bf16.msra.mxu0 %v9900
      %10033 = vmatprep.mubr.bf16.mxu0 %v9978
      %10034 = vmatmul.mubr.bf16.gmra.mxu0 %v9952
      %v10035 = vpop.f32.mrf.mxu0
      %v10036 = vadd.f32 0.0, %v10035
      %v10037 = vpop.f32.mrf.mxu0
      %v10038 = vpop.f32.mrf.mxu0
      %v10039 = vadd.f32 0.0, %v10038
      %v10040 = vpop.f32.mrf.mxu0
      %10041 = vmatprep.mubr.bf16.mxu0 %v9981
      %10042 = vmatmul.mubr.bf16.gmra.mxu0 %v9954
      %v10043 = vpop.f32.mrf.mxu0
      %v10044 = vadd.f32 0.0, %v10043
      %v10045 = vpop.f32.mrf.mxu0
      %v10046 = vpop.f32.mrf.mxu0
      %v10047 = vadd.f32 0.0, %v10046
      %v10048 = vpop.f32.mrf.mxu0
      %10049 = vmatprep.mubr.bf16.mxu0 %v9984
      %10050 = vmatmul.mubr.bf16.gmra.mxu0 %v9956
      %v10051 = vpop.f32.mrf.mxu0
      %v10052 = vadd.f32 0.0, %v10051
      %v10053 = vpop.f32.mrf.mxu0
      %v10054 = vpop.f32.mrf.mxu0
      %v10055 = vadd.f32 0.0, %v10054
      %v10056 = vpop.f32.mrf.mxu0
      %10057 = vmatprep.mubr.bf16.mxu0 %v9987
      %10058 = vmatmul.mubr.bf16.gmra.mxu0 %v9958
      %v10059 = vpop.f32.mrf.mxu0
      %v10060 = vadd.f32 0.0, %v10059
      %v10061 = vpop.f32.mrf.mxu0
      %v10062 = vpop.f32.mrf.mxu0
      %v10063 = vadd.f32 0.0, %v10062
      %v10064 = vpop.f32.mrf.mxu0
      %10065 = vmatprep.mubr.bf16.mxu0 %v9990
      %10066 = vmatmul.mubr.bf16.gmra.mxu0 %v9960
      %v10067 = vpop.f32.mrf.mxu0
      %v10068 = vadd.f32 0.0, %v10067
      %v10069 = vpop.f32.mrf.mxu0
      %v10070 = vpop.f32.mrf.mxu0
      %v10071 = vadd.f32 0.0, %v10070
      %v10072 = vpop.f32.mrf.mxu0
      %10073 = vmatprep.mubr.bf16.mxu0 %v9993
      %10074 = vmatmul.mubr.bf16.gmra.mxu0 %v9962
      %v10075 = vpop.f32.mrf.mxu0
      %v10076 = vadd.f32 0.0, %v10075
      %v10077 = vpop.f32.mrf.mxu0
      %v10078 = vpop.f32.mrf.mxu0
      %v10079 = vadd.f32 0.0, %v10078
      %v10080 = vpop.f32.mrf.mxu0
      %10081 = vmatprep.mubr.bf16.mxu0 %v9996
      %10082 = vmatmul.mubr.bf16.gmra.mxu0 %v9964
      %v10083 = vpop.f32.mrf.mxu0
      %v10084 = vadd.f32 0.0, %v10083
      %v10085 = vpop.f32.mrf.mxu0
      %v10086 = vpop.f32.mrf.mxu0
      %v10087 = vadd.f32 0.0, %v10086
      %v10088 = vpop.f32.mrf.mxu0
      %10089 = vmatprep.mubr.bf16.mxu0 %v9999
      %10090 = vmatmul.mubr.bf16.gmra.mxu0 %v9966
      %v10091 = vpop.f32.mrf.mxu0
      %v10092 = vadd.f32 0.0, %v10091
      %v10093 = vpop.f32.mrf.mxu0
      %v10094 = vpop.f32.mrf.mxu0
      %v10095 = vadd.f32 0.0, %v10094
      %v10096 = vpop.f32.mrf.mxu0
      %10097 = vdwg.mxu0
      %v10098 = vpack.c.bf16 %v10039, %v10036
      %v10099 = vpack.c.bf16 %v10047, %v10044
      %v10100 = vpack.c.bf16 %v10055, %v10052
      %v10101 = vpack.c.bf16 %v10063, %v10060
      %v10102 = vpack.c.bf16 %v10071, %v10068
      %v10103 = vpack.c.bf16 %v10079, %v10076
      %v10104 = vpack.c.bf16 %v10087, %v10084
      %v10105 = vpack.c.bf16 %v10095, %v10092
      %v10106 = vld [vmem:[%s18] sm:$0xf]
      %v10107 = vld [vmem:[%s18 + $0x4] sm:$0xf]
      %v10108 = vld [vmem:[%s18 + $0x8] sm:$0x1]
      %v10112 = vunpack.c.l.b16 %v10106
      %v10113 = vunpack.c.l.b16 %v10107
      %v10114 = vunpack.c.l.b16 %v10108
      %v10115 = vpack.c.b16 %v10113, %v10112
      %v10116 = vpack.c.b16 %v10114, %v10114
      %vm10118 = vcmask 146432
      %v10120 = vsel %vm10118, %v10098, 0
      %v10123 = vsel %vm10118, %v10099, 0
      %v10126 = vsel %vm10118, %v10100, 0
      %v10129 = vsel %vm10118, %v10101, 0
      %v10132 = vsel %vm10118, %v10102, 0
      %v10135 = vsel %vm10118, %v10103, 0
      %v10138 = vsel %vm10118, %v10104, 0
      %v10141 = vsel %vm10118, %v10105, 0
      %vm10143 = vcmask 1040384
      %v10145 = vsel %vm10143, %v10116, 0
      %10147 = vmatprep.subr.bf16.mxu0 0
      %10148 = vmatpush1.bf16.msra.mxu0 0
      %10149 = vmatprep.subr.bf16.mxu0 0
      %10150 = vmatpush1.bf16.msra.mxu0 0
      %10151 = vmatprep.subr.bf16.mxu0 0
      %10152 = vmatpush1.bf16.msra.mxu0 0
      %10153 = vmatprep.subr.bf16.mxu0 0
      %10154 = vmatpush1.bf16.msra.mxu0 0
      %10155 = vmatprep.subr.bf16.mxu0 0
      %10156 = vmatpush1.bf16.msra.mxu0 0
      %10157 = vmatprep.subr.bf16.mxu0 0
      %10158 = vmatpush1.bf16.msra.mxu0 0
      %10159 = vmatprep.subr.bf16.mxu0 0
      %10160 = vmatpush1.bf16.msra.mxu0 %v10145
      %10161 = vmatprep.subr.bf16.mxu0 0
      %10162 = vmatpush1.bf16.msra.mxu0 %v10115
      %10163 = vmatprep.subr.bf16.mxu0 0
      %10164 = vmatpush2.bf16.msra.mxu0 0
      %10165 = vmatprep.subr.bf16.mxu0 0
      %10166 = vmatpush2.bf16.msra.mxu0 0
      %10167 = vmatprep.subr.bf16.mxu0 0
      %10168 = vmatpush2.bf16.msra.mxu0 0
      %10169 = vmatprep.subr.bf16.mxu0 0
      %10170 = vmatpush2.bf16.msra.mxu0 0
      %10171 = vmatprep.subr.bf16.mxu0 0
      %10172 = vmatpush2.bf16.msra.mxu0 0
      %10173 = vmatprep.subr.bf16.mxu0 0
      %10174 = vmatpush2.bf16.msra.mxu0 0
      %10175 = vmatprep.subr.bf16.mxu0 0
      %10176 = vmatpush2.bf16.msra.mxu0 0
      %10177 = vmatprep.subr.bf16.mxu0 0
      %10178 = vmatpush2.bf16.msra.mxu0 0
      %10179 = vmatprep.mubr.bf16.mxu0 0
      %10180 = vmatmul.mubr.bf16.gmra.mxu0 %v10120
      %v10181 = vpop.f32.mrf.mxu0
      %v10182 = vadd.f32 0.0, %v10181
      %v10183 = vpop.f32.mrf.mxu0
      %v10184 = vpop.f32.mrf.mxu0
      %v10185 = vadd.f32 0.0, %v10184
      %v10186 = vpop.f32.mrf.mxu0
      %10187 = vmatprep.mubr.bf16.mxu0 0
      %10188 = vmatmul.mubr.bf16.gmra.mxu0 %v10123
      %v10189 = vpop.f32.mrf.mxu0
      %v10190 = vadd.f32 0.0, %v10189
      %v10191 = vpop.f32.mrf.mxu0
      %v10192 = vpop.f32.mrf.mxu0
      %v10193 = vadd.f32 0.0, %v10192
      %v10194 = vpop.f32.mrf.mxu0
      %10195 = vmatprep.mubr.bf16.mxu0 0
      %10196 = vmatmul.mubr.bf16.gmra.mxu0 %v10126
      %v10197 = vpop.f32.mrf.mxu0
      %v10198 = vadd.f32 0.0, %v10197
      %v10199 = vpop.f32.mrf.mxu0
      %v10200 = vpop.f32.mrf.mxu0
      %v10201 = vadd.f32 0.0, %v10200
      %v10202 = vpop.f32.mrf.mxu0
      %10203 = vmatprep.mubr.bf16.mxu0 0
      %10204 = vmatmul.mubr.bf16.gmra.mxu0 %v10129
      %v10205 = vpop.f32.mrf.mxu0
      %v10206 = vadd.f32 0.0, %v10205
      %v10207 = vpop.f32.mrf.mxu0
      %v10208 = vpop.f32.mrf.mxu0
      %v10209 = vadd.f32 0.0, %v10208
      %v10210 = vpop.f32.mrf.mxu0
      %10211 = vmatprep.mubr.bf16.mxu0 0
      %10212 = vmatmul.mubr.bf16.gmra.mxu0 %v10132
      %v10213 = vpop.f32.mrf.mxu0
      %v10214 = vadd.f32 0.0, %v10213
      %v10215 = vpop.f32.mrf.mxu0
      %v10216 = vpop.f32.mrf.mxu0
      %v10217 = vadd.f32 0.0, %v10216
      %v10218 = vpop.f32.mrf.mxu0
      %10219 = vmatprep.mubr.bf16.mxu0 0
      %10220 = vmatmul.mubr.bf16.gmra.mxu0 %v10135
      %v10221 = vpop.f32.mrf.mxu0
      %v10222 = vadd.f32 0.0, %v10221
      %v10223 = vpop.f32.mrf.mxu0
      %v10224 = vpop.f32.mrf.mxu0
      %v10225 = vadd.f32 0.0, %v10224
      %v10226 = vpop.f32.mrf.mxu0
      %10227 = vmatprep.mubr.bf16.mxu0 0
      %10228 = vmatmul.mubr.bf16.gmra.mxu0 %v10138
      %v10229 = vpop.f32.mrf.mxu0
      %v10230 = vadd.f32 0.0, %v10229
      %v10231 = vpop.f32.mrf.mxu0
      %v10232 = vpop.f32.mrf.mxu0
      %v10233 = vadd.f32 0.0, %v10232
      %v10234 = vpop.f32.mrf.mxu0
      %10235 = vmatprep.mubr.bf16.mxu0 0
      %10236 = vmatmul.mubr.bf16.gmra.mxu0 %v10141
      %v10237 = vpop.f32.mrf.mxu0
      %v10238 = vadd.f32 0.0, %v10237
      %v10239 = vpop.f32.mrf.mxu0
      %v10240 = vpop.f32.mrf.mxu0
      %v10241 = vadd.f32 0.0, %v10240
      %v10242 = vpop.f32.mrf.mxu0
      %10243 = vdwg.mxu0
      %s10244 = scalar_lea.vmem %s18, 12
      %v10245 = vld [vmem:[%s10244] sm:$0xf]
      %v10246 = vld [vmem:[%s10244 + $0x4] sm:$0xf]
      %v10247 = vld [vmem:[%s10244 + $0x8] sm:$0x1]
      %v10251 = vunpack.c.l.b16 %v10245
      %v10252 = vunpack.c.l.b16 %v10246
      %v10253 = vunpack.c.l.b16 %v10247
      %v10254 = vpack.c.b16 %v10252, %v10251
      %v10255 = vpack.c.b16 %v10253, %v10253
      %v10258 = vsel %vm10143, %v10255, 0
      %10260 = vmatprep.subr.bf16.mxu0 0
      %10261 = vmatpush1.bf16.msra.mxu0 0
      %10262 = vmatprep.subr.bf16.mxu0 0
      %10263 = vmatpush1.bf16.msra.mxu0 0
      %10264 = vmatprep.subr.bf16.mxu0 0
      %10265 = vmatpush1.bf16.msra.mxu0 0
      %10266 = vmatprep.subr.bf16.mxu0 0
      %10267 = vmatpush1.bf16.msra.mxu0 0
      %10268 = vmatprep.subr.bf16.mxu0 0
      %10269 = vmatpush1.bf16.msra.mxu0 0
      %10270 = vmatprep.subr.bf16.mxu0 0
      %10271 = vmatpush1.bf16.msra.mxu0 0
      %10272 = vmatprep.subr.bf16.mxu0 0
      %10273 = vmatpush1.bf16.msra.mxu0 %v10258
      %10274 = vmatprep.subr.bf16.mxu0 0
      %10275 = vmatpush1.bf16.msra.mxu0 %v10254
      %10276 = vmatprep.subr.bf16.mxu0 0
      %10277 = vmatpush2.bf16.msra.mxu0 0
      %10278 = vmatprep.subr.bf16.mxu0 0
      %10279 = vmatpush2.bf16.msra.mxu0 0
      %10280 = vmatprep.subr.bf16.mxu0 0
      %10281 = vmatpush2.bf16.msra.mxu0 0
      %10282 = vmatprep.subr.bf16.mxu0 0
      %10283 = vmatpush2.bf16.msra.mxu0 0
      %10284 = vmatprep.subr.bf16.mxu0 0
      %10285 = vmatpush2.bf16.msra.mxu0 0
      %10286 = vmatprep.subr.bf16.mxu0 0
      %10287 = vmatpush2.bf16.msra.mxu0 0
      %10288 = vmatprep.subr.bf16.mxu0 0
      %10289 = vmatpush2.bf16.msra.mxu0 0
      %10290 = vmatprep.subr.bf16.mxu0 0
      %10291 = vmatpush2.bf16.msra.mxu0 0
      %10292 = vmatprep.mubr.bf16.mxu0 0
      %10293 = vmatmul.mubr.bf16.gmra.mxu0 %v10120
      %v10294 = vpop.f32.mrf.mxu0
      %v10295 = vadd.f32 0.0, %v10294
      %v10296 = vpop.f32.mrf.mxu0
      %v10297 = vpop.f32.mrf.mxu0
      %v10298 = vadd.f32 0.0, %v10297
      %v10299 = vpop.f32.mrf.mxu0
      %10300 = vmatprep.mubr.bf16.mxu0 0
      %10301 = vmatmul.mubr.bf16.gmra.mxu0 %v10123
      %v10302 = vpop.f32.mrf.mxu0
      %v10303 = vadd.f32 0.0, %v10302
      %v10304 = vpop.f32.mrf.mxu0
      %v10305 = vpop.f32.mrf.mxu0
      %v10306 = vadd.f32 0.0, %v10305
      %v10307 = vpop.f32.mrf.mxu0
      %10308 = vmatprep.mubr.bf16.mxu0 0
      %10309 = vmatmul.mubr.bf16.gmra.mxu0 %v10126
      %v10310 = vpop.f32.mrf.mxu0
      %v10311 = vadd.f32 0.0, %v10310
      %v10312 = vpop.f32.mrf.mxu0
      %v10313 = vpop.f32.mrf.mxu0
      %v10314 = vadd.f32 0.0, %v10313
      %v10315 = vpop.f32.mrf.mxu0
      %10316 = vmatprep.mubr.bf16.mxu0 0
      %10317 = vmatmul.mubr.bf16.gmra.mxu0 %v10129
      %v10318 = vpop.f32.mrf.mxu0
      %v10319 = vadd.f32 0.0, %v10318
      %v10320 = vpop.f32.mrf.mxu0
      %v10321 = vpop.f32.mrf.mxu0
      %v10322 = vadd.f32 0.0, %v10321
      %v10323 = vpop.f32.mrf.mxu0
      %10324 = vmatprep.mubr.bf16.mxu0 0
      %10325 = vmatmul.mubr.bf16.gmra.mxu0 %v10132
      %v10326 = vpop.f32.mrf.mxu0
      %v10327 = vadd.f32 0.0, %v10326
      %v10328 = vpop.f32.mrf.mxu0
      %v10329 = vpop.f32.mrf.mxu0
      %v10330 = vadd.f32 0.0, %v10329
      %v10331 = vpop.f32.mrf.mxu0
      %10332 = vmatprep.mubr.bf16.mxu0 0
      %10333 = vmatmul.mubr.bf16.gmra.mxu0 %v10135
      %v10334 = vpop.f32.mrf.mxu0
      %v10335 = vadd.f32 0.0, %v10334
      %v10336 = vpop.f32.mrf.mxu0
      %v10337 = vpop.f32.mrf.mxu0
      %v10338 = vadd.f32 0.0, %v10337
      %v10339 = vpop.f32.mrf.mxu0
      %10340 = vmatprep.mubr.bf16.mxu0 0
      %10341 = vmatmul.mubr.bf16.gmra.mxu0 %v10138
      %v10342 = vpop.f32.mrf.mxu0
      %v10343 = vadd.f32 0.0, %v10342
      %v10344 = vpop.f32.mrf.mxu0
      %v10345 = vpop.f32.mrf.mxu0
      %v10346 = vadd.f32 0.0, %v10345
      %v10347 = vpop.f32.mrf.mxu0
      %10348 = vmatprep.mubr.bf16.mxu0 0
      %10349 = vmatmul.mubr.bf16.gmra.mxu0 %v10141
      %v10350 = vpop.f32.mrf.mxu0
      %v10351 = vadd.f32 0.0, %v10350
      %v10352 = vpop.f32.mrf.mxu0
      %v10353 = vpop.f32.mrf.mxu0
      %v10354 = vadd.f32 0.0, %v10353
      %v10355 = vpop.f32.mrf.mxu0
      %10356 = vdwg.mxu0
      %v10357 = vmax.f32 %v10182, %v10295
      %v10358 = vmax.f32 %v10185, %v10298
      %v10359 = vmax.f32 %v10190, %v10303
      %v10360 = vmax.f32 %v10193, %v10306
      %v10361 = vmax.f32 %v10198, %v10311
      %v10362 = vmax.f32 %v10201, %v10314
      %v10363 = vmax.f32 %v10206, %v10319
      %v10364 = vmax.f32 %v10209, %v10322
      %v10365 = vmax.f32 %v10214, %v10327
      %v10366 = vmax.f32 %v10217, %v10330
      %v10367 = vmax.f32 %v10222, %v10335
      %v10368 = vmax.f32 %v10225, %v10338
      %v10369 = vmax.f32 %v10230, %v10343
      %v10370 = vmax.f32 %v10233, %v10346
      %v10371 = vmax.f32 %v10238, %v10351
      %v10372 = vmax.f32 %v10241, %v10354
      %v10373 = vld [vmem:[%s17] sm:$0xff]
      %v10374 = vld [vmem:[%s17 + $0x8] sm:$0xff]
      %v10375 = vld [vmem:[%s17 + $0x10] sm:$0xff]
      %v10376 = vld [vmem:[%s17 + $0x18] sm:$0xff]
      %v10377 = vld [vmem:[%s17 + $0x20] sm:$0xff]
      %v10378 = vld [vmem:[%s17 + $0x28] sm:$0xff]
      %v10379 = vld [vmem:[%s17 + $0x30] sm:$0xff]
      %v10380 = vld [vmem:[%s17 + $0x38] sm:$0xff]
      %v10381 = vld [vmem:[%s17 + $0x40] sm:$0xff]
      %v10382 = vld [vmem:[%s17 + $0x48] sm:$0xff]
      %v10383 = vld [vmem:[%s17 + $0x50] sm:$0xff]
      %v10384 = vld [vmem:[%s17 + $0x58] sm:$0xff]
      %v10385 = vld [vmem:[%s17 + $0x60] sm:$0xff]
      %v10386 = vld [vmem:[%s17 + $0x68] sm:$0xff]
      %v10387 = vld [vmem:[%s17 + $0x70] sm:$0xff]
      %v10388 = vld [vmem:[%s17 + $0x78] sm:$0xff]
      %10390 = vset.pattern.permute.xlu0 0
      %10391 = vperm.xlu0 %10390, %v10373
      %v10392 = vpop.permute.xlu0 %10391
      %10395 = vset.pattern.permute.xlu0 0
      %10396 = vperm.xlu0 %10395, %v10374
      %v10397 = vpop.permute.xlu0 %10396
      %10400 = vset.pattern.permute.xlu0 0
      %10401 = vperm.xlu0 %10400, %v10375
      %v10402 = vpop.permute.xlu0 %10401
      %10405 = vset.pattern.permute.xlu0 0
      %10406 = vperm.xlu0 %10405, %v10376
      %v10407 = vpop.permute.xlu0 %10406
      %10410 = vset.pattern.permute.xlu0 0
      %10411 = vperm.xlu0 %10410, %v10377
      %v10412 = vpop.permute.xlu0 %10411
      %10415 = vset.pattern.permute.xlu0 0
      %10416 = vperm.xlu0 %10415, %v10378
      %v10417 = vpop.permute.xlu0 %10416
      %10420 = vset.pattern.permute.xlu0 0
      %10421 = vperm.xlu0 %10420, %v10379
      %v10422 = vpop.permute.xlu0 %10421
      %10425 = vset.pattern.permute.xlu0 0
      %10426 = vperm.xlu0 %10425, %v10380
      %v10427 = vpop.permute.xlu0 %10426
      %10430 = vset.pattern.permute.xlu0 0
      %10431 = vperm.xlu0 %10430, %v10381
      %v10432 = vpop.permute.xlu0 %10431
      %10435 = vset.pattern.permute.xlu0 0
      %10436 = vperm.xlu0 %10435, %v10382
      %v10437 = vpop.permute.xlu0 %10436
      %10440 = vset.pattern.permute.xlu0 0
      %10441 = vperm.xlu0 %10440, %v10383
      %v10442 = vpop.permute.xlu0 %10441
      %10445 = vset.pattern.permute.xlu0 0
      %10446 = vperm.xlu0 %10445, %v10384
      %v10447 = vpop.permute.xlu0 %10446
      %10450 = vset.pattern.permute.xlu0 0
      %10451 = vperm.xlu0 %10450, %v10385
      %v10452 = vpop.permute.xlu0 %10451
      %10455 = vset.pattern.permute.xlu0 0
      %10456 = vperm.xlu0 %10455, %v10386
      %v10457 = vpop.permute.xlu0 %10456
      %10460 = vset.pattern.permute.xlu0 0
      %10461 = vperm.xlu0 %10460, %v10387
      %v10462 = vpop.permute.xlu0 %10461
      %10465 = vset.pattern.permute.xlu0 0
      %10466 = vperm.xlu0 %10465, %v10388
      %v10467 = vpop.permute.xlu0 %10466
      %v10469 = vadd.f32 %v10357, %v10392
      %v10470 = vadd.f32 %v10358, %v10397
      %v10471 = vadd.f32 %v10359, %v10402
      %v10472 = vadd.f32 %v10360, %v10407
      %v10473 = vadd.f32 %v10361, %v10412
      %v10474 = vadd.f32 %v10362, %v10417
      %v10475 = vadd.f32 %v10363, %v10422
      %v10476 = vadd.f32 %v10364, %v10427
      %v10477 = vadd.f32 %v10365, %v10432
      %v10478 = vadd.f32 %v10366, %v10437
      %v10479 = vadd.f32 %v10367, %v10442
      %v10480 = vadd.f32 %v10368, %v10447
      %v10481 = vadd.f32 %v10369, %v10452
      %v10482 = vadd.f32 %v10370, %v10457
      %v10483 = vadd.f32 %v10371, %v10462
      %v10484 = vadd.f32 %v10372, %v10467
      %v10485 = vld [vmem:[%s21] sm:$0xf]
      %v10486 = vld [vmem:[%s21 + $0x4] sm:$0xf]
      %v10487 = vld [vmem:[%s21 + $0x8] sm:$0xf]
      %v10488 = vld [vmem:[%s21 + $0xc] sm:$0xf]
      %v10489 = vld [vmem:[%s19] sm:$0xff]
      %v10490 = vld [vmem:[%s19 + $0x8] sm:$0xff]
      %v10491 = vld [vmem:[%s19 + $0x10] sm:$0xff]
      %v10492 = vld [vmem:[%s19 + $0x18] sm:$0xff]
      %v10493 = vld [vmem:[%s19 + $0x20] sm:$0xff]
      %v10494 = vld [vmem:[%s19 + $0x28] sm:$0xff]
      %v10495 = vld [vmem:[%s19 + $0x30] sm:$0xff]
      %v10496 = vld [vmem:[%s19 + $0x38] sm:$0xff]
      %v10497 = vld [vmem:[%s19 + $0x40] sm:$0xff]
      %v10498 = vld [vmem:[%s19 + $0x48] sm:$0xff]
      %v10499 = vld [vmem:[%s19 + $0x50] sm:$0xff]
      %v10500 = vld [vmem:[%s19 + $0x58] sm:$0xff]
      %v10501 = vld [vmem:[%s19 + $0x60] sm:$0xff]
      %v10502 = vld [vmem:[%s19 + $0x68] sm:$0xff]
      %v10503 = vld [vmem:[%s19 + $0x70] sm:$0xff]
      %v10504 = vld [vmem:[%s19 + $0x78] sm:$0xff]
      %v10505 = vmul.f32 %v10469, %v10489
      %v10506 = vmul.f32 %v10470, %v10490
      %v10507 = vmul.f32 %v10471, %v10491
      %v10508 = vmul.f32 %v10472, %v10492
      %v10509 = vmul.f32 %v10473, %v10493
      %v10510 = vmul.f32 %v10474, %v10494
      %v10511 = vmul.f32 %v10475, %v10495
      %v10512 = vmul.f32 %v10476, %v10496
      %v10513 = vmul.f32 %v10477, %v10497
      %v10514 = vmul.f32 %v10478, %v10498
      %v10515 = vmul.f32 %v10479, %v10499
      %v10516 = vmul.f32 %v10480, %v10500
      %v10517 = vmul.f32 %v10481, %v10501
      %v10518 = vmul.f32 %v10482, %v10502
      %v10519 = vmul.f32 %v10483, %v10503
      %v10520 = vmul.f32 %v10484, %v10504
      %v10521 = vpack.c.bf16 %v10506, %v10505
      %v10522 = vpack.c.bf16 %v10508, %v10507
      %v10523 = vpack.c.bf16 %v10510, %v10509
      %v10524 = vpack.c.bf16 %v10512, %v10511
      %v10525 = vpack.c.bf16 %v10514, %v10513
      %v10526 = vpack.c.bf16 %v10516, %v10515
      %v10527 = vpack.c.bf16 %v10518, %v10517
      %v10528 = vpack.c.bf16 %v10520, %v10519
      %v10533 = vunpack.c.l.b16 %v10485
      %v10534 = vunpack.c.l.b16 %v10486
      %v10535 = vunpack.c.l.b16 %v10487
      %v10536 = vunpack.c.l.b16 %v10488
      %v10537 = vpack.c.b16 %v10534, %v10533
      %v10538 = vpack.c.b16 %v10536, %v10535
      %10541 = vmatprep.subr.bf16.mxu0 0
      %10542 = vmatpush1.bf16.msra.mxu0 %v10528
      %10543 = vmatprep.subr.bf16.mxu0 0
      %10544 = vmatpush1.bf16.msra.mxu0 %v10527
      %10545 = vmatprep.subr.bf16.mxu0 0
      %10546 = vmatpush1.bf16.msra.mxu0 %v10526
      %10547 = vmatprep.subr.bf16.mxu0 0
      %10548 = vmatpush1.bf16.msra.mxu0 %v10525
      %10549 = vmatprep.subr.bf16.mxu0 0
      %10550 = vmatpush1.bf16.msra.mxu0 %v10524
      %10551 = vmatprep.subr.bf16.mxu0 0
      %10552 = vmatpush1.bf16.msra.mxu0 %v10523
      %10553 = vmatprep.subr.bf16.mxu0 0
      %10554 = vmatpush1.bf16.msra.mxu0 %v10522
      %10555 = vmatprep.subr.bf16.mxu0 0
      %10556 = vmatpush1.bf16.msra.mxu0 %v10521
      %10557 = vmatprep.subr.bf16.mxu0 0
      %10558 = vmatpush2.bf16.msra.mxu0 0
      %10559 = vmatprep.subr.bf16.mxu0 0
      %10560 = vmatpush2.bf16.msra.mxu0 0
      %10561 = vmatprep.subr.bf16.mxu0 0
      %10562 = vmatpush2.bf16.msra.mxu0 0
      %10563 = vmatprep.subr.bf16.mxu0 0
      %10564 = vmatpush2.bf16.msra.mxu0 0
      %10565 = vmatprep.subr.bf16.mxu0 0
      %10566 = vmatpush2.bf16.msra.mxu0 0
      %10567 = vmatprep.subr.bf16.mxu0 0
      %10568 = vmatpush2.bf16.msra.mxu0 0
      %10569 = vmatprep.subr.bf16.mxu0 0
      %10570 = vmatpush2.bf16.msra.mxu0 0
      %10571 = vmatprep.subr.bf16.mxu0 0
      %10572 = vmatpush2.bf16.msra.mxu0 0
      %10573 = vmatprep.mubr.bf16.mxu0 0
      %10574 = vmatmul.mubr.bf16.gmra.mxu0 %v10537
      %v10575 = vpop.f32.mrf.mxu0
      %v10576 = vadd.f32 0.0, %v10575
      %v10577 = vpop.f32.mrf.mxu0
      %v10578 = vpop.f32.mrf.mxu0
      %v10579 = vadd.f32 0.0, %v10578
      %v10580 = vpop.f32.mrf.mxu0
      %10581 = vmatprep.mubr.bf16.mxu0 0
      %10582 = vmatmul.mubr.bf16.gmra.mxu0 %v10538
      %v10583 = vpop.f32.mrf.mxu0
      %v10584 = vadd.f32 0.0, %v10583
      %v10585 = vpop.f32.mrf.mxu0
      %v10586 = vpop.f32.mrf.mxu0
      %v10587 = vadd.f32 0.0, %v10586
      %v10588 = vpop.f32.mrf.mxu0
      %10589 = vdwg.mxu0
      %vm10590 = vcmask 80896
      %v10591 = vsel %vm10590, %v10576, 0.0
      %10592 = vadd.xlane.f32.xlu0 %v10591
      %v10593 = vpop.xlane.xlu0 %10592
      %v10594 = vsel %vm10590, %v10579, 0.0
      %10595 = vadd.xlane.f32.xlu0 %v10594
      %v10596 = vpop.xlane.xlu0 %10595
      %v10597 = vsel %vm10590, %v10584, 0.0
      %10598 = vadd.xlane.f32.xlu0 %v10597
      %v10599 = vpop.xlane.xlu0 %10598
      %v10600 = vsel %vm10590, %v10587, 0.0
      %10601 = vadd.xlane.f32.xlu0 %v10600
      %v10602 = vpop.xlane.xlu0 %10601
      %v10603 = vld [vmem:[#allocation2] sm:$0x1]
      %v10605 = vlaneseq
      %v10606 = vshrl.u32 %v10605, 7
      %v10607 = vsub.s32 0, %v10606
      %v10608 = vrot.slane %v10603, %v10607
      %v10610 = vadd.f32 %v10593, %v10608
      %v10611 = vadd.f32 %v10596, %v10608
      %v10612 = vadd.f32 %v10599, %v10608
      %v10613 = vadd.f32 %v10602, %v10608
      %v10614 = vld [vmem:[%s20] sm:$0xff]
      %v10615 = vld [vmem:[%s20 + $0x8] sm:$0xff]
      %v10616 = vld [vmem:[%s20 + $0x10] sm:$0xff]
      %v10617 = vld [vmem:[%s20 + $0x18] sm:$0xff]
      %v10618 = vld [vmem:[%s20 + $0x20] sm:$0xff]
      %v10619 = vld [vmem:[%s20 + $0x28] sm:$0xff]
      %v10620 = vld [vmem:[%s20 + $0x30] sm:$0xff]
      %v10621 = vld [vmem:[%s20 + $0x38] sm:$0xff]
      %v10622 = vld [vmem:[%s20 + $0x40] sm:$0xff]
      %v10623 = vld [vmem:[%s20 + $0x48] sm:$0xff]
      %v10624 = vld [vmem:[%s20 + $0x50] sm:$0xff]
      %v10625 = vld [vmem:[%s20 + $0x58] sm:$0xff]
      %v10626 = vld [vmem:[%s20 + $0x60] sm:$0xff]
      %v10627 = vld [vmem:[%s20 + $0x68] sm:$0xff]
      %v10628 = vld [vmem:[%s20 + $0x70] sm:$0xff]
      %v10629 = vld [vmem:[%s20 + $0x78] sm:$0xff]
      %v10630 = vmul.f32 %v10469, %v10614
      %v10631 = vmul.f32 %v10470, %v10615
      %v10632 = vmul.f32 %v10471, %v10616
      %v10633 = vmul.f32 %v10472, %v10617
      %v10634 = vmul.f32 %v10473, %v10618
      %v10635 = vmul.f32 %v10474, %v10619
      %v10636 = vmul.f32 %v10475, %v10620
      %v10637 = vmul.f32 %v10476, %v10621
      %v10638 = vmul.f32 %v10477, %v10622
      %v10639 = vmul.f32 %v10478, %v10623
      %v10640 = vmul.f32 %v10479, %v10624
      %v10641 = vmul.f32 %v10480, %v10625
      %v10642 = vmul.f32 %v10481, %v10626
      %v10643 = vmul.f32 %v10482, %v10627
      %v10644 = vmul.f32 %v10483, %v10628
      %v10645 = vmul.f32 %v10484, %v10629
      %v10646 = vpack.c.bf16 %v10631, %v10630
      %v10647 = vpack.c.bf16 %v10633, %v10632
      %v10648 = vpack.c.bf16 %v10635, %v10634
      %v10649 = vpack.c.bf16 %v10637, %v10636
      %v10650 = vpack.c.bf16 %v10639, %v10638
      %v10651 = vpack.c.bf16 %v10641, %v10640
      %v10652 = vpack.c.bf16 %v10643, %v10642
      %v10653 = vpack.c.bf16 %v10645, %v10644
      %10654 = vmatprep.subr.bf16.mxu0 0
      %10655 = vmatpush1.bf16.msra.mxu0 %v10653
      %10656 = vmatprep.subr.bf16.mxu0 0
      %10657 = vmatpush1.bf16.msra.mxu0 %v10652
      %10658 = vmatprep.subr.bf16.mxu0 0
      %10659 = vmatpush1.bf16.msra.mxu0 %v10651
      %10660 = vmatprep.subr.bf16.mxu0 0
      %10661 = vmatpush1.bf16.msra.mxu0 %v10650
      %10662 = vmatprep.subr.bf16.mxu0 0
      %10663 = vmatpush1.bf16.msra.mxu0 %v10649
      %10664 = vmatprep.subr.bf16.mxu0 0
      %10665 = vmatpush1.bf16.msra.mxu0 %v10648
      %10666 = vmatprep.subr.bf16.mxu0 0
      %10667 = vmatpush1.bf16.msra.mxu0 %v10647
      %10668 = vmatprep.subr.bf16.mxu0 0
      %10669 = vmatpush1.bf16.msra.mxu0 %v10646
      %10670 = vmatprep.subr.bf16.mxu0 0
      %10671 = vmatpush2.bf16.msra.mxu0 0
      %10672 = vmatprep.subr.bf16.mxu0 0
      %10673 = vmatpush2.bf16.msra.mxu0 0
      %10674 = vmatprep.subr.bf16.mxu0 0
      %10675 = vmatpush2.bf16.msra.mxu0 0
      %10676 = vmatprep.subr.bf16.mxu0 0
      %10677 = vmatpush2.bf16.msra.mxu0 0
      %10678 = vmatprep.subr.bf16.mxu0 0
      %10679 = vmatpush2.bf16.msra.mxu0 0
      %10680 = vmatprep.subr.bf16.mxu0 0
      %10681 = vmatpush2.bf16.msra.mxu0 0
      %10682 = vmatprep.subr.bf16.mxu0 0
      %10683 = vmatpush2.bf16.msra.mxu0 0
      %10684 = vmatprep.subr.bf16.mxu0 0
      %10685 = vmatpush2.bf16.msra.mxu0 0
      %10686 = vmatprep.mubr.bf16.mxu0 0
      %10687 = vmatmul.mubr.bf16.gmra.mxu0 %v10537
      %v10688 = vpop.f32.mrf.mxu0
      %v10689 = vadd.f32 0.0, %v10688
      %v10690 = vpop.f32.mrf.mxu0
      %v10691 = vpop.f32.mrf.mxu0
      %v10692 = vadd.f32 0.0, %v10691
      %v10693 = vpop.f32.mrf.mxu0
      %10694 = vmatprep.mubr.bf16.mxu0 0
      %10695 = vmatmul.mubr.bf16.gmra.mxu0 %v10538
      %v10696 = vpop.f32.mrf.mxu0
      %v10697 = vadd.f32 0.0, %v10696
      %v10698 = vpop.f32.mrf.mxu0
      %v10699 = vpop.f32.mrf.mxu0
      %v10700 = vadd.f32 0.0, %v10699
      %v10701 = vpop.f32.mrf.mxu0
      %10702 = vdwg.mxu0
      %v10703 = vsel %vm10590, %v10689, 0.0
      %10704 = vadd.xlane.f32.xlu0 %v10703
      %v10705 = vpop.xlane.xlu0 %10704
      %v10706 = vsel %vm10590, %v10692, 0.0
      %10707 = vadd.xlane.f32.xlu0 %v10706
      %v10708 = vpop.xlane.xlu0 %10707
      %v10709 = vsel %vm10590, %v10697, 0.0
      %10710 = vadd.xlane.f32.xlu0 %v10709
      %v10711 = vpop.xlane.xlu0 %10710
      %v10712 = vsel %vm10590, %v10700, 0.0
      %10713 = vadd.xlane.f32.xlu0 %v10712
      %v10714 = vpop.xlane.xlu0 %10713
      %v10715 = vld [vmem:[#allocation3] sm:$0x1]
      %v10717 = vlaneseq
      %v10718 = vshrl.u32 %v10717, 7
      %v10719 = vsub.s32 0, %v10718
      %v10720 = vrot.slane %v10715, %v10719
      %v10722 = vadd.f32 %v10705, %v10720
      %v10723 = vadd.f32 %v10708, %v10720
      %v10724 = vadd.f32 %v10711, %v10720
      %v10725 = vadd.f32 %v10714, %v10720
      %v10726 = vmul.f32 %v10610, %v10722
      %v10727 = vmul.f32 %v10611, %v10723
      %v10728 = vmul.f32 %v10612, %v10724
      %v10729 = vmul.f32 %v10613, %v10725
      %v10730 = vxor.u32 %v10726, 2147483648
      %v10731 = vxor.u32 %v10727, 2147483648
      %v10732 = vxor.u32 %v10728, 2147483648
      %v10733 = vxor.u32 %v10729, 2147483648
      %v10734 = vmul.f32 %v10730, 1.442695
      %v10735 = vpow.pop %v10734
      %v10736 = vmul.f32 %v10731, 1.442695
      %v10737 = vpow.pop %v10736
      %v10738 = vmul.f32 %v10732, 1.442695
      %v10739 = vpow.pop %v10738
      %v10740 = vmul.f32 %v10733, 1.442695
      %v10741 = vpow.pop %v10740
      %v10742 = vadd.f32 %v10735, 1.0
      %v10743 = vadd.f32 %v10737, 1.0
      %v10744 = vadd.f32 %v10739, 1.0
      %v10745 = vadd.f32 %v10741, 1.0
      %v10746 = vrcp.pop %v10742
      %v10747 = vmul.f32 1.0, %v10746
      %v10748 = vrcp.pop %v10743
      %v10749 = vmul.f32 1.0, %v10748
      %v10750 = vrcp.pop %v10744
      %v10751 = vmul.f32 1.0, %v10750
      %v10752 = vrcp.pop %v10745
      %v10753 = vmul.f32 1.0, %v10752
      %vm10754 = vcmask 7168
      %10755 = vst.msk [vmem:[%s790] sm:$0xff] %vm10754, %v10747
      %10756 = vst.msk [vmem:[%s790 + $0x8] sm:$0xff] %vm10754, %v10749
      %10757 = vst.msk [vmem:[%s790 + $0x10] sm:$0xff] %vm10754, %v10751
      %10758 = vst.msk [vmem:[%s790 + $0x18] sm:$0xff] %vm10754, %v10753
      %s10759 = smul.u32 4, %s39
      %p10760 = scmp.lt.s32.totalorder %s10759, 7
      %s10761 = scalar_select %p10760, %s10759, 7
      %s10762 = smul.addr %s10761, 8
      %s10763 = scalar_lea.vmem %s24, %s10762
      // Predicated region
      $region117: #{net_forward.1} parent=115 // pred_check
        %p10764 = pneg %p576
      $region118: #{net_forward.1} parent=115 // pred_check_branch
        %10766 = sbr.rel (%p10764) target = $region120
      $region119: #{net_forward.1} parent=115 // pred_region
        %s10767 = smul.u32 4, %s39
      $region120: #{net_forward.1} parent=115 // pred_fallthru
        _
    $region116: #{net_forward.1} parent=5 // pred_fallthru
      _
    %p10768 = scmp.le.s32.totalorder 2, %s34
    // Predicated region
    $region121: #{net_forward.1} parent=5 // pred_check
      %p10769 = pneg %p10768
    $region122: #{net_forward.1} parent=5 // pred_check_branch
      %10771 = sbr.rel (%p10769) target = $region124
    $region123: #{net_forward.1} parent=5 // pred_region
      %s10772 = ssub.s32 %s34, 2
      // Predicated region
      $region125: #{net_forward.1} parent=123 // pred_check
        %p10773 = pneg %p582
      $region126: #{net_forward.1} parent=123 // pred_check_branch
        %10775 = sbr.rel (%p10773) target = $region128
      $region127: #{net_forward.1} parent=123 // pred_region
        %s10776 = smul.u32 4, %s40
        %p10777 = scmp.lt.s32.totalorder %s10776, 7
        %s10778 = scalar_select %p10777, %s10776, 7
        %s10779 = smul.addr %s10778, 8
        %s10780 = scalar_lea.vmem %s24, %s10779
      $region128: #{net_forward.1} parent=123 // pred_fallthru
        _
    $region124: #{net_forward.1} parent=5 // pred_fallthru
      _
  $region6: #{net_forward.1} parent=0 // loop_footer
    %s38 = sadd.s32 1, %s34
  $region7: #{net_forward.1} parent=0 // loop_footer_branch
    %33 = sbr.rel target = $region3
  $region8: #{net_forward.1} parent=0 // loop_exit
    _

</llo_original>
